<compile_context>
chip_gen: v7x
topology: tpu7x:2x2x1
jax: 0.10.0
libtpu: 0.0.40
codegen_flags: <defaults>
</compile_context>

<pallas_src>
import jax
import jax.numpy as jnp
from jax.experimental import pallas as pl
from jax.experimental.pallas import tpu as pltpu

LANES = 128
VMEM_LIMIT_BYTES = 32 * 1024 * 1024   # actual per-step usage is ~2-6 MiB

# LeNet geometry (32x32x3 input).
KSIZE = 5
C0, C1, C2, C3 = 3, 6, 16, 120        # channels: input, conv1, conv2, conv3
H0 = 32                               # input H/W
H1 = 28                               # conv1 output H/W (pre-pool)
P1 = 14                               # pool1 output H/W
H2 = 10                               # conv2 output H/W (pre-pool)
P2 = 5                                # pool2 output H/W
FC1_OUT, FC2_OUT = 84, 10


def _round_up(x, m):
    return -(-x // m) * m


def _pick_batch_tile(bp):
    """Largest batch tile (multiple of 16) dividing bp, preferring >=2 grid
    steps so v7x's two TensorCores both get work."""
    for tb in (64, 48, 32, 16):
        if bp % tb == 0 and bp // tb >= 2:
            return tb
    for tb in (64, 48, 32, 16):
        if bp % tb == 0:
            return tb
    return 16


# ----------------------------------------------------------------------------
# The fused kernel
# ----------------------------------------------------------------------------
def _lenet_kernel(x_ref, a1_ref, a2_ref, a3_ref, w4_ref, w5_ref,
                  b1_ref, b2_ref, b3_ref, b4_ref, b5_ref, o_ref):
    """Whole LeNet forward for one batch tile.

    Layouts (tb = batch tile, leading dim = image row, lanes = width*chan):
      x_ref : [32, tb, 96]   bf16   lane = w*3 + c
      y1    : [14, tb, 84]   bf16   lane = q*6 + c   (pooled conv1)
      y2    : [ 5, tb, 80]   bf16   lane = q*16 + c  (pooled conv2)
      o_ref : [tb, 128]      f32    logits in lanes 0..9
    """
    tb = o_ref.shape[0]

    def conv_pool(act, a_ref, rows_out, k_in, n_out, bias):
        """relu(maxpool2x2(conv(act) + bias)) via banded-weight matmuls.

        a_ref[dj*5 + ki] is a [k_in, n_out] band matrix so that
        (act_row[i+ki] @ a_ref[dj*5+ki])[q*c_out+co] is the (ki)-slice of the
        conv at output column 2q+dj; summing over ki and maxing over dj / over
        adjacent output rows gives the pooled pre-activation.
        """
        def shifted_dot(base):
            acc = None
            for ki in range(KSIZE):
                lhs = act[ki:ki + rows_out].reshape(rows_out * tb, k_in)
                d = jnp.dot(lhs, a_ref[base + ki],
                            preferred_element_type=jnp.float32)
                acc = d if acc is None else acc + d
            # row pooling: max over adjacent conv output rows (tile-aligned
            # reshape -- tb is a multiple of 16, so this is a free re-index).
            z = acc.reshape(rows_out // 2, 2, tb, n_out)
            return jnp.maximum(z[:, 0], z[:, 1])

        z = jnp.maximum(shifted_dot(0), shifted_dot(KSIZE))   # column pooling
        z = jnp.maximum(z + bias, 0.0)                        # f32 bias + ReLU
        return z.astype(jnp.bfloat16)

    x = x_ref[...]                                            # [32, tb, 96] bf16
    y1 = conv_pool(x, a1_ref, H1, H0 * C0, P1 * C1, b1_ref[...])   # [14, tb, 84]
    y2 = conv_pool(y1, a2_ref, H2, P1 * C1, P2 * C2, b2_ref[...])  # [ 5, tb, 80]

    # conv3: 5x5 'valid' conv on a 5x5 map == dense 400->120 layer, expressed
    # as 5 row-matmuls (no flatten / relayout needed).
    h = None
    for ki in range(KSIZE):
        d = jnp.dot(y2[ki], a3_ref[ki], preferred_element_type=jnp.float32)
        h = d if h is None else h + d
    h = jnp.maximum(h + b3_ref[...], 0.0)                     # relu(conv3) [tb,128]

    h = jnp.dot(h.astype(jnp.bfloat16), w4_ref[...],
                preferred_element_type=jnp.float32)
    h = jnp.maximum(h + b4_ref[...], 0.0)                     # relu(fc1)
    h = jnp.dot(h.astype(jnp.bfloat16), w5_ref[...],
                preferred_element_type=jnp.float32)
    o_ref[...] = h + b5_ref[...]                              # fc2 logits (f32)


# ----------------------------------------------------------------------------
# Forward pass
# ----------------------------------------------------------------------------
def lenet_forward(prep, x):
    """x: [B, 3, 32, 32] f32 (NCHW, as in the PyTorch module) -> [B, 10] f32."""
    B = x.shape[0]
    bp = _round_up(max(B, 1), 16)
    tb = _pick_batch_tile(bp)
    grid = (bp // tb,)

    # Only XLA glue: [B,3,32,32] -> [32, Bp, 96] bf16 with lane index = w*3 + c
    # (image rows in the leading dim, batch in sublanes, width*chan in lanes).
    xt = jnp.transpose(x, (2, 0, 3, 1)).reshape(H0, B, H0 * C0)
    if bp != B:
        xt = jnp.pad(xt, ((0, 0), (0, bp - B), (0, 0)))
    xt = xt.astype(jnp.bfloat16)

    (a1, b1), (a2, b2), (a3, b3) = prep["conv1"], prep["conv2"], prep["conv3"]
    (w4, b4), (w5, b5) = prep["fc1"], prep["fc2"]

    flops_tile = 2 * tb * (
        H1 * (H0 * C0) * (P1 * C1) * 2 * KSIZE        # conv1 (even + odd banks)
        + H2 * (P1 * C1) * (P2 * C2) * 2 * KSIZE      # conv2 (even + odd banks)
        + (P2 * C2) * LANES * KSIZE                   # conv3
        + LANES * LANES * 2)                          # fc1 + fc2
    bytes_accessed = (xt.size * 2
                      + (a1.size + a2.size + a3.size + w4.size + w5.size) * 2
                      + (b1.size + b2.size + b3.size + b4.size + b5.size) * 4
                      + bp * LANES * 4)

    out = pl.pallas_call(
        _lenet_kernel,
        out_shape=jax.ShapeDtypeStruct((bp, LANES), jnp.float32),
        grid=grid,
        in_specs=[
            pl.BlockSpec((H0, tb, H0 * C0), lambda i: (0, i, 0)),   # input tile
            pl.BlockSpec(a1.shape, lambda i: (0, 0, 0)),            # conv1 bands
            pl.BlockSpec(a2.shape, lambda i: (0, 0, 0)),            # conv2 bands
            pl.BlockSpec(a3.shape, lambda i: (0, 0, 0)),            # conv3
            pl.BlockSpec(w4.shape, lambda i: (0, 0)),               # fc1
            pl.BlockSpec(w5.shape, lambda i: (0, 0)),               # fc2
            pl.BlockSpec(b1.shape, lambda i: (0, 0)),
            pl.BlockSpec(b2.shape, lambda i: (0, 0)),
            pl.BlockSpec(b3.shape, lambda i: (0, 0)),
            pl.BlockSpec(b4.shape, lambda i: (0, 0)),
            pl.BlockSpec(b5.shape, lambda i: (0, 0)),
        ],
        out_specs=pl.BlockSpec((tb, LANES), lambda i: (i, 0)),
        compiler_params=pltpu.CompilerParams(
            dimension_semantics=("parallel",),
            vmem_limit_bytes=VMEM_LIMIT_BYTES),
        cost_estimate=pl.CostEstimate(flops=flops_tile * (bp // tb),
                                      transcendentals=0,
                                      bytes_accessed=bytes_accessed),
    )(xt, a1, a2, a3, w4, w5, b1, b2, b3, b4, b5)
    return out[:B, :FC2_OUT]


# ----------------------------------------------------------------------------
# Parameter init (PyTorch layout) + one-time repack into kernel layout
# ----------------------------------------------------------------------------
def _init_conv(key, cout, cin, k):
    kw, kb = jax.random.split(key)
    bound = 1.0 / (cin * k * k) ** 0.5
    w = jax.random.uniform(kw, (cout, cin, k, k), jnp.float32, -bound, bound)
    b = jax.random.uniform(kb, (cout,), jnp.float32, -bound, bound)
    return w, b


def _init_fc(key, cout, cin):
    kw, kb = jax.random.split(key)
    bound = 1.0 / cin ** 0.5
    w = jax.random.uniform(kw, (cout, cin), jnp.float32, -bound, bound)
    b = jax.random.uniform(kb, (cout,), jnp.float32, -bound, bound)
    return w, b


def init_lenet_params(key):
    k1, k2, k3, k4, k5 = jax.random.split(key, 5)
    return {
        "conv1": _init_conv(k1, C1, C0, KSIZE),
        "conv2": _init_conv(k2, C2, C1, KSIZE),
        "conv3": _init_conv(k3, C3, C2, KSIZE),
        "fc1": _init_fc(k4, FC1_OUT, C3),
        "fc2": _init_fc(k5, FC2_OUT, FC1_OUT),
    }


def _conv_band_matrices(w, in_cols, out_cols):
    """w: [c_out, c_in, 5, 5] PyTorch conv weight.

    Returns [10, in_cols*c_in, out_cols*c_out] bf16 band matrices A such that
      (act_row @ A[dj*5 + ki])[q*c_out + co]
          = sum_{kj,c} act_row[(2q + dj + kj)*c_in + c] * w[co, c, ki, kj]
    i.e. one horizontal (ki) slice of the conv, with the stride-2 output-column
    selection of the following 2x2 max-pool (dj = window column parity) folded
    into the weight layout.
    """
    c_out, c_in = int(w.shape[0]), int(w.shape[1])
    wc = jnp.arange(in_cols)[:, None, None, None]      # input column
    ci = jnp.arange(c_in)[None, :, None, None]         # input channel
    q = jnp.arange(out_cols)[None, None, :, None]      # pooled output column
    co = jnp.arange(c_out)[None, None, None, :]        # output channel
    mats = []
    for dj in range(2):
        kj = wc - 2 * q - dj
        valid = (kj >= 0) & (kj < KSIZE)
        kj_c = jnp.clip(kj, 0, KSIZE - 1)
        for ki in range(KSIZE):
            vals = w[co, ci, ki, kj_c]                  # [in_cols,c_in,out_cols,c_out]
            vals = jnp.where(valid, vals, 0.0)
            mats.append(vals.reshape(in_cols * c_in, out_cols * c_out))
    return jnp.stack(mats, axis=0).astype(jnp.bfloat16)


def _conv3_matrices(w):
    """w: [120, 16, 5, 5] -> [5, 80, 128] with A[ki][kj*16+c, co] = w[co,c,ki,kj]."""
    mats = []
    for ki in range(KSIZE):
        m = jnp.transpose(w[:, :, ki, :], (2, 1, 0)).reshape(P2 * C2, C3)
        mats.append(jnp.pad(m, ((0, 0), (0, LANES - C3))))
    return jnp.stack(mats, axis=0).astype(jnp.bfloat16)


def _fc_pad(w):
    """[out, in] PyTorch Linear weight -> K-major [128, 128] bf16."""
    wt = w.T
    wt = jnp.pad(wt, ((0, LANES - wt.shape[0]), (0, LANES - wt.shape[1])))
    return wt.astype(jnp.bfloat16)


def _bias_tile(b, reps):
    """Per-channel bias tiled over output columns to match lane = q*c_out + co."""
    return jnp.tile(b, reps).reshape(1, -1).astype(jnp.float32)


def _bias_pad(b):
    return jnp.pad(b, (0, LANES - b.shape[0])).reshape(1, -1).astype(jnp.float32)


def prepare_params(params):
    """One-time repack of PyTorch-layout params into kernel layout (bf16 banded
    weights, f32 biases).  No per-forward weight transforms remain."""
    (w1, b1), (w2, b2), (w3, b3) = params["conv1"], params["conv2"], params["conv3"]
    (w4, b4), (w5, b5) = params["fc1"], params["fc2"]
    return {
        "conv1": (_conv_band_matrices(w1, H0, P1), _bias_tile(b1, P1)),
        "conv2": (_conv_band_matrices(w2, P1, P2), _bias_tile(b2, P2)),
        "conv3": (_conv3_matrices(w3), _bias_pad(b3)),
        "fc1": (_fc_pad(w4), _bias_pad(b4)),
        "fc2": (_fc_pad(w5), _bias_pad(b5)),
    }


if __name__ == "__main__":
    key = jax.random.PRNGKey(0)
    kp, kx = jax.random.split(key)
    params = init_lenet_params(kp)
    prep = prepare_params(params)

    # LeNet expects 32x32x3 images (smaller spatial sizes break conv3).
    x = jax.random.normal(kx, (2, 3, 32, 32), dtype=jnp.float32)

    out = jax.jit(lenet_forward)(prep, x)
    out = jax.block_until_ready(out)
    assert out.shape == (2, 10), out.shape
    print("KERNEL_OK")
</pallas_src>

<mosaic_0001>
module attributes {stable_mosaic.version = 11 : i64} {
  func.func @_lenet_kernel(%arg0: i32, %arg1: memref<32x16x96xbf16, #tpu.memory_space<vmem>>, %arg2: memref<10x96x84xbf16, #tpu.memory_space<vmem>>, %arg3: memref<10x84x80xbf16, #tpu.memory_space<vmem>>, %arg4: memref<5x80x128xbf16, #tpu.memory_space<vmem>>, %arg5: memref<128x128xbf16, #tpu.memory_space<vmem>>, %arg6: memref<128x128xbf16, #tpu.memory_space<vmem>>, %arg7: memref<1x84xf32, #tpu.memory_space<vmem>>, %arg8: memref<1x80xf32, #tpu.memory_space<vmem>>, %arg9: memref<1x128xf32, #tpu.memory_space<vmem>>, %arg10: memref<1x128xf32, #tpu.memory_space<vmem>>, %arg11: memref<1x128xf32, #tpu.memory_space<vmem>>, %arg12: memref<16x128xf32, #tpu.memory_space<vmem>>) attributes {dimension_semantics = [#tpu.dimension_semantics<parallel>], iteration_bounds = array<i64: 1>, scalar_prefetch = 0 : i64, scratch_operands = 0 : i64, tpu.core_type = #tpu.core_type<tc>, window_params = [{transform_indices = @transform_0, window_bounds = array<i64: 32, 16, 96>}, {pipeline_mode = #tpu.pipeline_mode<synchronous>, transform_indices = @transform_1, window_bounds = array<i64: 10, 96, 84>}, {pipeline_mode = #tpu.pipeline_mode<synchronous>, transform_indices = @transform_2, window_bounds = array<i64: 10, 84, 80>}, {pipeline_mode = #tpu.pipeline_mode<synchronous>, transform_indices = @transform_3, window_bounds = array<i64: 5, 80, 128>}, {pipeline_mode = #tpu.pipeline_mode<synchronous>, transform_indices = @transform_4, window_bounds = array<i64: 128, 128>}, {pipeline_mode = #tpu.pipeline_mode<synchronous>, transform_indices = @transform_5, window_bounds = array<i64: 128, 128>}, {pipeline_mode = #tpu.pipeline_mode<synchronous>, transform_indices = @transform_6, window_bounds = array<i64: 1, 84>}, {pipeline_mode = #tpu.pipeline_mode<synchronous>, transform_indices = @transform_7, window_bounds = array<i64: 1, 80>}, {pipeline_mode = #tpu.pipeline_mode<synchronous>, transform_indices = @transform_8, window_bounds = array<i64: 1, 128>}, {pipeline_mode = #tpu.pipeline_mode<synchronous>, transform_indices = @transform_9, window_bounds = array<i64: 1, 128>}, {pipeline_mode = #tpu.pipeline_mode<synchronous>, transform_indices = @transform_10, window_bounds = array<i64: 1, 128>}, {transform_indices = @transform_11, window_bounds = array<i64: 16, 128>}]} {
    %c0 = arith.constant 0 : index
    %c0_0 = arith.constant 0 : index
    %c0_1 = arith.constant 0 : index
    %0 = vector.load %arg1[%c0, %c0_0, %c0_1] : memref<32x16x96xbf16, #tpu.memory_space<vmem>>, vector<32x16x96xbf16>
    %c0_2 = arith.constant 0 : index
    %c0_3 = arith.constant 0 : index
    %1 = vector.load %arg7[%c0_2, %c0_3] : memref<1x84xf32, #tpu.memory_space<vmem>>, vector<1x84xf32>
    %2 = vector.extract_strided_slice %0 {offsets = [0, 0, 0], sizes = [28, 16, 96], strides = [1, 1, 1]} : vector<32x16x96xbf16> to vector<28x16x96xbf16>
    %3 = vector.shape_cast %2 : vector<28x16x96xbf16> to vector<448x96xbf16>
    %c0_4 = arith.constant 0 : index
    %c0_5 = arith.constant 0 : index
    %c0_6 = arith.constant 0 : index
    %4 = vector.load %arg2[%c0_4, %c0_5, %c0_6] : memref<10x96x84xbf16, #tpu.memory_space<vmem>>, vector<1x96x84xbf16>
    %5 = vector.shape_cast %4 : vector<1x96x84xbf16> to vector<96x84xbf16>
    %cst = arith.constant dense<0.000000e+00> : vector<448x84xf32>
    %6 = tpu.matmul %3, %5, %cst {dimension_numbers = #tpu.dot_dimension_numbers<[1], [0], [0], [1], [0, 0, 1, 1], [], []>} : vector<448x96xbf16>, vector<96x84xbf16>, vector<448x84xf32> -> vector<448x84xf32>
    %7 = vector.extract_strided_slice %0 {offsets = [1, 0, 0], sizes = [28, 16, 96], strides = [1, 1, 1]} : vector<32x16x96xbf16> to vector<28x16x96xbf16>
    %8 = vector.shape_cast %7 : vector<28x16x96xbf16> to vector<448x96xbf16>
    %c1 = arith.constant 1 : index
    %c0_7 = arith.constant 0 : index
    %c0_8 = arith.constant 0 : index
    %9 = vector.load %arg2[%c1, %c0_7, %c0_8] : memref<10x96x84xbf16, #tpu.memory_space<vmem>>, vector<1x96x84xbf16>
    %10 = vector.shape_cast %9 : vector<1x96x84xbf16> to vector<96x84xbf16>
    %cst_9 = arith.constant dense<0.000000e+00> : vector<448x84xf32>
    %11 = tpu.matmul %8, %10, %cst_9 {dimension_numbers = #tpu.dot_dimension_numbers<[1], [0], [0], [1], [0, 0, 1, 1], [], []>} : vector<448x96xbf16>, vector<96x84xbf16>, vector<448x84xf32> -> vector<448x84xf32>
    %12 = arith.addf %6, %11 : vector<448x84xf32>
    %13 = vector.extract_strided_slice %0 {offsets = [2, 0, 0], sizes = [28, 16, 96], strides = [1, 1, 1]} : vector<32x16x96xbf16> to vector<28x16x96xbf16>
    %14 = vector.shape_cast %13 : vector<28x16x96xbf16> to vector<448x96xbf16>
    %c2 = arith.constant 2 : index
    %c0_10 = arith.constant 0 : index
    %c0_11 = arith.constant 0 : index
    %15 = vector.load %arg2[%c2, %c0_10, %c0_11] : memref<10x96x84xbf16, #tpu.memory_space<vmem>>, vector<1x96x84xbf16>
    %16 = vector.shape_cast %15 : vector<1x96x84xbf16> to vector<96x84xbf16>
    %cst_12 = arith.constant dense<0.000000e+00> : vector<448x84xf32>
    %17 = tpu.matmul %14, %16, %cst_12 {dimension_numbers = #tpu.dot_dimension_numbers<[1], [0], [0], [1], [0, 0, 1, 1], [], []>} : vector<448x96xbf16>, vector<96x84xbf16>, vector<448x84xf32> -> vector<448x84xf32>
    %18 = arith.addf %12, %17 : vector<448x84xf32>
    %19 = vector.extract_strided_slice %0 {offsets = [3, 0, 0], sizes = [28, 16, 96], strides = [1, 1, 1]} : vector<32x16x96xbf16> to vector<28x16x96xbf16>
    %20 = vector.shape_cast %19 : vector<28x16x96xbf16> to vector<448x96xbf16>
    %c3 = arith.constant 3 : index
    %c0_13 = arith.constant 0 : index
    %c0_14 = arith.constant 0 : index
    %21 = vector.load %arg2[%c3, %c0_13, %c0_14] : memref<10x96x84xbf16, #tpu.memory_space<vmem>>, vector<1x96x84xbf16>
    %22 = vector.shape_cast %21 : vector<1x96x84xbf16> to vector<96x84xbf16>
    %cst_15 = arith.constant dense<0.000000e+00> : vector<448x84xf32>
    %23 = tpu.matmul %20, %22, %cst_15 {dimension_numbers = #tpu.dot_dimension_numbers<[1], [0], [0], [1], [0, 0, 1, 1], [], []>} : vector<448x96xbf16>, vector<96x84xbf16>, vector<448x84xf32> -> vector<448x84xf32>
    %24 = arith.addf %18, %23 : vector<448x84xf32>
    %25 = vector.extract_strided_slice %0 {offsets = [4, 0, 0], sizes = [28, 16, 96], strides = [1, 1, 1]} : vector<32x16x96xbf16> to vector<28x16x96xbf16>
    %26 = vector.shape_cast %25 : vector<28x16x96xbf16> to vector<448x96xbf16>
    %c4 = arith.constant 4 : index
    %c0_16 = arith.constant 0 : index
    %c0_17 = arith.constant 0 : index
    %27 = vector.load %arg2[%c4, %c0_16, %c0_17] : memref<10x96x84xbf16, #tpu.memory_space<vmem>>, vector<1x96x84xbf16>
    %28 = vector.shape_cast %27 : vector<1x96x84xbf16> to vector<96x84xbf16>
    %cst_18 = arith.constant dense<0.000000e+00> : vector<448x84xf32>
    %29 = tpu.matmul %26, %28, %cst_18 {dimension_numbers = #tpu.dot_dimension_numbers<[1], [0], [0], [1], [0, 0, 1, 1], [], []>} : vector<448x96xbf16>, vector<96x84xbf16>, vector<448x84xf32> -> vector<448x84xf32>
    %30 = arith.addf %24, %29 : vector<448x84xf32>
    %31 = vector.shape_cast %30 : vector<448x84xf32> to vector<14x2x16x84xf32>
    %32 = vector.extract_strided_slice %31 {offsets = [0, 0, 0, 0], sizes = [14, 1, 16, 84], strides = [1, 1, 1, 1]} : vector<14x2x16x84xf32> to vector<14x1x16x84xf32>
    %33 = vector.shape_cast %32 : vector<14x1x16x84xf32> to vector<14x16x84xf32>
    %34 = vector.extract_strided_slice %31 {offsets = [0, 1, 0, 0], sizes = [14, 1, 16, 84], strides = [1, 1, 1, 1]} : vector<14x2x16x84xf32> to vector<14x1x16x84xf32>
    %35 = vector.shape_cast %34 : vector<14x1x16x84xf32> to vector<14x16x84xf32>
    %36 = arith.maximumf %33, %35 : vector<14x16x84xf32>
    %37 = vector.extract_strided_slice %0 {offsets = [0, 0, 0], sizes = [28, 16, 96], strides = [1, 1, 1]} : vector<32x16x96xbf16> to vector<28x16x96xbf16>
    %38 = vector.shape_cast %37 : vector<28x16x96xbf16> to vector<448x96xbf16>
    %c5 = arith.constant 5 : index
    %c0_19 = arith.constant 0 : index
    %c0_20 = arith.constant 0 : index
    %39 = vector.load %arg2[%c5, %c0_19, %c0_20] : memref<10x96x84xbf16, #tpu.memory_space<vmem>>, vector<1x96x84xbf16>
    %40 = vector.shape_cast %39 : vector<1x96x84xbf16> to vector<96x84xbf16>
    %cst_21 = arith.constant dense<0.000000e+00> : vector<448x84xf32>
    %41 = tpu.matmul %38, %40, %cst_21 {dimension_numbers = #tpu.dot_dimension_numbers<[1], [0], [0], [1], [0, 0, 1, 1], [], []>} : vector<448x96xbf16>, vector<96x84xbf16>, vector<448x84xf32> -> vector<448x84xf32>
    %42 = vector.extract_strided_slice %0 {offsets = [1, 0, 0], sizes = [28, 16, 96], strides = [1, 1, 1]} : vector<32x16x96xbf16> to vector<28x16x96xbf16>
    %43 = vector.shape_cast %42 : vector<28x16x96xbf16> to vector<448x96xbf16>
    %c6 = arith.constant 6 : index
    %c0_22 = arith.constant 0 : index
    %c0_23 = arith.constant 0 : index
    %44 = vector.load %arg2[%c6, %c0_22, %c0_23] : memref<10x96x84xbf16, #tpu.memory_space<vmem>>, vector<1x96x84xbf16>
    %45 = vector.shape_cast %44 : vector<1x96x84xbf16> to vector<96x84xbf16>
    %cst_24 = arith.constant dense<0.000000e+00> : vector<448x84xf32>
    %46 = tpu.matmul %43, %45, %cst_24 {dimension_numbers = #tpu.dot_dimension_numbers<[1], [0], [0], [1], [0, 0, 1, 1], [], []>} : vector<448x96xbf16>, vector<96x84xbf16>, vector<448x84xf32> -> vector<448x84xf32>
    %47 = arith.addf %41, %46 : vector<448x84xf32>
    %48 = vector.extract_strided_slice %0 {offsets = [2, 0, 0], sizes = [28, 16, 96], strides = [1, 1, 1]} : vector<32x16x96xbf16> to vector<28x16x96xbf16>
    %49 = vector.shape_cast %48 : vector<28x16x96xbf16> to vector<448x96xbf16>
    %c7 = arith.constant 7 : index
    %c0_25 = arith.constant 0 : index
    %c0_26 = arith.constant 0 : index
    %50 = vector.load %arg2[%c7, %c0_25, %c0_26] : memref<10x96x84xbf16, #tpu.memory_space<vmem>>, vector<1x96x84xbf16>
    %51 = vector.shape_cast %50 : vector<1x96x84xbf16> to vector<96x84xbf16>
    %cst_27 = arith.constant dense<0.000000e+00> : vector<448x84xf32>
    %52 = tpu.matmul %49, %51, %cst_27 {dimension_numbers = #tpu.dot_dimension_numbers<[1], [0], [0], [1], [0, 0, 1, 1], [], []>} : vector<448x96xbf16>, vector<96x84xbf16>, vector<448x84xf32> -> vector<448x84xf32>
    %53 = arith.addf %47, %52 : vector<448x84xf32>
    %54 = vector.extract_strided_slice %0 {offsets = [3, 0, 0], sizes = [28, 16, 96], strides = [1, 1, 1]} : vector<32x16x96xbf16> to vector<28x16x96xbf16>
    %55 = vector.shape_cast %54 : vector<28x16x96xbf16> to vector<448x96xbf16>
    %c8 = arith.constant 8 : index
    %c0_28 = arith.constant 0 : index
    %c0_29 = arith.constant 0 : index
    %56 = vector.load %arg2[%c8, %c0_28, %c0_29] : memref<10x96x84xbf16, #tpu.memory_space<vmem>>, vector<1x96x84xbf16>
    %57 = vector.shape_cast %56 : vector<1x96x84xbf16> to vector<96x84xbf16>
    %cst_30 = arith.constant dense<0.000000e+00> : vector<448x84xf32>
    %58 = tpu.matmul %55, %57, %cst_30 {dimension_numbers = #tpu.dot_dimension_numbers<[1], [0], [0], [1], [0, 0, 1, 1], [], []>} : vector<448x96xbf16>, vector<96x84xbf16>, vector<448x84xf32> -> vector<448x84xf32>
    %59 = arith.addf %53, %58 : vector<448x84xf32>
    %60 = vector.extract_strided_slice %0 {offsets = [4, 0, 0], sizes = [28, 16, 96], strides = [1, 1, 1]} : vector<32x16x96xbf16> to vector<28x16x96xbf16>
    %61 = vector.shape_cast %60 : vector<28x16x96xbf16> to vector<448x96xbf16>
    %c9 = arith.constant 9 : index
    %c0_31 = arith.constant 0 : index
    %c0_32 = arith.constant 0 : index
    %62 = vector.load %arg2[%c9, %c0_31, %c0_32] : memref<10x96x84xbf16, #tpu.memory_space<vmem>>, vector<1x96x84xbf16>
    %63 = vector.shape_cast %62 : vector<1x96x84xbf16> to vector<96x84xbf16>
    %cst_33 = arith.constant dense<0.000000e+00> : vector<448x84xf32>
    %64 = tpu.matmul %61, %63, %cst_33 {dimension_numbers = #tpu.dot_dimension_numbers<[1], [0], [0], [1], [0, 0, 1, 1], [], []>} : vector<448x96xbf16>, vector<96x84xbf16>, vector<448x84xf32> -> vector<448x84xf32>
    %65 = arith.addf %59, %64 : vector<448x84xf32>
    %66 = vector.shape_cast %65 : vector<448x84xf32> to vector<14x2x16x84xf32>
    %67 = vector.extract_strided_slice %66 {offsets = [0, 0, 0, 0], sizes = [14, 1, 16, 84], strides = [1, 1, 1, 1]} : vector<14x2x16x84xf32> to vector<14x1x16x84xf32>
    %68 = vector.shape_cast %67 : vector<14x1x16x84xf32> to vector<14x16x84xf32>
    %69 = vector.extract_strided_slice %66 {offsets = [0, 1, 0, 0], sizes = [14, 1, 16, 84], strides = [1, 1, 1, 1]} : vector<14x2x16x84xf32> to vector<14x1x16x84xf32>
    %70 = vector.shape_cast %69 : vector<14x1x16x84xf32> to vector<14x16x84xf32>
    %71 = arith.maximumf %68, %70 : vector<14x16x84xf32>
    %72 = arith.maximumf %36, %71 : vector<14x16x84xf32>
    %73 = vector.shape_cast %1 : vector<1x84xf32> to vector<1x1x84xf32>
    %74 = vector.broadcast %73 : vector<1x1x84xf32> to vector<14x16x84xf32>
    %75 = arith.addf %72, %74 : vector<14x16x84xf32>
    %cst_34 = arith.constant 0.000000e+00 : f32
    %76 = vector.broadcast %cst_34 : f32 to vector<14x16x84xf32>
    %77 = arith.maximumf %75, %76 : vector<14x16x84xf32>
    %78 = arith.truncf %77 : vector<14x16x84xf32> to vector<14x16x84xbf16>
    %c0_35 = arith.constant 0 : index
    %c0_36 = arith.constant 0 : index
    %79 = vector.load %arg8[%c0_35, %c0_36] : memref<1x80xf32, #tpu.memory_space<vmem>>, vector<1x80xf32>
    %80 = vector.extract_strided_slice %78 {offsets = [0, 0, 0], sizes = [10, 16, 84], strides = [1, 1, 1]} : vector<14x16x84xbf16> to vector<10x16x84xbf16>
    %81 = vector.shape_cast %80 : vector<10x16x84xbf16> to vector<160x84xbf16>
    %c0_37 = arith.constant 0 : index
    %c0_38 = arith.constant 0 : index
    %c0_39 = arith.constant 0 : index
    %82 = vector.load %arg3[%c0_37, %c0_38, %c0_39] : memref<10x84x80xbf16, #tpu.memory_space<vmem>>, vector<1x84x80xbf16>
    %83 = vector.shape_cast %82 : vector<1x84x80xbf16> to vector<84x80xbf16>
    %cst_40 = arith.constant dense<0.000000e+00> : vector<160x80xf32>
    %84 = tpu.matmul %81, %83, %cst_40 {dimension_numbers = #tpu.dot_dimension_numbers<[1], [0], [0], [1], [0, 0, 1, 1], [], []>} : vector<160x84xbf16>, vector<84x80xbf16>, vector<160x80xf32> -> vector<160x80xf32>
    %85 = vector.extract_strided_slice %78 {offsets = [1, 0, 0], sizes = [10, 16, 84], strides = [1, 1, 1]} : vector<14x16x84xbf16> to vector<10x16x84xbf16>
    %86 = vector.shape_cast %85 : vector<10x16x84xbf16> to vector<160x84xbf16>
    %c1_41 = arith.constant 1 : index
    %c0_42 = arith.constant 0 : index
    %c0_43 = arith.constant 0 : index
    %87 = vector.load %arg3[%c1_41, %c0_42, %c0_43] : memref<10x84x80xbf16, #tpu.memory_space<vmem>>, vector<1x84x80xbf16>
    %88 = vector.shape_cast %87 : vector<1x84x80xbf16> to vector<84x80xbf16>
    %cst_44 = arith.constant dense<0.000000e+00> : vector<160x80xf32>
    %89 = tpu.matmul %86, %88, %cst_44 {dimension_numbers = #tpu.dot_dimension_numbers<[1], [0], [0], [1], [0, 0, 1, 1], [], []>} : vector<160x84xbf16>, vector<84x80xbf16>, vector<160x80xf32> -> vector<160x80xf32>
    %90 = arith.addf %84, %89 : vector<160x80xf32>
    %91 = vector.extract_strided_slice %78 {offsets = [2, 0, 0], sizes = [10, 16, 84], strides = [1, 1, 1]} : vector<14x16x84xbf16> to vector<10x16x84xbf16>
    %92 = vector.shape_cast %91 : vector<10x16x84xbf16> to vector<160x84xbf16>
    %c2_45 = arith.constant 2 : index
    %c0_46 = arith.constant 0 : index
    %c0_47 = arith.constant 0 : index
    %93 = vector.load %arg3[%c2_45, %c0_46, %c0_47] : memref<10x84x80xbf16, #tpu.memory_space<vmem>>, vector<1x84x80xbf16>
    %94 = vector.shape_cast %93 : vector<1x84x80xbf16> to vector<84x80xbf16>
    %cst_48 = arith.constant dense<0.000000e+00> : vector<160x80xf32>
    %95 = tpu.matmul %92, %94, %cst_48 {dimension_numbers = #tpu.dot_dimension_numbers<[1], [0], [0], [1], [0, 0, 1, 1], [], []>} : vector<160x84xbf16>, vector<84x80xbf16>, vector<160x80xf32> -> vector<160x80xf32>
    %96 = arith.addf %90, %95 : vector<160x80xf32>
    %97 = vector.extract_strided_slice %78 {offsets = [3, 0, 0], sizes = [10, 16, 84], strides = [1, 1, 1]} : vector<14x16x84xbf16> to vector<10x16x84xbf16>
    %98 = vector.shape_cast %97 : vector<10x16x84xbf16> to vector<160x84xbf16>
    %c3_49 = arith.constant 3 : index
    %c0_50 = arith.constant 0 : index
    %c0_51 = arith.constant 0 : index
    %99 = vector.load %arg3[%c3_49, %c0_50, %c0_51] : memref<10x84x80xbf16, #tpu.memory_space<vmem>>, vector<1x84x80xbf16>
    %100 = vector.shape_cast %99 : vector<1x84x80xbf16> to vector<84x80xbf16>
    %cst_52 = arith.constant dense<0.000000e+00> : vector<160x80xf32>
    %101 = tpu.matmul %98, %100, %cst_52 {dimension_numbers = #tpu.dot_dimension_numbers<[1], [0], [0], [1], [0, 0, 1, 1], [], []>} : vector<160x84xbf16>, vector<84x80xbf16>, vector<160x80xf32> -> vector<160x80xf32>
    %102 = arith.addf %96, %101 : vector<160x80xf32>
    %103 = vector.extract_strided_slice %78 {offsets = [4, 0, 0], sizes = [10, 16, 84], strides = [1, 1, 1]} : vector<14x16x84xbf16> to vector<10x16x84xbf16>
    %104 = vector.shape_cast %103 : vector<10x16x84xbf16> to vector<160x84xbf16>
    %c4_53 = arith.constant 4 : index
    %c0_54 = arith.constant 0 : index
    %c0_55 = arith.constant 0 : index
    %105 = vector.load %arg3[%c4_53, %c0_54, %c0_55] : memref<10x84x80xbf16, #tpu.memory_space<vmem>>, vector<1x84x80xbf16>
    %106 = vector.shape_cast %105 : vector<1x84x80xbf16> to vector<84x80xbf16>
    %cst_56 = arith.constant dense<0.000000e+00> : vector<160x80xf32>
    %107 = tpu.matmul %104, %106, %cst_56 {dimension_numbers = #tpu.dot_dimension_numbers<[1], [0], [0], [1], [0, 0, 1, 1], [], []>} : vector<160x84xbf16>, vector<84x80xbf16>, vector<160x80xf32> -> vector<160x80xf32>
    %108 = arith.addf %102, %107 : vector<160x80xf32>
    %109 = vector.shape_cast %108 : vector<160x80xf32> to vector<5x2x16x80xf32>
    %110 = vector.extract_strided_slice %109 {offsets = [0, 0, 0, 0], sizes = [5, 1, 16, 80], strides = [1, 1, 1, 1]} : vector<5x2x16x80xf32> to vector<5x1x16x80xf32>
    %111 = vector.shape_cast %110 : vector<5x1x16x80xf32> to vector<5x16x80xf32>
    %112 = vector.extract_strided_slice %109 {offsets = [0, 1, 0, 0], sizes = [5, 1, 16, 80], strides = [1, 1, 1, 1]} : vector<5x2x16x80xf32> to vector<5x1x16x80xf32>
    %113 = vector.shape_cast %112 : vector<5x1x16x80xf32> to vector<5x16x80xf32>
    %114 = arith.maximumf %111, %113 : vector<5x16x80xf32>
    %115 = vector.extract_strided_slice %78 {offsets = [0, 0, 0], sizes = [10, 16, 84], strides = [1, 1, 1]} : vector<14x16x84xbf16> to vector<10x16x84xbf16>
    %116 = vector.shape_cast %115 : vector<10x16x84xbf16> to vector<160x84xbf16>
    %c5_57 = arith.constant 5 : index
    %c0_58 = arith.constant 0 : index
    %c0_59 = arith.constant 0 : index
    %117 = vector.load %arg3[%c5_57, %c0_58, %c0_59] : memref<10x84x80xbf16, #tpu.memory_space<vmem>>, vector<1x84x80xbf16>
    %118 = vector.shape_cast %117 : vector<1x84x80xbf16> to vector<84x80xbf16>
    %cst_60 = arith.constant dense<0.000000e+00> : vector<160x80xf32>
    %119 = tpu.matmul %116, %118, %cst_60 {dimension_numbers = #tpu.dot_dimension_numbers<[1], [0], [0], [1], [0, 0, 1, 1], [], []>} : vector<160x84xbf16>, vector<84x80xbf16>, vector<160x80xf32> -> vector<160x80xf32>
    %120 = vector.extract_strided_slice %78 {offsets = [1, 0, 0], sizes = [10, 16, 84], strides = [1, 1, 1]} : vector<14x16x84xbf16> to vector<10x16x84xbf16>
    %121 = vector.shape_cast %120 : vector<10x16x84xbf16> to vector<160x84xbf16>
    %c6_61 = arith.constant 6 : index
    %c0_62 = arith.constant 0 : index
    %c0_63 = arith.constant 0 : index
    %122 = vector.load %arg3[%c6_61, %c0_62, %c0_63] : memref<10x84x80xbf16, #tpu.memory_space<vmem>>, vector<1x84x80xbf16>
    %123 = vector.shape_cast %122 : vector<1x84x80xbf16> to vector<84x80xbf16>
    %cst_64 = arith.constant dense<0.000000e+00> : vector<160x80xf32>
    %124 = tpu.matmul %121, %123, %cst_64 {dimension_numbers = #tpu.dot_dimension_numbers<[1], [0], [0], [1], [0, 0, 1, 1], [], []>} : vector<160x84xbf16>, vector<84x80xbf16>, vector<160x80xf32> -> vector<160x80xf32>
    %125 = arith.addf %119, %124 : vector<160x80xf32>
    %126 = vector.extract_strided_slice %78 {offsets = [2, 0, 0], sizes = [10, 16, 84], strides = [1, 1, 1]} : vector<14x16x84xbf16> to vector<10x16x84xbf16>
    %127 = vector.shape_cast %126 : vector<10x16x84xbf16> to vector<160x84xbf16>
    %c7_65 = arith.constant 7 : index
    %c0_66 = arith.constant 0 : index
    %c0_67 = arith.constant 0 : index
    %128 = vector.load %arg3[%c7_65, %c0_66, %c0_67] : memref<10x84x80xbf16, #tpu.memory_space<vmem>>, vector<1x84x80xbf16>
    %129 = vector.shape_cast %128 : vector<1x84x80xbf16> to vector<84x80xbf16>
    %cst_68 = arith.constant dense<0.000000e+00> : vector<160x80xf32>
    %130 = tpu.matmul %127, %129, %cst_68 {dimension_numbers = #tpu.dot_dimension_numbers<[1], [0], [0], [1], [0, 0, 1, 1], [], []>} : vector<160x84xbf16>, vector<84x80xbf16>, vector<160x80xf32> -> vector<160x80xf32>
    %131 = arith.addf %125, %130 : vector<160x80xf32>
    %132 = vector.extract_strided_slice %78 {offsets = [3, 0, 0], sizes = [10, 16, 84], strides = [1, 1, 1]} : vector<14x16x84xbf16> to vector<10x16x84xbf16>
    %133 = vector.shape_cast %132 : vector<10x16x84xbf16> to vector<160x84xbf16>
    %c8_69 = arith.constant 8 : index
    %c0_70 = arith.constant 0 : index
    %c0_71 = arith.constant 0 : index
    %134 = vector.load %arg3[%c8_69, %c0_70, %c0_71] : memref<10x84x80xbf16, #tpu.memory_space<vmem>>, vector<1x84x80xbf16>
    %135 = vector.shape_cast %134 : vector<1x84x80xbf16> to vector<84x80xbf16>
    %cst_72 = arith.constant dense<0.000000e+00> : vector<160x80xf32>
    %136 = tpu.matmul %133, %135, %cst_72 {dimension_numbers = #tpu.dot_dimension_numbers<[1], [0], [0], [1], [0, 0, 1, 1], [], []>} : vector<160x84xbf16>, vector<84x80xbf16>, vector<160x80xf32> -> vector<160x80xf32>
    %137 = arith.addf %131, %136 : vector<160x80xf32>
    %138 = vector.extract_strided_slice %78 {offsets = [4, 0, 0], sizes = [10, 16, 84], strides = [1, 1, 1]} : vector<14x16x84xbf16> to vector<10x16x84xbf16>
    %139 = vector.shape_cast %138 : vector<10x16x84xbf16> to vector<160x84xbf16>
    %c9_73 = arith.constant 9 : index
    %c0_74 = arith.constant 0 : index
    %c0_75 = arith.constant 0 : index
    %140 = vector.load %arg3[%c9_73, %c0_74, %c0_75] : memref<10x84x80xbf16, #tpu.memory_space<vmem>>, vector<1x84x80xbf16>
    %141 = vector.shape_cast %140 : vector<1x84x80xbf16> to vector<84x80xbf16>
    %cst_76 = arith.constant dense<0.000000e+00> : vector<160x80xf32>
    %142 = tpu.matmul %139, %141, %cst_76 {dimension_numbers = #tpu.dot_dimension_numbers<[1], [0], [0], [1], [0, 0, 1, 1], [], []>} : vector<160x84xbf16>, vector<84x80xbf16>, vector<160x80xf32> -> vector<160x80xf32>
    %143 = arith.addf %137, %142 : vector<160x80xf32>
    %144 = vector.shape_cast %143 : vector<160x80xf32> to vector<5x2x16x80xf32>
    %145 = vector.extract_strided_slice %144 {offsets = [0, 0, 0, 0], sizes = [5, 1, 16, 80], strides = [1, 1, 1, 1]} : vector<5x2x16x80xf32> to vector<5x1x16x80xf32>
    %146 = vector.shape_cast %145 : vector<5x1x16x80xf32> to vector<5x16x80xf32>
    %147 = vector.extract_strided_slice %144 {offsets = [0, 1, 0, 0], sizes = [5, 1, 16, 80], strides = [1, 1, 1, 1]} : vector<5x2x16x80xf32> to vector<5x1x16x80xf32>
    %148 = vector.shape_cast %147 : vector<5x1x16x80xf32> to vector<5x16x80xf32>
    %149 = arith.maximumf %146, %148 : vector<5x16x80xf32>
    %150 = arith.maximumf %114, %149 : vector<5x16x80xf32>
    %151 = vector.shape_cast %79 : vector<1x80xf32> to vector<1x1x80xf32>
    %152 = vector.broadcast %151 : vector<1x1x80xf32> to vector<5x16x80xf32>
    %153 = arith.addf %150, %152 : vector<5x16x80xf32>
    %cst_77 = arith.constant 0.000000e+00 : f32
    %154 = vector.broadcast %cst_77 : f32 to vector<5x16x80xf32>
    %155 = arith.maximumf %153, %154 : vector<5x16x80xf32>
    %156 = arith.truncf %155 : vector<5x16x80xf32> to vector<5x16x80xbf16>
    %157 = vector.extract_strided_slice %156 {offsets = [0, 0, 0], sizes = [1, 16, 80], strides = [1, 1, 1]} : vector<5x16x80xbf16> to vector<1x16x80xbf16>
    %158 = vector.shape_cast %157 : vector<1x16x80xbf16> to vector<16x80xbf16>
    %c0_78 = arith.constant 0 : index
    %c0_79 = arith.constant 0 : index
    %c0_80 = arith.constant 0 : index
    %159 = vector.load %arg4[%c0_78, %c0_79, %c0_80] : memref<5x80x128xbf16, #tpu.memory_space<vmem>>, vector<1x80x128xbf16>
    %160 = vector.shape_cast %159 : vector<1x80x128xbf16> to vector<80x128xbf16>
    %cst_81 = arith.constant dense<0.000000e+00> : vector<16x128xf32>
    %161 = tpu.matmul %158, %160, %cst_81 {dimension_numbers = #tpu.dot_dimension_numbers<[1], [0], [0], [1], [0, 0, 1, 1], [], []>} : vector<16x80xbf16>, vector<80x128xbf16>, vector<16x128xf32> -> vector<16x128xf32>
    %162 = vector.extract_strided_slice %156 {offsets = [1, 0, 0], sizes = [1, 16, 80], strides = [1, 1, 1]} : vector<5x16x80xbf16> to vector<1x16x80xbf16>
    %163 = vector.shape_cast %162 : vector<1x16x80xbf16> to vector<16x80xbf16>
    %c1_82 = arith.constant 1 : index
    %c0_83 = arith.constant 0 : index
    %c0_84 = arith.constant 0 : index
    %164 = vector.load %arg4[%c1_82, %c0_83, %c0_84] : memref<5x80x128xbf16, #tpu.memory_space<vmem>>, vector<1x80x128xbf16>
    %165 = vector.shape_cast %164 : vector<1x80x128xbf16> to vector<80x128xbf16>
    %cst_85 = arith.constant dense<0.000000e+00> : vector<16x128xf32>
    %166 = tpu.matmul %163, %165, %cst_85 {dimension_numbers = #tpu.dot_dimension_numbers<[1], [0], [0], [1], [0, 0, 1, 1], [], []>} : vector<16x80xbf16>, vector<80x128xbf16>, vector<16x128xf32> -> vector<16x128xf32>
    %167 = arith.addf %161, %166 : vector<16x128xf32>
    %168 = vector.extract_strided_slice %156 {offsets = [2, 0, 0], sizes = [1, 16, 80], strides = [1, 1, 1]} : vector<5x16x80xbf16> to vector<1x16x80xbf16>
    %169 = vector.shape_cast %168 : vector<1x16x80xbf16> to vector<16x80xbf16>
    %c2_86 = arith.constant 2 : index
    %c0_87 = arith.constant 0 : index
    %c0_88 = arith.constant 0 : index
    %170 = vector.load %arg4[%c2_86, %c0_87, %c0_88] : memref<5x80x128xbf16, #tpu.memory_space<vmem>>, vector<1x80x128xbf16>
    %171 = vector.shape_cast %170 : vector<1x80x128xbf16> to vector<80x128xbf16>
    %cst_89 = arith.constant dense<0.000000e+00> : vector<16x128xf32>
    %172 = tpu.matmul %169, %171, %cst_89 {dimension_numbers = #tpu.dot_dimension_numbers<[1], [0], [0], [1], [0, 0, 1, 1], [], []>} : vector<16x80xbf16>, vector<80x128xbf16>, vector<16x128xf32> -> vector<16x128xf32>
    %173 = arith.addf %167, %172 : vector<16x128xf32>
    %174 = vector.extract_strided_slice %156 {offsets = [3, 0, 0], sizes = [1, 16, 80], strides = [1, 1, 1]} : vector<5x16x80xbf16> to vector<1x16x80xbf16>
    %175 = vector.shape_cast %174 : vector<1x16x80xbf16> to vector<16x80xbf16>
    %c3_90 = arith.constant 3 : index
    %c0_91 = arith.constant 0 : index
    %c0_92 = arith.constant 0 : index
    %176 = vector.load %arg4[%c3_90, %c0_91, %c0_92] : memref<5x80x128xbf16, #tpu.memory_space<vmem>>, vector<1x80x128xbf16>
    %177 = vector.shape_cast %176 : vector<1x80x128xbf16> to vector<80x128xbf16>
    %cst_93 = arith.constant dense<0.000000e+00> : vector<16x128xf32>
    %178 = tpu.matmul %175, %177, %cst_93 {dimension_numbers = #tpu.dot_dimension_numbers<[1], [0], [0], [1], [0, 0, 1, 1], [], []>} : vector<16x80xbf16>, vector<80x128xbf16>, vector<16x128xf32> -> vector<16x128xf32>
    %179 = arith.addf %173, %178 : vector<16x128xf32>
    %180 = vector.extract_strided_slice %156 {offsets = [4, 0, 0], sizes = [1, 16, 80], strides = [1, 1, 1]} : vector<5x16x80xbf16> to vector<1x16x80xbf16>
    %181 = vector.shape_cast %180 : vector<1x16x80xbf16> to vector<16x80xbf16>
    %c4_94 = arith.constant 4 : index
    %c0_95 = arith.constant 0 : index
    %c0_96 = arith.constant 0 : index
    %182 = vector.load %arg4[%c4_94, %c0_95, %c0_96] : memref<5x80x128xbf16, #tpu.memory_space<vmem>>, vector<1x80x128xbf16>
    %183 = vector.shape_cast %182 : vector<1x80x128xbf16> to vector<80x128xbf16>
    %cst_97 = arith.constant dense<0.000000e+00> : vector<16x128xf32>
    %184 = tpu.matmul %181, %183, %cst_97 {dimension_numbers = #tpu.dot_dimension_numbers<[1], [0], [0], [1], [0, 0, 1, 1], [], []>} : vector<16x80xbf16>, vector<80x128xbf16>, vector<16x128xf32> -> vector<16x128xf32>
    %185 = arith.addf %179, %184 : vector<16x128xf32>
    %c0_98 = arith.constant 0 : index
    %c0_99 = arith.constant 0 : index
    %186 = vector.load %arg9[%c0_98, %c0_99] : memref<1x128xf32, #tpu.memory_space<vmem>>, vector<1x128xf32>
    %187 = vector.broadcast %186 : vector<1x128xf32> to vector<16x128xf32>
    %188 = arith.addf %185, %187 : vector<16x128xf32>
    %cst_100 = arith.constant 0.000000e+00 : f32
    %189 = vector.broadcast %cst_100 : f32 to vector<16x128xf32>
    %190 = arith.maximumf %188, %189 : vector<16x128xf32>
    %191 = arith.truncf %190 : vector<16x128xf32> to vector<16x128xbf16>
    %c0_101 = arith.constant 0 : index
    %c0_102 = arith.constant 0 : index
    %192 = vector.load %arg5[%c0_101, %c0_102] : memref<128x128xbf16, #tpu.memory_space<vmem>>, vector<128x128xbf16>
    %cst_103 = arith.constant dense<0.000000e+00> : vector<16x128xf32>
    %193 = tpu.matmul %191, %192, %cst_103 {dimension_numbers = #tpu.dot_dimension_numbers<[1], [0], [0], [1], [0, 0, 1, 1], [], []>} : vector<16x128xbf16>, vector<128x128xbf16>, vector<16x128xf32> -> vector<16x128xf32>
    %c0_104 = arith.constant 0 : index
    %c0_105 = arith.constant 0 : index
    %194 = vector.load %arg10[%c0_104, %c0_105] : memref<1x128xf32, #tpu.memory_space<vmem>>, vector<1x128xf32>
    %195 = vector.broadcast %194 : vector<1x128xf32> to vector<16x128xf32>
    %196 = arith.addf %193, %195 : vector<16x128xf32>
    %cst_106 = arith.constant 0.000000e+00 : f32
    %197 = vector.broadcast %cst_106 : f32 to vector<16x128xf32>
    %198 = arith.maximumf %196, %197 : vector<16x128xf32>
    %199 = arith.truncf %198 : vector<16x128xf32> to vector<16x128xbf16>
    %c0_107 = arith.constant 0 : index
    %c0_108 = arith.constant 0 : index
    %200 = vector.load %arg6[%c0_107, %c0_108] : memref<128x128xbf16, #tpu.memory_space<vmem>>, vector<128x128xbf16>
    %cst_109 = arith.constant dense<0.000000e+00> : vector<16x128xf32>
    %201 = tpu.matmul %199, %200, %cst_109 {dimension_numbers = #tpu.dot_dimension_numbers<[1], [0], [0], [1], [0, 0, 1, 1], [], []>} : vector<16x128xbf16>, vector<128x128xbf16>, vector<16x128xf32> -> vector<16x128xf32>
    %c0_110 = arith.constant 0 : index
    %c0_111 = arith.constant 0 : index
    %202 = vector.load %arg11[%c0_110, %c0_111] : memref<1x128xf32, #tpu.memory_space<vmem>>, vector<1x128xf32>
    %203 = vector.broadcast %202 : vector<1x128xf32> to vector<16x128xf32>
    %204 = arith.addf %201, %203 : vector<16x128xf32>
    %c0_112 = arith.constant 0 : index
    %c0_113 = arith.constant 0 : index
    %205 = vector.load %arg12[%c0_112, %c0_113] : memref<16x128xf32, #tpu.memory_space<vmem>>, vector<16x128xf32>
    tpu.vector_store %arg12[%c0_112, %c0_113], %204 {strides = array<i32>} : memref<16x128xf32, #tpu.memory_space<vmem>>, vector<16x128xf32>,
    return
  }
  func.func @transform_0(%arg0: i32) -> (i32, i32, i32) {
    %c0_i32 = arith.constant 0 : i32
    %c0_i32_0 = arith.constant 0 : i32
    %c0_i32_1 = arith.constant 0 : i32
    return %c0_i32, %arg0, %c0_i32_0 : i32, i32, i32
  }
  func.func @transform_1(%arg0: i32) -> (i32, i32, i32) {
    %c0_i32 = arith.constant 0 : i32
    %c0_i32_0 = arith.constant 0 : i32
    %c0_i32_1 = arith.constant 0 : i32
    %c0_i32_2 = arith.constant 0 : i32
    return %c0_i32, %c0_i32_0, %c0_i32_1 : i32, i32, i32
  }
  func.func @transform_2(%arg0: i32) -> (i32, i32, i32) {
    %c0_i32 = arith.constant 0 : i32
    %c0_i32_0 = arith.constant 0 : i32
    %c0_i32_1 = arith.constant 0 : i32
    %c0_i32_2 = arith.constant 0 : i32
    return %c0_i32, %c0_i32_0, %c0_i32_1 : i32, i32, i32
  }
  func.func @transform_3(%arg0: i32) -> (i32, i32, i32) {
    %c0_i32 = arith.constant 0 : i32
    %c0_i32_0 = arith.constant 0 : i32
    %c0_i32_1 = arith.constant 0 : i32
    %c0_i32_2 = arith.constant 0 : i32
    return %c0_i32, %c0_i32_0, %c0_i32_1 : i32, i32, i32
  }
  func.func @transform_4(%arg0: i32) -> (i32, i32) {
    %c0_i32 = arith.constant 0 : i32
    %c0_i32_0 = arith.constant 0 : i32
    %c0_i32_1 = arith.constant 0 : i32
    return %c0_i32, %c0_i32_0 : i32, i32
  }
  func.func @transform_5(%arg0: i32) -> (i32, i32) {
    %c0_i32 = arith.constant 0 : i32
    %c0_i32_0 = arith.constant 0 : i32
    %c0_i32_1 = arith.constant 0 : i32
    return %c0_i32, %c0_i32_0 : i32, i32
  }
  func.func @transform_6(%arg0: i32) -> (i32, i32) {
    %c0_i32 = arith.constant 0 : i32
    %c0_i32_0 = arith.constant 0 : i32
    %c0_i32_1 = arith.constant 0 : i32
    return %c0_i32, %c0_i32_0 : i32, i32
  }
  func.func @transform_7(%arg0: i32) -> (i32, i32) {
    %c0_i32 = arith.constant 0 : i32
    %c0_i32_0 = arith.constant 0 : i32
    %c0_i32_1 = arith.constant 0 : i32
    return %c0_i32, %c0_i32_0 : i32, i32
  }
  func.func @transform_8(%arg0: i32) -> (i32, i32) {
    %c0_i32 = arith.constant 0 : i32
    %c0_i32_0 = arith.constant 0 : i32
    %c0_i32_1 = arith.constant 0 : i32
    return %c0_i32, %c0_i32_0 : i32, i32
  }
  func.func @transform_9(%arg0: i32) -> (i32, i32) {
    %c0_i32 = arith.constant 0 : i32
    %c0_i32_0 = arith.constant 0 : i32
    %c0_i32_1 = arith.constant 0 : i32
    return %c0_i32, %c0_i32_0 : i32, i32
  }
  func.func @transform_10(%arg0: i32) -> (i32, i32) {
    %c0_i32 = arith.constant 0 : i32
    %c0_i32_0 = arith.constant 0 : i32
    %c0_i32_1 = arith.constant 0 : i32
    return %c0_i32, %c0_i32_0 : i32, i32
  }
  func.func @transform_11(%arg0: i32) -> (i32, i32) {
    %c0_i32 = arith.constant 0 : i32
    %c0_i32_0 = arith.constant 0 : i32
    return %arg0, %c0_i32 : i32, i32
  }
}

</mosaic_0001>

<llo_original>
// kernel: lenet_forward.1
$region0: #{lenet_forward.1}
  #allocation0 [shape = 'u32[]', space=smem, size = 0x4, offset = 0x4, fixed_abs, tag = 'smem constant byte address 0x4 - core index']
  #allocation1 [shape = 'u32[144,128]{1,0:T(1,128)}', space=vmem, size = 0x12000, scoped, tag = 'internal scratch']
  %s0 = inlined_call_operand.vmem [shape: bf16[32,16,96], index: 0, kind: input, shape index: {}]
  %s1 = inlined_call_operand.vmem [shape: bf16[10,96,84], index: 1, kind: input, shape index: {}]
  %s2 = inlined_call_operand.vmem [shape: bf16[10,84,80], index: 2, kind: input, shape index: {}]
  %s3 = inlined_call_operand.vmem [shape: bf16[5,80,128], index: 3, kind: input, shape index: {}]
  %s4 = inlined_call_operand.vmem [shape: bf16[128,128], index: 4, kind: input, shape index: {}]
  %s5 = inlined_call_operand.vmem [shape: bf16[128,128], index: 5, kind: input, shape index: {}]
  %s6 = inlined_call_operand.vmem [shape: f32[1,84], index: 6, kind: input, shape index: {}]
  %s7 = inlined_call_operand.vmem [shape: f32[1,80], index: 7, kind: input, shape index: {}]
  %s8 = inlined_call_operand.vmem [shape: f32[1,128], index: 8, kind: input, shape index: {}]
  %s9 = inlined_call_operand.vmem [shape: f32[1,128], index: 9, kind: input, shape index: {}]
  %s10 = inlined_call_operand.vmem [shape: f32[1,128], index: 10, kind: input, shape index: {}]
  %s11 = inlined_call_operand.vmem [shape: f32[16,128], index: 11, kind: output, shape index: {}]
  %s12 = sld [smem:[#allocation0]]
  $region54: #{lenet_forward.1} parent=0
    _
  %s14 = ssub.s32 1, %s12
  %s15 = scalar_select 0, %s14, %s12
  // Predicated region
  $region2: #{lenet_forward.1} parent=0 // pred_check
    _
  $region3: #{lenet_forward.1} parent=0 // pred_check_branch
    %17 = sbr.rel (0) target = $region5
  $region4: #{lenet_forward.1} parent=0 // pred_region
    _
  $region5: #{lenet_forward.1} parent=0 // pred_fallthru
    _
  // Predicated region
  $region6: #{lenet_forward.1} parent=0 // pred_check
    _
  $region7: #{lenet_forward.1} parent=0 // pred_check_branch
    %19 = sbr.rel (0) target = $region9
  $region8: #{lenet_forward.1} parent=0 // pred_region
    _
  $region9: #{lenet_forward.1} parent=0 // pred_fallthru
    _
  // Predicated region
  $region10: #{lenet_forward.1} parent=0 // pred_check
    _
  $region11: #{lenet_forward.1} parent=0 // pred_check_branch
    %21 = sbr.rel (0) target = $region13
  $region12: #{lenet_forward.1} parent=0 // pred_region
    _
  $region13: #{lenet_forward.1} parent=0 // pred_fallthru
    _
  // Predicated region
  $region14: #{lenet_forward.1} parent=0 // pred_check
    _
  $region15: #{lenet_forward.1} parent=0 // pred_check_branch
    %23 = sbr.rel (0) target = $region17
  $region16: #{lenet_forward.1} parent=0 // pred_region
    _
  $region17: #{lenet_forward.1} parent=0 // pred_fallthru
    _
  // Predicated region
  $region18: #{lenet_forward.1} parent=0 // pred_check
    _
  $region19: #{lenet_forward.1} parent=0 // pred_check_branch
    %25 = sbr.rel (0) target = $region21
  $region20: #{lenet_forward.1} parent=0 // pred_region
    _
  $region21: #{lenet_forward.1} parent=0 // pred_fallthru
    _
  // Predicated region
  $region22: #{lenet_forward.1} parent=0 // pred_check
    _
  $region23: #{lenet_forward.1} parent=0 // pred_check_branch
    %27 = sbr.rel (0) target = $region25
  $region24: #{lenet_forward.1} parent=0 // pred_region
    _
  $region25: #{lenet_forward.1} parent=0 // pred_fallthru
    _
  // Predicated region
  $region26: #{lenet_forward.1} parent=0 // pred_check
    _
  $region27: #{lenet_forward.1} parent=0 // pred_check_branch
    %29 = sbr.rel (0) target = $region29
  $region28: #{lenet_forward.1} parent=0 // pred_region
    _
  $region29: #{lenet_forward.1} parent=0 // pred_fallthru
    _
  // Predicated region
  $region30: #{lenet_forward.1} parent=0 // pred_check
    _
  $region31: #{lenet_forward.1} parent=0 // pred_check_branch
    %31 = sbr.rel (0) target = $region33
  $region32: #{lenet_forward.1} parent=0 // pred_region
    _
  $region33: #{lenet_forward.1} parent=0 // pred_fallthru
    _
  // Predicated region
  $region34: #{lenet_forward.1} parent=0 // pred_check
    _
  $region35: #{lenet_forward.1} parent=0 // pred_check_branch
    %33 = sbr.rel (0) target = $region37
  $region36: #{lenet_forward.1} parent=0 // pred_region
    _
  $region37: #{lenet_forward.1} parent=0 // pred_fallthru
    _
  // Predicated region
  $region38: #{lenet_forward.1} parent=0 // pred_check
    _
  $region39: #{lenet_forward.1} parent=0 // pred_check_branch
    %35 = sbr.rel (0) target = $region41
  $region40: #{lenet_forward.1} parent=0 // pred_region
    _
  $region41: #{lenet_forward.1} parent=0 // pred_fallthru
    _
  // Predicated region
  $region42: #{lenet_forward.1} parent=0 // pred_check
    _
  $region43: #{lenet_forward.1} parent=0 // pred_check_branch
    %37 = sbr.rel (0) target = $region45
  $region44: #{lenet_forward.1} parent=0 // pred_region
    _
  $region45: #{lenet_forward.1} parent=0 // pred_fallthru
    _
  %v39 = vld [vmem:[%s0] sm:$0xf]
  %v40 = vld [vmem:[%s0 + $0x4] sm:$0xf]
  %v41 = vld [vmem:[%s0 + $0x8] sm:$0xf]
  %v42 = vld [vmem:[%s0 + $0xc] sm:$0xf]
  %v43 = vld [vmem:[%s0 + $0x10] sm:$0xf]
  %v44 = vld [vmem:[%s0 + $0x14] sm:$0xf]
  %v45 = vld [vmem:[%s0 + $0x18] sm:$0xf]
  %v46 = vld [vmem:[%s0 + $0x1c] sm:$0xf]
  %v47 = vld [vmem:[%s0 + $0x20] sm:$0xf]
  %v48 = vld [vmem:[%s0 + $0x24] sm:$0xf]
  %v49 = vld [vmem:[%s0 + $0x28] sm:$0xf]
  %v50 = vld [vmem:[%s0 + $0x2c] sm:$0xf]
  %v51 = vld [vmem:[%s0 + $0x30] sm:$0xf]
  %v52 = vld [vmem:[%s0 + $0x34] sm:$0xf]
  %v53 = vld [vmem:[%s0 + $0x38] sm:$0xf]
  %v54 = vld [vmem:[%s0 + $0x3c] sm:$0xf]
  %v55 = vld [vmem:[%s0 + $0x40] sm:$0xf]
  %v56 = vld [vmem:[%s0 + $0x44] sm:$0xf]
  %v57 = vld [vmem:[%s0 + $0x48] sm:$0xf]
  %v58 = vld [vmem:[%s0 + $0x4c] sm:$0xf]
  %v59 = vld [vmem:[%s0 + $0x50] sm:$0xf]
  %v60 = vld [vmem:[%s0 + $0x54] sm:$0xf]
  %v61 = vld [vmem:[%s0 + $0x58] sm:$0xf]
  %v62 = vld [vmem:[%s0 + $0x5c] sm:$0xf]
  %v63 = vld [vmem:[%s0 + $0x60] sm:$0xf]
  %v64 = vld [vmem:[%s0 + $0x64] sm:$0xf]
  %v65 = vld [vmem:[%s0 + $0x68] sm:$0xf]
  %v66 = vld [vmem:[%s0 + $0x6c] sm:$0xf]
  %v67 = vld [vmem:[%s0 + $0x70] sm:$0xf]
  %v68 = vld [vmem:[%s0 + $0x74] sm:$0xf]
  %v69 = vld [vmem:[%s0 + $0x78] sm:$0xf]
  %v70 = vld [vmem:[%s0 + $0x7c] sm:$0xf]
  %v71 = vld [vmem:[%s0 + $0x80] sm:$0xf]
  %v72 = vld [vmem:[%s0 + $0x84] sm:$0xf]
  %v73 = vld [vmem:[%s0 + $0x88] sm:$0xf]
  %v74 = vld [vmem:[%s0 + $0x8c] sm:$0xf]
  %v75 = vld [vmem:[%s0 + $0x90] sm:$0xf]
  %v76 = vld [vmem:[%s0 + $0x94] sm:$0xf]
  %v77 = vld [vmem:[%s0 + $0x98] sm:$0xf]
  %v78 = vld [vmem:[%s0 + $0x9c] sm:$0xf]
  %v79 = vld [vmem:[%s0 + $0xa0] sm:$0xf]
  %v80 = vld [vmem:[%s0 + $0xa4] sm:$0xf]
  %v81 = vld [vmem:[%s0 + $0xa8] sm:$0xf]
  %v82 = vld [vmem:[%s0 + $0xac] sm:$0xf]
  %v83 = vld [vmem:[%s0 + $0xb0] sm:$0xf]
  %v84 = vld [vmem:[%s0 + $0xb4] sm:$0xf]
  %v85 = vld [vmem:[%s0 + $0xb8] sm:$0xf]
  %v86 = vld [vmem:[%s0 + $0xbc] sm:$0xf]
  %v87 = vld [vmem:[%s0 + $0xc0] sm:$0xf]
  %v88 = vld [vmem:[%s0 + $0xc4] sm:$0xf]
  %v89 = vld [vmem:[%s0 + $0xc8] sm:$0xf]
  %v90 = vld [vmem:[%s0 + $0xcc] sm:$0xf]
  %v91 = vld [vmem:[%s0 + $0xd0] sm:$0xf]
  %v92 = vld [vmem:[%s0 + $0xd4] sm:$0xf]
  %v93 = vld [vmem:[%s0 + $0xd8] sm:$0xf]
  %v94 = vld [vmem:[%s0 + $0xdc] sm:$0xf]
  %v95 = vld [vmem:[%s0 + $0xe0] sm:$0xf]
  %v96 = vld [vmem:[%s0 + $0xe4] sm:$0xf]
  %v97 = vld [vmem:[%s0 + $0xe8] sm:$0xf]
  %v98 = vld [vmem:[%s0 + $0xec] sm:$0xf]
  %v99 = vld [vmem:[%s0 + $0xf0] sm:$0xf]
  %v100 = vld [vmem:[%s0 + $0xf4] sm:$0xf]
  %v101 = vld [vmem:[%s0 + $0xf8] sm:$0xf]
  %v102 = vld [vmem:[%s0 + $0xfc] sm:$0xf]
  %v103 = vld [vmem:[%s6] sm:$0x1]
  %v104 = vld [vmem:[%s1] sm:$0xf]
  %v105 = vld [vmem:[%s1 + $0x4] sm:$0xf]
  %v106 = vld [vmem:[%s1 + $0x8] sm:$0xf]
  %v107 = vld [vmem:[%s1 + $0xc] sm:$0xf]
  %v108 = vld [vmem:[%s1 + $0x10] sm:$0xf]
  %v109 = vld [vmem:[%s1 + $0x14] sm:$0xf]
  %v110 = vld [vmem:[%s1 + $0x18] sm:$0xf]
  %v111 = vld [vmem:[%s1 + $0x1c] sm:$0xf]
  %v112 = vld [vmem:[%s1 + $0x20] sm:$0xf]
  %v113 = vld [vmem:[%s1 + $0x24] sm:$0xf]
  %v114 = vld [vmem:[%s1 + $0x28] sm:$0xf]
  %v115 = vld [vmem:[%s1 + $0x2c] sm:$0xf]
  %s116 = scalar_lea.vmem %s1, 48
  %v117 = vld [vmem:[%s116] sm:$0xf]
  %v118 = vld [vmem:[%s116 + $0x4] sm:$0xf]
  %v119 = vld [vmem:[%s116 + $0x8] sm:$0xf]
  %v120 = vld [vmem:[%s116 + $0xc] sm:$0xf]
  %v121 = vld [vmem:[%s116 + $0x10] sm:$0xf]
  %v122 = vld [vmem:[%s116 + $0x14] sm:$0xf]
  %v123 = vld [vmem:[%s116 + $0x18] sm:$0xf]
  %v124 = vld [vmem:[%s116 + $0x1c] sm:$0xf]
  %v125 = vld [vmem:[%s116 + $0x20] sm:$0xf]
  %v126 = vld [vmem:[%s116 + $0x24] sm:$0xf]
  %v127 = vld [vmem:[%s116 + $0x28] sm:$0xf]
  %v128 = vld [vmem:[%s116 + $0x2c] sm:$0xf]
  %v185 = vunpack.c.l.b16 %v41
  %v186 = vunpack.c.l.b16 %v42
  %v187 = vunpack.c.l.b16 %v43
  %v188 = vunpack.c.l.b16 %v44
  %v189 = vunpack.c.l.b16 %v45
  %v190 = vunpack.c.l.b16 %v46
  %v191 = vunpack.c.l.b16 %v47
  %v192 = vunpack.c.l.b16 %v48
  %v193 = vunpack.c.l.b16 %v49
  %v194 = vunpack.c.l.b16 %v50
  %v195 = vunpack.c.l.b16 %v51
  %v196 = vunpack.c.l.b16 %v52
  %v197 = vunpack.c.l.b16 %v53
  %v198 = vunpack.c.l.b16 %v54
  %v199 = vunpack.c.l.b16 %v55
  %v200 = vunpack.c.l.b16 %v56
  %v201 = vunpack.c.l.b16 %v57
  %v202 = vunpack.c.l.b16 %v58
  %v203 = vunpack.c.l.b16 %v59
  %v204 = vunpack.c.l.b16 %v60
  %v205 = vunpack.c.l.b16 %v61
  %v206 = vunpack.c.l.b16 %v62
  %v207 = vunpack.c.l.b16 %v63
  %v208 = vunpack.c.l.b16 %v64
  %v209 = vunpack.c.l.b16 %v65
  %v210 = vunpack.c.l.b16 %v66
  %v211 = vunpack.c.l.b16 %v67
  %v212 = vunpack.c.l.b16 %v68
  %v213 = vunpack.c.l.b16 %v69
  %v214 = vunpack.c.l.b16 %v70
  %v215 = vunpack.c.l.b16 %v71
  %v216 = vunpack.c.l.b16 %v72
  %v217 = vunpack.c.l.b16 %v73
  %v218 = vunpack.c.l.b16 %v74
  %v219 = vunpack.c.l.b16 %v75
  %v220 = vunpack.c.l.b16 %v76
  %v221 = vunpack.c.l.b16 %v77
  %v222 = vunpack.c.l.b16 %v78
  %v223 = vunpack.c.l.b16 %v79
  %v224 = vunpack.c.l.b16 %v80
  %v225 = vunpack.c.l.b16 %v81
  %v226 = vunpack.c.l.b16 %v82
  %v227 = vunpack.c.l.b16 %v83
  %v228 = vunpack.c.l.b16 %v84
  %v229 = vunpack.c.l.b16 %v85
  %v230 = vunpack.c.l.b16 %v86
  %v231 = vunpack.c.l.b16 %v87
  %v232 = vunpack.c.l.b16 %v88
  %v233 = vunpack.c.l.b16 %v89
  %v234 = vunpack.c.l.b16 %v90
  %v235 = vunpack.c.l.b16 %v91
  %v236 = vunpack.c.l.b16 %v92
  %v237 = vunpack.c.l.b16 %v93
  %v238 = vunpack.c.l.b16 %v94
  %v239 = vunpack.c.l.b16 %v95
  %v240 = vunpack.c.l.b16 %v96
  %v241 = vpack.c.b16 %v186, %v185
  %v242 = vpack.c.b16 %v188, %v187
  %v243 = vpack.c.b16 %v190, %v189
  %v244 = vpack.c.b16 %v192, %v191
  %v245 = vpack.c.b16 %v194, %v193
  %v246 = vpack.c.b16 %v196, %v195
  %v247 = vpack.c.b16 %v198, %v197
  %v248 = vpack.c.b16 %v200, %v199
  %v249 = vpack.c.b16 %v202, %v201
  %v250 = vpack.c.b16 %v204, %v203
  %v251 = vpack.c.b16 %v206, %v205
  %v252 = vpack.c.b16 %v208, %v207
  %v253 = vpack.c.b16 %v210, %v209
  %v254 = vpack.c.b16 %v212, %v211
  %v255 = vpack.c.b16 %v214, %v213
  %v256 = vpack.c.b16 %v216, %v215
  %v257 = vpack.c.b16 %v218, %v217
  %v258 = vpack.c.b16 %v220, %v219
  %v259 = vpack.c.b16 %v222, %v221
  %v260 = vpack.c.b16 %v224, %v223
  %v261 = vpack.c.b16 %v226, %v225
  %v262 = vpack.c.b16 %v228, %v227
  %v263 = vpack.c.b16 %v230, %v229
  %v264 = vpack.c.b16 %v232, %v231
  %v265 = vpack.c.b16 %v234, %v233
  %v266 = vpack.c.b16 %v236, %v235
  %v267 = vpack.c.b16 %v238, %v237
  %v268 = vpack.c.b16 %v240, %v239
  %v281 = vunpack.c.l.b16 %v117
  %v282 = vunpack.c.l.b16 %v118
  %v283 = vunpack.c.l.b16 %v119
  %v284 = vunpack.c.l.b16 %v120
  %v285 = vunpack.c.l.b16 %v121
  %v286 = vunpack.c.l.b16 %v122
  %v287 = vunpack.c.l.b16 %v123
  %v288 = vunpack.c.l.b16 %v124
  %v289 = vunpack.c.l.b16 %v125
  %v290 = vunpack.c.l.b16 %v126
  %v291 = vunpack.c.l.b16 %v127
  %v292 = vunpack.c.l.b16 %v128
  %v293 = vpack.c.b16 %v282, %v281
  %v294 = vpack.c.b16 %v284, %v283
  %v295 = vpack.c.b16 %v286, %v285
  %v296 = vpack.c.b16 %v288, %v287
  %v297 = vpack.c.b16 %v290, %v289
  %v298 = vpack.c.b16 %v292, %v291
  %vm305 = vcmask 785408
  %v307 = vsel %vm305, %v241, 0
  %v310 = vsel %vm305, %v242, 0
  %v313 = vsel %vm305, %v243, 0
  %v316 = vsel %vm305, %v244, 0
  %v319 = vsel %vm305, %v245, 0
  %v322 = vsel %vm305, %v246, 0
  %v325 = vsel %vm305, %v247, 0
  %v328 = vsel %vm305, %v248, 0
  %v331 = vsel %vm305, %v249, 0
  %v334 = vsel %vm305, %v250, 0
  %v337 = vsel %vm305, %v251, 0
  %v340 = vsel %vm305, %v252, 0
  %v343 = vsel %vm305, %v253, 0
  %v346 = vsel %vm305, %v254, 0
  %v349 = vsel %vm305, %v255, 0
  %v352 = vsel %vm305, %v256, 0
  %v355 = vsel %vm305, %v257, 0
  %v358 = vsel %vm305, %v258, 0
  %v361 = vsel %vm305, %v259, 0
  %v364 = vsel %vm305, %v260, 0
  %v367 = vsel %vm305, %v261, 0
  %v370 = vsel %vm305, %v262, 0
  %v373 = vsel %vm305, %v263, 0
  %v376 = vsel %vm305, %v264, 0
  %v379 = vsel %vm305, %v265, 0
  %v382 = vsel %vm305, %v266, 0
  %v385 = vsel %vm305, %v267, 0
  %v388 = vsel %vm305, %v268, 0
  %390 = vmatprep.subr.bf16.mxu0 0
  %391 = vmatpush1.bf16.msra.mxu0 %v293
  %392 = vmatprep.subr.bf16.mxu0 0
  %393 = vmatpush1.bf16.msra.mxu0 %v294
  %394 = vmatprep.subr.bf16.mxu0 0
  %395 = vmatpush1.bf16.msra.mxu0 %v295
  %396 = vmatprep.subr.bf16.mxu0 0
  %397 = vmatpush1.bf16.msra.mxu0 %v296
  %398 = vmatprep.subr.bf16.mxu0 0
  %399 = vmatpush1.bf16.msra.mxu0 %v297
  %400 = vmatprep.subr.bf16.mxu0 0
  %401 = vmatpush1.bf16.msra.mxu0 %v298
  %402 = vmatprep.subr.bf16.mxu0 0
  %403 = vmatpush1.bf16.msra.mxu0 0
  %404 = vmatprep.subr.bf16.mxu0 0
  %405 = vmatpush1.bf16.msra.mxu0 0
  %406 = vmatprep.subr.bf16.mxu0 0
  %407 = vmatpush1.bf16.msra.mxu0 0
  %408 = vmatprep.subr.bf16.mxu0 0
  %409 = vmatpush1.bf16.msra.mxu0 0
  %410 = vmatprep.subr.bf16.mxu0 0
  %411 = vmatpush1.bf16.msra.mxu0 0
  %412 = vmatprep.subr.bf16.mxu0 0
  %413 = vmatpush1.bf16.msra.mxu0 0
  %414 = vmatprep.subr.bf16.mxu0 0
  %415 = vmatpush1.bf16.msra.mxu0 0
  %416 = vmatprep.subr.bf16.mxu0 0
  %417 = vmatpush1.bf16.msra.mxu0 0
  %418 = vmatprep.subr.bf16.mxu0 0
  %419 = vmatpush1.bf16.msra.mxu0 0
  %420 = vmatprep.subr.bf16.mxu0 0
  %421 = vmatpush1.bf16.msra.mxu0 0
  %422 = vmatprep.mubr.bf16.mxu0 0
  %423 = vmatmul.mubr.bf16.gmra.mrb[0].mxu0 %v307
  %v424 = vpop.f32.mrb[0].mxu0
  %v425 = vadd.f32 0.0, %v424
  %v426 = vpop.f32.mrb[0].mxu0
  %v427 = vpop.f32.mrb[0].mxu0
  %v428 = vadd.f32 0.0, %v427
  %v429 = vpop.f32.mrb[0].mxu0
  %430 = vmatprep.mubr.bf16.mxu0 0
  %431 = vmatmul.mubr.bf16.gmra.mrb[0].mxu0 %v310
  %v432 = vpop.f32.mrb[0].mxu0
  %v433 = vadd.f32 0.0, %v432
  %v434 = vpop.f32.mrb[0].mxu0
  %v435 = vpop.f32.mrb[0].mxu0
  %v436 = vadd.f32 0.0, %v435
  %v437 = vpop.f32.mrb[0].mxu0
  %438 = vmatprep.mubr.bf16.mxu0 0
  %439 = vmatmul.mubr.bf16.gmra.mrb[0].mxu0 %v313
  %v440 = vpop.f32.mrb[0].mxu0
  %v441 = vadd.f32 0.0, %v440
  %v442 = vpop.f32.mrb[0].mxu0
  %v443 = vpop.f32.mrb[0].mxu0
  %v444 = vadd.f32 0.0, %v443
  %v445 = vpop.f32.mrb[0].mxu0
  %446 = vmatprep.mubr.bf16.mxu0 0
  %447 = vmatmul.mubr.bf16.gmra.mrb[0].mxu0 %v316
  %v448 = vpop.f32.mrb[0].mxu0
  %v449 = vadd.f32 0.0, %v448
  %v450 = vpop.f32.mrb[0].mxu0
  %v451 = vpop.f32.mrb[0].mxu0
  %v452 = vadd.f32 0.0, %v451
  %v453 = vpop.f32.mrb[0].mxu0
  %454 = vmatprep.mubr.bf16.mxu0 0
  %455 = vmatmul.mubr.bf16.gmra.mrb[0].mxu0 %v319
  %v456 = vpop.f32.mrb[0].mxu0
  %v457 = vadd.f32 0.0, %v456
  %v458 = vpop.f32.mrb[0].mxu0
  %v459 = vpop.f32.mrb[0].mxu0
  %v460 = vadd.f32 0.0, %v459
  %v461 = vpop.f32.mrb[0].mxu0
  %462 = vmatprep.mubr.bf16.mxu0 0
  %463 = vmatmul.mubr.bf16.gmra.mrb[0].mxu0 %v322
  %v464 = vpop.f32.mrb[0].mxu0
  %v465 = vadd.f32 0.0, %v464
  %v466 = vpop.f32.mrb[0].mxu0
  %v467 = vpop.f32.mrb[0].mxu0
  %v468 = vadd.f32 0.0, %v467
  %v469 = vpop.f32.mrb[0].mxu0
  %470 = vmatprep.mubr.bf16.mxu0 0
  %471 = vmatmul.mubr.bf16.gmra.mrb[0].mxu0 %v325
  %v472 = vpop.f32.mrb[0].mxu0
  %v473 = vadd.f32 0.0, %v472
  %v474 = vpop.f32.mrb[0].mxu0
  %v475 = vpop.f32.mrb[0].mxu0
  %v476 = vadd.f32 0.0, %v475
  %v477 = vpop.f32.mrb[0].mxu0
  %478 = vmatprep.mubr.bf16.mxu0 0
  %479 = vmatmul.mubr.bf16.gmra.mrb[0].mxu0 %v328
  %v480 = vpop.f32.mrb[0].mxu0
  %v481 = vadd.f32 0.0, %v480
  %v482 = vpop.f32.mrb[0].mxu0
  %v483 = vpop.f32.mrb[0].mxu0
  %v484 = vadd.f32 0.0, %v483
  %v485 = vpop.f32.mrb[0].mxu0
  %486 = vmatprep.mubr.bf16.mxu0 0
  %487 = vmatmul.mubr.bf16.gmra.mrb[0].mxu0 %v331
  %v488 = vpop.f32.mrb[0].mxu0
  %v489 = vadd.f32 0.0, %v488
  %v490 = vpop.f32.mrb[0].mxu0
  %v491 = vpop.f32.mrb[0].mxu0
  %v492 = vadd.f32 0.0, %v491
  %v493 = vpop.f32.mrb[0].mxu0
  %494 = vmatprep.mubr.bf16.mxu0 0
  %495 = vmatmul.mubr.bf16.gmra.mrb[0].mxu0 %v334
  %v496 = vpop.f32.mrb[0].mxu0
  %v497 = vadd.f32 0.0, %v496
  %v498 = vpop.f32.mrb[0].mxu0
  %v499 = vpop.f32.mrb[0].mxu0
  %v500 = vadd.f32 0.0, %v499
  %v501 = vpop.f32.mrb[0].mxu0
  %502 = vmatprep.mubr.bf16.mxu0 0
  %503 = vmatmul.mubr.bf16.gmra.mrb[0].mxu0 %v337
  %v504 = vpop.f32.mrb[0].mxu0
  %v505 = vadd.f32 0.0, %v504
  %v506 = vpop.f32.mrb[0].mxu0
  %v507 = vpop.f32.mrb[0].mxu0
  %v508 = vadd.f32 0.0, %v507
  %v509 = vpop.f32.mrb[0].mxu0
  %510 = vmatprep.mubr.bf16.mxu0 0
  %511 = vmatmul.mubr.bf16.gmra.mrb[0].mxu0 %v340
  %v512 = vpop.f32.mrb[0].mxu0
  %v513 = vadd.f32 0.0, %v512
  %v514 = vpop.f32.mrb[0].mxu0
  %v515 = vpop.f32.mrb[0].mxu0
  %v516 = vadd.f32 0.0, %v515
  %v517 = vpop.f32.mrb[0].mxu0
  %518 = vmatprep.mubr.bf16.mxu0 0
  %519 = vmatmul.mubr.bf16.gmra.mrb[0].mxu0 %v343
  %v520 = vpop.f32.mrb[0].mxu0
  %v521 = vadd.f32 0.0, %v520
  %v522 = vpop.f32.mrb[0].mxu0
  %v523 = vpop.f32.mrb[0].mxu0
  %v524 = vadd.f32 0.0, %v523
  %v525 = vpop.f32.mrb[0].mxu0
  %526 = vmatprep.mubr.bf16.mxu0 0
  %527 = vmatmul.mubr.bf16.gmra.mrb[0].mxu0 %v346
  %v528 = vpop.f32.mrb[0].mxu0
  %v529 = vadd.f32 0.0, %v528
  %v530 = vpop.f32.mrb[0].mxu0
  %v531 = vpop.f32.mrb[0].mxu0
  %v532 = vadd.f32 0.0, %v531
  %v533 = vpop.f32.mrb[0].mxu0
  %534 = vmatprep.mubr.bf16.mxu0 0
  %535 = vmatmul.mubr.bf16.gmra.mrb[0].mxu0 %v349
  %v536 = vpop.f32.mrb[0].mxu0
  %v537 = vadd.f32 0.0, %v536
  %v538 = vpop.f32.mrb[0].mxu0
  %v539 = vpop.f32.mrb[0].mxu0
  %v540 = vadd.f32 0.0, %v539
  %v541 = vpop.f32.mrb[0].mxu0
  %542 = vmatprep.mubr.bf16.mxu0 0
  %543 = vmatmul.mubr.bf16.gmra.mrb[0].mxu0 %v352
  %v544 = vpop.f32.mrb[0].mxu0
  %v545 = vadd.f32 0.0, %v544
  %v546 = vpop.f32.mrb[0].mxu0
  %v547 = vpop.f32.mrb[0].mxu0
  %v548 = vadd.f32 0.0, %v547
  %v549 = vpop.f32.mrb[0].mxu0
  %550 = vmatprep.mubr.bf16.mxu0 0
  %551 = vmatmul.mubr.bf16.gmra.mrb[0].mxu0 %v355
  %v552 = vpop.f32.mrb[0].mxu0
  %v553 = vadd.f32 0.0, %v552
  %v554 = vpop.f32.mrb[0].mxu0
  %v555 = vpop.f32.mrb[0].mxu0
  %v556 = vadd.f32 0.0, %v555
  %v557 = vpop.f32.mrb[0].mxu0
  %558 = vmatprep.mubr.bf16.mxu0 0
  %559 = vmatmul.mubr.bf16.gmra.mrb[0].mxu0 %v358
  %v560 = vpop.f32.mrb[0].mxu0
  %v561 = vadd.f32 0.0, %v560
  %v562 = vpop.f32.mrb[0].mxu0
  %v563 = vpop.f32.mrb[0].mxu0
  %v564 = vadd.f32 0.0, %v563
  %v565 = vpop.f32.mrb[0].mxu0
  %566 = vmatprep.mubr.bf16.mxu0 0
  %567 = vmatmul.mubr.bf16.gmra.mrb[0].mxu0 %v361
  %v568 = vpop.f32.mrb[0].mxu0
  %v569 = vadd.f32 0.0, %v568
  %v570 = vpop.f32.mrb[0].mxu0
  %v571 = vpop.f32.mrb[0].mxu0
  %v572 = vadd.f32 0.0, %v571
  %v573 = vpop.f32.mrb[0].mxu0
  %574 = vmatprep.mubr.bf16.mxu0 0
  %575 = vmatmul.mubr.bf16.gmra.mrb[0].mxu0 %v364
  %v576 = vpop.f32.mrb[0].mxu0
  %v577 = vadd.f32 0.0, %v576
  %v578 = vpop.f32.mrb[0].mxu0
  %v579 = vpop.f32.mrb[0].mxu0
  %v580 = vadd.f32 0.0, %v579
  %v581 = vpop.f32.mrb[0].mxu0
  %582 = vmatprep.mubr.bf16.mxu0 0
  %583 = vmatmul.mubr.bf16.gmra.mrb[0].mxu0 %v367
  %v584 = vpop.f32.mrb[0].mxu0
  %v585 = vadd.f32 0.0, %v584
  %v586 = vpop.f32.mrb[0].mxu0
  %v587 = vpop.f32.mrb[0].mxu0
  %v588 = vadd.f32 0.0, %v587
  %v589 = vpop.f32.mrb[0].mxu0
  %590 = vmatprep.mubr.bf16.mxu0 0
  %591 = vmatmul.mubr.bf16.gmra.mrb[0].mxu0 %v370
  %v592 = vpop.f32.mrb[0].mxu0
  %v593 = vadd.f32 0.0, %v592
  %v594 = vpop.f32.mrb[0].mxu0
  %v595 = vpop.f32.mrb[0].mxu0
  %v596 = vadd.f32 0.0, %v595
  %v597 = vpop.f32.mrb[0].mxu0
  %598 = vmatprep.mubr.bf16.mxu0 0
  %599 = vmatmul.mubr.bf16.gmra.mrb[0].mxu0 %v373
  %v600 = vpop.f32.mrb[0].mxu0
  %v601 = vadd.f32 0.0, %v600
  %v602 = vpop.f32.mrb[0].mxu0
  %v603 = vpop.f32.mrb[0].mxu0
  %v604 = vadd.f32 0.0, %v603
  %v605 = vpop.f32.mrb[0].mxu0
  %606 = vmatprep.mubr.bf16.mxu0 0
  %607 = vmatmul.mubr.bf16.gmra.mrb[0].mxu0 %v376
  %v608 = vpop.f32.mrb[0].mxu0
  %v609 = vadd.f32 0.0, %v608
  %v610 = vpop.f32.mrb[0].mxu0
  %v611 = vpop.f32.mrb[0].mxu0
  %v612 = vadd.f32 0.0, %v611
  %v613 = vpop.f32.mrb[0].mxu0
  %614 = vmatprep.mubr.bf16.mxu0 0
  %615 = vmatmul.mubr.bf16.gmra.mrb[0].mxu0 %v379
  %v616 = vpop.f32.mrb[0].mxu0
  %v617 = vadd.f32 0.0, %v616
  %v618 = vpop.f32.mrb[0].mxu0
  %v619 = vpop.f32.mrb[0].mxu0
  %v620 = vadd.f32 0.0, %v619
  %v621 = vpop.f32.mrb[0].mxu0
  %622 = vmatprep.mubr.bf16.mxu0 0
  %623 = vmatmul.mubr.bf16.gmra.mrb[0].mxu0 %v382
  %v624 = vpop.f32.mrb[0].mxu0
  %v625 = vadd.f32 0.0, %v624
  %v626 = vpop.f32.mrb[0].mxu0
  %v627 = vpop.f32.mrb[0].mxu0
  %v628 = vadd.f32 0.0, %v627
  %v629 = vpop.f32.mrb[0].mxu0
  %630 = vmatprep.mubr.bf16.mxu0 0
  %631 = vmatmul.mubr.bf16.gmra.mrb[0].mxu0 %v385
  %v632 = vpop.f32.mrb[0].mxu0
  %v633 = vadd.f32 0.0, %v632
  %v634 = vpop.f32.mrb[0].mxu0
  %v635 = vpop.f32.mrb[0].mxu0
  %v636 = vadd.f32 0.0, %v635
  %v637 = vpop.f32.mrb[0].mxu0
  %638 = vmatprep.mubr.bf16.mxu0 0
  %639 = vmatmul.mubr.bf16.gmra.mrb[0].mxu0 %v388
  %v640 = vpop.f32.mrb[0].mxu0
  %v641 = vadd.f32 0.0, %v640
  %v642 = vpop.f32.mrb[0].mxu0
  %v643 = vpop.f32.mrb[0].mxu0
  %v644 = vadd.f32 0.0, %v643
  %v645 = vpop.f32.mrb[0].mxu0
  %646 = vdwg.mxu0
  %v649 = vunpack.c.l.b16 %v39
  %v650 = vunpack.c.l.b16 %v40
  %v651 = vpack.c.b16 %v650, %v649
  %v664 = vunpack.c.l.b16 %v104
  %v665 = vunpack.c.l.b16 %v105
  %v666 = vunpack.c.l.b16 %v106
  %v667 = vunpack.c.l.b16 %v107
  %v668 = vunpack.c.l.b16 %v108
  %v669 = vunpack.c.l.b16 %v109
  %v670 = vunpack.c.l.b16 %v110
  %v671 = vunpack.c.l.b16 %v111
  %v672 = vunpack.c.l.b16 %v112
  %v673 = vunpack.c.l.b16 %v113
  %v674 = vunpack.c.l.b16 %v114
  %v675 = vunpack.c.l.b16 %v115
  %v676 = vpack.c.b16 %v665, %v664
  %v677 = vpack.c.b16 %v667, %v666
  %v678 = vpack.c.b16 %v669, %v668
  %v679 = vpack.c.b16 %v671, %v670
  %v680 = vpack.c.b16 %v673, %v672
  %v681 = vpack.c.b16 %v675, %v674
  %v689 = vsel %vm305, %v651, 0
  %691 = vmatprep.subr.bf16.mxu0 0
  %692 = vmatpush1.bf16.msra.mxu0 %v676
  %693 = vmatprep.subr.bf16.mxu0 0
  %694 = vmatpush1.bf16.msra.mxu0 %v677
  %695 = vmatprep.subr.bf16.mxu0 0
  %696 = vmatpush1.bf16.msra.mxu0 %v678
  %697 = vmatprep.subr.bf16.mxu0 0
  %698 = vmatpush1.bf16.msra.mxu0 %v679
  %699 = vmatprep.subr.bf16.mxu0 0
  %700 = vmatpush1.bf16.msra.mxu0 %v680
  %701 = vmatprep.subr.bf16.mxu0 0
  %702 = vmatpush1.bf16.msra.mxu0 %v681
  %703 = vmatprep.subr.bf16.mxu0 0
  %704 = vmatpush1.bf16.msra.mxu0 0
  %705 = vmatprep.subr.bf16.mxu0 0
  %706 = vmatpush1.bf16.msra.mxu0 0
  %707 = vmatprep.subr.bf16.mxu0 0
  %708 = vmatpush1.bf16.msra.mxu0 0
  %709 = vmatprep.subr.bf16.mxu0 0
  %710 = vmatpush1.bf16.msra.mxu0 0
  %711 = vmatprep.subr.bf16.mxu0 0
  %712 = vmatpush1.bf16.msra.mxu0 0
  %713 = vmatprep.subr.bf16.mxu0 0
  %714 = vmatpush1.bf16.msra.mxu0 0
  %715 = vmatprep.subr.bf16.mxu0 0
  %716 = vmatpush1.bf16.msra.mxu0 0
  %717 = vmatprep.subr.bf16.mxu0 0
  %718 = vmatpush1.bf16.msra.mxu0 0
  %719 = vmatprep.subr.bf16.mxu0 0
  %720 = vmatpush1.bf16.msra.mxu0 0
  %721 = vmatprep.subr.bf16.mxu0 0
  %722 = vmatpush1.bf16.msra.mxu0 0
  %723 = vmatprep.mubr.bf16.mxu0 0
  %724 = vmatmul.mubr.bf16.gmra.mrb[0].mxu0 %v689
  %v725 = vpop.f32.mrb[0].mxu0
  %v726 = vadd.f32 %v425, %v725
  %v727 = vpop.f32.mrb[0].mxu0
  %v728 = vpop.f32.mrb[0].mxu0
  %v729 = vadd.f32 %v428, %v728
  %v730 = vpop.f32.mrb[0].mxu0
  %731 = vmatprep.mubr.bf16.mxu0 0
  %732 = vmatmul.mubr.bf16.gmra.mrb[0].mxu0 %v307
  %v733 = vpop.f32.mrb[0].mxu0
  %v734 = vadd.f32 %v433, %v733
  %v735 = vpop.f32.mrb[0].mxu0
  %v736 = vpop.f32.mrb[0].mxu0
  %v737 = vadd.f32 %v436, %v736
  %v738 = vpop.f32.mrb[0].mxu0
  %739 = vmatprep.mubr.bf16.mxu0 0
  %740 = vmatmul.mubr.bf16.gmra.mrb[0].mxu0 %v310
  %v741 = vpop.f32.mrb[0].mxu0
  %v742 = vadd.f32 %v441, %v741
  %v743 = vpop.f32.mrb[0].mxu0
  %v744 = vpop.f32.mrb[0].mxu0
  %v745 = vadd.f32 %v444, %v744
  %v746 = vpop.f32.mrb[0].mxu0
  %747 = vmatprep.mubr.bf16.mxu0 0
  %748 = vmatmul.mubr.bf16.gmra.mrb[0].mxu0 %v313
  %v749 = vpop.f32.mrb[0].mxu0
  %v750 = vadd.f32 %v449, %v749
  %v751 = vpop.f32.mrb[0].mxu0
  %v752 = vpop.f32.mrb[0].mxu0
  %v753 = vadd.f32 %v452, %v752
  %v754 = vpop.f32.mrb[0].mxu0
  %755 = vmatprep.mubr.bf16.mxu0 0
  %756 = vmatmul.mubr.bf16.gmra.mrb[0].mxu0 %v316
  %v757 = vpop.f32.mrb[0].mxu0
  %v758 = vadd.f32 %v457, %v757
  %v759 = vpop.f32.mrb[0].mxu0
  %v760 = vpop.f32.mrb[0].mxu0
  %v761 = vadd.f32 %v460, %v760
  %v762 = vpop.f32.mrb[0].mxu0
  %763 = vmatprep.mubr.bf16.mxu0 0
  %764 = vmatmul.mubr.bf16.gmra.mrb[0].mxu0 %v319
  %v765 = vpop.f32.mrb[0].mxu0
  %v766 = vadd.f32 %v465, %v765
  %v767 = vpop.f32.mrb[0].mxu0
  %v768 = vpop.f32.mrb[0].mxu0
  %v769 = vadd.f32 %v468, %v768
  %v770 = vpop.f32.mrb[0].mxu0
  %771 = vmatprep.mubr.bf16.mxu0 0
  %772 = vmatmul.mubr.bf16.gmra.mrb[0].mxu0 %v322
  %v773 = vpop.f32.mrb[0].mxu0
  %v774 = vadd.f32 %v473, %v773
  %v775 = vpop.f32.mrb[0].mxu0
  %v776 = vpop.f32.mrb[0].mxu0
  %v777 = vadd.f32 %v476, %v776
  %v778 = vpop.f32.mrb[0].mxu0
  %779 = vmatprep.mubr.bf16.mxu0 0
  %780 = vmatmul.mubr.bf16.gmra.mrb[0].mxu0 %v325
  %v781 = vpop.f32.mrb[0].mxu0
  %v782 = vadd.f32 %v481, %v781
  %v783 = vpop.f32.mrb[0].mxu0
  %v784 = vpop.f32.mrb[0].mxu0
  %v785 = vadd.f32 %v484, %v784
  %v786 = vpop.f32.mrb[0].mxu0
  %787 = vmatprep.mubr.bf16.mxu0 0
  %788 = vmatmul.mubr.bf16.gmra.mrb[0].mxu0 %v328
  %v789 = vpop.f32.mrb[0].mxu0
  %v790 = vadd.f32 %v489, %v789
  %v791 = vpop.f32.mrb[0].mxu0
  %v792 = vpop.f32.mrb[0].mxu0
  %v793 = vadd.f32 %v492, %v792
  %v794 = vpop.f32.mrb[0].mxu0
  %795 = vmatprep.mubr.bf16.mxu0 0
  %796 = vmatmul.mubr.bf16.gmra.mrb[0].mxu0 %v331
  %v797 = vpop.f32.mrb[0].mxu0
  %v798 = vadd.f32 %v497, %v797
  %v799 = vpop.f32.mrb[0].mxu0
  %v800 = vpop.f32.mrb[0].mxu0
  %v801 = vadd.f32 %v500, %v800
  %v802 = vpop.f32.mrb[0].mxu0
  %803 = vmatprep.mubr.bf16.mxu0 0
  %804 = vmatmul.mubr.bf16.gmra.mrb[0].mxu0 %v334
  %v805 = vpop.f32.mrb[0].mxu0
  %v806 = vadd.f32 %v505, %v805
  %v807 = vpop.f32.mrb[0].mxu0
  %v808 = vpop.f32.mrb[0].mxu0
  %v809 = vadd.f32 %v508, %v808
  %v810 = vpop.f32.mrb[0].mxu0
  %811 = vmatprep.mubr.bf16.mxu0 0
  %812 = vmatmul.mubr.bf16.gmra.mrb[0].mxu0 %v337
  %v813 = vpop.f32.mrb[0].mxu0
  %v814 = vadd.f32 %v513, %v813
  %v815 = vpop.f32.mrb[0].mxu0
  %v816 = vpop.f32.mrb[0].mxu0
  %v817 = vadd.f32 %v516, %v816
  %v818 = vpop.f32.mrb[0].mxu0
  %819 = vmatprep.mubr.bf16.mxu0 0
  %820 = vmatmul.mubr.bf16.gmra.mrb[0].mxu0 %v340
  %v821 = vpop.f32.mrb[0].mxu0
  %v822 = vadd.f32 %v521, %v821
  %v823 = vpop.f32.mrb[0].mxu0
  %v824 = vpop.f32.mrb[0].mxu0
  %v825 = vadd.f32 %v524, %v824
  %v826 = vpop.f32.mrb[0].mxu0
  %827 = vmatprep.mubr.bf16.mxu0 0
  %828 = vmatmul.mubr.bf16.gmra.mrb[0].mxu0 %v343
  %v829 = vpop.f32.mrb[0].mxu0
  %v830 = vadd.f32 %v529, %v829
  %v831 = vpop.f32.mrb[0].mxu0
  %v832 = vpop.f32.mrb[0].mxu0
  %v833 = vadd.f32 %v532, %v832
  %v834 = vpop.f32.mrb[0].mxu0
  %835 = vmatprep.mubr.bf16.mxu0 0
  %836 = vmatmul.mubr.bf16.gmra.mrb[0].mxu0 %v346
  %v837 = vpop.f32.mrb[0].mxu0
  %v838 = vadd.f32 %v537, %v837
  %v839 = vpop.f32.mrb[0].mxu0
  %v840 = vpop.f32.mrb[0].mxu0
  %v841 = vadd.f32 %v540, %v840
  %v842 = vpop.f32.mrb[0].mxu0
  %843 = vmatprep.mubr.bf16.mxu0 0
  %844 = vmatmul.mubr.bf16.gmra.mrb[0].mxu0 %v349
  %v845 = vpop.f32.mrb[0].mxu0
  %v846 = vadd.f32 %v545, %v845
  %v847 = vpop.f32.mrb[0].mxu0
  %v848 = vpop.f32.mrb[0].mxu0
  %v849 = vadd.f32 %v548, %v848
  %v850 = vpop.f32.mrb[0].mxu0
  %851 = vmatprep.mubr.bf16.mxu0 0
  %852 = vmatmul.mubr.bf16.gmra.mrb[0].mxu0 %v352
  %v853 = vpop.f32.mrb[0].mxu0
  %v854 = vadd.f32 %v553, %v853
  %v855 = vpop.f32.mrb[0].mxu0
  %v856 = vpop.f32.mrb[0].mxu0
  %v857 = vadd.f32 %v556, %v856
  %v858 = vpop.f32.mrb[0].mxu0
  %859 = vmatprep.mubr.bf16.mxu0 0
  %860 = vmatmul.mubr.bf16.gmra.mrb[0].mxu0 %v355
  %v861 = vpop.f32.mrb[0].mxu0
  %v862 = vadd.f32 %v561, %v861
  %v863 = vpop.f32.mrb[0].mxu0
  %v864 = vpop.f32.mrb[0].mxu0
  %v865 = vadd.f32 %v564, %v864
  %v866 = vpop.f32.mrb[0].mxu0
  %867 = vmatprep.mubr.bf16.mxu0 0
  %868 = vmatmul.mubr.bf16.gmra.mrb[0].mxu0 %v358
  %v869 = vpop.f32.mrb[0].mxu0
  %v870 = vadd.f32 %v569, %v869
  %v871 = vpop.f32.mrb[0].mxu0
  %v872 = vpop.f32.mrb[0].mxu0
  %v873 = vadd.f32 %v572, %v872
  %v874 = vpop.f32.mrb[0].mxu0
  %875 = vmatprep.mubr.bf16.mxu0 0
  %876 = vmatmul.mubr.bf16.gmra.mrb[0].mxu0 %v361
  %v877 = vpop.f32.mrb[0].mxu0
  %v878 = vadd.f32 %v577, %v877
  %v879 = vpop.f32.mrb[0].mxu0
  %v880 = vpop.f32.mrb[0].mxu0
  %v881 = vadd.f32 %v580, %v880
  %v882 = vpop.f32.mrb[0].mxu0
  %883 = vmatprep.mubr.bf16.mxu0 0
  %884 = vmatmul.mubr.bf16.gmra.mrb[0].mxu0 %v364
  %v885 = vpop.f32.mrb[0].mxu0
  %v886 = vadd.f32 %v585, %v885
  %v887 = vpop.f32.mrb[0].mxu0
  %v888 = vpop.f32.mrb[0].mxu0
  %v889 = vadd.f32 %v588, %v888
  %v890 = vpop.f32.mrb[0].mxu0
  %891 = vmatprep.mubr.bf16.mxu0 0
  %892 = vmatmul.mubr.bf16.gmra.mrb[0].mxu0 %v367
  %v893 = vpop.f32.mrb[0].mxu0
  %v894 = vadd.f32 %v593, %v893
  %v895 = vpop.f32.mrb[0].mxu0
  %v896 = vpop.f32.mrb[0].mxu0
  %v897 = vadd.f32 %v596, %v896
  %v898 = vpop.f32.mrb[0].mxu0
  %899 = vmatprep.mubr.bf16.mxu0 0
  %900 = vmatmul.mubr.bf16.gmra.mrb[0].mxu0 %v370
  %v901 = vpop.f32.mrb[0].mxu0
  %v902 = vadd.f32 %v601, %v901
  %v903 = vpop.f32.mrb[0].mxu0
  %v904 = vpop.f32.mrb[0].mxu0
  %v905 = vadd.f32 %v604, %v904
  %v906 = vpop.f32.mrb[0].mxu0
  %907 = vmatprep.mubr.bf16.mxu0 0
  %908 = vmatmul.mubr.bf16.gmra.mrb[0].mxu0 %v373
  %v909 = vpop.f32.mrb[0].mxu0
  %v910 = vadd.f32 %v609, %v909
  %v911 = vpop.f32.mrb[0].mxu0
  %v912 = vpop.f32.mrb[0].mxu0
  %v913 = vadd.f32 %v612, %v912
  %v914 = vpop.f32.mrb[0].mxu0
  %915 = vmatprep.mubr.bf16.mxu0 0
  %916 = vmatmul.mubr.bf16.gmra.mrb[0].mxu0 %v376
  %v917 = vpop.f32.mrb[0].mxu0
  %v918 = vadd.f32 %v617, %v917
  %v919 = vpop.f32.mrb[0].mxu0
  %v920 = vpop.f32.mrb[0].mxu0
  %v921 = vadd.f32 %v620, %v920
  %v922 = vpop.f32.mrb[0].mxu0
  %923 = vmatprep.mubr.bf16.mxu0 0
  %924 = vmatmul.mubr.bf16.gmra.mrb[0].mxu0 %v379
  %v925 = vpop.f32.mrb[0].mxu0
  %v926 = vadd.f32 %v625, %v925
  %v927 = vpop.f32.mrb[0].mxu0
  %v928 = vpop.f32.mrb[0].mxu0
  %v929 = vadd.f32 %v628, %v928
  %v930 = vpop.f32.mrb[0].mxu0
  %931 = vmatprep.mubr.bf16.mxu0 0
  %932 = vmatmul.mubr.bf16.gmra.mrb[0].mxu0 %v382
  %v933 = vpop.f32.mrb[0].mxu0
  %v934 = vadd.f32 %v633, %v933
  %v935 = vpop.f32.mrb[0].mxu0
  %v936 = vpop.f32.mrb[0].mxu0
  %v937 = vadd.f32 %v636, %v936
  %v938 = vpop.f32.mrb[0].mxu0
  %939 = vmatprep.mubr.bf16.mxu0 0
  %940 = vmatmul.mubr.bf16.gmra.mrb[0].mxu0 %v385
  %v941 = vpop.f32.mrb[0].mxu0
  %v942 = vadd.f32 %v641, %v941
  %v943 = vpop.f32.mrb[0].mxu0
  %v944 = vpop.f32.mrb[0].mxu0
  %v945 = vadd.f32 %v644, %v944
  %v946 = vpop.f32.mrb[0].mxu0
  %947 = vdwg.mxu0
  %s948 = scalar_lea.vmem %s1, 96
  %v949 = vld [vmem:[%s948] sm:$0xf]
  %v950 = vld [vmem:[%s948 + $0x4] sm:$0xf]
  %v951 = vld [vmem:[%s948 + $0x8] sm:$0xf]
  %v952 = vld [vmem:[%s948 + $0xc] sm:$0xf]
  %v953 = vld [vmem:[%s948 + $0x10] sm:$0xf]
  %v954 = vld [vmem:[%s948 + $0x14] sm:$0xf]
  %v955 = vld [vmem:[%s948 + $0x18] sm:$0xf]
  %v956 = vld [vmem:[%s948 + $0x1c] sm:$0xf]
  %v957 = vld [vmem:[%s948 + $0x20] sm:$0xf]
  %v958 = vld [vmem:[%s948 + $0x24] sm:$0xf]
  %v959 = vld [vmem:[%s948 + $0x28] sm:$0xf]
  %v960 = vld [vmem:[%s948 + $0x2c] sm:$0xf]
  %v963 = vunpack.c.l.b16 %v97
  %v964 = vunpack.c.l.b16 %v98
  %v965 = vpack.c.b16 %v964, %v963
  %v978 = vunpack.c.l.b16 %v949
  %v979 = vunpack.c.l.b16 %v950
  %v980 = vunpack.c.l.b16 %v951
  %v981 = vunpack.c.l.b16 %v952
  %v982 = vunpack.c.l.b16 %v953
  %v983 = vunpack.c.l.b16 %v954
  %v984 = vunpack.c.l.b16 %v955
  %v985 = vunpack.c.l.b16 %v956
  %v986 = vunpack.c.l.b16 %v957
  %v987 = vunpack.c.l.b16 %v958
  %v988 = vunpack.c.l.b16 %v959
  %v989 = vunpack.c.l.b16 %v960
  %v990 = vpack.c.b16 %v979, %v978
  %v991 = vpack.c.b16 %v981, %v980
  %v992 = vpack.c.b16 %v983, %v982
  %v993 = vpack.c.b16 %v985, %v984
  %v994 = vpack.c.b16 %v987, %v986
  %v995 = vpack.c.b16 %v989, %v988
  %v1003 = vsel %vm305, %v965, 0
  %1005 = vmatprep.subr.bf16.mxu0 0
  %1006 = vmatpush1.bf16.msra.mxu0 %v990
  %1007 = vmatprep.subr.bf16.mxu0 0
  %1008 = vmatpush1.bf16.msra.mxu0 %v991
  %1009 = vmatprep.subr.bf16.mxu0 0
  %1010 = vmatpush1.bf16.msra.mxu0 %v992
  %1011 = vmatprep.subr.bf16.mxu0 0
  %1012 = vmatpush1.bf16.msra.mxu0 %v993
  %1013 = vmatprep.subr.bf16.mxu0 0
  %1014 = vmatpush1.bf16.msra.mxu0 %v994
  %1015 = vmatprep.subr.bf16.mxu0 0
  %1016 = vmatpush1.bf16.msra.mxu0 %v995
  %1017 = vmatprep.subr.bf16.mxu0 0
  %1018 = vmatpush1.bf16.msra.mxu0 0
  %1019 = vmatprep.subr.bf16.mxu0 0
  %1020 = vmatpush1.bf16.msra.mxu0 0
  %1021 = vmatprep.subr.bf16.mxu0 0
  %1022 = vmatpush1.bf16.msra.mxu0 0
  %1023 = vmatprep.subr.bf16.mxu0 0
  %1024 = vmatpush1.bf16.msra.mxu0 0
  %1025 = vmatprep.subr.bf16.mxu0 0
  %1026 = vmatpush1.bf16.msra.mxu0 0
  %1027 = vmatprep.subr.bf16.mxu0 0
  %1028 = vmatpush1.bf16.msra.mxu0 0
  %1029 = vmatprep.subr.bf16.mxu0 0
  %1030 = vmatpush1.bf16.msra.mxu0 0
  %1031 = vmatprep.subr.bf16.mxu0 0
  %1032 = vmatpush1.bf16.msra.mxu0 0
  %1033 = vmatprep.subr.bf16.mxu0 0
  %1034 = vmatpush1.bf16.msra.mxu0 0
  %1035 = vmatprep.subr.bf16.mxu0 0
  %1036 = vmatpush1.bf16.msra.mxu0 0
  %1037 = vmatprep.mubr.bf16.mxu0 0
  %1038 = vmatmul.mubr.bf16.gmra.mrb[0].mxu0 %v310
  %v1039 = vpop.f32.mrb[0].mxu0
  %v1040 = vadd.f32 0.0, %v1039
  %v1041 = vpop.f32.mrb[0].mxu0
  %v1042 = vpop.f32.mrb[0].mxu0
  %v1043 = vadd.f32 0.0, %v1042
  %v1044 = vpop.f32.mrb[0].mxu0
  %1045 = vmatprep.mubr.bf16.mxu0 0
  %1046 = vmatmul.mubr.bf16.gmra.mrb[0].mxu0 %v313
  %v1047 = vpop.f32.mrb[0].mxu0
  %v1048 = vadd.f32 0.0, %v1047
  %v1049 = vpop.f32.mrb[0].mxu0
  %v1050 = vpop.f32.mrb[0].mxu0
  %v1051 = vadd.f32 0.0, %v1050
  %v1052 = vpop.f32.mrb[0].mxu0
  %1053 = vmatprep.mubr.bf16.mxu0 0
  %1054 = vmatmul.mubr.bf16.gmra.mrb[0].mxu0 %v316
  %v1055 = vpop.f32.mrb[0].mxu0
  %v1056 = vadd.f32 0.0, %v1055
  %v1057 = vpop.f32.mrb[0].mxu0
  %v1058 = vpop.f32.mrb[0].mxu0
  %v1059 = vadd.f32 0.0, %v1058
  %v1060 = vpop.f32.mrb[0].mxu0
  %1061 = vmatprep.mubr.bf16.mxu0 0
  %1062 = vmatmul.mubr.bf16.gmra.mrb[0].mxu0 %v319
  %v1063 = vpop.f32.mrb[0].mxu0
  %v1064 = vadd.f32 0.0, %v1063
  %v1065 = vpop.f32.mrb[0].mxu0
  %v1066 = vpop.f32.mrb[0].mxu0
  %v1067 = vadd.f32 0.0, %v1066
  %v1068 = vpop.f32.mrb[0].mxu0
  %1069 = vmatprep.mubr.bf16.mxu0 0
  %1070 = vmatmul.mubr.bf16.gmra.mrb[0].mxu0 %v322
  %v1071 = vpop.f32.mrb[0].mxu0
  %v1072 = vadd.f32 0.0, %v1071
  %v1073 = vpop.f32.mrb[0].mxu0
  %v1074 = vpop.f32.mrb[0].mxu0
  %v1075 = vadd.f32 0.0, %v1074
  %v1076 = vpop.f32.mrb[0].mxu0
  %1077 = vmatprep.mubr.bf16.mxu0 0
  %1078 = vmatmul.mubr.bf16.gmra.mrb[0].mxu0 %v325
  %v1079 = vpop.f32.mrb[0].mxu0
  %v1080 = vadd.f32 0.0, %v1079
  %v1081 = vpop.f32.mrb[0].mxu0
  %v1082 = vpop.f32.mrb[0].mxu0
  %v1083 = vadd.f32 0.0, %v1082
  %v1084 = vpop.f32.mrb[0].mxu0
  %1085 = vmatprep.mubr.bf16.mxu0 0
  %1086 = vmatmul.mubr.bf16.gmra.mrb[0].mxu0 %v328
  %v1087 = vpop.f32.mrb[0].mxu0
  %v1088 = vadd.f32 0.0, %v1087
  %v1089 = vpop.f32.mrb[0].mxu0
  %v1090 = vpop.f32.mrb[0].mxu0
  %v1091 = vadd.f32 0.0, %v1090
  %v1092 = vpop.f32.mrb[0].mxu0
  %1093 = vmatprep.mubr.bf16.mxu0 0
  %1094 = vmatmul.mubr.bf16.gmra.mrb[0].mxu0 %v331
  %v1095 = vpop.f32.mrb[0].mxu0
  %v1096 = vadd.f32 0.0, %v1095
  %v1097 = vpop.f32.mrb[0].mxu0
  %v1098 = vpop.f32.mrb[0].mxu0
  %v1099 = vadd.f32 0.0, %v1098
  %v1100 = vpop.f32.mrb[0].mxu0
  %1101 = vmatprep.mubr.bf16.mxu0 0
  %1102 = vmatmul.mubr.bf16.gmra.mrb[0].mxu0 %v334
  %v1103 = vpop.f32.mrb[0].mxu0
  %v1104 = vadd.f32 0.0, %v1103
  %v1105 = vpop.f32.mrb[0].mxu0
  %v1106 = vpop.f32.mrb[0].mxu0
  %v1107 = vadd.f32 0.0, %v1106
  %v1108 = vpop.f32.mrb[0].mxu0
  %1109 = vmatprep.mubr.bf16.mxu0 0
  %1110 = vmatmul.mubr.bf16.gmra.mrb[0].mxu0 %v337
  %v1111 = vpop.f32.mrb[0].mxu0
  %v1112 = vadd.f32 0.0, %v1111
  %v1113 = vpop.f32.mrb[0].mxu0
  %v1114 = vpop.f32.mrb[0].mxu0
  %v1115 = vadd.f32 0.0, %v1114
  %v1116 = vpop.f32.mrb[0].mxu0
  %1117 = vmatprep.mubr.bf16.mxu0 0
  %1118 = vmatmul.mubr.bf16.gmra.mrb[0].mxu0 %v340
  %v1119 = vpop.f32.mrb[0].mxu0
  %v1120 = vadd.f32 0.0, %v1119
  %v1121 = vpop.f32.mrb[0].mxu0
  %v1122 = vpop.f32.mrb[0].mxu0
  %v1123 = vadd.f32 0.0, %v1122
  %v1124 = vpop.f32.mrb[0].mxu0
  %1125 = vmatprep.mubr.bf16.mxu0 0
  %1126 = vmatmul.mubr.bf16.gmra.mrb[0].mxu0 %v343
  %v1127 = vpop.f32.mrb[0].mxu0
  %v1128 = vadd.f32 0.0, %v1127
  %v1129 = vpop.f32.mrb[0].mxu0
  %v1130 = vpop.f32.mrb[0].mxu0
  %v1131 = vadd.f32 0.0, %v1130
  %v1132 = vpop.f32.mrb[0].mxu0
  %1133 = vmatprep.mubr.bf16.mxu0 0
  %1134 = vmatmul.mubr.bf16.gmra.mrb[0].mxu0 %v346
  %v1135 = vpop.f32.mrb[0].mxu0
  %v1136 = vadd.f32 0.0, %v1135
  %v1137 = vpop.f32.mrb[0].mxu0
  %v1138 = vpop.f32.mrb[0].mxu0
  %v1139 = vadd.f32 0.0, %v1138
  %v1140 = vpop.f32.mrb[0].mxu0
  %1141 = vmatprep.mubr.bf16.mxu0 0
  %1142 = vmatmul.mubr.bf16.gmra.mrb[0].mxu0 %v349
  %v1143 = vpop.f32.mrb[0].mxu0
  %v1144 = vadd.f32 0.0, %v1143
  %v1145 = vpop.f32.mrb[0].mxu0
  %v1146 = vpop.f32.mrb[0].mxu0
  %v1147 = vadd.f32 0.0, %v1146
  %v1148 = vpop.f32.mrb[0].mxu0
  %1149 = vmatprep.mubr.bf16.mxu0 0
  %1150 = vmatmul.mubr.bf16.gmra.mrb[0].mxu0 %v352
  %v1151 = vpop.f32.mrb[0].mxu0
  %v1152 = vadd.f32 0.0, %v1151
  %v1153 = vpop.f32.mrb[0].mxu0
  %v1154 = vpop.f32.mrb[0].mxu0
  %v1155 = vadd.f32 0.0, %v1154
  %v1156 = vpop.f32.mrb[0].mxu0
  %1157 = vmatprep.mubr.bf16.mxu0 0
  %1158 = vmatmul.mubr.bf16.gmra.mrb[0].mxu0 %v355
  %v1159 = vpop.f32.mrb[0].mxu0
  %v1160 = vadd.f32 0.0, %v1159
  %v1161 = vpop.f32.mrb[0].mxu0
  %v1162 = vpop.f32.mrb[0].mxu0
  %v1163 = vadd.f32 0.0, %v1162
  %v1164 = vpop.f32.mrb[0].mxu0
  %1165 = vmatprep.mubr.bf16.mxu0 0
  %1166 = vmatmul.mubr.bf16.gmra.mrb[0].mxu0 %v358
  %v1167 = vpop.f32.mrb[0].mxu0
  %v1168 = vadd.f32 0.0, %v1167
  %v1169 = vpop.f32.mrb[0].mxu0
  %v1170 = vpop.f32.mrb[0].mxu0
  %v1171 = vadd.f32 0.0, %v1170
  %v1172 = vpop.f32.mrb[0].mxu0
  %1173 = vmatprep.mubr.bf16.mxu0 0
  %1174 = vmatmul.mubr.bf16.gmra.mrb[0].mxu0 %v361
  %v1175 = vpop.f32.mrb[0].mxu0
  %v1176 = vadd.f32 0.0, %v1175
  %v1177 = vpop.f32.mrb[0].mxu0
  %v1178 = vpop.f32.mrb[0].mxu0
  %v1179 = vadd.f32 0.0, %v1178
  %v1180 = vpop.f32.mrb[0].mxu0
  %1181 = vmatprep.mubr.bf16.mxu0 0
  %1182 = vmatmul.mubr.bf16.gmra.mrb[0].mxu0 %v364
  %v1183 = vpop.f32.mrb[0].mxu0
  %v1184 = vadd.f32 0.0, %v1183
  %v1185 = vpop.f32.mrb[0].mxu0
  %v1186 = vpop.f32.mrb[0].mxu0
  %v1187 = vadd.f32 0.0, %v1186
  %v1188 = vpop.f32.mrb[0].mxu0
  %1189 = vmatprep.mubr.bf16.mxu0 0
  %1190 = vmatmul.mubr.bf16.gmra.mrb[0].mxu0 %v367
  %v1191 = vpop.f32.mrb[0].mxu0
  %v1192 = vadd.f32 0.0, %v1191
  %v1193 = vpop.f32.mrb[0].mxu0
  %v1194 = vpop.f32.mrb[0].mxu0
  %v1195 = vadd.f32 0.0, %v1194
  %v1196 = vpop.f32.mrb[0].mxu0
  %1197 = vmatprep.mubr.bf16.mxu0 0
  %1198 = vmatmul.mubr.bf16.gmra.mrb[0].mxu0 %v370
  %v1199 = vpop.f32.mrb[0].mxu0
  %v1200 = vadd.f32 0.0, %v1199
  %v1201 = vpop.f32.mrb[0].mxu0
  %v1202 = vpop.f32.mrb[0].mxu0
  %v1203 = vadd.f32 0.0, %v1202
  %v1204 = vpop.f32.mrb[0].mxu0
  %1205 = vmatprep.mubr.bf16.mxu0 0
  %1206 = vmatmul.mubr.bf16.gmra.mrb[0].mxu0 %v373
  %v1207 = vpop.f32.mrb[0].mxu0
  %v1208 = vadd.f32 0.0, %v1207
  %v1209 = vpop.f32.mrb[0].mxu0
  %v1210 = vpop.f32.mrb[0].mxu0
  %v1211 = vadd.f32 0.0, %v1210
  %v1212 = vpop.f32.mrb[0].mxu0
  %1213 = vmatprep.mubr.bf16.mxu0 0
  %1214 = vmatmul.mubr.bf16.gmra.mrb[0].mxu0 %v376
  %v1215 = vpop.f32.mrb[0].mxu0
  %v1216 = vadd.f32 0.0, %v1215
  %v1217 = vpop.f32.mrb[0].mxu0
  %v1218 = vpop.f32.mrb[0].mxu0
  %v1219 = vadd.f32 0.0, %v1218
  %v1220 = vpop.f32.mrb[0].mxu0
  %1221 = vmatprep.mubr.bf16.mxu0 0
  %1222 = vmatmul.mubr.bf16.gmra.mrb[0].mxu0 %v379
  %v1223 = vpop.f32.mrb[0].mxu0
  %v1224 = vadd.f32 0.0, %v1223
  %v1225 = vpop.f32.mrb[0].mxu0
  %v1226 = vpop.f32.mrb[0].mxu0
  %v1227 = vadd.f32 0.0, %v1226
  %v1228 = vpop.f32.mrb[0].mxu0
  %1229 = vmatprep.mubr.bf16.mxu0 0
  %1230 = vmatmul.mubr.bf16.gmra.mrb[0].mxu0 %v382
  %v1231 = vpop.f32.mrb[0].mxu0
  %v1232 = vadd.f32 0.0, %v1231
  %v1233 = vpop.f32.mrb[0].mxu0
  %v1234 = vpop.f32.mrb[0].mxu0
  %v1235 = vadd.f32 0.0, %v1234
  %v1236 = vpop.f32.mrb[0].mxu0
  %1237 = vmatprep.mubr.bf16.mxu0 0
  %1238 = vmatmul.mubr.bf16.gmra.mrb[0].mxu0 %v385
  %v1239 = vpop.f32.mrb[0].mxu0
  %v1240 = vadd.f32 0.0, %v1239
  %v1241 = vpop.f32.mrb[0].mxu0
  %v1242 = vpop.f32.mrb[0].mxu0
  %v1243 = vadd.f32 0.0, %v1242
  %v1244 = vpop.f32.mrb[0].mxu0
  %1245 = vmatprep.mubr.bf16.mxu0 0
  %1246 = vmatmul.mubr.bf16.gmra.mrb[0].mxu0 %v388
  %v1247 = vpop.f32.mrb[0].mxu0
  %v1248 = vadd.f32 0.0, %v1247
  %v1249 = vpop.f32.mrb[0].mxu0
  %v1250 = vpop.f32.mrb[0].mxu0
  %v1251 = vadd.f32 0.0, %v1250
  %v1252 = vpop.f32.mrb[0].mxu0
  %1253 = vmatprep.mubr.bf16.mxu0 0
  %1254 = vmatmul.mubr.bf16.gmra.mrb[0].mxu0 %v1003
  %v1255 = vpop.f32.mrb[0].mxu0
  %v1256 = vadd.f32 0.0, %v1255
  %v1257 = vpop.f32.mrb[0].mxu0
  %v1258 = vpop.f32.mrb[0].mxu0
  %v1259 = vadd.f32 0.0, %v1258
  %v1260 = vpop.f32.mrb[0].mxu0
  %1261 = vdwg.mxu0
  %v1262 = vadd.f32 %v726, %v1040
  %v1263 = vadd.f32 %v729, %v1043
  %v1264 = vadd.f32 %v734, %v1048
  %v1265 = vadd.f32 %v737, %v1051
  %v1266 = vadd.f32 %v742, %v1056
  %v1267 = vadd.f32 %v745, %v1059
  %v1268 = vadd.f32 %v750, %v1064
  %v1269 = vadd.f32 %v753, %v1067
  %v1270 = vadd.f32 %v758, %v1072
  %v1271 = vadd.f32 %v761, %v1075
  %v1272 = vadd.f32 %v766, %v1080
  %v1273 = vadd.f32 %v769, %v1083
  %v1274 = vadd.f32 %v774, %v1088
  %v1275 = vadd.f32 %v777, %v1091
  %v1276 = vadd.f32 %v782, %v1096
  %v1277 = vadd.f32 %v785, %v1099
  %v1278 = vadd.f32 %v790, %v1104
  %v1279 = vadd.f32 %v793, %v1107
  %v1280 = vadd.f32 %v798, %v1112
  %v1281 = vadd.f32 %v801, %v1115
  %v1282 = vadd.f32 %v806, %v1120
  %v1283 = vadd.f32 %v809, %v1123
  %v1284 = vadd.f32 %v814, %v1128
  %v1285 = vadd.f32 %v817, %v1131
  %v1286 = vadd.f32 %v822, %v1136
  %v1287 = vadd.f32 %v825, %v1139
  %v1288 = vadd.f32 %v830, %v1144
  %v1289 = vadd.f32 %v833, %v1147
  %v1290 = vadd.f32 %v838, %v1152
  %v1291 = vadd.f32 %v841, %v1155
  %v1292 = vadd.f32 %v846, %v1160
  %v1293 = vadd.f32 %v849, %v1163
  %v1294 = vadd.f32 %v854, %v1168
  %v1295 = vadd.f32 %v857, %v1171
  %v1296 = vadd.f32 %v862, %v1176
  %v1297 = vadd.f32 %v865, %v1179
  %v1298 = vadd.f32 %v870, %v1184
  %v1299 = vadd.f32 %v873, %v1187
  %v1300 = vadd.f32 %v878, %v1192
  %v1301 = vadd.f32 %v881, %v1195
  %v1302 = vadd.f32 %v886, %v1200
  %v1303 = vadd.f32 %v889, %v1203
  %v1304 = vadd.f32 %v894, %v1208
  %v1305 = vadd.f32 %v897, %v1211
  %v1306 = vadd.f32 %v902, %v1216
  %v1307 = vadd.f32 %v905, %v1219
  %v1308 = vadd.f32 %v910, %v1224
  %v1309 = vadd.f32 %v913, %v1227
  %v1310 = vadd.f32 %v918, %v1232
  %v1311 = vadd.f32 %v921, %v1235
  %v1312 = vadd.f32 %v926, %v1240
  %v1313 = vadd.f32 %v929, %v1243
  %v1314 = vadd.f32 %v934, %v1248
  %v1315 = vadd.f32 %v937, %v1251
  %v1316 = vadd.f32 %v942, %v1256
  %v1317 = vadd.f32 %v945, %v1259
  %s1318 = scalar_lea.vmem %s1, 144
  %v1319 = vld [vmem:[%s1318] sm:$0xf]
  %v1320 = vld [vmem:[%s1318 + $0x4] sm:$0xf]
  %v1321 = vld [vmem:[%s1318 + $0x8] sm:$0xf]
  %v1322 = vld [vmem:[%s1318 + $0xc] sm:$0xf]
  %v1323 = vld [vmem:[%s1318 + $0x10] sm:$0xf]
  %v1324 = vld [vmem:[%s1318 + $0x14] sm:$0xf]
  %v1325 = vld [vmem:[%s1318 + $0x18] sm:$0xf]
  %v1326 = vld [vmem:[%s1318 + $0x1c] sm:$0xf]
  %v1327 = vld [vmem:[%s1318 + $0x20] sm:$0xf]
  %v1328 = vld [vmem:[%s1318 + $0x24] sm:$0xf]
  %v1329 = vld [vmem:[%s1318 + $0x28] sm:$0xf]
  %v1330 = vld [vmem:[%s1318 + $0x2c] sm:$0xf]
  %v1333 = vunpack.c.l.b16 %v99
  %v1334 = vunpack.c.l.b16 %v100
  %v1335 = vpack.c.b16 %v1334, %v1333
  %v1348 = vunpack.c.l.b16 %v1319
  %v1349 = vunpack.c.l.b16 %v1320
  %v1350 = vunpack.c.l.b16 %v1321
  %v1351 = vunpack.c.l.b16 %v1322
  %v1352 = vunpack.c.l.b16 %v1323
  %v1353 = vunpack.c.l.b16 %v1324
  %v1354 = vunpack.c.l.b16 %v1325
  %v1355 = vunpack.c.l.b16 %v1326
  %v1356 = vunpack.c.l.b16 %v1327
  %v1357 = vunpack.c.l.b16 %v1328
  %v1358 = vunpack.c.l.b16 %v1329
  %v1359 = vunpack.c.l.b16 %v1330
  %v1360 = vpack.c.b16 %v1349, %v1348
  %v1361 = vpack.c.b16 %v1351, %v1350
  %v1362 = vpack.c.b16 %v1353, %v1352
  %v1363 = vpack.c.b16 %v1355, %v1354
  %v1364 = vpack.c.b16 %v1357, %v1356
  %v1365 = vpack.c.b16 %v1359, %v1358
  %v1373 = vsel %vm305, %v1335, 0
  %1375 = vmatprep.subr.bf16.mxu0 0
  %1376 = vmatpush1.bf16.msra.mxu0 %v1360
  %1377 = vmatprep.subr.bf16.mxu0 0
  %1378 = vmatpush1.bf16.msra.mxu0 %v1361
  %1379 = vmatprep.subr.bf16.mxu0 0
  %1380 = vmatpush1.bf16.msra.mxu0 %v1362
  %1381 = vmatprep.subr.bf16.mxu0 0
  %1382 = vmatpush1.bf16.msra.mxu0 %v1363
  %1383 = vmatprep.subr.bf16.mxu0 0
  %1384 = vmatpush1.bf16.msra.mxu0 %v1364
  %1385 = vmatprep.subr.bf16.mxu0 0
  %1386 = vmatpush1.bf16.msra.mxu0 %v1365
  %1387 = vmatprep.subr.bf16.mxu0 0
  %1388 = vmatpush1.bf16.msra.mxu0 0
  %1389 = vmatprep.subr.bf16.mxu0 0
  %1390 = vmatpush1.bf16.msra.mxu0 0
  %1391 = vmatprep.subr.bf16.mxu0 0
  %1392 = vmatpush1.bf16.msra.mxu0 0
  %1393 = vmatprep.subr.bf16.mxu0 0
  %1394 = vmatpush1.bf16.msra.mxu0 0
  %1395 = vmatprep.subr.bf16.mxu0 0
  %1396 = vmatpush1.bf16.msra.mxu0 0
  %1397 = vmatprep.subr.bf16.mxu0 0
  %1398 = vmatpush1.bf16.msra.mxu0 0
  %1399 = vmatprep.subr.bf16.mxu0 0
  %1400 = vmatpush1.bf16.msra.mxu0 0
  %1401 = vmatprep.subr.bf16.mxu0 0
  %1402 = vmatpush1.bf16.msra.mxu0 0
  %1403 = vmatprep.subr.bf16.mxu0 0
  %1404 = vmatpush1.bf16.msra.mxu0 0
  %1405 = vmatprep.subr.bf16.mxu0 0
  %1406 = vmatpush1.bf16.msra.mxu0 0
  %1407 = vmatprep.mubr.bf16.mxu0 0
  %1408 = vmatmul.mubr.bf16.gmra.mrb[0].mxu0 %v313
  %v1409 = vpop.f32.mrb[0].mxu0
  %v1410 = vadd.f32 0.0, %v1409
  %v1411 = vpop.f32.mrb[0].mxu0
  %v1412 = vpop.f32.mrb[0].mxu0
  %v1413 = vadd.f32 0.0, %v1412
  %v1414 = vpop.f32.mrb[0].mxu0
  %1415 = vmatprep.mubr.bf16.mxu0 0
  %1416 = vmatmul.mubr.bf16.gmra.mrb[0].mxu0 %v316
  %v1417 = vpop.f32.mrb[0].mxu0
  %v1418 = vadd.f32 0.0, %v1417
  %v1419 = vpop.f32.mrb[0].mxu0
  %v1420 = vpop.f32.mrb[0].mxu0
  %v1421 = vadd.f32 0.0, %v1420
  %v1422 = vpop.f32.mrb[0].mxu0
  %1423 = vmatprep.mubr.bf16.mxu0 0
  %1424 = vmatmul.mubr.bf16.gmra.mrb[0].mxu0 %v319
  %v1425 = vpop.f32.mrb[0].mxu0
  %v1426 = vadd.f32 0.0, %v1425
  %v1427 = vpop.f32.mrb[0].mxu0
  %v1428 = vpop.f32.mrb[0].mxu0
  %v1429 = vadd.f32 0.0, %v1428
  %v1430 = vpop.f32.mrb[0].mxu0
  %1431 = vmatprep.mubr.bf16.mxu0 0
  %1432 = vmatmul.mubr.bf16.gmra.mrb[0].mxu0 %v322
  %v1433 = vpop.f32.mrb[0].mxu0
  %v1434 = vadd.f32 0.0, %v1433
  %v1435 = vpop.f32.mrb[0].mxu0
  %v1436 = vpop.f32.mrb[0].mxu0
  %v1437 = vadd.f32 0.0, %v1436
  %v1438 = vpop.f32.mrb[0].mxu0
  %1439 = vmatprep.mubr.bf16.mxu0 0
  %1440 = vmatmul.mubr.bf16.gmra.mrb[0].mxu0 %v325
  %v1441 = vpop.f32.mrb[0].mxu0
  %v1442 = vadd.f32 0.0, %v1441
  %v1443 = vpop.f32.mrb[0].mxu0
  %v1444 = vpop.f32.mrb[0].mxu0
  %v1445 = vadd.f32 0.0, %v1444
  %v1446 = vpop.f32.mrb[0].mxu0
  %1447 = vmatprep.mubr.bf16.mxu0 0
  %1448 = vmatmul.mubr.bf16.gmra.mrb[0].mxu0 %v328
  %v1449 = vpop.f32.mrb[0].mxu0
  %v1450 = vadd.f32 0.0, %v1449
  %v1451 = vpop.f32.mrb[0].mxu0
  %v1452 = vpop.f32.mrb[0].mxu0
  %v1453 = vadd.f32 0.0, %v1452
  %v1454 = vpop.f32.mrb[0].mxu0
  %1455 = vmatprep.mubr.bf16.mxu0 0
  %1456 = vmatmul.mubr.bf16.gmra.mrb[0].mxu0 %v331
  %v1457 = vpop.f32.mrb[0].mxu0
  %v1458 = vadd.f32 0.0, %v1457
  %v1459 = vpop.f32.mrb[0].mxu0
  %v1460 = vpop.f32.mrb[0].mxu0
  %v1461 = vadd.f32 0.0, %v1460
  %v1462 = vpop.f32.mrb[0].mxu0
  %1463 = vmatprep.mubr.bf16.mxu0 0
  %1464 = vmatmul.mubr.bf16.gmra.mrb[0].mxu0 %v334
  %v1465 = vpop.f32.mrb[0].mxu0
  %v1466 = vadd.f32 0.0, %v1465
  %v1467 = vpop.f32.mrb[0].mxu0
  %v1468 = vpop.f32.mrb[0].mxu0
  %v1469 = vadd.f32 0.0, %v1468
  %v1470 = vpop.f32.mrb[0].mxu0
  %1471 = vmatprep.mubr.bf16.mxu0 0
  %1472 = vmatmul.mubr.bf16.gmra.mrb[0].mxu0 %v337
  %v1473 = vpop.f32.mrb[0].mxu0
  %v1474 = vadd.f32 0.0, %v1473
  %v1475 = vpop.f32.mrb[0].mxu0
  %v1476 = vpop.f32.mrb[0].mxu0
  %v1477 = vadd.f32 0.0, %v1476
  %v1478 = vpop.f32.mrb[0].mxu0
  %1479 = vmatprep.mubr.bf16.mxu0 0
  %1480 = vmatmul.mubr.bf16.gmra.mrb[0].mxu0 %v340
  %v1481 = vpop.f32.mrb[0].mxu0
  %v1482 = vadd.f32 0.0, %v1481
  %v1483 = vpop.f32.mrb[0].mxu0
  %v1484 = vpop.f32.mrb[0].mxu0
  %v1485 = vadd.f32 0.0, %v1484
  %v1486 = vpop.f32.mrb[0].mxu0
  %1487 = vmatprep.mubr.bf16.mxu0 0
  %1488 = vmatmul.mubr.bf16.gmra.mrb[0].mxu0 %v343
  %v1489 = vpop.f32.mrb[0].mxu0
  %v1490 = vadd.f32 0.0, %v1489
  %v1491 = vpop.f32.mrb[0].mxu0
  %v1492 = vpop.f32.mrb[0].mxu0
  %v1493 = vadd.f32 0.0, %v1492
  %v1494 = vpop.f32.mrb[0].mxu0
  %1495 = vmatprep.mubr.bf16.mxu0 0
  %1496 = vmatmul.mubr.bf16.gmra.mrb[0].mxu0 %v346
  %v1497 = vpop.f32.mrb[0].mxu0
  %v1498 = vadd.f32 0.0, %v1497
  %v1499 = vpop.f32.mrb[0].mxu0
  %v1500 = vpop.f32.mrb[0].mxu0
  %v1501 = vadd.f32 0.0, %v1500
  %v1502 = vpop.f32.mrb[0].mxu0
  %1503 = vmatprep.mubr.bf16.mxu0 0
  %1504 = vmatmul.mubr.bf16.gmra.mrb[0].mxu0 %v349
  %v1505 = vpop.f32.mrb[0].mxu0
  %v1506 = vadd.f32 0.0, %v1505
  %v1507 = vpop.f32.mrb[0].mxu0
  %v1508 = vpop.f32.mrb[0].mxu0
  %v1509 = vadd.f32 0.0, %v1508
  %v1510 = vpop.f32.mrb[0].mxu0
  %1511 = vmatprep.mubr.bf16.mxu0 0
  %1512 = vmatmul.mubr.bf16.gmra.mrb[0].mxu0 %v352
  %v1513 = vpop.f32.mrb[0].mxu0
  %v1514 = vadd.f32 0.0, %v1513
  %v1515 = vpop.f32.mrb[0].mxu0
  %v1516 = vpop.f32.mrb[0].mxu0
  %v1517 = vadd.f32 0.0, %v1516
  %v1518 = vpop.f32.mrb[0].mxu0
  %1519 = vmatprep.mubr.bf16.mxu0 0
  %1520 = vmatmul.mubr.bf16.gmra.mrb[0].mxu0 %v355
  %v1521 = vpop.f32.mrb[0].mxu0
  %v1522 = vadd.f32 0.0, %v1521
  %v1523 = vpop.f32.mrb[0].mxu0
  %v1524 = vpop.f32.mrb[0].mxu0
  %v1525 = vadd.f32 0.0, %v1524
  %v1526 = vpop.f32.mrb[0].mxu0
  %1527 = vmatprep.mubr.bf16.mxu0 0
  %1528 = vmatmul.mubr.bf16.gmra.mrb[0].mxu0 %v358
  %v1529 = vpop.f32.mrb[0].mxu0
  %v1530 = vadd.f32 0.0, %v1529
  %v1531 = vpop.f32.mrb[0].mxu0
  %v1532 = vpop.f32.mrb[0].mxu0
  %v1533 = vadd.f32 0.0, %v1532
  %v1534 = vpop.f32.mrb[0].mxu0
  %1535 = vmatprep.mubr.bf16.mxu0 0
  %1536 = vmatmul.mubr.bf16.gmra.mrb[0].mxu0 %v361
  %v1537 = vpop.f32.mrb[0].mxu0
  %v1538 = vadd.f32 0.0, %v1537
  %v1539 = vpop.f32.mrb[0].mxu0
  %v1540 = vpop.f32.mrb[0].mxu0
  %v1541 = vadd.f32 0.0, %v1540
  %v1542 = vpop.f32.mrb[0].mxu0
  %1543 = vmatprep.mubr.bf16.mxu0 0
  %1544 = vmatmul.mubr.bf16.gmra.mrb[0].mxu0 %v364
  %v1545 = vpop.f32.mrb[0].mxu0
  %v1546 = vadd.f32 0.0, %v1545
  %v1547 = vpop.f32.mrb[0].mxu0
  %v1548 = vpop.f32.mrb[0].mxu0
  %v1549 = vadd.f32 0.0, %v1548
  %v1550 = vpop.f32.mrb[0].mxu0
  %1551 = vmatprep.mubr.bf16.mxu0 0
  %1552 = vmatmul.mubr.bf16.gmra.mrb[0].mxu0 %v367
  %v1553 = vpop.f32.mrb[0].mxu0
  %v1554 = vadd.f32 0.0, %v1553
  %v1555 = vpop.f32.mrb[0].mxu0
  %v1556 = vpop.f32.mrb[0].mxu0
  %v1557 = vadd.f32 0.0, %v1556
  %v1558 = vpop.f32.mrb[0].mxu0
  %1559 = vmatprep.mubr.bf16.mxu0 0
  %1560 = vmatmul.mubr.bf16.gmra.mrb[0].mxu0 %v370
  %v1561 = vpop.f32.mrb[0].mxu0
  %v1562 = vadd.f32 0.0, %v1561
  %v1563 = vpop.f32.mrb[0].mxu0
  %v1564 = vpop.f32.mrb[0].mxu0
  %v1565 = vadd.f32 0.0, %v1564
  %v1566 = vpop.f32.mrb[0].mxu0
  %1567 = vmatprep.mubr.bf16.mxu0 0
  %1568 = vmatmul.mubr.bf16.gmra.mrb[0].mxu0 %v373
  %v1569 = vpop.f32.mrb[0].mxu0
  %v1570 = vadd.f32 0.0, %v1569
  %v1571 = vpop.f32.mrb[0].mxu0
  %v1572 = vpop.f32.mrb[0].mxu0
  %v1573 = vadd.f32 0.0, %v1572
  %v1574 = vpop.f32.mrb[0].mxu0
  %1575 = vmatprep.mubr.bf16.mxu0 0
  %1576 = vmatmul.mubr.bf16.gmra.mrb[0].mxu0 %v376
  %v1577 = vpop.f32.mrb[0].mxu0
  %v1578 = vadd.f32 0.0, %v1577
  %v1579 = vpop.f32.mrb[0].mxu0
  %v1580 = vpop.f32.mrb[0].mxu0
  %v1581 = vadd.f32 0.0, %v1580
  %v1582 = vpop.f32.mrb[0].mxu0
  %1583 = vmatprep.mubr.bf16.mxu0 0
  %1584 = vmatmul.mubr.bf16.gmra.mrb[0].mxu0 %v379
  %v1585 = vpop.f32.mrb[0].mxu0
  %v1586 = vadd.f32 0.0, %v1585
  %v1587 = vpop.f32.mrb[0].mxu0
  %v1588 = vpop.f32.mrb[0].mxu0
  %v1589 = vadd.f32 0.0, %v1588
  %v1590 = vpop.f32.mrb[0].mxu0
  %1591 = vmatprep.mubr.bf16.mxu0 0
  %1592 = vmatmul.mubr.bf16.gmra.mrb[0].mxu0 %v382
  %v1593 = vpop.f32.mrb[0].mxu0
  %v1594 = vadd.f32 0.0, %v1593
  %v1595 = vpop.f32.mrb[0].mxu0
  %v1596 = vpop.f32.mrb[0].mxu0
  %v1597 = vadd.f32 0.0, %v1596
  %v1598 = vpop.f32.mrb[0].mxu0
  %1599 = vmatprep.mubr.bf16.mxu0 0
  %1600 = vmatmul.mubr.bf16.gmra.mrb[0].mxu0 %v385
  %v1601 = vpop.f32.mrb[0].mxu0
  %v1602 = vadd.f32 0.0, %v1601
  %v1603 = vpop.f32.mrb[0].mxu0
  %v1604 = vpop.f32.mrb[0].mxu0
  %v1605 = vadd.f32 0.0, %v1604
  %v1606 = vpop.f32.mrb[0].mxu0
  %1607 = vmatprep.mubr.bf16.mxu0 0
  %1608 = vmatmul.mubr.bf16.gmra.mrb[0].mxu0 %v388
  %v1609 = vpop.f32.mrb[0].mxu0
  %v1610 = vadd.f32 0.0, %v1609
  %v1611 = vpop.f32.mrb[0].mxu0
  %v1612 = vpop.f32.mrb[0].mxu0
  %v1613 = vadd.f32 0.0, %v1612
  %v1614 = vpop.f32.mrb[0].mxu0
  %1615 = vmatprep.mubr.bf16.mxu0 0
  %1616 = vmatmul.mubr.bf16.gmra.mrb[0].mxu0 %v1003
  %v1617 = vpop.f32.mrb[0].mxu0
  %v1618 = vadd.f32 0.0, %v1617
  %v1619 = vpop.f32.mrb[0].mxu0
  %v1620 = vpop.f32.mrb[0].mxu0
  %v1621 = vadd.f32 0.0, %v1620
  %v1622 = vpop.f32.mrb[0].mxu0
  %1623 = vmatprep.mubr.bf16.mxu0 0
  %1624 = vmatmul.mubr.bf16.gmra.mrb[0].mxu0 %v1373
  %v1625 = vpop.f32.mrb[0].mxu0
  %v1626 = vadd.f32 0.0, %v1625
  %v1627 = vpop.f32.mrb[0].mxu0
  %v1628 = vpop.f32.mrb[0].mxu0
  %v1629 = vadd.f32 0.0, %v1628
  %v1630 = vpop.f32.mrb[0].mxu0
  %1631 = vdwg.mxu0
  %v1632 = vadd.f32 %v1262, %v1410
  %v1633 = vadd.f32 %v1263, %v1413
  %v1634 = vadd.f32 %v1264, %v1418
  %v1635 = vadd.f32 %v1265, %v1421
  %v1636 = vadd.f32 %v1266, %v1426
  %v1637 = vadd.f32 %v1267, %v1429
  %v1638 = vadd.f32 %v1268, %v1434
  %v1639 = vadd.f32 %v1269, %v1437
  %v1640 = vadd.f32 %v1270, %v1442
  %v1641 = vadd.f32 %v1271, %v1445
  %v1642 = vadd.f32 %v1272, %v1450
  %v1643 = vadd.f32 %v1273, %v1453
  %v1644 = vadd.f32 %v1274, %v1458
  %v1645 = vadd.f32 %v1275, %v1461
  %v1646 = vadd.f32 %v1276, %v1466
  %v1647 = vadd.f32 %v1277, %v1469
  %v1648 = vadd.f32 %v1278, %v1474
  %v1649 = vadd.f32 %v1279, %v1477
  %v1650 = vadd.f32 %v1280, %v1482
  %v1651 = vadd.f32 %v1281, %v1485
  %v1652 = vadd.f32 %v1282, %v1490
  %v1653 = vadd.f32 %v1283, %v1493
  %v1654 = vadd.f32 %v1284, %v1498
  %v1655 = vadd.f32 %v1285, %v1501
  %v1656 = vadd.f32 %v1286, %v1506
  %v1657 = vadd.f32 %v1287, %v1509
  %v1658 = vadd.f32 %v1288, %v1514
  %v1659 = vadd.f32 %v1289, %v1517
  %v1660 = vadd.f32 %v1290, %v1522
  %v1661 = vadd.f32 %v1291, %v1525
  %v1662 = vadd.f32 %v1292, %v1530
  %v1663 = vadd.f32 %v1293, %v1533
  %v1664 = vadd.f32 %v1294, %v1538
  %v1665 = vadd.f32 %v1295, %v1541
  %v1666 = vadd.f32 %v1296, %v1546
  %v1667 = vadd.f32 %v1297, %v1549
  %v1668 = vadd.f32 %v1298, %v1554
  %v1669 = vadd.f32 %v1299, %v1557
  %v1670 = vadd.f32 %v1300, %v1562
  %v1671 = vadd.f32 %v1301, %v1565
  %v1672 = vadd.f32 %v1302, %v1570
  %v1673 = vadd.f32 %v1303, %v1573
  %v1674 = vadd.f32 %v1304, %v1578
  %v1675 = vadd.f32 %v1305, %v1581
  %v1676 = vadd.f32 %v1306, %v1586
  %v1677 = vadd.f32 %v1307, %v1589
  %v1678 = vadd.f32 %v1308, %v1594
  %v1679 = vadd.f32 %v1309, %v1597
  %v1680 = vadd.f32 %v1310, %v1602
  %v1681 = vadd.f32 %v1311, %v1605
  %v1682 = vadd.f32 %v1312, %v1610
  %v1683 = vadd.f32 %v1313, %v1613
  %v1684 = vadd.f32 %v1314, %v1618
  %v1685 = vadd.f32 %v1315, %v1621
  %v1686 = vadd.f32 %v1316, %v1626
  %v1687 = vadd.f32 %v1317, %v1629
  %s1688 = scalar_lea.vmem %s1, 192
  %v1689 = vld [vmem:[%s1688] sm:$0xf]
  %v1690 = vld [vmem:[%s1688 + $0x4] sm:$0xf]
  %v1691 = vld [vmem:[%s1688 + $0x8] sm:$0xf]
  %v1692 = vld [vmem:[%s1688 + $0xc] sm:$0xf]
  %v1693 = vld [vmem:[%s1688 + $0x10] sm:$0xf]
  %v1694 = vld [vmem:[%s1688 + $0x14] sm:$0xf]
  %v1695 = vld [vmem:[%s1688 + $0x18] sm:$0xf]
  %v1696 = vld [vmem:[%s1688 + $0x1c] sm:$0xf]
  %v1697 = vld [vmem:[%s1688 + $0x20] sm:$0xf]
  %v1698 = vld [vmem:[%s1688 + $0x24] sm:$0xf]
  %v1699 = vld [vmem:[%s1688 + $0x28] sm:$0xf]
  %v1700 = vld [vmem:[%s1688 + $0x2c] sm:$0xf]
  %v1703 = vunpack.c.l.b16 %v101
  %v1704 = vunpack.c.l.b16 %v102
  %v1705 = vpack.c.b16 %v1704, %v1703
  %v1718 = vunpack.c.l.b16 %v1689
  %v1719 = vunpack.c.l.b16 %v1690
  %v1720 = vunpack.c.l.b16 %v1691
  %v1721 = vunpack.c.l.b16 %v1692
  %v1722 = vunpack.c.l.b16 %v1693
  %v1723 = vunpack.c.l.b16 %v1694
  %v1724 = vunpack.c.l.b16 %v1695
  %v1725 = vunpack.c.l.b16 %v1696
  %v1726 = vunpack.c.l.b16 %v1697
  %v1727 = vunpack.c.l.b16 %v1698
  %v1728 = vunpack.c.l.b16 %v1699
  %v1729 = vunpack.c.l.b16 %v1700
  %v1730 = vpack.c.b16 %v1719, %v1718
  %v1731 = vpack.c.b16 %v1721, %v1720
  %v1732 = vpack.c.b16 %v1723, %v1722
  %v1733 = vpack.c.b16 %v1725, %v1724
  %v1734 = vpack.c.b16 %v1727, %v1726
  %v1735 = vpack.c.b16 %v1729, %v1728
  %v1743 = vsel %vm305, %v1705, 0
  %1745 = vmatprep.subr.bf16.mxu0 0
  %1746 = vmatpush1.bf16.msra.mxu0 %v1730
  %1747 = vmatprep.subr.bf16.mxu0 0
  %1748 = vmatpush1.bf16.msra.mxu0 %v1731
  %1749 = vmatprep.subr.bf16.mxu0 0
  %1750 = vmatpush1.bf16.msra.mxu0 %v1732
  %1751 = vmatprep.subr.bf16.mxu0 0
  %1752 = vmatpush1.bf16.msra.mxu0 %v1733
  %1753 = vmatprep.subr.bf16.mxu0 0
  %1754 = vmatpush1.bf16.msra.mxu0 %v1734
  %1755 = vmatprep.subr.bf16.mxu0 0
  %1756 = vmatpush1.bf16.msra.mxu0 %v1735
  %1757 = vmatprep.subr.bf16.mxu0 0
  %1758 = vmatpush1.bf16.msra.mxu0 0
  %1759 = vmatprep.subr.bf16.mxu0 0
  %1760 = vmatpush1.bf16.msra.mxu0 0
  %1761 = vmatprep.subr.bf16.mxu0 0
  %1762 = vmatpush1.bf16.msra.mxu0 0
  %1763 = vmatprep.subr.bf16.mxu0 0
  %1764 = vmatpush1.bf16.msra.mxu0 0
  %1765 = vmatprep.subr.bf16.mxu0 0
  %1766 = vmatpush1.bf16.msra.mxu0 0
  %1767 = vmatprep.subr.bf16.mxu0 0
  %1768 = vmatpush1.bf16.msra.mxu0 0
  %1769 = vmatprep.subr.bf16.mxu0 0
  %1770 = vmatpush1.bf16.msra.mxu0 0
  %1771 = vmatprep.subr.bf16.mxu0 0
  %1772 = vmatpush1.bf16.msra.mxu0 0
  %1773 = vmatprep.subr.bf16.mxu0 0
  %1774 = vmatpush1.bf16.msra.mxu0 0
  %1775 = vmatprep.subr.bf16.mxu0 0
  %1776 = vmatpush1.bf16.msra.mxu0 0
  %1777 = vmatprep.mubr.bf16.mxu0 0
  %1778 = vmatmul.mubr.bf16.gmra.mrb[0].mxu0 %v316
  %v1779 = vpop.f32.mrb[0].mxu0
  %v1780 = vadd.f32 0.0, %v1779
  %v1781 = vpop.f32.mrb[0].mxu0
  %v1782 = vpop.f32.mrb[0].mxu0
  %v1783 = vadd.f32 0.0, %v1782
  %v1784 = vpop.f32.mrb[0].mxu0
  %1785 = vmatprep.mubr.bf16.mxu0 0
  %1786 = vmatmul.mubr.bf16.gmra.mrb[0].mxu0 %v319
  %v1787 = vpop.f32.mrb[0].mxu0
  %v1788 = vadd.f32 0.0, %v1787
  %v1789 = vpop.f32.mrb[0].mxu0
  %v1790 = vpop.f32.mrb[0].mxu0
  %v1791 = vadd.f32 0.0, %v1790
  %v1792 = vpop.f32.mrb[0].mxu0
  %1793 = vmatprep.mubr.bf16.mxu0 0
  %1794 = vmatmul.mubr.bf16.gmra.mrb[0].mxu0 %v322
  %v1795 = vpop.f32.mrb[0].mxu0
  %v1796 = vadd.f32 0.0, %v1795
  %v1797 = vpop.f32.mrb[0].mxu0
  %v1798 = vpop.f32.mrb[0].mxu0
  %v1799 = vadd.f32 0.0, %v1798
  %v1800 = vpop.f32.mrb[0].mxu0
  %1801 = vmatprep.mubr.bf16.mxu0 0
  %1802 = vmatmul.mubr.bf16.gmra.mrb[0].mxu0 %v325
  %v1803 = vpop.f32.mrb[0].mxu0
  %v1804 = vadd.f32 0.0, %v1803
  %v1805 = vpop.f32.mrb[0].mxu0
  %v1806 = vpop.f32.mrb[0].mxu0
  %v1807 = vadd.f32 0.0, %v1806
  %v1808 = vpop.f32.mrb[0].mxu0
  %1809 = vmatprep.mubr.bf16.mxu0 0
  %1810 = vmatmul.mubr.bf16.gmra.mrb[0].mxu0 %v328
  %v1811 = vpop.f32.mrb[0].mxu0
  %v1812 = vadd.f32 0.0, %v1811
  %v1813 = vpop.f32.mrb[0].mxu0
  %v1814 = vpop.f32.mrb[0].mxu0
  %v1815 = vadd.f32 0.0, %v1814
  %v1816 = vpop.f32.mrb[0].mxu0
  %1817 = vmatprep.mubr.bf16.mxu0 0
  %1818 = vmatmul.mubr.bf16.gmra.mrb[0].mxu0 %v331
  %v1819 = vpop.f32.mrb[0].mxu0
  %v1820 = vadd.f32 0.0, %v1819
  %v1821 = vpop.f32.mrb[0].mxu0
  %v1822 = vpop.f32.mrb[0].mxu0
  %v1823 = vadd.f32 0.0, %v1822
  %v1824 = vpop.f32.mrb[0].mxu0
  %1825 = vmatprep.mubr.bf16.mxu0 0
  %1826 = vmatmul.mubr.bf16.gmra.mrb[0].mxu0 %v334
  %v1827 = vpop.f32.mrb[0].mxu0
  %v1828 = vadd.f32 0.0, %v1827
  %v1829 = vpop.f32.mrb[0].mxu0
  %v1830 = vpop.f32.mrb[0].mxu0
  %v1831 = vadd.f32 0.0, %v1830
  %v1832 = vpop.f32.mrb[0].mxu0
  %1833 = vmatprep.mubr.bf16.mxu0 0
  %1834 = vmatmul.mubr.bf16.gmra.mrb[0].mxu0 %v337
  %v1835 = vpop.f32.mrb[0].mxu0
  %v1836 = vadd.f32 0.0, %v1835
  %v1837 = vpop.f32.mrb[0].mxu0
  %v1838 = vpop.f32.mrb[0].mxu0
  %v1839 = vadd.f32 0.0, %v1838
  %v1840 = vpop.f32.mrb[0].mxu0
  %1841 = vmatprep.mubr.bf16.mxu0 0
  %1842 = vmatmul.mubr.bf16.gmra.mrb[0].mxu0 %v340
  %v1843 = vpop.f32.mrb[0].mxu0
  %v1844 = vadd.f32 0.0, %v1843
  %v1845 = vpop.f32.mrb[0].mxu0
  %v1846 = vpop.f32.mrb[0].mxu0
  %v1847 = vadd.f32 0.0, %v1846
  %v1848 = vpop.f32.mrb[0].mxu0
  %1849 = vmatprep.mubr.bf16.mxu0 0
  %1850 = vmatmul.mubr.bf16.gmra.mrb[0].mxu0 %v343
  %v1851 = vpop.f32.mrb[0].mxu0
  %v1852 = vadd.f32 0.0, %v1851
  %v1853 = vpop.f32.mrb[0].mxu0
  %v1854 = vpop.f32.mrb[0].mxu0
  %v1855 = vadd.f32 0.0, %v1854
  %v1856 = vpop.f32.mrb[0].mxu0
  %1857 = vmatprep.mubr.bf16.mxu0 0
  %1858 = vmatmul.mubr.bf16.gmra.mrb[0].mxu0 %v346
  %v1859 = vpop.f32.mrb[0].mxu0
  %v1860 = vadd.f32 0.0, %v1859
  %v1861 = vpop.f32.mrb[0].mxu0
  %v1862 = vpop.f32.mrb[0].mxu0
  %v1863 = vadd.f32 0.0, %v1862
  %v1864 = vpop.f32.mrb[0].mxu0
  %1865 = vmatprep.mubr.bf16.mxu0 0
  %1866 = vmatmul.mubr.bf16.gmra.mrb[0].mxu0 %v349
  %v1867 = vpop.f32.mrb[0].mxu0
  %v1868 = vadd.f32 0.0, %v1867
  %v1869 = vpop.f32.mrb[0].mxu0
  %v1870 = vpop.f32.mrb[0].mxu0
  %v1871 = vadd.f32 0.0, %v1870
  %v1872 = vpop.f32.mrb[0].mxu0
  %1873 = vmatprep.mubr.bf16.mxu0 0
  %1874 = vmatmul.mubr.bf16.gmra.mrb[0].mxu0 %v352
  %v1875 = vpop.f32.mrb[0].mxu0
  %v1876 = vadd.f32 0.0, %v1875
  %v1877 = vpop.f32.mrb[0].mxu0
  %v1878 = vpop.f32.mrb[0].mxu0
  %v1879 = vadd.f32 0.0, %v1878
  %v1880 = vpop.f32.mrb[0].mxu0
  %1881 = vmatprep.mubr.bf16.mxu0 0
  %1882 = vmatmul.mubr.bf16.gmra.mrb[0].mxu0 %v355
  %v1883 = vpop.f32.mrb[0].mxu0
  %v1884 = vadd.f32 0.0, %v1883
  %v1885 = vpop.f32.mrb[0].mxu0
  %v1886 = vpop.f32.mrb[0].mxu0
  %v1887 = vadd.f32 0.0, %v1886
  %v1888 = vpop.f32.mrb[0].mxu0
  %1889 = vmatprep.mubr.bf16.mxu0 0
  %1890 = vmatmul.mubr.bf16.gmra.mrb[0].mxu0 %v358
  %v1891 = vpop.f32.mrb[0].mxu0
  %v1892 = vadd.f32 0.0, %v1891
  %v1893 = vpop.f32.mrb[0].mxu0
  %v1894 = vpop.f32.mrb[0].mxu0
  %v1895 = vadd.f32 0.0, %v1894
  %v1896 = vpop.f32.mrb[0].mxu0
  %1897 = vmatprep.mubr.bf16.mxu0 0
  %1898 = vmatmul.mubr.bf16.gmra.mrb[0].mxu0 %v361
  %v1899 = vpop.f32.mrb[0].mxu0
  %v1900 = vadd.f32 0.0, %v1899
  %v1901 = vpop.f32.mrb[0].mxu0
  %v1902 = vpop.f32.mrb[0].mxu0
  %v1903 = vadd.f32 0.0, %v1902
  %v1904 = vpop.f32.mrb[0].mxu0
  %1905 = vmatprep.mubr.bf16.mxu0 0
  %1906 = vmatmul.mubr.bf16.gmra.mrb[0].mxu0 %v364
  %v1907 = vpop.f32.mrb[0].mxu0
  %v1908 = vadd.f32 0.0, %v1907
  %v1909 = vpop.f32.mrb[0].mxu0
  %v1910 = vpop.f32.mrb[0].mxu0
  %v1911 = vadd.f32 0.0, %v1910
  %v1912 = vpop.f32.mrb[0].mxu0
  %1913 = vmatprep.mubr.bf16.mxu0 0
  %1914 = vmatmul.mubr.bf16.gmra.mrb[0].mxu0 %v367
  %v1915 = vpop.f32.mrb[0].mxu0
  %v1916 = vadd.f32 0.0, %v1915
  %v1917 = vpop.f32.mrb[0].mxu0
  %v1918 = vpop.f32.mrb[0].mxu0
  %v1919 = vadd.f32 0.0, %v1918
  %v1920 = vpop.f32.mrb[0].mxu0
  %1921 = vmatprep.mubr.bf16.mxu0 0
  %1922 = vmatmul.mubr.bf16.gmra.mrb[0].mxu0 %v370
  %v1923 = vpop.f32.mrb[0].mxu0
  %v1924 = vadd.f32 0.0, %v1923
  %v1925 = vpop.f32.mrb[0].mxu0
  %v1926 = vpop.f32.mrb[0].mxu0
  %v1927 = vadd.f32 0.0, %v1926
  %v1928 = vpop.f32.mrb[0].mxu0
  %1929 = vmatprep.mubr.bf16.mxu0 0
  %1930 = vmatmul.mubr.bf16.gmra.mrb[0].mxu0 %v373
  %v1931 = vpop.f32.mrb[0].mxu0
  %v1932 = vadd.f32 0.0, %v1931
  %v1933 = vpop.f32.mrb[0].mxu0
  %v1934 = vpop.f32.mrb[0].mxu0
  %v1935 = vadd.f32 0.0, %v1934
  %v1936 = vpop.f32.mrb[0].mxu0
  %1937 = vmatprep.mubr.bf16.mxu0 0
  %1938 = vmatmul.mubr.bf16.gmra.mrb[0].mxu0 %v376
  %v1939 = vpop.f32.mrb[0].mxu0
  %v1940 = vadd.f32 0.0, %v1939
  %v1941 = vpop.f32.mrb[0].mxu0
  %v1942 = vpop.f32.mrb[0].mxu0
  %v1943 = vadd.f32 0.0, %v1942
  %v1944 = vpop.f32.mrb[0].mxu0
  %1945 = vmatprep.mubr.bf16.mxu0 0
  %1946 = vmatmul.mubr.bf16.gmra.mrb[0].mxu0 %v379
  %v1947 = vpop.f32.mrb[0].mxu0
  %v1948 = vadd.f32 0.0, %v1947
  %v1949 = vpop.f32.mrb[0].mxu0
  %v1950 = vpop.f32.mrb[0].mxu0
  %v1951 = vadd.f32 0.0, %v1950
  %v1952 = vpop.f32.mrb[0].mxu0
  %1953 = vmatprep.mubr.bf16.mxu0 0
  %1954 = vmatmul.mubr.bf16.gmra.mrb[0].mxu0 %v382
  %v1955 = vpop.f32.mrb[0].mxu0
  %v1956 = vadd.f32 0.0, %v1955
  %v1957 = vpop.f32.mrb[0].mxu0
  %v1958 = vpop.f32.mrb[0].mxu0
  %v1959 = vadd.f32 0.0, %v1958
  %v1960 = vpop.f32.mrb[0].mxu0
  %1961 = vmatprep.mubr.bf16.mxu0 0
  %1962 = vmatmul.mubr.bf16.gmra.mrb[0].mxu0 %v385
  %v1963 = vpop.f32.mrb[0].mxu0
  %v1964 = vadd.f32 0.0, %v1963
  %v1965 = vpop.f32.mrb[0].mxu0
  %v1966 = vpop.f32.mrb[0].mxu0
  %v1967 = vadd.f32 0.0, %v1966
  %v1968 = vpop.f32.mrb[0].mxu0
  %1969 = vmatprep.mubr.bf16.mxu0 0
  %1970 = vmatmul.mubr.bf16.gmra.mrb[0].mxu0 %v388
  %v1971 = vpop.f32.mrb[0].mxu0
  %v1972 = vadd.f32 0.0, %v1971
  %v1973 = vpop.f32.mrb[0].mxu0
  %v1974 = vpop.f32.mrb[0].mxu0
  %v1975 = vadd.f32 0.0, %v1974
  %v1976 = vpop.f32.mrb[0].mxu0
  %1977 = vmatprep.mubr.bf16.mxu0 0
  %1978 = vmatmul.mubr.bf16.gmra.mrb[0].mxu0 %v1003
  %v1979 = vpop.f32.mrb[0].mxu0
  %v1980 = vadd.f32 0.0, %v1979
  %v1981 = vpop.f32.mrb[0].mxu0
  %v1982 = vpop.f32.mrb[0].mxu0
  %v1983 = vadd.f32 0.0, %v1982
  %v1984 = vpop.f32.mrb[0].mxu0
  %1985 = vmatprep.mubr.bf16.mxu0 0
  %1986 = vmatmul.mubr.bf16.gmra.mrb[0].mxu0 %v1373
  %v1987 = vpop.f32.mrb[0].mxu0
  %v1988 = vadd.f32 0.0, %v1987
  %v1989 = vpop.f32.mrb[0].mxu0
  %v1990 = vpop.f32.mrb[0].mxu0
  %v1991 = vadd.f32 0.0, %v1990
  %v1992 = vpop.f32.mrb[0].mxu0
  %1993 = vmatprep.mubr.bf16.mxu0 0
  %1994 = vmatmul.mubr.bf16.gmra.mrb[0].mxu0 %v1743
  %v1995 = vpop.f32.mrb[0].mxu0
  %v1996 = vadd.f32 0.0, %v1995
  %v1997 = vpop.f32.mrb[0].mxu0
  %v1998 = vpop.f32.mrb[0].mxu0
  %v1999 = vadd.f32 0.0, %v1998
  %v2000 = vpop.f32.mrb[0].mxu0
  %2001 = vdwg.mxu0
  %v2002 = vadd.f32 %v1632, %v1780
  %v2003 = vadd.f32 %v1633, %v1783
  %v2004 = vadd.f32 %v1634, %v1788
  %v2005 = vadd.f32 %v1635, %v1791
  %v2006 = vadd.f32 %v1636, %v1796
  %v2007 = vadd.f32 %v1637, %v1799
  %v2008 = vadd.f32 %v1638, %v1804
  %v2009 = vadd.f32 %v1639, %v1807
  %v2010 = vadd.f32 %v1640, %v1812
  %v2011 = vadd.f32 %v1641, %v1815
  %v2012 = vadd.f32 %v1642, %v1820
  %v2013 = vadd.f32 %v1643, %v1823
  %v2014 = vadd.f32 %v1644, %v1828
  %v2015 = vadd.f32 %v1645, %v1831
  %v2016 = vadd.f32 %v1646, %v1836
  %v2017 = vadd.f32 %v1647, %v1839
  %v2018 = vadd.f32 %v1648, %v1844
  %v2019 = vadd.f32 %v1649, %v1847
  %v2020 = vadd.f32 %v1650, %v1852
  %v2021 = vadd.f32 %v1651, %v1855
  %v2022 = vadd.f32 %v1652, %v1860
  %v2023 = vadd.f32 %v1653, %v1863
  %v2024 = vadd.f32 %v1654, %v1868
  %v2025 = vadd.f32 %v1655, %v1871
  %v2026 = vadd.f32 %v1656, %v1876
  %v2027 = vadd.f32 %v1657, %v1879
  %v2028 = vadd.f32 %v1658, %v1884
  %v2029 = vadd.f32 %v1659, %v1887
  %v2030 = vadd.f32 %v1660, %v1892
  %v2031 = vadd.f32 %v1661, %v1895
  %v2032 = vadd.f32 %v1662, %v1900
  %v2033 = vadd.f32 %v1663, %v1903
  %v2034 = vadd.f32 %v1664, %v1908
  %v2035 = vadd.f32 %v1665, %v1911
  %v2036 = vadd.f32 %v1666, %v1916
  %v2037 = vadd.f32 %v1667, %v1919
  %v2038 = vadd.f32 %v1668, %v1924
  %v2039 = vadd.f32 %v1669, %v1927
  %v2040 = vadd.f32 %v1670, %v1932
  %v2041 = vadd.f32 %v1671, %v1935
  %v2042 = vadd.f32 %v1672, %v1940
  %v2043 = vadd.f32 %v1673, %v1943
  %v2044 = vadd.f32 %v1674, %v1948
  %v2045 = vadd.f32 %v1675, %v1951
  %v2046 = vadd.f32 %v1676, %v1956
  %v2047 = vadd.f32 %v1677, %v1959
  %v2048 = vadd.f32 %v1678, %v1964
  %v2049 = vadd.f32 %v1679, %v1967
  %v2050 = vadd.f32 %v1680, %v1972
  %v2051 = vadd.f32 %v1681, %v1975
  %v2052 = vadd.f32 %v1682, %v1980
  %v2053 = vadd.f32 %v1683, %v1983
  %v2054 = vadd.f32 %v1684, %v1988
  %v2055 = vadd.f32 %v1685, %v1991
  %v2056 = vadd.f32 %v1686, %v1996
  %v2057 = vadd.f32 %v1687, %v1999
  %v2058 = vmax.f32 %v2002, %v2004
  %v2059 = vmax.f32 %v2003, %v2005
  %v2060 = vmax.f32 %v2006, %v2008
  %v2061 = vmax.f32 %v2007, %v2009
  %v2062 = vmax.f32 %v2010, %v2012
  %v2063 = vmax.f32 %v2011, %v2013
  %v2064 = vmax.f32 %v2014, %v2016
  %v2065 = vmax.f32 %v2015, %v2017
  %v2066 = vmax.f32 %v2018, %v2020
  %v2067 = vmax.f32 %v2019, %v2021
  %v2068 = vmax.f32 %v2022, %v2024
  %v2069 = vmax.f32 %v2023, %v2025
  %v2070 = vmax.f32 %v2026, %v2028
  %v2071 = vmax.f32 %v2027, %v2029
  %v2072 = vmax.f32 %v2030, %v2032
  %v2073 = vmax.f32 %v2031, %v2033
  %v2074 = vmax.f32 %v2034, %v2036
  %v2075 = vmax.f32 %v2035, %v2037
  %v2076 = vmax.f32 %v2038, %v2040
  %v2077 = vmax.f32 %v2039, %v2041
  %v2078 = vmax.f32 %v2042, %v2044
  %v2079 = vmax.f32 %v2043, %v2045
  %v2080 = vmax.f32 %v2046, %v2048
  %v2081 = vmax.f32 %v2047, %v2049
  %v2082 = vmax.f32 %v2050, %v2052
  %v2083 = vmax.f32 %v2051, %v2053
  %v2084 = vmax.f32 %v2054, %v2056
  %v2085 = vmax.f32 %v2055, %v2057
  %s2086 = scalar_lea.vmem %s1, 240
  %v2087 = vld [vmem:[%s2086] sm:$0xf]
  %v2088 = vld [vmem:[%s2086 + $0x4] sm:$0xf]
  %v2089 = vld [vmem:[%s2086 + $0x8] sm:$0xf]
  %v2090 = vld [vmem:[%s2086 + $0xc] sm:$0xf]
  %v2091 = vld [vmem:[%s2086 + $0x10] sm:$0xf]
  %v2092 = vld [vmem:[%s2086 + $0x14] sm:$0xf]
  %v2093 = vld [vmem:[%s2086 + $0x18] sm:$0xf]
  %v2094 = vld [vmem:[%s2086 + $0x1c] sm:$0xf]
  %v2095 = vld [vmem:[%s2086 + $0x20] sm:$0xf]
  %v2096 = vld [vmem:[%s2086 + $0x24] sm:$0xf]
  %v2097 = vld [vmem:[%s2086 + $0x28] sm:$0xf]
  %v2098 = vld [vmem:[%s2086 + $0x2c] sm:$0xf]
  %s2099 = scalar_lea.vmem %s1, 288
  %v2100 = vld [vmem:[%s2099] sm:$0xf]
  %v2101 = vld [vmem:[%s2099 + $0x4] sm:$0xf]
  %v2102 = vld [vmem:[%s2099 + $0x8] sm:$0xf]
  %v2103 = vld [vmem:[%s2099 + $0xc] sm:$0xf]
  %v2104 = vld [vmem:[%s2099 + $0x10] sm:$0xf]
  %v2105 = vld [vmem:[%s2099 + $0x14] sm:$0xf]
  %v2106 = vld [vmem:[%s2099 + $0x18] sm:$0xf]
  %v2107 = vld [vmem:[%s2099 + $0x1c] sm:$0xf]
  %v2108 = vld [vmem:[%s2099 + $0x20] sm:$0xf]
  %v2109 = vld [vmem:[%s2099 + $0x24] sm:$0xf]
  %v2110 = vld [vmem:[%s2099 + $0x28] sm:$0xf]
  %v2111 = vld [vmem:[%s2099 + $0x2c] sm:$0xf]
  %v2124 = vunpack.c.l.b16 %v2100
  %v2125 = vunpack.c.l.b16 %v2101
  %v2126 = vunpack.c.l.b16 %v2102
  %v2127 = vunpack.c.l.b16 %v2103
  %v2128 = vunpack.c.l.b16 %v2104
  %v2129 = vunpack.c.l.b16 %v2105
  %v2130 = vunpack.c.l.b16 %v2106
  %v2131 = vunpack.c.l.b16 %v2107
  %v2132 = vunpack.c.l.b16 %v2108
  %v2133 = vunpack.c.l.b16 %v2109
  %v2134 = vunpack.c.l.b16 %v2110
  %v2135 = vunpack.c.l.b16 %v2111
  %v2136 = vpack.c.b16 %v2125, %v2124
  %v2137 = vpack.c.b16 %v2127, %v2126
  %v2138 = vpack.c.b16 %v2129, %v2128
  %v2139 = vpack.c.b16 %v2131, %v2130
  %v2140 = vpack.c.b16 %v2133, %v2132
  %v2141 = vpack.c.b16 %v2135, %v2134
  %2148 = vmatprep.subr.bf16.mxu0 0
  %2149 = vmatpush1.bf16.msra.mxu0 %v2136
  %2150 = vmatprep.subr.bf16.mxu0 0
  %2151 = vmatpush1.bf16.msra.mxu0 %v2137
  %2152 = vmatprep.subr.bf16.mxu0 0
  %2153 = vmatpush1.bf16.msra.mxu0 %v2138
  %2154 = vmatprep.subr.bf16.mxu0 0
  %2155 = vmatpush1.bf16.msra.mxu0 %v2139
  %2156 = vmatprep.subr.bf16.mxu0 0
  %2157 = vmatpush1.bf16.msra.mxu0 %v2140
  %2158 = vmatprep.subr.bf16.mxu0 0
  %2159 = vmatpush1.bf16.msra.mxu0 %v2141
  %2160 = vmatprep.subr.bf16.mxu0 0
  %2161 = vmatpush1.bf16.msra.mxu0 0
  %2162 = vmatprep.subr.bf16.mxu0 0
  %2163 = vmatpush1.bf16.msra.mxu0 0
  %2164 = vmatprep.subr.bf16.mxu0 0
  %2165 = vmatpush1.bf16.msra.mxu0 0
  %2166 = vmatprep.subr.bf16.mxu0 0
  %2167 = vmatpush1.bf16.msra.mxu0 0
  %2168 = vmatprep.subr.bf16.mxu0 0
  %2169 = vmatpush1.bf16.msra.mxu0 0
  %2170 = vmatprep.subr.bf16.mxu0 0
  %2171 = vmatpush1.bf16.msra.mxu0 0
  %2172 = vmatprep.subr.bf16.mxu0 0
  %2173 = vmatpush1.bf16.msra.mxu0 0
  %2174 = vmatprep.subr.bf16.mxu0 0
  %2175 = vmatpush1.bf16.msra.mxu0 0
  %2176 = vmatprep.subr.bf16.mxu0 0
  %2177 = vmatpush1.bf16.msra.mxu0 0
  %2178 = vmatprep.subr.bf16.mxu0 0
  %2179 = vmatpush1.bf16.msra.mxu0 0
  %2180 = vmatprep.mubr.bf16.mxu0 0
  %2181 = vmatmul.mubr.bf16.gmra.mrb[0].mxu0 %v307
  %v2182 = vpop.f32.mrb[0].mxu0
  %v2183 = vadd.f32 0.0, %v2182
  %v2184 = vpop.f32.mrb[0].mxu0
  %v2185 = vpop.f32.mrb[0].mxu0
  %v2186 = vadd.f32 0.0, %v2185
  %v2187 = vpop.f32.mrb[0].mxu0
  %2188 = vmatprep.mubr.bf16.mxu0 0
  %2189 = vmatmul.mubr.bf16.gmra.mrb[0].mxu0 %v310
  %v2190 = vpop.f32.mrb[0].mxu0
  %v2191 = vadd.f32 0.0, %v2190
  %v2192 = vpop.f32.mrb[0].mxu0
  %v2193 = vpop.f32.mrb[0].mxu0
  %v2194 = vadd.f32 0.0, %v2193
  %v2195 = vpop.f32.mrb[0].mxu0
  %2196 = vmatprep.mubr.bf16.mxu0 0
  %2197 = vmatmul.mubr.bf16.gmra.mrb[0].mxu0 %v313
  %v2198 = vpop.f32.mrb[0].mxu0
  %v2199 = vadd.f32 0.0, %v2198
  %v2200 = vpop.f32.mrb[0].mxu0
  %v2201 = vpop.f32.mrb[0].mxu0
  %v2202 = vadd.f32 0.0, %v2201
  %v2203 = vpop.f32.mrb[0].mxu0
  %2204 = vmatprep.mubr.bf16.mxu0 0
  %2205 = vmatmul.mubr.bf16.gmra.mrb[0].mxu0 %v316
  %v2206 = vpop.f32.mrb[0].mxu0
  %v2207 = vadd.f32 0.0, %v2206
  %v2208 = vpop.f32.mrb[0].mxu0
  %v2209 = vpop.f32.mrb[0].mxu0
  %v2210 = vadd.f32 0.0, %v2209
  %v2211 = vpop.f32.mrb[0].mxu0
  %2212 = vmatprep.mubr.bf16.mxu0 0
  %2213 = vmatmul.mubr.bf16.gmra.mrb[0].mxu0 %v319
  %v2214 = vpop.f32.mrb[0].mxu0
  %v2215 = vadd.f32 0.0, %v2214
  %v2216 = vpop.f32.mrb[0].mxu0
  %v2217 = vpop.f32.mrb[0].mxu0
  %v2218 = vadd.f32 0.0, %v2217
  %v2219 = vpop.f32.mrb[0].mxu0
  %2220 = vmatprep.mubr.bf16.mxu0 0
  %2221 = vmatmul.mubr.bf16.gmra.mrb[0].mxu0 %v322
  %v2222 = vpop.f32.mrb[0].mxu0
  %v2223 = vadd.f32 0.0, %v2222
  %v2224 = vpop.f32.mrb[0].mxu0
  %v2225 = vpop.f32.mrb[0].mxu0
  %v2226 = vadd.f32 0.0, %v2225
  %v2227 = vpop.f32.mrb[0].mxu0
  %2228 = vmatprep.mubr.bf16.mxu0 0
  %2229 = vmatmul.mubr.bf16.gmra.mrb[0].mxu0 %v325
  %v2230 = vpop.f32.mrb[0].mxu0
  %v2231 = vadd.f32 0.0, %v2230
  %v2232 = vpop.f32.mrb[0].mxu0
  %v2233 = vpop.f32.mrb[0].mxu0
  %v2234 = vadd.f32 0.0, %v2233
  %v2235 = vpop.f32.mrb[0].mxu0
  %2236 = vmatprep.mubr.bf16.mxu0 0
  %2237 = vmatmul.mubr.bf16.gmra.mrb[0].mxu0 %v328
  %v2238 = vpop.f32.mrb[0].mxu0
  %v2239 = vadd.f32 0.0, %v2238
  %v2240 = vpop.f32.mrb[0].mxu0
  %v2241 = vpop.f32.mrb[0].mxu0
  %v2242 = vadd.f32 0.0, %v2241
  %v2243 = vpop.f32.mrb[0].mxu0
  %2244 = vmatprep.mubr.bf16.mxu0 0
  %2245 = vmatmul.mubr.bf16.gmra.mrb[0].mxu0 %v331
  %v2246 = vpop.f32.mrb[0].mxu0
  %v2247 = vadd.f32 0.0, %v2246
  %v2248 = vpop.f32.mrb[0].mxu0
  %v2249 = vpop.f32.mrb[0].mxu0
  %v2250 = vadd.f32 0.0, %v2249
  %v2251 = vpop.f32.mrb[0].mxu0
  %2252 = vmatprep.mubr.bf16.mxu0 0
  %2253 = vmatmul.mubr.bf16.gmra.mrb[0].mxu0 %v334
  %v2254 = vpop.f32.mrb[0].mxu0
  %v2255 = vadd.f32 0.0, %v2254
  %v2256 = vpop.f32.mrb[0].mxu0
  %v2257 = vpop.f32.mrb[0].mxu0
  %v2258 = vadd.f32 0.0, %v2257
  %v2259 = vpop.f32.mrb[0].mxu0
  %2260 = vmatprep.mubr.bf16.mxu0 0
  %2261 = vmatmul.mubr.bf16.gmra.mrb[0].mxu0 %v337
  %v2262 = vpop.f32.mrb[0].mxu0
  %v2263 = vadd.f32 0.0, %v2262
  %v2264 = vpop.f32.mrb[0].mxu0
  %v2265 = vpop.f32.mrb[0].mxu0
  %v2266 = vadd.f32 0.0, %v2265
  %v2267 = vpop.f32.mrb[0].mxu0
  %2268 = vmatprep.mubr.bf16.mxu0 0
  %2269 = vmatmul.mubr.bf16.gmra.mrb[0].mxu0 %v340
  %v2270 = vpop.f32.mrb[0].mxu0
  %v2271 = vadd.f32 0.0, %v2270
  %v2272 = vpop.f32.mrb[0].mxu0
  %v2273 = vpop.f32.mrb[0].mxu0
  %v2274 = vadd.f32 0.0, %v2273
  %v2275 = vpop.f32.mrb[0].mxu0
  %2276 = vmatprep.mubr.bf16.mxu0 0
  %2277 = vmatmul.mubr.bf16.gmra.mrb[0].mxu0 %v343
  %v2278 = vpop.f32.mrb[0].mxu0
  %v2279 = vadd.f32 0.0, %v2278
  %v2280 = vpop.f32.mrb[0].mxu0
  %v2281 = vpop.f32.mrb[0].mxu0
  %v2282 = vadd.f32 0.0, %v2281
  %v2283 = vpop.f32.mrb[0].mxu0
  %2284 = vmatprep.mubr.bf16.mxu0 0
  %2285 = vmatmul.mubr.bf16.gmra.mrb[0].mxu0 %v346
  %v2286 = vpop.f32.mrb[0].mxu0
  %v2287 = vadd.f32 0.0, %v2286
  %v2288 = vpop.f32.mrb[0].mxu0
  %v2289 = vpop.f32.mrb[0].mxu0
  %v2290 = vadd.f32 0.0, %v2289
  %v2291 = vpop.f32.mrb[0].mxu0
  %2292 = vmatprep.mubr.bf16.mxu0 0
  %2293 = vmatmul.mubr.bf16.gmra.mrb[0].mxu0 %v349
  %v2294 = vpop.f32.mrb[0].mxu0
  %v2295 = vadd.f32 0.0, %v2294
  %v2296 = vpop.f32.mrb[0].mxu0
  %v2297 = vpop.f32.mrb[0].mxu0
  %v2298 = vadd.f32 0.0, %v2297
  %v2299 = vpop.f32.mrb[0].mxu0
  %2300 = vmatprep.mubr.bf16.mxu0 0
  %2301 = vmatmul.mubr.bf16.gmra.mrb[0].mxu0 %v352
  %v2302 = vpop.f32.mrb[0].mxu0
  %v2303 = vadd.f32 0.0, %v2302
  %v2304 = vpop.f32.mrb[0].mxu0
  %v2305 = vpop.f32.mrb[0].mxu0
  %v2306 = vadd.f32 0.0, %v2305
  %v2307 = vpop.f32.mrb[0].mxu0
  %2308 = vmatprep.mubr.bf16.mxu0 0
  %2309 = vmatmul.mubr.bf16.gmra.mrb[0].mxu0 %v355
  %v2310 = vpop.f32.mrb[0].mxu0
  %v2311 = vadd.f32 0.0, %v2310
  %v2312 = vpop.f32.mrb[0].mxu0
  %v2313 = vpop.f32.mrb[0].mxu0
  %v2314 = vadd.f32 0.0, %v2313
  %v2315 = vpop.f32.mrb[0].mxu0
  %2316 = vmatprep.mubr.bf16.mxu0 0
  %2317 = vmatmul.mubr.bf16.gmra.mrb[0].mxu0 %v358
  %v2318 = vpop.f32.mrb[0].mxu0
  %v2319 = vadd.f32 0.0, %v2318
  %v2320 = vpop.f32.mrb[0].mxu0
  %v2321 = vpop.f32.mrb[0].mxu0
  %v2322 = vadd.f32 0.0, %v2321
  %v2323 = vpop.f32.mrb[0].mxu0
  %2324 = vmatprep.mubr.bf16.mxu0 0
  %2325 = vmatmul.mubr.bf16.gmra.mrb[0].mxu0 %v361
  %v2326 = vpop.f32.mrb[0].mxu0
  %v2327 = vadd.f32 0.0, %v2326
  %v2328 = vpop.f32.mrb[0].mxu0
  %v2329 = vpop.f32.mrb[0].mxu0
  %v2330 = vadd.f32 0.0, %v2329
  %v2331 = vpop.f32.mrb[0].mxu0
  %2332 = vmatprep.mubr.bf16.mxu0 0
  %2333 = vmatmul.mubr.bf16.gmra.mrb[0].mxu0 %v364
  %v2334 = vpop.f32.mrb[0].mxu0
  %v2335 = vadd.f32 0.0, %v2334
  %v2336 = vpop.f32.mrb[0].mxu0
  %v2337 = vpop.f32.mrb[0].mxu0
  %v2338 = vadd.f32 0.0, %v2337
  %v2339 = vpop.f32.mrb[0].mxu0
  %2340 = vmatprep.mubr.bf16.mxu0 0
  %2341 = vmatmul.mubr.bf16.gmra.mrb[0].mxu0 %v367
  %v2342 = vpop.f32.mrb[0].mxu0
  %v2343 = vadd.f32 0.0, %v2342
  %v2344 = vpop.f32.mrb[0].mxu0
  %v2345 = vpop.f32.mrb[0].mxu0
  %v2346 = vadd.f32 0.0, %v2345
  %v2347 = vpop.f32.mrb[0].mxu0
  %2348 = vmatprep.mubr.bf16.mxu0 0
  %2349 = vmatmul.mubr.bf16.gmra.mrb[0].mxu0 %v370
  %v2350 = vpop.f32.mrb[0].mxu0
  %v2351 = vadd.f32 0.0, %v2350
  %v2352 = vpop.f32.mrb[0].mxu0
  %v2353 = vpop.f32.mrb[0].mxu0
  %v2354 = vadd.f32 0.0, %v2353
  %v2355 = vpop.f32.mrb[0].mxu0
  %2356 = vmatprep.mubr.bf16.mxu0 0
  %2357 = vmatmul.mubr.bf16.gmra.mrb[0].mxu0 %v373
  %v2358 = vpop.f32.mrb[0].mxu0
  %v2359 = vadd.f32 0.0, %v2358
  %v2360 = vpop.f32.mrb[0].mxu0
  %v2361 = vpop.f32.mrb[0].mxu0
  %v2362 = vadd.f32 0.0, %v2361
  %v2363 = vpop.f32.mrb[0].mxu0
  %2364 = vmatprep.mubr.bf16.mxu0 0
  %2365 = vmatmul.mubr.bf16.gmra.mrb[0].mxu0 %v376
  %v2366 = vpop.f32.mrb[0].mxu0
  %v2367 = vadd.f32 0.0, %v2366
  %v2368 = vpop.f32.mrb[0].mxu0
  %v2369 = vpop.f32.mrb[0].mxu0
  %v2370 = vadd.f32 0.0, %v2369
  %v2371 = vpop.f32.mrb[0].mxu0
  %2372 = vmatprep.mubr.bf16.mxu0 0
  %2373 = vmatmul.mubr.bf16.gmra.mrb[0].mxu0 %v379
  %v2374 = vpop.f32.mrb[0].mxu0
  %v2375 = vadd.f32 0.0, %v2374
  %v2376 = vpop.f32.mrb[0].mxu0
  %v2377 = vpop.f32.mrb[0].mxu0
  %v2378 = vadd.f32 0.0, %v2377
  %v2379 = vpop.f32.mrb[0].mxu0
  %2380 = vmatprep.mubr.bf16.mxu0 0
  %2381 = vmatmul.mubr.bf16.gmra.mrb[0].mxu0 %v382
  %v2382 = vpop.f32.mrb[0].mxu0
  %v2383 = vadd.f32 0.0, %v2382
  %v2384 = vpop.f32.mrb[0].mxu0
  %v2385 = vpop.f32.mrb[0].mxu0
  %v2386 = vadd.f32 0.0, %v2385
  %v2387 = vpop.f32.mrb[0].mxu0
  %2388 = vmatprep.mubr.bf16.mxu0 0
  %2389 = vmatmul.mubr.bf16.gmra.mrb[0].mxu0 %v385
  %v2390 = vpop.f32.mrb[0].mxu0
  %v2391 = vadd.f32 0.0, %v2390
  %v2392 = vpop.f32.mrb[0].mxu0
  %v2393 = vpop.f32.mrb[0].mxu0
  %v2394 = vadd.f32 0.0, %v2393
  %v2395 = vpop.f32.mrb[0].mxu0
  %2396 = vmatprep.mubr.bf16.mxu0 0
  %2397 = vmatmul.mubr.bf16.gmra.mrb[0].mxu0 %v388
  %v2398 = vpop.f32.mrb[0].mxu0
  %v2399 = vadd.f32 0.0, %v2398
  %v2400 = vpop.f32.mrb[0].mxu0
  %v2401 = vpop.f32.mrb[0].mxu0
  %v2402 = vadd.f32 0.0, %v2401
  %v2403 = vpop.f32.mrb[0].mxu0
  %2404 = vdwg.mxu0
  %v2417 = vunpack.c.l.b16 %v2087
  %v2418 = vunpack.c.l.b16 %v2088
  %v2419 = vunpack.c.l.b16 %v2089
  %v2420 = vunpack.c.l.b16 %v2090
  %v2421 = vunpack.c.l.b16 %v2091
  %v2422 = vunpack.c.l.b16 %v2092
  %v2423 = vunpack.c.l.b16 %v2093
  %v2424 = vunpack.c.l.b16 %v2094
  %v2425 = vunpack.c.l.b16 %v2095
  %v2426 = vunpack.c.l.b16 %v2096
  %v2427 = vunpack.c.l.b16 %v2097
  %v2428 = vunpack.c.l.b16 %v2098
  %v2429 = vpack.c.b16 %v2418, %v2417
  %v2430 = vpack.c.b16 %v2420, %v2419
  %v2431 = vpack.c.b16 %v2422, %v2421
  %v2432 = vpack.c.b16 %v2424, %v2423
  %v2433 = vpack.c.b16 %v2426, %v2425
  %v2434 = vpack.c.b16 %v2428, %v2427
  %2441 = vmatprep.subr.bf16.mxu0 0
  %2442 = vmatpush1.bf16.msra.mxu0 %v2429
  %2443 = vmatprep.subr.bf16.mxu0 0
  %2444 = vmatpush1.bf16.msra.mxu0 %v2430
  %2445 = vmatprep.subr.bf16.mxu0 0
  %2446 = vmatpush1.bf16.msra.mxu0 %v2431
  %2447 = vmatprep.subr.bf16.mxu0 0
  %2448 = vmatpush1.bf16.msra.mxu0 %v2432
  %2449 = vmatprep.subr.bf16.mxu0 0
  %2450 = vmatpush1.bf16.msra.mxu0 %v2433
  %2451 = vmatprep.subr.bf16.mxu0 0
  %2452 = vmatpush1.bf16.msra.mxu0 %v2434
  %2453 = vmatprep.subr.bf16.mxu0 0
  %2454 = vmatpush1.bf16.msra.mxu0 0
  %2455 = vmatprep.subr.bf16.mxu0 0
  %2456 = vmatpush1.bf16.msra.mxu0 0
  %2457 = vmatprep.subr.bf16.mxu0 0
  %2458 = vmatpush1.bf16.msra.mxu0 0
  %2459 = vmatprep.subr.bf16.mxu0 0
  %2460 = vmatpush1.bf16.msra.mxu0 0
  %2461 = vmatprep.subr.bf16.mxu0 0
  %2462 = vmatpush1.bf16.msra.mxu0 0
  %2463 = vmatprep.subr.bf16.mxu0 0
  %2464 = vmatpush1.bf16.msra.mxu0 0
  %2465 = vmatprep.subr.bf16.mxu0 0
  %2466 = vmatpush1.bf16.msra.mxu0 0
  %2467 = vmatprep.subr.bf16.mxu0 0
  %2468 = vmatpush1.bf16.msra.mxu0 0
  %2469 = vmatprep.subr.bf16.mxu0 0
  %2470 = vmatpush1.bf16.msra.mxu0 0
  %2471 = vmatprep.subr.bf16.mxu0 0
  %2472 = vmatpush1.bf16.msra.mxu0 0
  %2473 = vmatprep.mubr.bf16.mxu0 0
  %2474 = vmatmul.mubr.bf16.gmra.mrb[0].mxu0 %v689
  %v2475 = vpop.f32.mrb[0].mxu0
  %v2476 = vadd.f32 %v2183, %v2475
  %v2477 = vpop.f32.mrb[0].mxu0
  %v2478 = vpop.f32.mrb[0].mxu0
  %v2479 = vadd.f32 %v2186, %v2478
  %v2480 = vpop.f32.mrb[0].mxu0
  %2481 = vmatprep.mubr.bf16.mxu0 0
  %2482 = vmatmul.mubr.bf16.gmra.mrb[0].mxu0 %v307
  %v2483 = vpop.f32.mrb[0].mxu0
  %v2484 = vadd.f32 %v2191, %v2483
  %v2485 = vpop.f32.mrb[0].mxu0
  %v2486 = vpop.f32.mrb[0].mxu0
  %v2487 = vadd.f32 %v2194, %v2486
  %v2488 = vpop.f32.mrb[0].mxu0
  %2489 = vmatprep.mubr.bf16.mxu0 0
  %2490 = vmatmul.mubr.bf16.gmra.mrb[0].mxu0 %v310
  %v2491 = vpop.f32.mrb[0].mxu0
  %v2492 = vadd.f32 %v2199, %v2491
  %v2493 = vpop.f32.mrb[0].mxu0
  %v2494 = vpop.f32.mrb[0].mxu0
  %v2495 = vadd.f32 %v2202, %v2494
  %v2496 = vpop.f32.mrb[0].mxu0
  %2497 = vmatprep.mubr.bf16.mxu0 0
  %2498 = vmatmul.mubr.bf16.gmra.mrb[0].mxu0 %v313
  %v2499 = vpop.f32.mrb[0].mxu0
  %v2500 = vadd.f32 %v2207, %v2499
  %v2501 = vpop.f32.mrb[0].mxu0
  %v2502 = vpop.f32.mrb[0].mxu0
  %v2503 = vadd.f32 %v2210, %v2502
  %v2504 = vpop.f32.mrb[0].mxu0
  %2505 = vmatprep.mubr.bf16.mxu0 0
  %2506 = vmatmul.mubr.bf16.gmra.mrb[0].mxu0 %v316
  %v2507 = vpop.f32.mrb[0].mxu0
  %v2508 = vadd.f32 %v2215, %v2507
  %v2509 = vpop.f32.mrb[0].mxu0
  %v2510 = vpop.f32.mrb[0].mxu0
  %v2511 = vadd.f32 %v2218, %v2510
  %v2512 = vpop.f32.mrb[0].mxu0
  %2513 = vmatprep.mubr.bf16.mxu0 0
  %2514 = vmatmul.mubr.bf16.gmra.mrb[0].mxu0 %v319
  %v2515 = vpop.f32.mrb[0].mxu0
  %v2516 = vadd.f32 %v2223, %v2515
  %v2517 = vpop.f32.mrb[0].mxu0
  %v2518 = vpop.f32.mrb[0].mxu0
  %v2519 = vadd.f32 %v2226, %v2518
  %v2520 = vpop.f32.mrb[0].mxu0
  %2521 = vmatprep.mubr.bf16.mxu0 0
  %2522 = vmatmul.mubr.bf16.gmra.mrb[0].mxu0 %v322
  %v2523 = vpop.f32.mrb[0].mxu0
  %v2524 = vadd.f32 %v2231, %v2523
  %v2525 = vpop.f32.mrb[0].mxu0
  %v2526 = vpop.f32.mrb[0].mxu0
  %v2527 = vadd.f32 %v2234, %v2526
  %v2528 = vpop.f32.mrb[0].mxu0
  %2529 = vmatprep.mubr.bf16.mxu0 0
  %2530 = vmatmul.mubr.bf16.gmra.mrb[0].mxu0 %v325
  %v2531 = vpop.f32.mrb[0].mxu0
  %v2532 = vadd.f32 %v2239, %v2531
  %v2533 = vpop.f32.mrb[0].mxu0
  %v2534 = vpop.f32.mrb[0].mxu0
  %v2535 = vadd.f32 %v2242, %v2534
  %v2536 = vpop.f32.mrb[0].mxu0
  %2537 = vmatprep.mubr.bf16.mxu0 0
  %2538 = vmatmul.mubr.bf16.gmra.mrb[0].mxu0 %v328
  %v2539 = vpop.f32.mrb[0].mxu0
  %v2540 = vadd.f32 %v2247, %v2539
  %v2541 = vpop.f32.mrb[0].mxu0
  %v2542 = vpop.f32.mrb[0].mxu0
  %v2543 = vadd.f32 %v2250, %v2542
  %v2544 = vpop.f32.mrb[0].mxu0
  %2545 = vmatprep.mubr.bf16.mxu0 0
  %2546 = vmatmul.mubr.bf16.gmra.mrb[0].mxu0 %v331
  %v2547 = vpop.f32.mrb[0].mxu0
  %v2548 = vadd.f32 %v2255, %v2547
  %v2549 = vpop.f32.mrb[0].mxu0
  %v2550 = vpop.f32.mrb[0].mxu0
  %v2551 = vadd.f32 %v2258, %v2550
  %v2552 = vpop.f32.mrb[0].mxu0
  %2553 = vmatprep.mubr.bf16.mxu0 0
  %2554 = vmatmul.mubr.bf16.gmra.mrb[0].mxu0 %v334
  %v2555 = vpop.f32.mrb[0].mxu0
  %v2556 = vadd.f32 %v2263, %v2555
  %v2557 = vpop.f32.mrb[0].mxu0
  %v2558 = vpop.f32.mrb[0].mxu0
  %v2559 = vadd.f32 %v2266, %v2558
  %v2560 = vpop.f32.mrb[0].mxu0
  %2561 = vmatprep.mubr.bf16.mxu0 0
  %2562 = vmatmul.mubr.bf16.gmra.mrb[0].mxu0 %v337
  %v2563 = vpop.f32.mrb[0].mxu0
  %v2564 = vadd.f32 %v2271, %v2563
  %v2565 = vpop.f32.mrb[0].mxu0
  %v2566 = vpop.f32.mrb[0].mxu0
  %v2567 = vadd.f32 %v2274, %v2566
  %v2568 = vpop.f32.mrb[0].mxu0
  %2569 = vmatprep.mubr.bf16.mxu0 0
  %2570 = vmatmul.mubr.bf16.gmra.mrb[0].mxu0 %v340
  %v2571 = vpop.f32.mrb[0].mxu0
  %v2572 = vadd.f32 %v2279, %v2571
  %v2573 = vpop.f32.mrb[0].mxu0
  %v2574 = vpop.f32.mrb[0].mxu0
  %v2575 = vadd.f32 %v2282, %v2574
  %v2576 = vpop.f32.mrb[0].mxu0
  %2577 = vmatprep.mubr.bf16.mxu0 0
  %2578 = vmatmul.mubr.bf16.gmra.mrb[0].mxu0 %v343
  %v2579 = vpop.f32.mrb[0].mxu0
  %v2580 = vadd.f32 %v2287, %v2579
  %v2581 = vpop.f32.mrb[0].mxu0
  %v2582 = vpop.f32.mrb[0].mxu0
  %v2583 = vadd.f32 %v2290, %v2582
  %v2584 = vpop.f32.mrb[0].mxu0
  %2585 = vmatprep.mubr.bf16.mxu0 0
  %2586 = vmatmul.mubr.bf16.gmra.mrb[0].mxu0 %v346
  %v2587 = vpop.f32.mrb[0].mxu0
  %v2588 = vadd.f32 %v2295, %v2587
  %v2589 = vpop.f32.mrb[0].mxu0
  %v2590 = vpop.f32.mrb[0].mxu0
  %v2591 = vadd.f32 %v2298, %v2590
  %v2592 = vpop.f32.mrb[0].mxu0
  %2593 = vmatprep.mubr.bf16.mxu0 0
  %2594 = vmatmul.mubr.bf16.gmra.mrb[0].mxu0 %v349
  %v2595 = vpop.f32.mrb[0].mxu0
  %v2596 = vadd.f32 %v2303, %v2595
  %v2597 = vpop.f32.mrb[0].mxu0
  %v2598 = vpop.f32.mrb[0].mxu0
  %v2599 = vadd.f32 %v2306, %v2598
  %v2600 = vpop.f32.mrb[0].mxu0
  %2601 = vmatprep.mubr.bf16.mxu0 0
  %2602 = vmatmul.mubr.bf16.gmra.mrb[0].mxu0 %v352
  %v2603 = vpop.f32.mrb[0].mxu0
  %v2604 = vadd.f32 %v2311, %v2603
  %v2605 = vpop.f32.mrb[0].mxu0
  %v2606 = vpop.f32.mrb[0].mxu0
  %v2607 = vadd.f32 %v2314, %v2606
  %v2608 = vpop.f32.mrb[0].mxu0
  %2609 = vmatprep.mubr.bf16.mxu0 0
  %2610 = vmatmul.mubr.bf16.gmra.mrb[0].mxu0 %v355
  %v2611 = vpop.f32.mrb[0].mxu0
  %v2612 = vadd.f32 %v2319, %v2611
  %v2613 = vpop.f32.mrb[0].mxu0
  %v2614 = vpop.f32.mrb[0].mxu0
  %v2615 = vadd.f32 %v2322, %v2614
  %v2616 = vpop.f32.mrb[0].mxu0
  %2617 = vmatprep.mubr.bf16.mxu0 0
  %2618 = vmatmul.mubr.bf16.gmra.mrb[0].mxu0 %v358
  %v2619 = vpop.f32.mrb[0].mxu0
  %v2620 = vadd.f32 %v2327, %v2619
  %v2621 = vpop.f32.mrb[0].mxu0
  %v2622 = vpop.f32.mrb[0].mxu0
  %v2623 = vadd.f32 %v2330, %v2622
  %v2624 = vpop.f32.mrb[0].mxu0
  %2625 = vmatprep.mubr.bf16.mxu0 0
  %2626 = vmatmul.mubr.bf16.gmra.mrb[0].mxu0 %v361
  %v2627 = vpop.f32.mrb[0].mxu0
  %v2628 = vadd.f32 %v2335, %v2627
  %v2629 = vpop.f32.mrb[0].mxu0
  %v2630 = vpop.f32.mrb[0].mxu0
  %v2631 = vadd.f32 %v2338, %v2630
  %v2632 = vpop.f32.mrb[0].mxu0
  %2633 = vmatprep.mubr.bf16.mxu0 0
  %2634 = vmatmul.mubr.bf16.gmra.mrb[0].mxu0 %v364
  %v2635 = vpop.f32.mrb[0].mxu0
  %v2636 = vadd.f32 %v2343, %v2635
  %v2637 = vpop.f32.mrb[0].mxu0
  %v2638 = vpop.f32.mrb[0].mxu0
  %v2639 = vadd.f32 %v2346, %v2638
  %v2640 = vpop.f32.mrb[0].mxu0
  %2641 = vmatprep.mubr.bf16.mxu0 0
  %2642 = vmatmul.mubr.bf16.gmra.mrb[0].mxu0 %v367
  %v2643 = vpop.f32.mrb[0].mxu0
  %v2644 = vadd.f32 %v2351, %v2643
  %v2645 = vpop.f32.mrb[0].mxu0
  %v2646 = vpop.f32.mrb[0].mxu0
  %v2647 = vadd.f32 %v2354, %v2646
  %v2648 = vpop.f32.mrb[0].mxu0
  %2649 = vmatprep.mubr.bf16.mxu0 0
  %2650 = vmatmul.mubr.bf16.gmra.mrb[0].mxu0 %v370
  %v2651 = vpop.f32.mrb[0].mxu0
  %v2652 = vadd.f32 %v2359, %v2651
  %v2653 = vpop.f32.mrb[0].mxu0
  %v2654 = vpop.f32.mrb[0].mxu0
  %v2655 = vadd.f32 %v2362, %v2654
  %v2656 = vpop.f32.mrb[0].mxu0
  %2657 = vmatprep.mubr.bf16.mxu0 0
  %2658 = vmatmul.mubr.bf16.gmra.mrb[0].mxu0 %v373
  %v2659 = vpop.f32.mrb[0].mxu0
  %v2660 = vadd.f32 %v2367, %v2659
  %v2661 = vpop.f32.mrb[0].mxu0
  %v2662 = vpop.f32.mrb[0].mxu0
  %v2663 = vadd.f32 %v2370, %v2662
  %v2664 = vpop.f32.mrb[0].mxu0
  %2665 = vmatprep.mubr.bf16.mxu0 0
  %2666 = vmatmul.mubr.bf16.gmra.mrb[0].mxu0 %v376
  %v2667 = vpop.f32.mrb[0].mxu0
  %v2668 = vadd.f32 %v2375, %v2667
  %v2669 = vpop.f32.mrb[0].mxu0
  %v2670 = vpop.f32.mrb[0].mxu0
  %v2671 = vadd.f32 %v2378, %v2670
  %v2672 = vpop.f32.mrb[0].mxu0
  %2673 = vmatprep.mubr.bf16.mxu0 0
  %2674 = vmatmul.mubr.bf16.gmra.mrb[0].mxu0 %v379
  %v2675 = vpop.f32.mrb[0].mxu0
  %v2676 = vadd.f32 %v2383, %v2675
  %v2677 = vpop.f32.mrb[0].mxu0
  %v2678 = vpop.f32.mrb[0].mxu0
  %v2679 = vadd.f32 %v2386, %v2678
  %v2680 = vpop.f32.mrb[0].mxu0
  %2681 = vmatprep.mubr.bf16.mxu0 0
  %2682 = vmatmul.mubr.bf16.gmra.mrb[0].mxu0 %v382
  %v2683 = vpop.f32.mrb[0].mxu0
  %v2684 = vadd.f32 %v2391, %v2683
  %v2685 = vpop.f32.mrb[0].mxu0
  %v2686 = vpop.f32.mrb[0].mxu0
  %v2687 = vadd.f32 %v2394, %v2686
  %v2688 = vpop.f32.mrb[0].mxu0
  %2689 = vmatprep.mubr.bf16.mxu0 0
  %2690 = vmatmul.mubr.bf16.gmra.mrb[0].mxu0 %v385
  %v2691 = vpop.f32.mrb[0].mxu0
  %v2692 = vadd.f32 %v2399, %v2691
  %v2693 = vpop.f32.mrb[0].mxu0
  %v2694 = vpop.f32.mrb[0].mxu0
  %v2695 = vadd.f32 %v2402, %v2694
  %v2696 = vpop.f32.mrb[0].mxu0
  %2697 = vdwg.mxu0
  %s2698 = scalar_lea.vmem %s1, 336
  %v2699 = vld [vmem:[%s2698] sm:$0xf]
  %v2700 = vld [vmem:[%s2698 + $0x4] sm:$0xf]
  %v2701 = vld [vmem:[%s2698 + $0x8] sm:$0xf]
  %v2702 = vld [vmem:[%s2698 + $0xc] sm:$0xf]
  %v2703 = vld [vmem:[%s2698 + $0x10] sm:$0xf]
  %v2704 = vld [vmem:[%s2698 + $0x14] sm:$0xf]
  %v2705 = vld [vmem:[%s2698 + $0x18] sm:$0xf]
  %v2706 = vld [vmem:[%s2698 + $0x1c] sm:$0xf]
  %v2707 = vld [vmem:[%s2698 + $0x20] sm:$0xf]
  %v2708 = vld [vmem:[%s2698 + $0x24] sm:$0xf]
  %v2709 = vld [vmem:[%s2698 + $0x28] sm:$0xf]
  %v2710 = vld [vmem:[%s2698 + $0x2c] sm:$0xf]
  %v2723 = vunpack.c.l.b16 %v2699
  %v2724 = vunpack.c.l.b16 %v2700
  %v2725 = vunpack.c.l.b16 %v2701
  %v2726 = vunpack.c.l.b16 %v2702
  %v2727 = vunpack.c.l.b16 %v2703
  %v2728 = vunpack.c.l.b16 %v2704
  %v2729 = vunpack.c.l.b16 %v2705
  %v2730 = vunpack.c.l.b16 %v2706
  %v2731 = vunpack.c.l.b16 %v2707
  %v2732 = vunpack.c.l.b16 %v2708
  %v2733 = vunpack.c.l.b16 %v2709
  %v2734 = vunpack.c.l.b16 %v2710
  %v2735 = vpack.c.b16 %v2724, %v2723
  %v2736 = vpack.c.b16 %v2726, %v2725
  %v2737 = vpack.c.b16 %v2728, %v2727
  %v2738 = vpack.c.b16 %v2730, %v2729
  %v2739 = vpack.c.b16 %v2732, %v2731
  %v2740 = vpack.c.b16 %v2734, %v2733
  %2747 = vmatprep.subr.bf16.mxu0 0
  %2748 = vmatpush1.bf16.msra.mxu0 %v2735
  %2749 = vmatprep.subr.bf16.mxu0 0
  %2750 = vmatpush1.bf16.msra.mxu0 %v2736
  %2751 = vmatprep.subr.bf16.mxu0 0
  %2752 = vmatpush1.bf16.msra.mxu0 %v2737
  %2753 = vmatprep.subr.bf16.mxu0 0
  %2754 = vmatpush1.bf16.msra.mxu0 %v2738
  %2755 = vmatprep.subr.bf16.mxu0 0
  %2756 = vmatpush1.bf16.msra.mxu0 %v2739
  %2757 = vmatprep.subr.bf16.mxu0 0
  %2758 = vmatpush1.bf16.msra.mxu0 %v2740
  %2759 = vmatprep.subr.bf16.mxu0 0
  %2760 = vmatpush1.bf16.msra.mxu0 0
  %2761 = vmatprep.subr.bf16.mxu0 0
  %2762 = vmatpush1.bf16.msra.mxu0 0
  %2763 = vmatprep.subr.bf16.mxu0 0
  %2764 = vmatpush1.bf16.msra.mxu0 0
  %2765 = vmatprep.subr.bf16.mxu0 0
  %2766 = vmatpush1.bf16.msra.mxu0 0
  %2767 = vmatprep.subr.bf16.mxu0 0
  %2768 = vmatpush1.bf16.msra.mxu0 0
  %2769 = vmatprep.subr.bf16.mxu0 0
  %2770 = vmatpush1.bf16.msra.mxu0 0
  %2771 = vmatprep.subr.bf16.mxu0 0
  %2772 = vmatpush1.bf16.msra.mxu0 0
  %2773 = vmatprep.subr.bf16.mxu0 0
  %2774 = vmatpush1.bf16.msra.mxu0 0
  %2775 = vmatprep.subr.bf16.mxu0 0
  %2776 = vmatpush1.bf16.msra.mxu0 0
  %2777 = vmatprep.subr.bf16.mxu0 0
  %2778 = vmatpush1.bf16.msra.mxu0 0
  %2779 = vmatprep.mubr.bf16.mxu0 0
  %2780 = vmatmul.mubr.bf16.gmra.mrb[0].mxu0 %v310
  %v2781 = vpop.f32.mrb[0].mxu0
  %v2782 = vadd.f32 0.0, %v2781
  %v2783 = vpop.f32.mrb[0].mxu0
  %v2784 = vpop.f32.mrb[0].mxu0
  %v2785 = vadd.f32 0.0, %v2784
  %v2786 = vpop.f32.mrb[0].mxu0
  %2787 = vmatprep.mubr.bf16.mxu0 0
  %2788 = vmatmul.mubr.bf16.gmra.mrb[0].mxu0 %v313
  %v2789 = vpop.f32.mrb[0].mxu0
  %v2790 = vadd.f32 0.0, %v2789
  %v2791 = vpop.f32.mrb[0].mxu0
  %v2792 = vpop.f32.mrb[0].mxu0
  %v2793 = vadd.f32 0.0, %v2792
  %v2794 = vpop.f32.mrb[0].mxu0
  %2795 = vmatprep.mubr.bf16.mxu0 0
  %2796 = vmatmul.mubr.bf16.gmra.mrb[0].mxu0 %v316
  %v2797 = vpop.f32.mrb[0].mxu0
  %v2798 = vadd.f32 0.0, %v2797
  %v2799 = vpop.f32.mrb[0].mxu0
  %v2800 = vpop.f32.mrb[0].mxu0
  %v2801 = vadd.f32 0.0, %v2800
  %v2802 = vpop.f32.mrb[0].mxu0
  %2803 = vmatprep.mubr.bf16.mxu0 0
  %2804 = vmatmul.mubr.bf16.gmra.mrb[0].mxu0 %v319
  %v2805 = vpop.f32.mrb[0].mxu0
  %v2806 = vadd.f32 0.0, %v2805
  %v2807 = vpop.f32.mrb[0].mxu0
  %v2808 = vpop.f32.mrb[0].mxu0
  %v2809 = vadd.f32 0.0, %v2808
  %v2810 = vpop.f32.mrb[0].mxu0
  %2811 = vmatprep.mubr.bf16.mxu0 0
  %2812 = vmatmul.mubr.bf16.gmra.mrb[0].mxu0 %v322
  %v2813 = vpop.f32.mrb[0].mxu0
  %v2814 = vadd.f32 0.0, %v2813
  %v2815 = vpop.f32.mrb[0].mxu0
  %v2816 = vpop.f32.mrb[0].mxu0
  %v2817 = vadd.f32 0.0, %v2816
  %v2818 = vpop.f32.mrb[0].mxu0
  %2819 = vmatprep.mubr.bf16.mxu0 0
  %2820 = vmatmul.mubr.bf16.gmra.mrb[0].mxu0 %v325
  %v2821 = vpop.f32.mrb[0].mxu0
  %v2822 = vadd.f32 0.0, %v2821
  %v2823 = vpop.f32.mrb[0].mxu0
  %v2824 = vpop.f32.mrb[0].mxu0
  %v2825 = vadd.f32 0.0, %v2824
  %v2826 = vpop.f32.mrb[0].mxu0
  %2827 = vmatprep.mubr.bf16.mxu0 0
  %2828 = vmatmul.mubr.bf16.gmra.mrb[0].mxu0 %v328
  %v2829 = vpop.f32.mrb[0].mxu0
  %v2830 = vadd.f32 0.0, %v2829
  %v2831 = vpop.f32.mrb[0].mxu0
  %v2832 = vpop.f32.mrb[0].mxu0
  %v2833 = vadd.f32 0.0, %v2832
  %v2834 = vpop.f32.mrb[0].mxu0
  %2835 = vmatprep.mubr.bf16.mxu0 0
  %2836 = vmatmul.mubr.bf16.gmra.mrb[0].mxu0 %v331
  %v2837 = vpop.f32.mrb[0].mxu0
  %v2838 = vadd.f32 0.0, %v2837
  %v2839 = vpop.f32.mrb[0].mxu0
  %v2840 = vpop.f32.mrb[0].mxu0
  %v2841 = vadd.f32 0.0, %v2840
  %v2842 = vpop.f32.mrb[0].mxu0
  %2843 = vmatprep.mubr.bf16.mxu0 0
  %2844 = vmatmul.mubr.bf16.gmra.mrb[0].mxu0 %v334
  %v2845 = vpop.f32.mrb[0].mxu0
  %v2846 = vadd.f32 0.0, %v2845
  %v2847 = vpop.f32.mrb[0].mxu0
  %v2848 = vpop.f32.mrb[0].mxu0
  %v2849 = vadd.f32 0.0, %v2848
  %v2850 = vpop.f32.mrb[0].mxu0
  %2851 = vmatprep.mubr.bf16.mxu0 0
  %2852 = vmatmul.mubr.bf16.gmra.mrb[0].mxu0 %v337
  %v2853 = vpop.f32.mrb[0].mxu0
  %v2854 = vadd.f32 0.0, %v2853
  %v2855 = vpop.f32.mrb[0].mxu0
  %v2856 = vpop.f32.mrb[0].mxu0
  %v2857 = vadd.f32 0.0, %v2856
  %v2858 = vpop.f32.mrb[0].mxu0
  %2859 = vmatprep.mubr.bf16.mxu0 0
  %2860 = vmatmul.mubr.bf16.gmra.mrb[0].mxu0 %v340
  %v2861 = vpop.f32.mrb[0].mxu0
  %v2862 = vadd.f32 0.0, %v2861
  %v2863 = vpop.f32.mrb[0].mxu0
  %v2864 = vpop.f32.mrb[0].mxu0
  %v2865 = vadd.f32 0.0, %v2864
  %v2866 = vpop.f32.mrb[0].mxu0
  %2867 = vmatprep.mubr.bf16.mxu0 0
  %2868 = vmatmul.mubr.bf16.gmra.mrb[0].mxu0 %v343
  %v2869 = vpop.f32.mrb[0].mxu0
  %v2870 = vadd.f32 0.0, %v2869
  %v2871 = vpop.f32.mrb[0].mxu0
  %v2872 = vpop.f32.mrb[0].mxu0
  %v2873 = vadd.f32 0.0, %v2872
  %v2874 = vpop.f32.mrb[0].mxu0
  %2875 = vmatprep.mubr.bf16.mxu0 0
  %2876 = vmatmul.mubr.bf16.gmra.mrb[0].mxu0 %v346
  %v2877 = vpop.f32.mrb[0].mxu0
  %v2878 = vadd.f32 0.0, %v2877
  %v2879 = vpop.f32.mrb[0].mxu0
  %v2880 = vpop.f32.mrb[0].mxu0
  %v2881 = vadd.f32 0.0, %v2880
  %v2882 = vpop.f32.mrb[0].mxu0
  %2883 = vmatprep.mubr.bf16.mxu0 0
  %2884 = vmatmul.mubr.bf16.gmra.mrb[0].mxu0 %v349
  %v2885 = vpop.f32.mrb[0].mxu0
  %v2886 = vadd.f32 0.0, %v2885
  %v2887 = vpop.f32.mrb[0].mxu0
  %v2888 = vpop.f32.mrb[0].mxu0
  %v2889 = vadd.f32 0.0, %v2888
  %v2890 = vpop.f32.mrb[0].mxu0
  %2891 = vmatprep.mubr.bf16.mxu0 0
  %2892 = vmatmul.mubr.bf16.gmra.mrb[0].mxu0 %v352
  %v2893 = vpop.f32.mrb[0].mxu0
  %v2894 = vadd.f32 0.0, %v2893
  %v2895 = vpop.f32.mrb[0].mxu0
  %v2896 = vpop.f32.mrb[0].mxu0
  %v2897 = vadd.f32 0.0, %v2896
  %v2898 = vpop.f32.mrb[0].mxu0
  %2899 = vmatprep.mubr.bf16.mxu0 0
  %2900 = vmatmul.mubr.bf16.gmra.mrb[0].mxu0 %v355
  %v2901 = vpop.f32.mrb[0].mxu0
  %v2902 = vadd.f32 0.0, %v2901
  %v2903 = vpop.f32.mrb[0].mxu0
  %v2904 = vpop.f32.mrb[0].mxu0
  %v2905 = vadd.f32 0.0, %v2904
  %v2906 = vpop.f32.mrb[0].mxu0
  %2907 = vmatprep.mubr.bf16.mxu0 0
  %2908 = vmatmul.mubr.bf16.gmra.mrb[0].mxu0 %v358
  %v2909 = vpop.f32.mrb[0].mxu0
  %v2910 = vadd.f32 0.0, %v2909
  %v2911 = vpop.f32.mrb[0].mxu0
  %v2912 = vpop.f32.mrb[0].mxu0
  %v2913 = vadd.f32 0.0, %v2912
  %v2914 = vpop.f32.mrb[0].mxu0
  %2915 = vmatprep.mubr.bf16.mxu0 0
  %2916 = vmatmul.mubr.bf16.gmra.mrb[0].mxu0 %v361
  %v2917 = vpop.f32.mrb[0].mxu0
  %v2918 = vadd.f32 0.0, %v2917
  %v2919 = vpop.f32.mrb[0].mxu0
  %v2920 = vpop.f32.mrb[0].mxu0
  %v2921 = vadd.f32 0.0, %v2920
  %v2922 = vpop.f32.mrb[0].mxu0
  %2923 = vmatprep.mubr.bf16.mxu0 0
  %2924 = vmatmul.mubr.bf16.gmra.mrb[0].mxu0 %v364
  %v2925 = vpop.f32.mrb[0].mxu0
  %v2926 = vadd.f32 0.0, %v2925
  %v2927 = vpop.f32.mrb[0].mxu0
  %v2928 = vpop.f32.mrb[0].mxu0
  %v2929 = vadd.f32 0.0, %v2928
  %v2930 = vpop.f32.mrb[0].mxu0
  %2931 = vmatprep.mubr.bf16.mxu0 0
  %2932 = vmatmul.mubr.bf16.gmra.mrb[0].mxu0 %v367
  %v2933 = vpop.f32.mrb[0].mxu0
  %v2934 = vadd.f32 0.0, %v2933
  %v2935 = vpop.f32.mrb[0].mxu0
  %v2936 = vpop.f32.mrb[0].mxu0
  %v2937 = vadd.f32 0.0, %v2936
  %v2938 = vpop.f32.mrb[0].mxu0
  %2939 = vmatprep.mubr.bf16.mxu0 0
  %2940 = vmatmul.mubr.bf16.gmra.mrb[0].mxu0 %v370
  %v2941 = vpop.f32.mrb[0].mxu0
  %v2942 = vadd.f32 0.0, %v2941
  %v2943 = vpop.f32.mrb[0].mxu0
  %v2944 = vpop.f32.mrb[0].mxu0
  %v2945 = vadd.f32 0.0, %v2944
  %v2946 = vpop.f32.mrb[0].mxu0
  %2947 = vmatprep.mubr.bf16.mxu0 0
  %2948 = vmatmul.mubr.bf16.gmra.mrb[0].mxu0 %v373
  %v2949 = vpop.f32.mrb[0].mxu0
  %v2950 = vadd.f32 0.0, %v2949
  %v2951 = vpop.f32.mrb[0].mxu0
  %v2952 = vpop.f32.mrb[0].mxu0
  %v2953 = vadd.f32 0.0, %v2952
  %v2954 = vpop.f32.mrb[0].mxu0
  %2955 = vmatprep.mubr.bf16.mxu0 0
  %2956 = vmatmul.mubr.bf16.gmra.mrb[0].mxu0 %v376
  %v2957 = vpop.f32.mrb[0].mxu0
  %v2958 = vadd.f32 0.0, %v2957
  %v2959 = vpop.f32.mrb[0].mxu0
  %v2960 = vpop.f32.mrb[0].mxu0
  %v2961 = vadd.f32 0.0, %v2960
  %v2962 = vpop.f32.mrb[0].mxu0
  %2963 = vmatprep.mubr.bf16.mxu0 0
  %2964 = vmatmul.mubr.bf16.gmra.mrb[0].mxu0 %v379
  %v2965 = vpop.f32.mrb[0].mxu0
  %v2966 = vadd.f32 0.0, %v2965
  %v2967 = vpop.f32.mrb[0].mxu0
  %v2968 = vpop.f32.mrb[0].mxu0
  %v2969 = vadd.f32 0.0, %v2968
  %v2970 = vpop.f32.mrb[0].mxu0
  %2971 = vmatprep.mubr.bf16.mxu0 0
  %2972 = vmatmul.mubr.bf16.gmra.mrb[0].mxu0 %v382
  %v2973 = vpop.f32.mrb[0].mxu0
  %v2974 = vadd.f32 0.0, %v2973
  %v2975 = vpop.f32.mrb[0].mxu0
  %v2976 = vpop.f32.mrb[0].mxu0
  %v2977 = vadd.f32 0.0, %v2976
  %v2978 = vpop.f32.mrb[0].mxu0
  %2979 = vmatprep.mubr.bf16.mxu0 0
  %2980 = vmatmul.mubr.bf16.gmra.mrb[0].mxu0 %v385
  %v2981 = vpop.f32.mrb[0].mxu0
  %v2982 = vadd.f32 0.0, %v2981
  %v2983 = vpop.f32.mrb[0].mxu0
  %v2984 = vpop.f32.mrb[0].mxu0
  %v2985 = vadd.f32 0.0, %v2984
  %v2986 = vpop.f32.mrb[0].mxu0
  %2987 = vmatprep.mubr.bf16.mxu0 0
  %2988 = vmatmul.mubr.bf16.gmra.mrb[0].mxu0 %v388
  %v2989 = vpop.f32.mrb[0].mxu0
  %v2990 = vadd.f32 0.0, %v2989
  %v2991 = vpop.f32.mrb[0].mxu0
  %v2992 = vpop.f32.mrb[0].mxu0
  %v2993 = vadd.f32 0.0, %v2992
  %v2994 = vpop.f32.mrb[0].mxu0
  %2995 = vmatprep.mubr.bf16.mxu0 0
  %2996 = vmatmul.mubr.bf16.gmra.mrb[0].mxu0 %v1003
  %v2997 = vpop.f32.mrb[0].mxu0
  %v2998 = vadd.f32 0.0, %v2997
  %v2999 = vpop.f32.mrb[0].mxu0
  %v3000 = vpop.f32.mrb[0].mxu0
  %v3001 = vadd.f32 0.0, %v3000
  %v3002 = vpop.f32.mrb[0].mxu0
  %3003 = vdwg.mxu0
  %v3004 = vadd.f32 %v2476, %v2782
  %v3005 = vadd.f32 %v2479, %v2785
  %v3006 = vadd.f32 %v2484, %v2790
  %v3007 = vadd.f32 %v2487, %v2793
  %v3008 = vadd.f32 %v2492, %v2798
  %v3009 = vadd.f32 %v2495, %v2801
  %v3010 = vadd.f32 %v2500, %v2806
  %v3011 = vadd.f32 %v2503, %v2809
  %v3012 = vadd.f32 %v2508, %v2814
  %v3013 = vadd.f32 %v2511, %v2817
  %v3014 = vadd.f32 %v2516, %v2822
  %v3015 = vadd.f32 %v2519, %v2825
  %v3016 = vadd.f32 %v2524, %v2830
  %v3017 = vadd.f32 %v2527, %v2833
  %v3018 = vadd.f32 %v2532, %v2838
  %v3019 = vadd.f32 %v2535, %v2841
  %v3020 = vadd.f32 %v2540, %v2846
  %v3021 = vadd.f32 %v2543, %v2849
  %v3022 = vadd.f32 %v2548, %v2854
  %v3023 = vadd.f32 %v2551, %v2857
  %v3024 = vadd.f32 %v2556, %v2862
  %v3025 = vadd.f32 %v2559, %v2865
  %v3026 = vadd.f32 %v2564, %v2870
  %v3027 = vadd.f32 %v2567, %v2873
  %v3028 = vadd.f32 %v2572, %v2878
  %v3029 = vadd.f32 %v2575, %v2881
  %v3030 = vadd.f32 %v2580, %v2886
  %v3031 = vadd.f32 %v2583, %v2889
  %v3032 = vadd.f32 %v2588, %v2894
  %v3033 = vadd.f32 %v2591, %v2897
  %v3034 = vadd.f32 %v2596, %v2902
  %v3035 = vadd.f32 %v2599, %v2905
  %v3036 = vadd.f32 %v2604, %v2910
  %v3037 = vadd.f32 %v2607, %v2913
  %v3038 = vadd.f32 %v2612, %v2918
  %v3039 = vadd.f32 %v2615, %v2921
  %v3040 = vadd.f32 %v2620, %v2926
  %v3041 = vadd.f32 %v2623, %v2929
  %v3042 = vadd.f32 %v2628, %v2934
  %v3043 = vadd.f32 %v2631, %v2937
  %v3044 = vadd.f32 %v2636, %v2942
  %v3045 = vadd.f32 %v2639, %v2945
  %v3046 = vadd.f32 %v2644, %v2950
  %v3047 = vadd.f32 %v2647, %v2953
  %v3048 = vadd.f32 %v2652, %v2958
  %v3049 = vadd.f32 %v2655, %v2961
  %v3050 = vadd.f32 %v2660, %v2966
  %v3051 = vadd.f32 %v2663, %v2969
  %v3052 = vadd.f32 %v2668, %v2974
  %v3053 = vadd.f32 %v2671, %v2977
  %v3054 = vadd.f32 %v2676, %v2982
  %v3055 = vadd.f32 %v2679, %v2985
  %v3056 = vadd.f32 %v2684, %v2990
  %v3057 = vadd.f32 %v2687, %v2993
  %v3058 = vadd.f32 %v2692, %v2998
  %v3059 = vadd.f32 %v2695, %v3001
  %s3060 = scalar_lea.vmem %s1, 384
  %v3061 = vld [vmem:[%s3060] sm:$0xf]
  %v3062 = vld [vmem:[%s3060 + $0x4] sm:$0xf]
  %v3063 = vld [vmem:[%s3060 + $0x8] sm:$0xf]
  %v3064 = vld [vmem:[%s3060 + $0xc] sm:$0xf]
  %v3065 = vld [vmem:[%s3060 + $0x10] sm:$0xf]
  %v3066 = vld [vmem:[%s3060 + $0x14] sm:$0xf]
  %v3067 = vld [vmem:[%s3060 + $0x18] sm:$0xf]
  %v3068 = vld [vmem:[%s3060 + $0x1c] sm:$0xf]
  %v3069 = vld [vmem:[%s3060 + $0x20] sm:$0xf]
  %v3070 = vld [vmem:[%s3060 + $0x24] sm:$0xf]
  %v3071 = vld [vmem:[%s3060 + $0x28] sm:$0xf]
  %v3072 = vld [vmem:[%s3060 + $0x2c] sm:$0xf]
  %v3085 = vunpack.c.l.b16 %v3061
  %v3086 = vunpack.c.l.b16 %v3062
  %v3087 = vunpack.c.l.b16 %v3063
  %v3088 = vunpack.c.l.b16 %v3064
  %v3089 = vunpack.c.l.b16 %v3065
  %v3090 = vunpack.c.l.b16 %v3066
  %v3091 = vunpack.c.l.b16 %v3067
  %v3092 = vunpack.c.l.b16 %v3068
  %v3093 = vunpack.c.l.b16 %v3069
  %v3094 = vunpack.c.l.b16 %v3070
  %v3095 = vunpack.c.l.b16 %v3071
  %v3096 = vunpack.c.l.b16 %v3072
  %v3097 = vpack.c.b16 %v3086, %v3085
  %v3098 = vpack.c.b16 %v3088, %v3087
  %v3099 = vpack.c.b16 %v3090, %v3089
  %v3100 = vpack.c.b16 %v3092, %v3091
  %v3101 = vpack.c.b16 %v3094, %v3093
  %v3102 = vpack.c.b16 %v3096, %v3095
  %3109 = vmatprep.subr.bf16.mxu0 0
  %3110 = vmatpush1.bf16.msra.mxu0 %v3097
  %3111 = vmatprep.subr.bf16.mxu0 0
  %3112 = vmatpush1.bf16.msra.mxu0 %v3098
  %3113 = vmatprep.subr.bf16.mxu0 0
  %3114 = vmatpush1.bf16.msra.mxu0 %v3099
  %3115 = vmatprep.subr.bf16.mxu0 0
  %3116 = vmatpush1.bf16.msra.mxu0 %v3100
  %3117 = vmatprep.subr.bf16.mxu0 0
  %3118 = vmatpush1.bf16.msra.mxu0 %v3101
  %3119 = vmatprep.subr.bf16.mxu0 0
  %3120 = vmatpush1.bf16.msra.mxu0 %v3102
  %3121 = vmatprep.subr.bf16.mxu0 0
  %3122 = vmatpush1.bf16.msra.mxu0 0
  %3123 = vmatprep.subr.bf16.mxu0 0
  %3124 = vmatpush1.bf16.msra.mxu0 0
  %3125 = vmatprep.subr.bf16.mxu0 0
  %3126 = vmatpush1.bf16.msra.mxu0 0
  %3127 = vmatprep.subr.bf16.mxu0 0
  %3128 = vmatpush1.bf16.msra.mxu0 0
  %3129 = vmatprep.subr.bf16.mxu0 0
  %3130 = vmatpush1.bf16.msra.mxu0 0
  %3131 = vmatprep.subr.bf16.mxu0 0
  %3132 = vmatpush1.bf16.msra.mxu0 0
  %3133 = vmatprep.subr.bf16.mxu0 0
  %3134 = vmatpush1.bf16.msra.mxu0 0
  %3135 = vmatprep.subr.bf16.mxu0 0
  %3136 = vmatpush1.bf16.msra.mxu0 0
  %3137 = vmatprep.subr.bf16.mxu0 0
  %3138 = vmatpush1.bf16.msra.mxu0 0
  %3139 = vmatprep.subr.bf16.mxu0 0
  %3140 = vmatpush1.bf16.msra.mxu0 0
  %3141 = vmatprep.mubr.bf16.mxu0 0
  %3142 = vmatmul.mubr.bf16.gmra.mrb[0].mxu0 %v313
  %v3143 = vpop.f32.mrb[0].mxu0
  %v3144 = vadd.f32 0.0, %v3143
  %v3145 = vpop.f32.mrb[0].mxu0
  %v3146 = vpop.f32.mrb[0].mxu0
  %v3147 = vadd.f32 0.0, %v3146
  %v3148 = vpop.f32.mrb[0].mxu0
  %3149 = vmatprep.mubr.bf16.mxu0 0
  %3150 = vmatmul.mubr.bf16.gmra.mrb[0].mxu0 %v316
  %v3151 = vpop.f32.mrb[0].mxu0
  %v3152 = vadd.f32 0.0, %v3151
  %v3153 = vpop.f32.mrb[0].mxu0
  %v3154 = vpop.f32.mrb[0].mxu0
  %v3155 = vadd.f32 0.0, %v3154
  %v3156 = vpop.f32.mrb[0].mxu0
  %3157 = vmatprep.mubr.bf16.mxu0 0
  %3158 = vmatmul.mubr.bf16.gmra.mrb[0].mxu0 %v319
  %v3159 = vpop.f32.mrb[0].mxu0
  %v3160 = vadd.f32 0.0, %v3159
  %v3161 = vpop.f32.mrb[0].mxu0
  %v3162 = vpop.f32.mrb[0].mxu0
  %v3163 = vadd.f32 0.0, %v3162
  %v3164 = vpop.f32.mrb[0].mxu0
  %3165 = vmatprep.mubr.bf16.mxu0 0
  %3166 = vmatmul.mubr.bf16.gmra.mrb[0].mxu0 %v322
  %v3167 = vpop.f32.mrb[0].mxu0
  %v3168 = vadd.f32 0.0, %v3167
  %v3169 = vpop.f32.mrb[0].mxu0
  %v3170 = vpop.f32.mrb[0].mxu0
  %v3171 = vadd.f32 0.0, %v3170
  %v3172 = vpop.f32.mrb[0].mxu0
  %3173 = vmatprep.mubr.bf16.mxu0 0
  %3174 = vmatmul.mubr.bf16.gmra.mrb[0].mxu0 %v325
  %v3175 = vpop.f32.mrb[0].mxu0
  %v3176 = vadd.f32 0.0, %v3175
  %v3177 = vpop.f32.mrb[0].mxu0
  %v3178 = vpop.f32.mrb[0].mxu0
  %v3179 = vadd.f32 0.0, %v3178
  %v3180 = vpop.f32.mrb[0].mxu0
  %3181 = vmatprep.mubr.bf16.mxu0 0
  %3182 = vmatmul.mubr.bf16.gmra.mrb[0].mxu0 %v328
  %v3183 = vpop.f32.mrb[0].mxu0
  %v3184 = vadd.f32 0.0, %v3183
  %v3185 = vpop.f32.mrb[0].mxu0
  %v3186 = vpop.f32.mrb[0].mxu0
  %v3187 = vadd.f32 0.0, %v3186
  %v3188 = vpop.f32.mrb[0].mxu0
  %3189 = vmatprep.mubr.bf16.mxu0 0
  %3190 = vmatmul.mubr.bf16.gmra.mrb[0].mxu0 %v331
  %v3191 = vpop.f32.mrb[0].mxu0
  %v3192 = vadd.f32 0.0, %v3191
  %v3193 = vpop.f32.mrb[0].mxu0
  %v3194 = vpop.f32.mrb[0].mxu0
  %v3195 = vadd.f32 0.0, %v3194
  %v3196 = vpop.f32.mrb[0].mxu0
  %3197 = vmatprep.mubr.bf16.mxu0 0
  %3198 = vmatmul.mubr.bf16.gmra.mrb[0].mxu0 %v334
  %v3199 = vpop.f32.mrb[0].mxu0
  %v3200 = vadd.f32 0.0, %v3199
  %v3201 = vpop.f32.mrb[0].mxu0
  %v3202 = vpop.f32.mrb[0].mxu0
  %v3203 = vadd.f32 0.0, %v3202
  %v3204 = vpop.f32.mrb[0].mxu0
  %3205 = vmatprep.mubr.bf16.mxu0 0
  %3206 = vmatmul.mubr.bf16.gmra.mrb[0].mxu0 %v337
  %v3207 = vpop.f32.mrb[0].mxu0
  %v3208 = vadd.f32 0.0, %v3207
  %v3209 = vpop.f32.mrb[0].mxu0
  %v3210 = vpop.f32.mrb[0].mxu0
  %v3211 = vadd.f32 0.0, %v3210
  %v3212 = vpop.f32.mrb[0].mxu0
  %3213 = vmatprep.mubr.bf16.mxu0 0
  %3214 = vmatmul.mubr.bf16.gmra.mrb[0].mxu0 %v340
  %v3215 = vpop.f32.mrb[0].mxu0
  %v3216 = vadd.f32 0.0, %v3215
  %v3217 = vpop.f32.mrb[0].mxu0
  %v3218 = vpop.f32.mrb[0].mxu0
  %v3219 = vadd.f32 0.0, %v3218
  %v3220 = vpop.f32.mrb[0].mxu0
  %3221 = vmatprep.mubr.bf16.mxu0 0
  %3222 = vmatmul.mubr.bf16.gmra.mrb[0].mxu0 %v343
  %v3223 = vpop.f32.mrb[0].mxu0
  %v3224 = vadd.f32 0.0, %v3223
  %v3225 = vpop.f32.mrb[0].mxu0
  %v3226 = vpop.f32.mrb[0].mxu0
  %v3227 = vadd.f32 0.0, %v3226
  %v3228 = vpop.f32.mrb[0].mxu0
  %3229 = vmatprep.mubr.bf16.mxu0 0
  %3230 = vmatmul.mubr.bf16.gmra.mrb[0].mxu0 %v346
  %v3231 = vpop.f32.mrb[0].mxu0
  %v3232 = vadd.f32 0.0, %v3231
  %v3233 = vpop.f32.mrb[0].mxu0
  %v3234 = vpop.f32.mrb[0].mxu0
  %v3235 = vadd.f32 0.0, %v3234
  %v3236 = vpop.f32.mrb[0].mxu0
  %3237 = vmatprep.mubr.bf16.mxu0 0
  %3238 = vmatmul.mubr.bf16.gmra.mrb[0].mxu0 %v349
  %v3239 = vpop.f32.mrb[0].mxu0
  %v3240 = vadd.f32 0.0, %v3239
  %v3241 = vpop.f32.mrb[0].mxu0
  %v3242 = vpop.f32.mrb[0].mxu0
  %v3243 = vadd.f32 0.0, %v3242
  %v3244 = vpop.f32.mrb[0].mxu0
  %3245 = vmatprep.mubr.bf16.mxu0 0
  %3246 = vmatmul.mubr.bf16.gmra.mrb[0].mxu0 %v352
  %v3247 = vpop.f32.mrb[0].mxu0
  %v3248 = vadd.f32 0.0, %v3247
  %v3249 = vpop.f32.mrb[0].mxu0
  %v3250 = vpop.f32.mrb[0].mxu0
  %v3251 = vadd.f32 0.0, %v3250
  %v3252 = vpop.f32.mrb[0].mxu0
  %3253 = vmatprep.mubr.bf16.mxu0 0
  %3254 = vmatmul.mubr.bf16.gmra.mrb[0].mxu0 %v355
  %v3255 = vpop.f32.mrb[0].mxu0
  %v3256 = vadd.f32 0.0, %v3255
  %v3257 = vpop.f32.mrb[0].mxu0
  %v3258 = vpop.f32.mrb[0].mxu0
  %v3259 = vadd.f32 0.0, %v3258
  %v3260 = vpop.f32.mrb[0].mxu0
  %3261 = vmatprep.mubr.bf16.mxu0 0
  %3262 = vmatmul.mubr.bf16.gmra.mrb[0].mxu0 %v358
  %v3263 = vpop.f32.mrb[0].mxu0
  %v3264 = vadd.f32 0.0, %v3263
  %v3265 = vpop.f32.mrb[0].mxu0
  %v3266 = vpop.f32.mrb[0].mxu0
  %v3267 = vadd.f32 0.0, %v3266
  %v3268 = vpop.f32.mrb[0].mxu0
  %3269 = vmatprep.mubr.bf16.mxu0 0
  %3270 = vmatmul.mubr.bf16.gmra.mrb[0].mxu0 %v361
  %v3271 = vpop.f32.mrb[0].mxu0
  %v3272 = vadd.f32 0.0, %v3271
  %v3273 = vpop.f32.mrb[0].mxu0
  %v3274 = vpop.f32.mrb[0].mxu0
  %v3275 = vadd.f32 0.0, %v3274
  %v3276 = vpop.f32.mrb[0].mxu0
  %3277 = vmatprep.mubr.bf16.mxu0 0
  %3278 = vmatmul.mubr.bf16.gmra.mrb[0].mxu0 %v364
  %v3279 = vpop.f32.mrb[0].mxu0
  %v3280 = vadd.f32 0.0, %v3279
  %v3281 = vpop.f32.mrb[0].mxu0
  %v3282 = vpop.f32.mrb[0].mxu0
  %v3283 = vadd.f32 0.0, %v3282
  %v3284 = vpop.f32.mrb[0].mxu0
  %3285 = vmatprep.mubr.bf16.mxu0 0
  %3286 = vmatmul.mubr.bf16.gmra.mrb[0].mxu0 %v367
  %v3287 = vpop.f32.mrb[0].mxu0
  %v3288 = vadd.f32 0.0, %v3287
  %v3289 = vpop.f32.mrb[0].mxu0
  %v3290 = vpop.f32.mrb[0].mxu0
  %v3291 = vadd.f32 0.0, %v3290
  %v3292 = vpop.f32.mrb[0].mxu0
  %3293 = vmatprep.mubr.bf16.mxu0 0
  %3294 = vmatmul.mubr.bf16.gmra.mrb[0].mxu0 %v370
  %v3295 = vpop.f32.mrb[0].mxu0
  %v3296 = vadd.f32 0.0, %v3295
  %v3297 = vpop.f32.mrb[0].mxu0
  %v3298 = vpop.f32.mrb[0].mxu0
  %v3299 = vadd.f32 0.0, %v3298
  %v3300 = vpop.f32.mrb[0].mxu0
  %3301 = vmatprep.mubr.bf16.mxu0 0
  %3302 = vmatmul.mubr.bf16.gmra.mrb[0].mxu0 %v373
  %v3303 = vpop.f32.mrb[0].mxu0
  %v3304 = vadd.f32 0.0, %v3303
  %v3305 = vpop.f32.mrb[0].mxu0
  %v3306 = vpop.f32.mrb[0].mxu0
  %v3307 = vadd.f32 0.0, %v3306
  %v3308 = vpop.f32.mrb[0].mxu0
  %3309 = vmatprep.mubr.bf16.mxu0 0
  %3310 = vmatmul.mubr.bf16.gmra.mrb[0].mxu0 %v376
  %v3311 = vpop.f32.mrb[0].mxu0
  %v3312 = vadd.f32 0.0, %v3311
  %v3313 = vpop.f32.mrb[0].mxu0
  %v3314 = vpop.f32.mrb[0].mxu0
  %v3315 = vadd.f32 0.0, %v3314
  %v3316 = vpop.f32.mrb[0].mxu0
  %3317 = vmatprep.mubr.bf16.mxu0 0
  %3318 = vmatmul.mubr.bf16.gmra.mrb[0].mxu0 %v379
  %v3319 = vpop.f32.mrb[0].mxu0
  %v3320 = vadd.f32 0.0, %v3319
  %v3321 = vpop.f32.mrb[0].mxu0
  %v3322 = vpop.f32.mrb[0].mxu0
  %v3323 = vadd.f32 0.0, %v3322
  %v3324 = vpop.f32.mrb[0].mxu0
  %3325 = vmatprep.mubr.bf16.mxu0 0
  %3326 = vmatmul.mubr.bf16.gmra.mrb[0].mxu0 %v382
  %v3327 = vpop.f32.mrb[0].mxu0
  %v3328 = vadd.f32 0.0, %v3327
  %v3329 = vpop.f32.mrb[0].mxu0
  %v3330 = vpop.f32.mrb[0].mxu0
  %v3331 = vadd.f32 0.0, %v3330
  %v3332 = vpop.f32.mrb[0].mxu0
  %3333 = vmatprep.mubr.bf16.mxu0 0
  %3334 = vmatmul.mubr.bf16.gmra.mrb[0].mxu0 %v385
  %v3335 = vpop.f32.mrb[0].mxu0
  %v3336 = vadd.f32 0.0, %v3335
  %v3337 = vpop.f32.mrb[0].mxu0
  %v3338 = vpop.f32.mrb[0].mxu0
  %v3339 = vadd.f32 0.0, %v3338
  %v3340 = vpop.f32.mrb[0].mxu0
  %3341 = vmatprep.mubr.bf16.mxu0 0
  %3342 = vmatmul.mubr.bf16.gmra.mrb[0].mxu0 %v388
  %v3343 = vpop.f32.mrb[0].mxu0
  %v3344 = vadd.f32 0.0, %v3343
  %v3345 = vpop.f32.mrb[0].mxu0
  %v3346 = vpop.f32.mrb[0].mxu0
  %v3347 = vadd.f32 0.0, %v3346
  %v3348 = vpop.f32.mrb[0].mxu0
  %3349 = vmatprep.mubr.bf16.mxu0 0
  %3350 = vmatmul.mubr.bf16.gmra.mrb[0].mxu0 %v1003
  %v3351 = vpop.f32.mrb[0].mxu0
  %v3352 = vadd.f32 0.0, %v3351
  %v3353 = vpop.f32.mrb[0].mxu0
  %v3354 = vpop.f32.mrb[0].mxu0
  %v3355 = vadd.f32 0.0, %v3354
  %v3356 = vpop.f32.mrb[0].mxu0
  %3357 = vmatprep.mubr.bf16.mxu0 0
  %3358 = vmatmul.mubr.bf16.gmra.mrb[0].mxu0 %v1373
  %v3359 = vpop.f32.mrb[0].mxu0
  %v3360 = vadd.f32 0.0, %v3359
  %v3361 = vpop.f32.mrb[0].mxu0
  %v3362 = vpop.f32.mrb[0].mxu0
  %v3363 = vadd.f32 0.0, %v3362
  %v3364 = vpop.f32.mrb[0].mxu0
  %3365 = vdwg.mxu0
  %v3366 = vadd.f32 %v3004, %v3144
  %v3367 = vadd.f32 %v3005, %v3147
  %v3368 = vadd.f32 %v3006, %v3152
  %v3369 = vadd.f32 %v3007, %v3155
  %v3370 = vadd.f32 %v3008, %v3160
  %v3371 = vadd.f32 %v3009, %v3163
  %v3372 = vadd.f32 %v3010, %v3168
  %v3373 = vadd.f32 %v3011, %v3171
  %v3374 = vadd.f32 %v3012, %v3176
  %v3375 = vadd.f32 %v3013, %v3179
  %v3376 = vadd.f32 %v3014, %v3184
  %v3377 = vadd.f32 %v3015, %v3187
  %v3378 = vadd.f32 %v3016, %v3192
  %v3379 = vadd.f32 %v3017, %v3195
  %v3380 = vadd.f32 %v3018, %v3200
  %v3381 = vadd.f32 %v3019, %v3203
  %v3382 = vadd.f32 %v3020, %v3208
  %v3383 = vadd.f32 %v3021, %v3211
  %v3384 = vadd.f32 %v3022, %v3216
  %v3385 = vadd.f32 %v3023, %v3219
  %v3386 = vadd.f32 %v3024, %v3224
  %v3387 = vadd.f32 %v3025, %v3227
  %v3388 = vadd.f32 %v3026, %v3232
  %v3389 = vadd.f32 %v3027, %v3235
  %v3390 = vadd.f32 %v3028, %v3240
  %v3391 = vadd.f32 %v3029, %v3243
  %v3392 = vadd.f32 %v3030, %v3248
  %v3393 = vadd.f32 %v3031, %v3251
  %v3394 = vadd.f32 %v3032, %v3256
  %v3395 = vadd.f32 %v3033, %v3259
  %v3396 = vadd.f32 %v3034, %v3264
  %v3397 = vadd.f32 %v3035, %v3267
  %v3398 = vadd.f32 %v3036, %v3272
  %v3399 = vadd.f32 %v3037, %v3275
  %v3400 = vadd.f32 %v3038, %v3280
  %v3401 = vadd.f32 %v3039, %v3283
  %v3402 = vadd.f32 %v3040, %v3288
  %v3403 = vadd.f32 %v3041, %v3291
  %v3404 = vadd.f32 %v3042, %v3296
  %v3405 = vadd.f32 %v3043, %v3299
  %v3406 = vadd.f32 %v3044, %v3304
  %v3407 = vadd.f32 %v3045, %v3307
  %v3408 = vadd.f32 %v3046, %v3312
  %v3409 = vadd.f32 %v3047, %v3315
  %v3410 = vadd.f32 %v3048, %v3320
  %v3411 = vadd.f32 %v3049, %v3323
  %v3412 = vadd.f32 %v3050, %v3328
  %v3413 = vadd.f32 %v3051, %v3331
  %v3414 = vadd.f32 %v3052, %v3336
  %v3415 = vadd.f32 %v3053, %v3339
  %v3416 = vadd.f32 %v3054, %v3344
  %v3417 = vadd.f32 %v3055, %v3347
  %v3418 = vadd.f32 %v3056, %v3352
  %v3419 = vadd.f32 %v3057, %v3355
  %v3420 = vadd.f32 %v3058, %v3360
  %v3421 = vadd.f32 %v3059, %v3363
  %s3422 = scalar_lea.vmem %s1, 432
  %v3423 = vld [vmem:[%s3422] sm:$0xf]
  %v3424 = vld [vmem:[%s3422 + $0x4] sm:$0xf]
  %v3425 = vld [vmem:[%s3422 + $0x8] sm:$0xf]
  %v3426 = vld [vmem:[%s3422 + $0xc] sm:$0xf]
  %v3427 = vld [vmem:[%s3422 + $0x10] sm:$0xf]
  %v3428 = vld [vmem:[%s3422 + $0x14] sm:$0xf]
  %v3429 = vld [vmem:[%s3422 + $0x18] sm:$0xf]
  %v3430 = vld [vmem:[%s3422 + $0x1c] sm:$0xf]
  %v3431 = vld [vmem:[%s3422 + $0x20] sm:$0xf]
  %v3432 = vld [vmem:[%s3422 + $0x24] sm:$0xf]
  %v3433 = vld [vmem:[%s3422 + $0x28] sm:$0xf]
  %v3434 = vld [vmem:[%s3422 + $0x2c] sm:$0xf]
  %v3447 = vunpack.c.l.b16 %v3423
  %v3448 = vunpack.c.l.b16 %v3424
  %v3449 = vunpack.c.l.b16 %v3425
  %v3450 = vunpack.c.l.b16 %v3426
  %v3451 = vunpack.c.l.b16 %v3427
  %v3452 = vunpack.c.l.b16 %v3428
  %v3453 = vunpack.c.l.b16 %v3429
  %v3454 = vunpack.c.l.b16 %v3430
  %v3455 = vunpack.c.l.b16 %v3431
  %v3456 = vunpack.c.l.b16 %v3432
  %v3457 = vunpack.c.l.b16 %v3433
  %v3458 = vunpack.c.l.b16 %v3434
  %v3459 = vpack.c.b16 %v3448, %v3447
  %v3460 = vpack.c.b16 %v3450, %v3449
  %v3461 = vpack.c.b16 %v3452, %v3451
  %v3462 = vpack.c.b16 %v3454, %v3453
  %v3463 = vpack.c.b16 %v3456, %v3455
  %v3464 = vpack.c.b16 %v3458, %v3457
  %3471 = vmatprep.subr.bf16.mxu0 0
  %3472 = vmatpush1.bf16.msra.mxu0 %v3459
  %3473 = vmatprep.subr.bf16.mxu0 0
  %3474 = vmatpush1.bf16.msra.mxu0 %v3460
  %3475 = vmatprep.subr.bf16.mxu0 0
  %3476 = vmatpush1.bf16.msra.mxu0 %v3461
  %3477 = vmatprep.subr.bf16.mxu0 0
  %3478 = vmatpush1.bf16.msra.mxu0 %v3462
  %3479 = vmatprep.subr.bf16.mxu0 0
  %3480 = vmatpush1.bf16.msra.mxu0 %v3463
  %3481 = vmatprep.subr.bf16.mxu0 0
  %3482 = vmatpush1.bf16.msra.mxu0 %v3464
  %3483 = vmatprep.subr.bf16.mxu0 0
  %3484 = vmatpush1.bf16.msra.mxu0 0
  %3485 = vmatprep.subr.bf16.mxu0 0
  %3486 = vmatpush1.bf16.msra.mxu0 0
  %3487 = vmatprep.subr.bf16.mxu0 0
  %3488 = vmatpush1.bf16.msra.mxu0 0
  %3489 = vmatprep.subr.bf16.mxu0 0
  %3490 = vmatpush1.bf16.msra.mxu0 0
  %3491 = vmatprep.subr.bf16.mxu0 0
  %3492 = vmatpush1.bf16.msra.mxu0 0
  %3493 = vmatprep.subr.bf16.mxu0 0
  %3494 = vmatpush1.bf16.msra.mxu0 0
  %3495 = vmatprep.subr.bf16.mxu0 0
  %3496 = vmatpush1.bf16.msra.mxu0 0
  %3497 = vmatprep.subr.bf16.mxu0 0
  %3498 = vmatpush1.bf16.msra.mxu0 0
  %3499 = vmatprep.subr.bf16.mxu0 0
  %3500 = vmatpush1.bf16.msra.mxu0 0
  %3501 = vmatprep.subr.bf16.mxu0 0
  %3502 = vmatpush1.bf16.msra.mxu0 0
  %3503 = vmatprep.mubr.bf16.mxu0 0
  %3504 = vmatmul.mubr.bf16.gmra.mrb[0].mxu0 %v316
  %v3505 = vpop.f32.mrb[0].mxu0
  %v3506 = vadd.f32 0.0, %v3505
  %v3507 = vpop.f32.mrb[0].mxu0
  %v3508 = vpop.f32.mrb[0].mxu0
  %v3509 = vadd.f32 0.0, %v3508
  %v3510 = vpop.f32.mrb[0].mxu0
  %3511 = vmatprep.mubr.bf16.mxu0 0
  %3512 = vmatmul.mubr.bf16.gmra.mrb[0].mxu0 %v319
  %v3513 = vpop.f32.mrb[0].mxu0
  %v3514 = vadd.f32 0.0, %v3513
  %v3515 = vpop.f32.mrb[0].mxu0
  %v3516 = vpop.f32.mrb[0].mxu0
  %v3517 = vadd.f32 0.0, %v3516
  %v3518 = vpop.f32.mrb[0].mxu0
  %3519 = vmatprep.mubr.bf16.mxu0 0
  %3520 = vmatmul.mubr.bf16.gmra.mrb[0].mxu0 %v322
  %v3521 = vpop.f32.mrb[0].mxu0
  %v3522 = vadd.f32 0.0, %v3521
  %v3523 = vpop.f32.mrb[0].mxu0
  %v3524 = vpop.f32.mrb[0].mxu0
  %v3525 = vadd.f32 0.0, %v3524
  %v3526 = vpop.f32.mrb[0].mxu0
  %3527 = vmatprep.mubr.bf16.mxu0 0
  %3528 = vmatmul.mubr.bf16.gmra.mrb[0].mxu0 %v325
  %v3529 = vpop.f32.mrb[0].mxu0
  %v3530 = vadd.f32 0.0, %v3529
  %v3531 = vpop.f32.mrb[0].mxu0
  %v3532 = vpop.f32.mrb[0].mxu0
  %v3533 = vadd.f32 0.0, %v3532
  %v3534 = vpop.f32.mrb[0].mxu0
  %3535 = vmatprep.mubr.bf16.mxu0 0
  %3536 = vmatmul.mubr.bf16.gmra.mrb[0].mxu0 %v328
  %v3537 = vpop.f32.mrb[0].mxu0
  %v3538 = vadd.f32 0.0, %v3537
  %v3539 = vpop.f32.mrb[0].mxu0
  %v3540 = vpop.f32.mrb[0].mxu0
  %v3541 = vadd.f32 0.0, %v3540
  %v3542 = vpop.f32.mrb[0].mxu0
  %3543 = vmatprep.mubr.bf16.mxu0 0
  %3544 = vmatmul.mubr.bf16.gmra.mrb[0].mxu0 %v331
  %v3545 = vpop.f32.mrb[0].mxu0
  %v3546 = vadd.f32 0.0, %v3545
  %v3547 = vpop.f32.mrb[0].mxu0
  %v3548 = vpop.f32.mrb[0].mxu0
  %v3549 = vadd.f32 0.0, %v3548
  %v3550 = vpop.f32.mrb[0].mxu0
  %3551 = vmatprep.mubr.bf16.mxu0 0
  %3552 = vmatmul.mubr.bf16.gmra.mrb[0].mxu0 %v334
  %v3553 = vpop.f32.mrb[0].mxu0
  %v3554 = vadd.f32 0.0, %v3553
  %v3555 = vpop.f32.mrb[0].mxu0
  %v3556 = vpop.f32.mrb[0].mxu0
  %v3557 = vadd.f32 0.0, %v3556
  %v3558 = vpop.f32.mrb[0].mxu0
  %3559 = vmatprep.mubr.bf16.mxu0 0
  %3560 = vmatmul.mubr.bf16.gmra.mrb[0].mxu0 %v337
  %v3561 = vpop.f32.mrb[0].mxu0
  %v3562 = vadd.f32 0.0, %v3561
  %v3563 = vpop.f32.mrb[0].mxu0
  %v3564 = vpop.f32.mrb[0].mxu0
  %v3565 = vadd.f32 0.0, %v3564
  %v3566 = vpop.f32.mrb[0].mxu0
  %3567 = vmatprep.mubr.bf16.mxu0 0
  %3568 = vmatmul.mubr.bf16.gmra.mrb[0].mxu0 %v340
  %v3569 = vpop.f32.mrb[0].mxu0
  %v3570 = vadd.f32 0.0, %v3569
  %v3571 = vpop.f32.mrb[0].mxu0
  %v3572 = vpop.f32.mrb[0].mxu0
  %v3573 = vadd.f32 0.0, %v3572
  %v3574 = vpop.f32.mrb[0].mxu0
  %3575 = vmatprep.mubr.bf16.mxu0 0
  %3576 = vmatmul.mubr.bf16.gmra.mrb[0].mxu0 %v343
  %v3577 = vpop.f32.mrb[0].mxu0
  %v3578 = vadd.f32 0.0, %v3577
  %v3579 = vpop.f32.mrb[0].mxu0
  %v3580 = vpop.f32.mrb[0].mxu0
  %v3581 = vadd.f32 0.0, %v3580
  %v3582 = vpop.f32.mrb[0].mxu0
  %3583 = vmatprep.mubr.bf16.mxu0 0
  %3584 = vmatmul.mubr.bf16.gmra.mrb[0].mxu0 %v346
  %v3585 = vpop.f32.mrb[0].mxu0
  %v3586 = vadd.f32 0.0, %v3585
  %v3587 = vpop.f32.mrb[0].mxu0
  %v3588 = vpop.f32.mrb[0].mxu0
  %v3589 = vadd.f32 0.0, %v3588
  %v3590 = vpop.f32.mrb[0].mxu0
  %3591 = vmatprep.mubr.bf16.mxu0 0
  %3592 = vmatmul.mubr.bf16.gmra.mrb[0].mxu0 %v349
  %v3593 = vpop.f32.mrb[0].mxu0
  %v3594 = vadd.f32 0.0, %v3593
  %v3595 = vpop.f32.mrb[0].mxu0
  %v3596 = vpop.f32.mrb[0].mxu0
  %v3597 = vadd.f32 0.0, %v3596
  %v3598 = vpop.f32.mrb[0].mxu0
  %3599 = vmatprep.mubr.bf16.mxu0 0
  %3600 = vmatmul.mubr.bf16.gmra.mrb[0].mxu0 %v352
  %v3601 = vpop.f32.mrb[0].mxu0
  %v3602 = vadd.f32 0.0, %v3601
  %v3603 = vpop.f32.mrb[0].mxu0
  %v3604 = vpop.f32.mrb[0].mxu0
  %v3605 = vadd.f32 0.0, %v3604
  %v3606 = vpop.f32.mrb[0].mxu0
  %3607 = vmatprep.mubr.bf16.mxu0 0
  %3608 = vmatmul.mubr.bf16.gmra.mrb[0].mxu0 %v355
  %v3609 = vpop.f32.mrb[0].mxu0
  %v3610 = vadd.f32 0.0, %v3609
  %v3611 = vpop.f32.mrb[0].mxu0
  %v3612 = vpop.f32.mrb[0].mxu0
  %v3613 = vadd.f32 0.0, %v3612
  %v3614 = vpop.f32.mrb[0].mxu0
  %3615 = vmatprep.mubr.bf16.mxu0 0
  %3616 = vmatmul.mubr.bf16.gmra.mrb[0].mxu0 %v358
  %v3617 = vpop.f32.mrb[0].mxu0
  %v3618 = vadd.f32 0.0, %v3617
  %v3619 = vpop.f32.mrb[0].mxu0
  %v3620 = vpop.f32.mrb[0].mxu0
  %v3621 = vadd.f32 0.0, %v3620
  %v3622 = vpop.f32.mrb[0].mxu0
  %3623 = vmatprep.mubr.bf16.mxu0 0
  %3624 = vmatmul.mubr.bf16.gmra.mrb[0].mxu0 %v361
  %v3625 = vpop.f32.mrb[0].mxu0
  %v3626 = vadd.f32 0.0, %v3625
  %v3627 = vpop.f32.mrb[0].mxu0
  %v3628 = vpop.f32.mrb[0].mxu0
  %v3629 = vadd.f32 0.0, %v3628
  %v3630 = vpop.f32.mrb[0].mxu0
  %3631 = vmatprep.mubr.bf16.mxu0 0
  %3632 = vmatmul.mubr.bf16.gmra.mrb[0].mxu0 %v364
  %v3633 = vpop.f32.mrb[0].mxu0
  %v3634 = vadd.f32 0.0, %v3633
  %v3635 = vpop.f32.mrb[0].mxu0
  %v3636 = vpop.f32.mrb[0].mxu0
  %v3637 = vadd.f32 0.0, %v3636
  %v3638 = vpop.f32.mrb[0].mxu0
  %3639 = vmatprep.mubr.bf16.mxu0 0
  %3640 = vmatmul.mubr.bf16.gmra.mrb[0].mxu0 %v367
  %v3641 = vpop.f32.mrb[0].mxu0
  %v3642 = vadd.f32 0.0, %v3641
  %v3643 = vpop.f32.mrb[0].mxu0
  %v3644 = vpop.f32.mrb[0].mxu0
  %v3645 = vadd.f32 0.0, %v3644
  %v3646 = vpop.f32.mrb[0].mxu0
  %3647 = vmatprep.mubr.bf16.mxu0 0
  %3648 = vmatmul.mubr.bf16.gmra.mrb[0].mxu0 %v370
  %v3649 = vpop.f32.mrb[0].mxu0
  %v3650 = vadd.f32 0.0, %v3649
  %v3651 = vpop.f32.mrb[0].mxu0
  %v3652 = vpop.f32.mrb[0].mxu0
  %v3653 = vadd.f32 0.0, %v3652
  %v3654 = vpop.f32.mrb[0].mxu0
  %3655 = vmatprep.mubr.bf16.mxu0 0
  %3656 = vmatmul.mubr.bf16.gmra.mrb[0].mxu0 %v373
  %v3657 = vpop.f32.mrb[0].mxu0
  %v3658 = vadd.f32 0.0, %v3657
  %v3659 = vpop.f32.mrb[0].mxu0
  %v3660 = vpop.f32.mrb[0].mxu0
  %v3661 = vadd.f32 0.0, %v3660
  %v3662 = vpop.f32.mrb[0].mxu0
  %3663 = vmatprep.mubr.bf16.mxu0 0
  %3664 = vmatmul.mubr.bf16.gmra.mrb[0].mxu0 %v376
  %v3665 = vpop.f32.mrb[0].mxu0
  %v3666 = vadd.f32 0.0, %v3665
  %v3667 = vpop.f32.mrb[0].mxu0
  %v3668 = vpop.f32.mrb[0].mxu0
  %v3669 = vadd.f32 0.0, %v3668
  %v3670 = vpop.f32.mrb[0].mxu0
  %3671 = vmatprep.mubr.bf16.mxu0 0
  %3672 = vmatmul.mubr.bf16.gmra.mrb[0].mxu0 %v379
  %v3673 = vpop.f32.mrb[0].mxu0
  %v3674 = vadd.f32 0.0, %v3673
  %v3675 = vpop.f32.mrb[0].mxu0
  %v3676 = vpop.f32.mrb[0].mxu0
  %v3677 = vadd.f32 0.0, %v3676
  %v3678 = vpop.f32.mrb[0].mxu0
  %3679 = vmatprep.mubr.bf16.mxu0 0
  %3680 = vmatmul.mubr.bf16.gmra.mrb[0].mxu0 %v382
  %v3681 = vpop.f32.mrb[0].mxu0
  %v3682 = vadd.f32 0.0, %v3681
  %v3683 = vpop.f32.mrb[0].mxu0
  %v3684 = vpop.f32.mrb[0].mxu0
  %v3685 = vadd.f32 0.0, %v3684
  %v3686 = vpop.f32.mrb[0].mxu0
  %3687 = vmatprep.mubr.bf16.mxu0 0
  %3688 = vmatmul.mubr.bf16.gmra.mrb[0].mxu0 %v385
  %v3689 = vpop.f32.mrb[0].mxu0
  %v3690 = vadd.f32 0.0, %v3689
  %v3691 = vpop.f32.mrb[0].mxu0
  %v3692 = vpop.f32.mrb[0].mxu0
  %v3693 = vadd.f32 0.0, %v3692
  %v3694 = vpop.f32.mrb[0].mxu0
  %3695 = vmatprep.mubr.bf16.mxu0 0
  %3696 = vmatmul.mubr.bf16.gmra.mrb[0].mxu0 %v388
  %v3697 = vpop.f32.mrb[0].mxu0
  %v3698 = vadd.f32 0.0, %v3697
  %v3699 = vpop.f32.mrb[0].mxu0
  %v3700 = vpop.f32.mrb[0].mxu0
  %v3701 = vadd.f32 0.0, %v3700
  %v3702 = vpop.f32.mrb[0].mxu0
  %3703 = vmatprep.mubr.bf16.mxu0 0
  %3704 = vmatmul.mubr.bf16.gmra.mrb[0].mxu0 %v1003
  %v3705 = vpop.f32.mrb[0].mxu0
  %v3706 = vadd.f32 0.0, %v3705
  %v3707 = vpop.f32.mrb[0].mxu0
  %v3708 = vpop.f32.mrb[0].mxu0
  %v3709 = vadd.f32 0.0, %v3708
  %v3710 = vpop.f32.mrb[0].mxu0
  %3711 = vmatprep.mubr.bf16.mxu0 0
  %3712 = vmatmul.mubr.bf16.gmra.mrb[0].mxu0 %v1373
  %v3713 = vpop.f32.mrb[0].mxu0
  %v3714 = vadd.f32 0.0, %v3713
  %v3715 = vpop.f32.mrb[0].mxu0
  %v3716 = vpop.f32.mrb[0].mxu0
  %v3717 = vadd.f32 0.0, %v3716
  %v3718 = vpop.f32.mrb[0].mxu0
  %3719 = vmatprep.mubr.bf16.mxu0 0
  %3720 = vmatmul.mubr.bf16.gmra.mrb[0].mxu0 %v1743
  %v3721 = vpop.f32.mrb[0].mxu0
  %v3722 = vadd.f32 0.0, %v3721
  %v3723 = vpop.f32.mrb[0].mxu0
  %v3724 = vpop.f32.mrb[0].mxu0
  %v3725 = vadd.f32 0.0, %v3724
  %v3726 = vpop.f32.mrb[0].mxu0
  %3727 = vdwg.mxu0
  %v3728 = vadd.f32 %v3366, %v3506
  %v3729 = vadd.f32 %v3367, %v3509
  %v3730 = vadd.f32 %v3368, %v3514
  %v3731 = vadd.f32 %v3369, %v3517
  %v3732 = vadd.f32 %v3370, %v3522
  %v3733 = vadd.f32 %v3371, %v3525
  %v3734 = vadd.f32 %v3372, %v3530
  %v3735 = vadd.f32 %v3373, %v3533
  %v3736 = vadd.f32 %v3374, %v3538
  %v3737 = vadd.f32 %v3375, %v3541
  %v3738 = vadd.f32 %v3376, %v3546
  %v3739 = vadd.f32 %v3377, %v3549
  %v3740 = vadd.f32 %v3378, %v3554
  %v3741 = vadd.f32 %v3379, %v3557
  %v3742 = vadd.f32 %v3380, %v3562
  %v3743 = vadd.f32 %v3381, %v3565
  %v3744 = vadd.f32 %v3382, %v3570
  %v3745 = vadd.f32 %v3383, %v3573
  %v3746 = vadd.f32 %v3384, %v3578
  %v3747 = vadd.f32 %v3385, %v3581
  %v3748 = vadd.f32 %v3386, %v3586
  %v3749 = vadd.f32 %v3387, %v3589
  %v3750 = vadd.f32 %v3388, %v3594
  %v3751 = vadd.f32 %v3389, %v3597
  %v3752 = vadd.f32 %v3390, %v3602
  %v3753 = vadd.f32 %v3391, %v3605
  %v3754 = vadd.f32 %v3392, %v3610
  %v3755 = vadd.f32 %v3393, %v3613
  %v3756 = vadd.f32 %v3394, %v3618
  %v3757 = vadd.f32 %v3395, %v3621
  %v3758 = vadd.f32 %v3396, %v3626
  %v3759 = vadd.f32 %v3397, %v3629
  %v3760 = vadd.f32 %v3398, %v3634
  %v3761 = vadd.f32 %v3399, %v3637
  %v3762 = vadd.f32 %v3400, %v3642
  %v3763 = vadd.f32 %v3401, %v3645
  %v3764 = vadd.f32 %v3402, %v3650
  %v3765 = vadd.f32 %v3403, %v3653
  %v3766 = vadd.f32 %v3404, %v3658
  %v3767 = vadd.f32 %v3405, %v3661
  %v3768 = vadd.f32 %v3406, %v3666
  %v3769 = vadd.f32 %v3407, %v3669
  %v3770 = vadd.f32 %v3408, %v3674
  %v3771 = vadd.f32 %v3409, %v3677
  %v3772 = vadd.f32 %v3410, %v3682
  %v3773 = vadd.f32 %v3411, %v3685
  %v3774 = vadd.f32 %v3412, %v3690
  %v3775 = vadd.f32 %v3413, %v3693
  %v3776 = vadd.f32 %v3414, %v3698
  %v3777 = vadd.f32 %v3415, %v3701
  %v3778 = vadd.f32 %v3416, %v3706
  %v3779 = vadd.f32 %v3417, %v3709
  %v3780 = vadd.f32 %v3418, %v3714
  %v3781 = vadd.f32 %v3419, %v3717
  %v3782 = vadd.f32 %v3420, %v3722
  %v3783 = vadd.f32 %v3421, %v3725
  %v3784 = vmax.f32 %v3728, %v3730
  %v3785 = vmax.f32 %v3729, %v3731
  %v3786 = vmax.f32 %v3732, %v3734
  %v3787 = vmax.f32 %v3733, %v3735
  %v3788 = vmax.f32 %v3736, %v3738
  %v3789 = vmax.f32 %v3737, %v3739
  %v3790 = vmax.f32 %v3740, %v3742
  %v3791 = vmax.f32 %v3741, %v3743
  %v3792 = vmax.f32 %v3744, %v3746
  %v3793 = vmax.f32 %v3745, %v3747
  %v3794 = vmax.f32 %v3748, %v3750
  %v3795 = vmax.f32 %v3749, %v3751
  %v3796 = vmax.f32 %v3752, %v3754
  %v3797 = vmax.f32 %v3753, %v3755
  %v3798 = vmax.f32 %v3756, %v3758
  %v3799 = vmax.f32 %v3757, %v3759
  %v3800 = vmax.f32 %v3760, %v3762
  %v3801 = vmax.f32 %v3761, %v3763
  %v3802 = vmax.f32 %v3764, %v3766
  %v3803 = vmax.f32 %v3765, %v3767
  %v3804 = vmax.f32 %v3768, %v3770
  %v3805 = vmax.f32 %v3769, %v3771
  %v3806 = vmax.f32 %v3772, %v3774
  %v3807 = vmax.f32 %v3773, %v3775
  %v3808 = vmax.f32 %v3776, %v3778
  %v3809 = vmax.f32 %v3777, %v3779
  %v3810 = vmax.f32 %v3780, %v3782
  %v3811 = vmax.f32 %v3781, %v3783
  %v3812 = vmax.f32 %v2058, %v3784
  %v3813 = vmax.f32 %v2059, %v3785
  %v3814 = vmax.f32 %v2060, %v3786
  %v3815 = vmax.f32 %v2061, %v3787
  %v3816 = vmax.f32 %v2062, %v3788
  %v3817 = vmax.f32 %v2063, %v3789
  %v3818 = vmax.f32 %v2064, %v3790
  %v3819 = vmax.f32 %v2065, %v3791
  %v3820 = vmax.f32 %v2066, %v3792
  %v3821 = vmax.f32 %v2067, %v3793
  %v3822 = vmax.f32 %v2068, %v3794
  %v3823 = vmax.f32 %v2069, %v3795
  %v3824 = vmax.f32 %v2070, %v3796
  %v3825 = vmax.f32 %v2071, %v3797
  %v3826 = vmax.f32 %v2072, %v3798
  %v3827 = vmax.f32 %v2073, %v3799
  %v3828 = vmax.f32 %v2074, %v3800
  %v3829 = vmax.f32 %v2075, %v3801
  %v3830 = vmax.f32 %v2076, %v3802
  %v3831 = vmax.f32 %v2077, %v3803
  %v3832 = vmax.f32 %v2078, %v3804
  %v3833 = vmax.f32 %v2079, %v3805
  %v3834 = vmax.f32 %v2080, %v3806
  %v3835 = vmax.f32 %v2081, %v3807
  %v3836 = vmax.f32 %v2082, %v3808
  %v3837 = vmax.f32 %v2083, %v3809
  %v3838 = vmax.f32 %v2084, %v3810
  %v3839 = vmax.f32 %v2085, %v3811
  %v3841 = vlaneseq
  %v3842 = vshrl.u32 %v3841, 7
  %v3843 = vsub.s32 0, %v3842
  %v3844 = vrot.slane %v103, %v3843
  %v3846 = vadd.f32 %v3812, %v3844
  %v3847 = vadd.f32 %v3813, %v3844
  %v3848 = vadd.f32 %v3814, %v3844
  %v3849 = vadd.f32 %v3815, %v3844
  %v3850 = vadd.f32 %v3816, %v3844
  %v3851 = vadd.f32 %v3817, %v3844
  %v3852 = vadd.f32 %v3818, %v3844
  %v3853 = vadd.f32 %v3819, %v3844
  %v3854 = vadd.f32 %v3820, %v3844
  %v3855 = vadd.f32 %v3821, %v3844
  %v3856 = vadd.f32 %v3822, %v3844
  %v3857 = vadd.f32 %v3823, %v3844
  %v3858 = vadd.f32 %v3824, %v3844
  %v3859 = vadd.f32 %v3825, %v3844
  %v3860 = vadd.f32 %v3826, %v3844
  %v3861 = vadd.f32 %v3827, %v3844
  %v3862 = vadd.f32 %v3828, %v3844
  %v3863 = vadd.f32 %v3829, %v3844
  %v3864 = vadd.f32 %v3830, %v3844
  %v3865 = vadd.f32 %v3831, %v3844
  %v3866 = vadd.f32 %v3832, %v3844
  %v3867 = vadd.f32 %v3833, %v3844
  %v3868 = vadd.f32 %v3834, %v3844
  %v3869 = vadd.f32 %v3835, %v3844
  %v3870 = vadd.f32 %v3836, %v3844
  %v3871 = vadd.f32 %v3837, %v3844
  %v3872 = vadd.f32 %v3838, %v3844
  %v3873 = vadd.f32 %v3839, %v3844
  %v3874 = vmax.f32 %v3846, 0.0
  %v3875 = vmax.f32 %v3847, 0.0
  %v3876 = vmax.f32 %v3848, 0.0
  %v3877 = vmax.f32 %v3849, 0.0
  %v3878 = vmax.f32 %v3850, 0.0
  %v3879 = vmax.f32 %v3851, 0.0
  %v3880 = vmax.f32 %v3852, 0.0
  %v3881 = vmax.f32 %v3853, 0.0
  %v3882 = vmax.f32 %v3854, 0.0
  %v3883 = vmax.f32 %v3855, 0.0
  %v3884 = vmax.f32 %v3856, 0.0
  %v3885 = vmax.f32 %v3857, 0.0
  %v3886 = vmax.f32 %v3858, 0.0
  %v3887 = vmax.f32 %v3859, 0.0
  %v3888 = vmax.f32 %v3860, 0.0
  %v3889 = vmax.f32 %v3861, 0.0
  %v3890 = vmax.f32 %v3862, 0.0
  %v3891 = vmax.f32 %v3863, 0.0
  %v3892 = vmax.f32 %v3864, 0.0
  %v3893 = vmax.f32 %v3865, 0.0
  %v3894 = vmax.f32 %v3866, 0.0
  %v3895 = vmax.f32 %v3867, 0.0
  %v3896 = vmax.f32 %v3868, 0.0
  %v3897 = vmax.f32 %v3869, 0.0
  %v3898 = vmax.f32 %v3870, 0.0
  %v3899 = vmax.f32 %v3871, 0.0
  %v3900 = vmax.f32 %v3872, 0.0
  %v3901 = vmax.f32 %v3873, 0.0
  %v3902 = vpack.c.bf16 %v3875, %v3874
  %v3903 = vpack.c.bf16 %v3877, %v3876
  %v3904 = vpack.c.bf16 %v3879, %v3878
  %v3905 = vpack.c.bf16 %v3881, %v3880
  %v3906 = vpack.c.bf16 %v3883, %v3882
  %v3907 = vpack.c.bf16 %v3885, %v3884
  %v3908 = vpack.c.bf16 %v3887, %v3886
  %v3909 = vpack.c.bf16 %v3889, %v3888
  %v3910 = vpack.c.bf16 %v3891, %v3890
  %v3911 = vpack.c.bf16 %v3893, %v3892
  %v3912 = vpack.c.bf16 %v3895, %v3894
  %v3913 = vpack.c.bf16 %v3897, %v3896
  %v3914 = vpack.c.bf16 %v3899, %v3898
  %v3915 = vpack.c.bf16 %v3901, %v3900
  %v3916 = vld [vmem:[%s7] sm:$0x1]
  %v3917 = vld [vmem:[%s2] sm:$0xf]
  %v3918 = vld [vmem:[%s2 + $0x4] sm:$0xf]
  %v3919 = vld [vmem:[%s2 + $0x8] sm:$0xf]
  %v3920 = vld [vmem:[%s2 + $0xc] sm:$0xf]
  %v3921 = vld [vmem:[%s2 + $0x10] sm:$0xf]
  %v3922 = vld [vmem:[%s2 + $0x14] sm:$0xf]
  %v3923 = vld [vmem:[%s2 + $0x18] sm:$0xf]
  %v3924 = vld [vmem:[%s2 + $0x1c] sm:$0xf]
  %v3925 = vld [vmem:[%s2 + $0x20] sm:$0xf]
  %v3926 = vld [vmem:[%s2 + $0x24] sm:$0xf]
  %v3927 = vld [vmem:[%s2 + $0x28] sm:$0x3]
  %s3928 = scalar_lea.vmem %s2, 44
  %v3929 = vld [vmem:[%s3928] sm:$0xf]
  %v3930 = vld [vmem:[%s3928 + $0x4] sm:$0xf]
  %v3931 = vld [vmem:[%s3928 + $0x8] sm:$0xf]
  %v3932 = vld [vmem:[%s3928 + $0xc] sm:$0xf]
  %v3933 = vld [vmem:[%s3928 + $0x10] sm:$0xf]
  %v3934 = vld [vmem:[%s3928 + $0x14] sm:$0xf]
  %v3935 = vld [vmem:[%s3928 + $0x18] sm:$0xf]
  %v3936 = vld [vmem:[%s3928 + $0x1c] sm:$0xf]
  %v3937 = vld [vmem:[%s3928 + $0x20] sm:$0xf]
  %v3938 = vld [vmem:[%s3928 + $0x24] sm:$0xf]
  %v3939 = vld [vmem:[%s3928 + $0x28] sm:$0x3]
  %v3951 = vunpack.c.l.b16 %v3929
  %v3952 = vunpack.c.l.b16 %v3930
  %v3953 = vunpack.c.l.b16 %v3931
  %v3954 = vunpack.c.l.b16 %v3932
  %v3955 = vunpack.c.l.b16 %v3933
  %v3956 = vunpack.c.l.b16 %v3934
  %v3957 = vunpack.c.l.b16 %v3935
  %v3958 = vunpack.c.l.b16 %v3936
  %v3959 = vunpack.c.l.b16 %v3937
  %v3960 = vunpack.c.l.b16 %v3938
  %v3961 = vunpack.c.l.b16 %v3939
  %v3962 = vpack.c.b16 %v3952, %v3951
  %v3963 = vpack.c.b16 %v3954, %v3953
  %v3964 = vpack.c.b16 %v3956, %v3955
  %v3965 = vpack.c.b16 %v3958, %v3957
  %v3966 = vpack.c.b16 %v3960, %v3959
  %v3967 = vpack.c.b16 %v3961, %v3961
  %vm3973 = vcmask 687104
  %v3975 = vsel %vm3973, %v3903, 0
  %v3978 = vsel %vm3973, %v3904, 0
  %v3981 = vsel %vm3973, %v3905, 0
  %v3984 = vsel %vm3973, %v3906, 0
  %v3987 = vsel %vm3973, %v3907, 0
  %v3990 = vsel %vm3973, %v3908, 0
  %v3993 = vsel %vm3973, %v3909, 0
  %v3996 = vsel %vm3973, %v3910, 0
  %v3999 = vsel %vm3973, %v3911, 0
  %v4002 = vsel %vm3973, %v3912, 0
  %vm4004 = vcmask 1041408
  %v4006 = vsel %vm4004, %v3967, 0
  %4008 = vmatprep.subr.bf16.mxu0 0
  %4009 = vmatpush1.bf16.msra.mxu0 %v3962
  %4010 = vmatprep.subr.bf16.mxu0 0
  %4011 = vmatpush1.bf16.msra.mxu0 %v3963
  %4012 = vmatprep.subr.bf16.mxu0 0
  %4013 = vmatpush1.bf16.msra.mxu0 %v3964
  %4014 = vmatprep.subr.bf16.mxu0 0
  %4015 = vmatpush1.bf16.msra.mxu0 %v3965
  %4016 = vmatprep.subr.bf16.mxu0 0
  %4017 = vmatpush1.bf16.msra.mxu0 %v3966
  %4018 = vmatprep.subr.bf16.mxu0 0
  %4019 = vmatpush1.bf16.msra.mxu0 %v4006
  %4020 = vmatprep.subr.bf16.mxu0 0
  %4021 = vmatpush1.bf16.msra.mxu0 0
  %4022 = vmatprep.subr.bf16.mxu0 0
  %4023 = vmatpush1.bf16.msra.mxu0 0
  %4024 = vmatprep.subr.bf16.mxu0 0
  %4025 = vmatpush1.bf16.msra.mxu0 0
  %4026 = vmatprep.subr.bf16.mxu0 0
  %4027 = vmatpush1.bf16.msra.mxu0 0
  %4028 = vmatprep.subr.bf16.mxu0 0
  %4029 = vmatpush1.bf16.msra.mxu0 0
  %4030 = vmatprep.subr.bf16.mxu0 0
  %4031 = vmatpush1.bf16.msra.mxu0 0
  %4032 = vmatprep.subr.bf16.mxu0 0
  %4033 = vmatpush1.bf16.msra.mxu0 0
  %4034 = vmatprep.subr.bf16.mxu0 0
  %4035 = vmatpush1.bf16.msra.mxu0 0
  %4036 = vmatprep.subr.bf16.mxu0 0
  %4037 = vmatpush1.bf16.msra.mxu0 0
  %4038 = vmatprep.subr.bf16.mxu0 0
  %4039 = vmatpush1.bf16.msra.mxu0 0
  %4040 = vmatprep.mubr.bf16.mxu0 0
  %4041 = vmatmul.mubr.bf16.gmra.mrb[0].mxu0 %v3975
  %v4042 = vpop.f32.mrb[0].mxu0
  %v4043 = vadd.f32 0.0, %v4042
  %v4044 = vpop.f32.mrb[0].mxu0
  %v4045 = vpop.f32.mrb[0].mxu0
  %v4046 = vadd.f32 0.0, %v4045
  %v4047 = vpop.f32.mrb[0].mxu0
  %4048 = vmatprep.mubr.bf16.mxu0 0
  %4049 = vmatmul.mubr.bf16.gmra.mrb[0].mxu0 %v3978
  %v4050 = vpop.f32.mrb[0].mxu0
  %v4051 = vadd.f32 0.0, %v4050
  %v4052 = vpop.f32.mrb[0].mxu0
  %v4053 = vpop.f32.mrb[0].mxu0
  %v4054 = vadd.f32 0.0, %v4053
  %v4055 = vpop.f32.mrb[0].mxu0
  %4056 = vmatprep.mubr.bf16.mxu0 0
  %4057 = vmatmul.mubr.bf16.gmra.mrb[0].mxu0 %v3981
  %v4058 = vpop.f32.mrb[0].mxu0
  %v4059 = vadd.f32 0.0, %v4058
  %v4060 = vpop.f32.mrb[0].mxu0
  %v4061 = vpop.f32.mrb[0].mxu0
  %v4062 = vadd.f32 0.0, %v4061
  %v4063 = vpop.f32.mrb[0].mxu0
  %4064 = vmatprep.mubr.bf16.mxu0 0
  %4065 = vmatmul.mubr.bf16.gmra.mrb[0].mxu0 %v3984
  %v4066 = vpop.f32.mrb[0].mxu0
  %v4067 = vadd.f32 0.0, %v4066
  %v4068 = vpop.f32.mrb[0].mxu0
  %v4069 = vpop.f32.mrb[0].mxu0
  %v4070 = vadd.f32 0.0, %v4069
  %v4071 = vpop.f32.mrb[0].mxu0
  %4072 = vmatprep.mubr.bf16.mxu0 0
  %4073 = vmatmul.mubr.bf16.gmra.mrb[0].mxu0 %v3987
  %v4074 = vpop.f32.mrb[0].mxu0
  %v4075 = vadd.f32 0.0, %v4074
  %v4076 = vpop.f32.mrb[0].mxu0
  %v4077 = vpop.f32.mrb[0].mxu0
  %v4078 = vadd.f32 0.0, %v4077
  %v4079 = vpop.f32.mrb[0].mxu0
  %4080 = vmatprep.mubr.bf16.mxu0 0
  %4081 = vmatmul.mubr.bf16.gmra.mrb[0].mxu0 %v3990
  %v4082 = vpop.f32.mrb[0].mxu0
  %v4083 = vadd.f32 0.0, %v4082
  %v4084 = vpop.f32.mrb[0].mxu0
  %v4085 = vpop.f32.mrb[0].mxu0
  %v4086 = vadd.f32 0.0, %v4085
  %v4087 = vpop.f32.mrb[0].mxu0
  %4088 = vmatprep.mubr.bf16.mxu0 0
  %4089 = vmatmul.mubr.bf16.gmra.mrb[0].mxu0 %v3993
  %v4090 = vpop.f32.mrb[0].mxu0
  %v4091 = vadd.f32 0.0, %v4090
  %v4092 = vpop.f32.mrb[0].mxu0
  %v4093 = vpop.f32.mrb[0].mxu0
  %v4094 = vadd.f32 0.0, %v4093
  %v4095 = vpop.f32.mrb[0].mxu0
  %4096 = vmatprep.mubr.bf16.mxu0 0
  %4097 = vmatmul.mubr.bf16.gmra.mrb[0].mxu0 %v3996
  %v4098 = vpop.f32.mrb[0].mxu0
  %v4099 = vadd.f32 0.0, %v4098
  %v4100 = vpop.f32.mrb[0].mxu0
  %v4101 = vpop.f32.mrb[0].mxu0
  %v4102 = vadd.f32 0.0, %v4101
  %v4103 = vpop.f32.mrb[0].mxu0
  %4104 = vmatprep.mubr.bf16.mxu0 0
  %4105 = vmatmul.mubr.bf16.gmra.mrb[0].mxu0 %v3999
  %v4106 = vpop.f32.mrb[0].mxu0
  %v4107 = vadd.f32 0.0, %v4106
  %v4108 = vpop.f32.mrb[0].mxu0
  %v4109 = vpop.f32.mrb[0].mxu0
  %v4110 = vadd.f32 0.0, %v4109
  %v4111 = vpop.f32.mrb[0].mxu0
  %4112 = vmatprep.mubr.bf16.mxu0 0
  %4113 = vmatmul.mubr.bf16.gmra.mrb[0].mxu0 %v4002
  %v4114 = vpop.f32.mrb[0].mxu0
  %v4115 = vadd.f32 0.0, %v4114
  %v4116 = vpop.f32.mrb[0].mxu0
  %v4117 = vpop.f32.mrb[0].mxu0
  %v4118 = vadd.f32 0.0, %v4117
  %v4119 = vpop.f32.mrb[0].mxu0
  %4120 = vdwg.mxu0
  %v4132 = vunpack.c.l.b16 %v3917
  %v4133 = vunpack.c.l.b16 %v3918
  %v4134 = vunpack.c.l.b16 %v3919
  %v4135 = vunpack.c.l.b16 %v3920
  %v4136 = vunpack.c.l.b16 %v3921
  %v4137 = vunpack.c.l.b16 %v3922
  %v4138 = vunpack.c.l.b16 %v3923
  %v4139 = vunpack.c.l.b16 %v3924
  %v4140 = vunpack.c.l.b16 %v3925
  %v4141 = vunpack.c.l.b16 %v3926
  %v4142 = vunpack.c.l.b16 %v3927
  %v4143 = vpack.c.b16 %v4133, %v4132
  %v4144 = vpack.c.b16 %v4135, %v4134
  %v4145 = vpack.c.b16 %v4137, %v4136
  %v4146 = vpack.c.b16 %v4139, %v4138
  %v4147 = vpack.c.b16 %v4141, %v4140
  %v4148 = vpack.c.b16 %v4142, %v4142
  %v4155 = vsel %vm3973, %v3902, 0
  %v4158 = vsel %vm4004, %v4148, 0
  %4160 = vmatprep.subr.bf16.mxu0 0
  %4161 = vmatpush1.bf16.msra.mxu0 %v4143
  %4162 = vmatprep.subr.bf16.mxu0 0
  %4163 = vmatpush1.bf16.msra.mxu0 %v4144
  %4164 = vmatprep.subr.bf16.mxu0 0
  %4165 = vmatpush1.bf16.msra.mxu0 %v4145
  %4166 = vmatprep.subr.bf16.mxu0 0
  %4167 = vmatpush1.bf16.msra.mxu0 %v4146
  %4168 = vmatprep.subr.bf16.mxu0 0
  %4169 = vmatpush1.bf16.msra.mxu0 %v4147
  %4170 = vmatprep.subr.bf16.mxu0 0
  %4171 = vmatpush1.bf16.msra.mxu0 %v4158
  %4172 = vmatprep.subr.bf16.mxu0 0
  %4173 = vmatpush1.bf16.msra.mxu0 0
  %4174 = vmatprep.subr.bf16.mxu0 0
  %4175 = vmatpush1.bf16.msra.mxu0 0
  %4176 = vmatprep.subr.bf16.mxu0 0
  %4177 = vmatpush1.bf16.msra.mxu0 0
  %4178 = vmatprep.subr.bf16.mxu0 0
  %4179 = vmatpush1.bf16.msra.mxu0 0
  %4180 = vmatprep.subr.bf16.mxu0 0
  %4181 = vmatpush1.bf16.msra.mxu0 0
  %4182 = vmatprep.subr.bf16.mxu0 0
  %4183 = vmatpush1.bf16.msra.mxu0 0
  %4184 = vmatprep.subr.bf16.mxu0 0
  %4185 = vmatpush1.bf16.msra.mxu0 0
  %4186 = vmatprep.subr.bf16.mxu0 0
  %4187 = vmatpush1.bf16.msra.mxu0 0
  %4188 = vmatprep.subr.bf16.mxu0 0
  %4189 = vmatpush1.bf16.msra.mxu0 0
  %4190 = vmatprep.subr.bf16.mxu0 0
  %4191 = vmatpush1.bf16.msra.mxu0 0
  %4192 = vmatprep.mubr.bf16.mxu0 0
  %4193 = vmatmul.mubr.bf16.gmra.mrb[0].mxu0 %v4155
  %v4194 = vpop.f32.mrb[0].mxu0
  %v4195 = vadd.f32 %v4043, %v4194
  %v4196 = vpop.f32.mrb[0].mxu0
  %v4197 = vpop.f32.mrb[0].mxu0
  %v4198 = vadd.f32 %v4046, %v4197
  %v4199 = vpop.f32.mrb[0].mxu0
  %4200 = vmatprep.mubr.bf16.mxu0 0
  %4201 = vmatmul.mubr.bf16.gmra.mrb[0].mxu0 %v3975
  %v4202 = vpop.f32.mrb[0].mxu0
  %v4203 = vadd.f32 %v4051, %v4202
  %v4204 = vpop.f32.mrb[0].mxu0
  %v4205 = vpop.f32.mrb[0].mxu0
  %v4206 = vadd.f32 %v4054, %v4205
  %v4207 = vpop.f32.mrb[0].mxu0
  %4208 = vmatprep.mubr.bf16.mxu0 0
  %4209 = vmatmul.mubr.bf16.gmra.mrb[0].mxu0 %v3978
  %v4210 = vpop.f32.mrb[0].mxu0
  %v4211 = vadd.f32 %v4059, %v4210
  %v4212 = vpop.f32.mrb[0].mxu0
  %v4213 = vpop.f32.mrb[0].mxu0
  %v4214 = vadd.f32 %v4062, %v4213
  %v4215 = vpop.f32.mrb[0].mxu0
  %4216 = vmatprep.mubr.bf16.mxu0 0
  %4217 = vmatmul.mubr.bf16.gmra.mrb[0].mxu0 %v3981
  %v4218 = vpop.f32.mrb[0].mxu0
  %v4219 = vadd.f32 %v4067, %v4218
  %v4220 = vpop.f32.mrb[0].mxu0
  %v4221 = vpop.f32.mrb[0].mxu0
  %v4222 = vadd.f32 %v4070, %v4221
  %v4223 = vpop.f32.mrb[0].mxu0
  %4224 = vmatprep.mubr.bf16.mxu0 0
  %4225 = vmatmul.mubr.bf16.gmra.mrb[0].mxu0 %v3984
  %v4226 = vpop.f32.mrb[0].mxu0
  %v4227 = vadd.f32 %v4075, %v4226
  %v4228 = vpop.f32.mrb[0].mxu0
  %v4229 = vpop.f32.mrb[0].mxu0
  %v4230 = vadd.f32 %v4078, %v4229
  %v4231 = vpop.f32.mrb[0].mxu0
  %4232 = vmatprep.mubr.bf16.mxu0 0
  %4233 = vmatmul.mubr.bf16.gmra.mrb[0].mxu0 %v3987
  %v4234 = vpop.f32.mrb[0].mxu0
  %v4235 = vadd.f32 %v4083, %v4234
  %v4236 = vpop.f32.mrb[0].mxu0
  %v4237 = vpop.f32.mrb[0].mxu0
  %v4238 = vadd.f32 %v4086, %v4237
  %v4239 = vpop.f32.mrb[0].mxu0
  %4240 = vmatprep.mubr.bf16.mxu0 0
  %4241 = vmatmul.mubr.bf16.gmra.mrb[0].mxu0 %v3990
  %v4242 = vpop.f32.mrb[0].mxu0
  %v4243 = vadd.f32 %v4091, %v4242
  %v4244 = vpop.f32.mrb[0].mxu0
  %v4245 = vpop.f32.mrb[0].mxu0
  %v4246 = vadd.f32 %v4094, %v4245
  %v4247 = vpop.f32.mrb[0].mxu0
  %4248 = vmatprep.mubr.bf16.mxu0 0
  %4249 = vmatmul.mubr.bf16.gmra.mrb[0].mxu0 %v3993
  %v4250 = vpop.f32.mrb[0].mxu0
  %v4251 = vadd.f32 %v4099, %v4250
  %v4252 = vpop.f32.mrb[0].mxu0
  %v4253 = vpop.f32.mrb[0].mxu0
  %v4254 = vadd.f32 %v4102, %v4253
  %v4255 = vpop.f32.mrb[0].mxu0
  %4256 = vmatprep.mubr.bf16.mxu0 0
  %4257 = vmatmul.mubr.bf16.gmra.mrb[0].mxu0 %v3996
  %v4258 = vpop.f32.mrb[0].mxu0
  %v4259 = vadd.f32 %v4107, %v4258
  %v4260 = vpop.f32.mrb[0].mxu0
  %v4261 = vpop.f32.mrb[0].mxu0
  %v4262 = vadd.f32 %v4110, %v4261
  %v4263 = vpop.f32.mrb[0].mxu0
  %4264 = vmatprep.mubr.bf16.mxu0 0
  %4265 = vmatmul.mubr.bf16.gmra.mrb[0].mxu0 %v3999
  %v4266 = vpop.f32.mrb[0].mxu0
  %v4267 = vadd.f32 %v4115, %v4266
  %v4268 = vpop.f32.mrb[0].mxu0
  %v4269 = vpop.f32.mrb[0].mxu0
  %v4270 = vadd.f32 %v4118, %v4269
  %v4271 = vpop.f32.mrb[0].mxu0
  %4272 = vdwg.mxu0
  %s4273 = scalar_lea.vmem %s2, 88
  %v4274 = vld [vmem:[%s4273] sm:$0xf]
  %v4275 = vld [vmem:[%s4273 + $0x4] sm:$0xf]
  %v4276 = vld [vmem:[%s4273 + $0x8] sm:$0xf]
  %v4277 = vld [vmem:[%s4273 + $0xc] sm:$0xf]
  %v4278 = vld [vmem:[%s4273 + $0x10] sm:$0xf]
  %v4279 = vld [vmem:[%s4273 + $0x14] sm:$0xf]
  %v4280 = vld [vmem:[%s4273 + $0x18] sm:$0xf]
  %v4281 = vld [vmem:[%s4273 + $0x1c] sm:$0xf]
  %v4282 = vld [vmem:[%s4273 + $0x20] sm:$0xf]
  %v4283 = vld [vmem:[%s4273 + $0x24] sm:$0xf]
  %v4284 = vld [vmem:[%s4273 + $0x28] sm:$0x3]
  %v4296 = vunpack.c.l.b16 %v4274
  %v4297 = vunpack.c.l.b16 %v4275
  %v4298 = vunpack.c.l.b16 %v4276
  %v4299 = vunpack.c.l.b16 %v4277
  %v4300 = vunpack.c.l.b16 %v4278
  %v4301 = vunpack.c.l.b16 %v4279
  %v4302 = vunpack.c.l.b16 %v4280
  %v4303 = vunpack.c.l.b16 %v4281
  %v4304 = vunpack.c.l.b16 %v4282
  %v4305 = vunpack.c.l.b16 %v4283
  %v4306 = vunpack.c.l.b16 %v4284
  %v4307 = vpack.c.b16 %v4297, %v4296
  %v4308 = vpack.c.b16 %v4299, %v4298
  %v4309 = vpack.c.b16 %v4301, %v4300
  %v4310 = vpack.c.b16 %v4303, %v4302
  %v4311 = vpack.c.b16 %v4305, %v4304
  %v4312 = vpack.c.b16 %v4306, %v4306
  %v4319 = vsel %vm3973, %v3913, 0
  %v4322 = vsel %vm4004, %v4312, 0
  %4324 = vmatprep.subr.bf16.mxu0 0
  %4325 = vmatpush1.bf16.msra.mxu0 %v4307
  %4326 = vmatprep.subr.bf16.mxu0 0
  %4327 = vmatpush1.bf16.msra.mxu0 %v4308
  %4328 = vmatprep.subr.bf16.mxu0 0
  %4329 = vmatpush1.bf16.msra.mxu0 %v4309
  %4330 = vmatprep.subr.bf16.mxu0 0
  %4331 = vmatpush1.bf16.msra.mxu0 %v4310
  %4332 = vmatprep.subr.bf16.mxu0 0
  %4333 = vmatpush1.bf16.msra.mxu0 %v4311
  %4334 = vmatprep.subr.bf16.mxu0 0
  %4335 = vmatpush1.bf16.msra.mxu0 %v4322
  %4336 = vmatprep.subr.bf16.mxu0 0
  %4337 = vmatpush1.bf16.msra.mxu0 0
  %4338 = vmatprep.subr.bf16.mxu0 0
  %4339 = vmatpush1.bf16.msra.mxu0 0
  %4340 = vmatprep.subr.bf16.mxu0 0
  %4341 = vmatpush1.bf16.msra.mxu0 0
  %4342 = vmatprep.subr.bf16.mxu0 0
  %4343 = vmatpush1.bf16.msra.mxu0 0
  %4344 = vmatprep.subr.bf16.mxu0 0
  %4345 = vmatpush1.bf16.msra.mxu0 0
  %4346 = vmatprep.subr.bf16.mxu0 0
  %4347 = vmatpush1.bf16.msra.mxu0 0
  %4348 = vmatprep.subr.bf16.mxu0 0
  %4349 = vmatpush1.bf16.msra.mxu0 0
  %4350 = vmatprep.subr.bf16.mxu0 0
  %4351 = vmatpush1.bf16.msra.mxu0 0
  %4352 = vmatprep.subr.bf16.mxu0 0
  %4353 = vmatpush1.bf16.msra.mxu0 0
  %4354 = vmatprep.subr.bf16.mxu0 0
  %4355 = vmatpush1.bf16.msra.mxu0 0
  %4356 = vmatprep.mubr.bf16.mxu0 0
  %4357 = vmatmul.mubr.bf16.gmra.mrb[0].mxu0 %v3978
  %v4358 = vpop.f32.mrb[0].mxu0
  %v4359 = vadd.f32 0.0, %v4358
  %v4360 = vpop.f32.mrb[0].mxu0
  %v4361 = vpop.f32.mrb[0].mxu0
  %v4362 = vadd.f32 0.0, %v4361
  %v4363 = vpop.f32.mrb[0].mxu0
  %4364 = vmatprep.mubr.bf16.mxu0 0
  %4365 = vmatmul.mubr.bf16.gmra.mrb[0].mxu0 %v3981
  %v4366 = vpop.f32.mrb[0].mxu0
  %v4367 = vadd.f32 0.0, %v4366
  %v4368 = vpop.f32.mrb[0].mxu0
  %v4369 = vpop.f32.mrb[0].mxu0
  %v4370 = vadd.f32 0.0, %v4369
  %v4371 = vpop.f32.mrb[0].mxu0
  %4372 = vmatprep.mubr.bf16.mxu0 0
  %4373 = vmatmul.mubr.bf16.gmra.mrb[0].mxu0 %v3984
  %v4374 = vpop.f32.mrb[0].mxu0
  %v4375 = vadd.f32 0.0, %v4374
  %v4376 = vpop.f32.mrb[0].mxu0
  %v4377 = vpop.f32.mrb[0].mxu0
  %v4378 = vadd.f32 0.0, %v4377
  %v4379 = vpop.f32.mrb[0].mxu0
  %4380 = vmatprep.mubr.bf16.mxu0 0
  %4381 = vmatmul.mubr.bf16.gmra.mrb[0].mxu0 %v3987
  %v4382 = vpop.f32.mrb[0].mxu0
  %v4383 = vadd.f32 0.0, %v4382
  %v4384 = vpop.f32.mrb[0].mxu0
  %v4385 = vpop.f32.mrb[0].mxu0
  %v4386 = vadd.f32 0.0, %v4385
  %v4387 = vpop.f32.mrb[0].mxu0
  %4388 = vmatprep.mubr.bf16.mxu0 0
  %4389 = vmatmul.mubr.bf16.gmra.mrb[0].mxu0 %v3990
  %v4390 = vpop.f32.mrb[0].mxu0
  %v4391 = vadd.f32 0.0, %v4390
  %v4392 = vpop.f32.mrb[0].mxu0
  %v4393 = vpop.f32.mrb[0].mxu0
  %v4394 = vadd.f32 0.0, %v4393
  %v4395 = vpop.f32.mrb[0].mxu0
  %4396 = vmatprep.mubr.bf16.mxu0 0
  %4397 = vmatmul.mubr.bf16.gmra.mrb[0].mxu0 %v3993
  %v4398 = vpop.f32.mrb[0].mxu0
  %v4399 = vadd.f32 0.0, %v4398
  %v4400 = vpop.f32.mrb[0].mxu0
  %v4401 = vpop.f32.mrb[0].mxu0
  %v4402 = vadd.f32 0.0, %v4401
  %v4403 = vpop.f32.mrb[0].mxu0
  %4404 = vmatprep.mubr.bf16.mxu0 0
  %4405 = vmatmul.mubr.bf16.gmra.mrb[0].mxu0 %v3996
  %v4406 = vpop.f32.mrb[0].mxu0
  %v4407 = vadd.f32 0.0, %v4406
  %v4408 = vpop.f32.mrb[0].mxu0
  %v4409 = vpop.f32.mrb[0].mxu0
  %v4410 = vadd.f32 0.0, %v4409
  %v4411 = vpop.f32.mrb[0].mxu0
  %4412 = vmatprep.mubr.bf16.mxu0 0
  %4413 = vmatmul.mubr.bf16.gmra.mrb[0].mxu0 %v3999
  %v4414 = vpop.f32.mrb[0].mxu0
  %v4415 = vadd.f32 0.0, %v4414
  %v4416 = vpop.f32.mrb[0].mxu0
  %v4417 = vpop.f32.mrb[0].mxu0
  %v4418 = vadd.f32 0.0, %v4417
  %v4419 = vpop.f32.mrb[0].mxu0
  %4420 = vmatprep.mubr.bf16.mxu0 0
  %4421 = vmatmul.mubr.bf16.gmra.mrb[0].mxu0 %v4002
  %v4422 = vpop.f32.mrb[0].mxu0
  %v4423 = vadd.f32 0.0, %v4422
  %v4424 = vpop.f32.mrb[0].mxu0
  %v4425 = vpop.f32.mrb[0].mxu0
  %v4426 = vadd.f32 0.0, %v4425
  %v4427 = vpop.f32.mrb[0].mxu0
  %4428 = vmatprep.mubr.bf16.mxu0 0
  %4429 = vmatmul.mubr.bf16.gmra.mrb[0].mxu0 %v4319
  %v4430 = vpop.f32.mrb[0].mxu0
  %v4431 = vadd.f32 0.0, %v4430
  %v4432 = vpop.f32.mrb[0].mxu0
  %v4433 = vpop.f32.mrb[0].mxu0
  %v4434 = vadd.f32 0.0, %v4433
  %v4435 = vpop.f32.mrb[0].mxu0
  %4436 = vdwg.mxu0
  %v4437 = vadd.f32 %v4195, %v4359
  %v4438 = vadd.f32 %v4198, %v4362
  %v4439 = vadd.f32 %v4203, %v4367
  %v4440 = vadd.f32 %v4206, %v4370
  %v4441 = vadd.f32 %v4211, %v4375
  %v4442 = vadd.f32 %v4214, %v4378
  %v4443 = vadd.f32 %v4219, %v4383
  %v4444 = vadd.f32 %v4222, %v4386
  %v4445 = vadd.f32 %v4227, %v4391
  %v4446 = vadd.f32 %v4230, %v4394
  %v4447 = vadd.f32 %v4235, %v4399
  %v4448 = vadd.f32 %v4238, %v4402
  %v4449 = vadd.f32 %v4243, %v4407
  %v4450 = vadd.f32 %v4246, %v4410
  %v4451 = vadd.f32 %v4251, %v4415
  %v4452 = vadd.f32 %v4254, %v4418
  %v4453 = vadd.f32 %v4259, %v4423
  %v4454 = vadd.f32 %v4262, %v4426
  %v4455 = vadd.f32 %v4267, %v4431
  %v4456 = vadd.f32 %v4270, %v4434
  %s4457 = scalar_lea.vmem %s2, 132
  %v4458 = vld [vmem:[%s4457] sm:$0xf]
  %v4459 = vld [vmem:[%s4457 + $0x4] sm:$0xf]
  %v4460 = vld [vmem:[%s4457 + $0x8] sm:$0xf]
  %v4461 = vld [vmem:[%s4457 + $0xc] sm:$0xf]
  %v4462 = vld [vmem:[%s4457 + $0x10] sm:$0xf]
  %v4463 = vld [vmem:[%s4457 + $0x14] sm:$0xf]
  %v4464 = vld [vmem:[%s4457 + $0x18] sm:$0xf]
  %v4465 = vld [vmem:[%s4457 + $0x1c] sm:$0xf]
  %v4466 = vld [vmem:[%s4457 + $0x20] sm:$0xf]
  %v4467 = vld [vmem:[%s4457 + $0x24] sm:$0xf]
  %v4468 = vld [vmem:[%s4457 + $0x28] sm:$0x3]
  %v4480 = vunpack.c.l.b16 %v4458
  %v4481 = vunpack.c.l.b16 %v4459
  %v4482 = vunpack.c.l.b16 %v4460
  %v4483 = vunpack.c.l.b16 %v4461
  %v4484 = vunpack.c.l.b16 %v4462
  %v4485 = vunpack.c.l.b16 %v4463
  %v4486 = vunpack.c.l.b16 %v4464
  %v4487 = vunpack.c.l.b16 %v4465
  %v4488 = vunpack.c.l.b16 %v4466
  %v4489 = vunpack.c.l.b16 %v4467
  %v4490 = vunpack.c.l.b16 %v4468
  %v4491 = vpack.c.b16 %v4481, %v4480
  %v4492 = vpack.c.b16 %v4483, %v4482
  %v4493 = vpack.c.b16 %v4485, %v4484
  %v4494 = vpack.c.b16 %v4487, %v4486
  %v4495 = vpack.c.b16 %v4489, %v4488
  %v4496 = vpack.c.b16 %v4490, %v4490
  %v4503 = vsel %vm3973, %v3914, 0
  %v4506 = vsel %vm4004, %v4496, 0
  %4508 = vmatprep.subr.bf16.mxu0 0
  %4509 = vmatpush1.bf16.msra.mxu0 %v4491
  %4510 = vmatprep.subr.bf16.mxu0 0
  %4511 = vmatpush1.bf16.msra.mxu0 %v4492
  %4512 = vmatprep.subr.bf16.mxu0 0
  %4513 = vmatpush1.bf16.msra.mxu0 %v4493
  %4514 = vmatprep.subr.bf16.mxu0 0
  %4515 = vmatpush1.bf16.msra.mxu0 %v4494
  %4516 = vmatprep.subr.bf16.mxu0 0
  %4517 = vmatpush1.bf16.msra.mxu0 %v4495
  %4518 = vmatprep.subr.bf16.mxu0 0
  %4519 = vmatpush1.bf16.msra.mxu0 %v4506
  %4520 = vmatprep.subr.bf16.mxu0 0
  %4521 = vmatpush1.bf16.msra.mxu0 0
  %4522 = vmatprep.subr.bf16.mxu0 0
  %4523 = vmatpush1.bf16.msra.mxu0 0
  %4524 = vmatprep.subr.bf16.mxu0 0
  %4525 = vmatpush1.bf16.msra.mxu0 0
  %4526 = vmatprep.subr.bf16.mxu0 0
  %4527 = vmatpush1.bf16.msra.mxu0 0
  %4528 = vmatprep.subr.bf16.mxu0 0
  %4529 = vmatpush1.bf16.msra.mxu0 0
  %4530 = vmatprep.subr.bf16.mxu0 0
  %4531 = vmatpush1.bf16.msra.mxu0 0
  %4532 = vmatprep.subr.bf16.mxu0 0
  %4533 = vmatpush1.bf16.msra.mxu0 0
  %4534 = vmatprep.subr.bf16.mxu0 0
  %4535 = vmatpush1.bf16.msra.mxu0 0
  %4536 = vmatprep.subr.bf16.mxu0 0
  %4537 = vmatpush1.bf16.msra.mxu0 0
  %4538 = vmatprep.subr.bf16.mxu0 0
  %4539 = vmatpush1.bf16.msra.mxu0 0
  %4540 = vmatprep.mubr.bf16.mxu0 0
  %4541 = vmatmul.mubr.bf16.gmra.mrb[0].mxu0 %v3981
  %v4542 = vpop.f32.mrb[0].mxu0
  %v4543 = vadd.f32 0.0, %v4542
  %v4544 = vpop.f32.mrb[0].mxu0
  %v4545 = vpop.f32.mrb[0].mxu0
  %v4546 = vadd.f32 0.0, %v4545
  %v4547 = vpop.f32.mrb[0].mxu0
  %4548 = vmatprep.mubr.bf16.mxu0 0
  %4549 = vmatmul.mubr.bf16.gmra.mrb[0].mxu0 %v3984
  %v4550 = vpop.f32.mrb[0].mxu0
  %v4551 = vadd.f32 0.0, %v4550
  %v4552 = vpop.f32.mrb[0].mxu0
  %v4553 = vpop.f32.mrb[0].mxu0
  %v4554 = vadd.f32 0.0, %v4553
  %v4555 = vpop.f32.mrb[0].mxu0
  %4556 = vmatprep.mubr.bf16.mxu0 0
  %4557 = vmatmul.mubr.bf16.gmra.mrb[0].mxu0 %v3987
  %v4558 = vpop.f32.mrb[0].mxu0
  %v4559 = vadd.f32 0.0, %v4558
  %v4560 = vpop.f32.mrb[0].mxu0
  %v4561 = vpop.f32.mrb[0].mxu0
  %v4562 = vadd.f32 0.0, %v4561
  %v4563 = vpop.f32.mrb[0].mxu0
  %4564 = vmatprep.mubr.bf16.mxu0 0
  %4565 = vmatmul.mubr.bf16.gmra.mrb[0].mxu0 %v3990
  %v4566 = vpop.f32.mrb[0].mxu0
  %v4567 = vadd.f32 0.0, %v4566
  %v4568 = vpop.f32.mrb[0].mxu0
  %v4569 = vpop.f32.mrb[0].mxu0
  %v4570 = vadd.f32 0.0, %v4569
  %v4571 = vpop.f32.mrb[0].mxu0
  %4572 = vmatprep.mubr.bf16.mxu0 0
  %4573 = vmatmul.mubr.bf16.gmra.mrb[0].mxu0 %v3993
  %v4574 = vpop.f32.mrb[0].mxu0
  %v4575 = vadd.f32 0.0, %v4574
  %v4576 = vpop.f32.mrb[0].mxu0
  %v4577 = vpop.f32.mrb[0].mxu0
  %v4578 = vadd.f32 0.0, %v4577
  %v4579 = vpop.f32.mrb[0].mxu0
  %4580 = vmatprep.mubr.bf16.mxu0 0
  %4581 = vmatmul.mubr.bf16.gmra.mrb[0].mxu0 %v3996
  %v4582 = vpop.f32.mrb[0].mxu0
  %v4583 = vadd.f32 0.0, %v4582
  %v4584 = vpop.f32.mrb[0].mxu0
  %v4585 = vpop.f32.mrb[0].mxu0
  %v4586 = vadd.f32 0.0, %v4585
  %v4587 = vpop.f32.mrb[0].mxu0
  %4588 = vmatprep.mubr.bf16.mxu0 0
  %4589 = vmatmul.mubr.bf16.gmra.mrb[0].mxu0 %v3999
  %v4590 = vpop.f32.mrb[0].mxu0
  %v4591 = vadd.f32 0.0, %v4590
  %v4592 = vpop.f32.mrb[0].mxu0
  %v4593 = vpop.f32.mrb[0].mxu0
  %v4594 = vadd.f32 0.0, %v4593
  %v4595 = vpop.f32.mrb[0].mxu0
  %4596 = vmatprep.mubr.bf16.mxu0 0
  %4597 = vmatmul.mubr.bf16.gmra.mrb[0].mxu0 %v4002
  %v4598 = vpop.f32.mrb[0].mxu0
  %v4599 = vadd.f32 0.0, %v4598
  %v4600 = vpop.f32.mrb[0].mxu0
  %v4601 = vpop.f32.mrb[0].mxu0
  %v4602 = vadd.f32 0.0, %v4601
  %v4603 = vpop.f32.mrb[0].mxu0
  %4604 = vmatprep.mubr.bf16.mxu0 0
  %4605 = vmatmul.mubr.bf16.gmra.mrb[0].mxu0 %v4319
  %v4606 = vpop.f32.mrb[0].mxu0
  %v4607 = vadd.f32 0.0, %v4606
  %v4608 = vpop.f32.mrb[0].mxu0
  %v4609 = vpop.f32.mrb[0].mxu0
  %v4610 = vadd.f32 0.0, %v4609
  %v4611 = vpop.f32.mrb[0].mxu0
  %4612 = vmatprep.mubr.bf16.mxu0 0
  %4613 = vmatmul.mubr.bf16.gmra.mrb[0].mxu0 %v4503
  %v4614 = vpop.f32.mrb[0].mxu0
  %v4615 = vadd.f32 0.0, %v4614
  %v4616 = vpop.f32.mrb[0].mxu0
  %v4617 = vpop.f32.mrb[0].mxu0
  %v4618 = vadd.f32 0.0, %v4617
  %v4619 = vpop.f32.mrb[0].mxu0
  %4620 = vdwg.mxu0
  %v4621 = vadd.f32 %v4437, %v4543
  %v4622 = vadd.f32 %v4438, %v4546
  %v4623 = vadd.f32 %v4439, %v4551
  %v4624 = vadd.f32 %v4440, %v4554
  %v4625 = vadd.f32 %v4441, %v4559
  %v4626 = vadd.f32 %v4442, %v4562
  %v4627 = vadd.f32 %v4443, %v4567
  %v4628 = vadd.f32 %v4444, %v4570
  %v4629 = vadd.f32 %v4445, %v4575
  %v4630 = vadd.f32 %v4446, %v4578
  %v4631 = vadd.f32 %v4447, %v4583
  %v4632 = vadd.f32 %v4448, %v4586
  %v4633 = vadd.f32 %v4449, %v4591
  %v4634 = vadd.f32 %v4450, %v4594
  %v4635 = vadd.f32 %v4451, %v4599
  %v4636 = vadd.f32 %v4452, %v4602
  %v4637 = vadd.f32 %v4453, %v4607
  %v4638 = vadd.f32 %v4454, %v4610
  %v4639 = vadd.f32 %v4455, %v4615
  %v4640 = vadd.f32 %v4456, %v4618
  %s4641 = scalar_lea.vmem %s2, 176
  %v4642 = vld [vmem:[%s4641] sm:$0xf]
  %v4643 = vld [vmem:[%s4641 + $0x4] sm:$0xf]
  %v4644 = vld [vmem:[%s4641 + $0x8] sm:$0xf]
  %v4645 = vld [vmem:[%s4641 + $0xc] sm:$0xf]
  %v4646 = vld [vmem:[%s4641 + $0x10] sm:$0xf]
  %v4647 = vld [vmem:[%s4641 + $0x14] sm:$0xf]
  %v4648 = vld [vmem:[%s4641 + $0x18] sm:$0xf]
  %v4649 = vld [vmem:[%s4641 + $0x1c] sm:$0xf]
  %v4650 = vld [vmem:[%s4641 + $0x20] sm:$0xf]
  %v4651 = vld [vmem:[%s4641 + $0x24] sm:$0xf]
  %v4652 = vld [vmem:[%s4641 + $0x28] sm:$0x3]
  %v4664 = vunpack.c.l.b16 %v4642
  %v4665 = vunpack.c.l.b16 %v4643
  %v4666 = vunpack.c.l.b16 %v4644
  %v4667 = vunpack.c.l.b16 %v4645
  %v4668 = vunpack.c.l.b16 %v4646
  %v4669 = vunpack.c.l.b16 %v4647
  %v4670 = vunpack.c.l.b16 %v4648
  %v4671 = vunpack.c.l.b16 %v4649
  %v4672 = vunpack.c.l.b16 %v4650
  %v4673 = vunpack.c.l.b16 %v4651
  %v4674 = vunpack.c.l.b16 %v4652
  %v4675 = vpack.c.b16 %v4665, %v4664
  %v4676 = vpack.c.b16 %v4667, %v4666
  %v4677 = vpack.c.b16 %v4669, %v4668
  %v4678 = vpack.c.b16 %v4671, %v4670
  %v4679 = vpack.c.b16 %v4673, %v4672
  %v4680 = vpack.c.b16 %v4674, %v4674
  %v4687 = vsel %vm3973, %v3915, 0
  %v4690 = vsel %vm4004, %v4680, 0
  %4692 = vmatprep.subr.bf16.mxu0 0
  %4693 = vmatpush1.bf16.msra.mxu0 %v4675
  %4694 = vmatprep.subr.bf16.mxu0 0
  %4695 = vmatpush1.bf16.msra.mxu0 %v4676
  %4696 = vmatprep.subr.bf16.mxu0 0
  %4697 = vmatpush1.bf16.msra.mxu0 %v4677
  %4698 = vmatprep.subr.bf16.mxu0 0
  %4699 = vmatpush1.bf16.msra.mxu0 %v4678
  %4700 = vmatprep.subr.bf16.mxu0 0
  %4701 = vmatpush1.bf16.msra.mxu0 %v4679
  %4702 = vmatprep.subr.bf16.mxu0 0
  %4703 = vmatpush1.bf16.msra.mxu0 %v4690
  %4704 = vmatprep.subr.bf16.mxu0 0
  %4705 = vmatpush1.bf16.msra.mxu0 0
  %4706 = vmatprep.subr.bf16.mxu0 0
  %4707 = vmatpush1.bf16.msra.mxu0 0
  %4708 = vmatprep.subr.bf16.mxu0 0
  %4709 = vmatpush1.bf16.msra.mxu0 0
  %4710 = vmatprep.subr.bf16.mxu0 0
  %4711 = vmatpush1.bf16.msra.mxu0 0
  %4712 = vmatprep.subr.bf16.mxu0 0
  %4713 = vmatpush1.bf16.msra.mxu0 0
  %4714 = vmatprep.subr.bf16.mxu0 0
  %4715 = vmatpush1.bf16.msra.mxu0 0
  %4716 = vmatprep.subr.bf16.mxu0 0
  %4717 = vmatpush1.bf16.msra.mxu0 0
  %4718 = vmatprep.subr.bf16.mxu0 0
  %4719 = vmatpush1.bf16.msra.mxu0 0
  %4720 = vmatprep.subr.bf16.mxu0 0
  %4721 = vmatpush1.bf16.msra.mxu0 0
  %4722 = vmatprep.subr.bf16.mxu0 0
  %4723 = vmatpush1.bf16.msra.mxu0 0
  %4724 = vmatprep.mubr.bf16.mxu0 0
  %4725 = vmatmul.mubr.bf16.gmra.mrb[0].mxu0 %v3984
  %v4726 = vpop.f32.mrb[0].mxu0
  %v4727 = vadd.f32 0.0, %v4726
  %v4728 = vpop.f32.mrb[0].mxu0
  %v4729 = vpop.f32.mrb[0].mxu0
  %v4730 = vadd.f32 0.0, %v4729
  %v4731 = vpop.f32.mrb[0].mxu0
  %4732 = vmatprep.mubr.bf16.mxu0 0
  %4733 = vmatmul.mubr.bf16.gmra.mrb[0].mxu0 %v3987
  %v4734 = vpop.f32.mrb[0].mxu0
  %v4735 = vadd.f32 0.0, %v4734
  %v4736 = vpop.f32.mrb[0].mxu0
  %v4737 = vpop.f32.mrb[0].mxu0
  %v4738 = vadd.f32 0.0, %v4737
  %v4739 = vpop.f32.mrb[0].mxu0
  %4740 = vmatprep.mubr.bf16.mxu0 0
  %4741 = vmatmul.mubr.bf16.gmra.mrb[0].mxu0 %v3990
  %v4742 = vpop.f32.mrb[0].mxu0
  %v4743 = vadd.f32 0.0, %v4742
  %v4744 = vpop.f32.mrb[0].mxu0
  %v4745 = vpop.f32.mrb[0].mxu0
  %v4746 = vadd.f32 0.0, %v4745
  %v4747 = vpop.f32.mrb[0].mxu0
  %4748 = vmatprep.mubr.bf16.mxu0 0
  %4749 = vmatmul.mubr.bf16.gmra.mrb[0].mxu0 %v3993
  %v4750 = vpop.f32.mrb[0].mxu0
  %v4751 = vadd.f32 0.0, %v4750
  %v4752 = vpop.f32.mrb[0].mxu0
  %v4753 = vpop.f32.mrb[0].mxu0
  %v4754 = vadd.f32 0.0, %v4753
  %v4755 = vpop.f32.mrb[0].mxu0
  %4756 = vmatprep.mubr.bf16.mxu0 0
  %4757 = vmatmul.mubr.bf16.gmra.mrb[0].mxu0 %v3996
  %v4758 = vpop.f32.mrb[0].mxu0
  %v4759 = vadd.f32 0.0, %v4758
  %v4760 = vpop.f32.mrb[0].mxu0
  %v4761 = vpop.f32.mrb[0].mxu0
  %v4762 = vadd.f32 0.0, %v4761
  %v4763 = vpop.f32.mrb[0].mxu0
  %4764 = vmatprep.mubr.bf16.mxu0 0
  %4765 = vmatmul.mubr.bf16.gmra.mrb[0].mxu0 %v3999
  %v4766 = vpop.f32.mrb[0].mxu0
  %v4767 = vadd.f32 0.0, %v4766
  %v4768 = vpop.f32.mrb[0].mxu0
  %v4769 = vpop.f32.mrb[0].mxu0
  %v4770 = vadd.f32 0.0, %v4769
  %v4771 = vpop.f32.mrb[0].mxu0
  %4772 = vmatprep.mubr.bf16.mxu0 0
  %4773 = vmatmul.mubr.bf16.gmra.mrb[0].mxu0 %v4002
  %v4774 = vpop.f32.mrb[0].mxu0
  %v4775 = vadd.f32 0.0, %v4774
  %v4776 = vpop.f32.mrb[0].mxu0
  %v4777 = vpop.f32.mrb[0].mxu0
  %v4778 = vadd.f32 0.0, %v4777
  %v4779 = vpop.f32.mrb[0].mxu0
  %4780 = vmatprep.mubr.bf16.mxu0 0
  %4781 = vmatmul.mubr.bf16.gmra.mrb[0].mxu0 %v4319
  %v4782 = vpop.f32.mrb[0].mxu0
  %v4783 = vadd.f32 0.0, %v4782
  %v4784 = vpop.f32.mrb[0].mxu0
  %v4785 = vpop.f32.mrb[0].mxu0
  %v4786 = vadd.f32 0.0, %v4785
  %v4787 = vpop.f32.mrb[0].mxu0
  %4788 = vmatprep.mubr.bf16.mxu0 0
  %4789 = vmatmul.mubr.bf16.gmra.mrb[0].mxu0 %v4503
  %v4790 = vpop.f32.mrb[0].mxu0
  %v4791 = vadd.f32 0.0, %v4790
  %v4792 = vpop.f32.mrb[0].mxu0
  %v4793 = vpop.f32.mrb[0].mxu0
  %v4794 = vadd.f32 0.0, %v4793
  %v4795 = vpop.f32.mrb[0].mxu0
  %4796 = vmatprep.mubr.bf16.mxu0 0
  %4797 = vmatmul.mubr.bf16.gmra.mrb[0].mxu0 %v4687
  %v4798 = vpop.f32.mrb[0].mxu0
  %v4799 = vadd.f32 0.0, %v4798
  %v4800 = vpop.f32.mrb[0].mxu0
  %v4801 = vpop.f32.mrb[0].mxu0
  %v4802 = vadd.f32 0.0, %v4801
  %v4803 = vpop.f32.mrb[0].mxu0
  %4804 = vdwg.mxu0
  %v4805 = vadd.f32 %v4621, %v4727
  %v4806 = vadd.f32 %v4622, %v4730
  %v4807 = vadd.f32 %v4623, %v4735
  %v4808 = vadd.f32 %v4624, %v4738
  %v4809 = vadd.f32 %v4625, %v4743
  %v4810 = vadd.f32 %v4626, %v4746
  %v4811 = vadd.f32 %v4627, %v4751
  %v4812 = vadd.f32 %v4628, %v4754
  %v4813 = vadd.f32 %v4629, %v4759
  %v4814 = vadd.f32 %v4630, %v4762
  %v4815 = vadd.f32 %v4631, %v4767
  %v4816 = vadd.f32 %v4632, %v4770
  %v4817 = vadd.f32 %v4633, %v4775
  %v4818 = vadd.f32 %v4634, %v4778
  %v4819 = vadd.f32 %v4635, %v4783
  %v4820 = vadd.f32 %v4636, %v4786
  %v4821 = vadd.f32 %v4637, %v4791
  %v4822 = vadd.f32 %v4638, %v4794
  %v4823 = vadd.f32 %v4639, %v4799
  %v4824 = vadd.f32 %v4640, %v4802
  %v4825 = vmax.f32 %v4805, %v4807
  %v4826 = vmax.f32 %v4806, %v4808
  %v4827 = vmax.f32 %v4809, %v4811
  %v4828 = vmax.f32 %v4810, %v4812
  %v4829 = vmax.f32 %v4813, %v4815
  %v4830 = vmax.f32 %v4814, %v4816
  %v4831 = vmax.f32 %v4817, %v4819
  %v4832 = vmax.f32 %v4818, %v4820
  %v4833 = vmax.f32 %v4821, %v4823
  %v4834 = vmax.f32 %v4822, %v4824
  %s4835 = scalar_lea.vmem %s2, 220
  %v4836 = vld [vmem:[%s4835] sm:$0xf]
  %v4837 = vld [vmem:[%s4835 + $0x4] sm:$0xf]
  %v4838 = vld [vmem:[%s4835 + $0x8] sm:$0xf]
  %v4839 = vld [vmem:[%s4835 + $0xc] sm:$0xf]
  %v4840 = vld [vmem:[%s4835 + $0x10] sm:$0xf]
  %v4841 = vld [vmem:[%s4835 + $0x14] sm:$0xf]
  %v4842 = vld [vmem:[%s4835 + $0x18] sm:$0xf]
  %v4843 = vld [vmem:[%s4835 + $0x1c] sm:$0xf]
  %v4844 = vld [vmem:[%s4835 + $0x20] sm:$0xf]
  %v4845 = vld [vmem:[%s4835 + $0x24] sm:$0xf]
  %v4846 = vld [vmem:[%s4835 + $0x28] sm:$0x3]
  %s4847 = scalar_lea.vmem %s2, 264
  %v4848 = vld [vmem:[%s4847] sm:$0xf]
  %v4849 = vld [vmem:[%s4847 + $0x4] sm:$0xf]
  %v4850 = vld [vmem:[%s4847 + $0x8] sm:$0xf]
  %v4851 = vld [vmem:[%s4847 + $0xc] sm:$0xf]
  %v4852 = vld [vmem:[%s4847 + $0x10] sm:$0xf]
  %v4853 = vld [vmem:[%s4847 + $0x14] sm:$0xf]
  %v4854 = vld [vmem:[%s4847 + $0x18] sm:$0xf]
  %v4855 = vld [vmem:[%s4847 + $0x1c] sm:$0xf]
  %v4856 = vld [vmem:[%s4847 + $0x20] sm:$0xf]
  %v4857 = vld [vmem:[%s4847 + $0x24] sm:$0xf]
  %v4858 = vld [vmem:[%s4847 + $0x28] sm:$0x3]
  %v4870 = vunpack.c.l.b16 %v4848
  %v4871 = vunpack.c.l.b16 %v4849
  %v4872 = vunpack.c.l.b16 %v4850
  %v4873 = vunpack.c.l.b16 %v4851
  %v4874 = vunpack.c.l.b16 %v4852
  %v4875 = vunpack.c.l.b16 %v4853
  %v4876 = vunpack.c.l.b16 %v4854
  %v4877 = vunpack.c.l.b16 %v4855
  %v4878 = vunpack.c.l.b16 %v4856
  %v4879 = vunpack.c.l.b16 %v4857
  %v4880 = vunpack.c.l.b16 %v4858
  %v4881 = vpack.c.b16 %v4871, %v4870
  %v4882 = vpack.c.b16 %v4873, %v4872
  %v4883 = vpack.c.b16 %v4875, %v4874
  %v4884 = vpack.c.b16 %v4877, %v4876
  %v4885 = vpack.c.b16 %v4879, %v4878
  %v4886 = vpack.c.b16 %v4880, %v4880
  %v4893 = vsel %vm4004, %v4886, 0
  %4895 = vmatprep.subr.bf16.mxu0 0
  %4896 = vmatpush1.bf16.msra.mxu0 %v4881
  %4897 = vmatprep.subr.bf16.mxu0 0
  %4898 = vmatpush1.bf16.msra.mxu0 %v4882
  %4899 = vmatprep.subr.bf16.mxu0 0
  %4900 = vmatpush1.bf16.msra.mxu0 %v4883
  %4901 = vmatprep.subr.bf16.mxu0 0
  %4902 = vmatpush1.bf16.msra.mxu0 %v4884
  %4903 = vmatprep.subr.bf16.mxu0 0
  %4904 = vmatpush1.bf16.msra.mxu0 %v4885
  %4905 = vmatprep.subr.bf16.mxu0 0
  %4906 = vmatpush1.bf16.msra.mxu0 %v4893
  %4907 = vmatprep.subr.bf16.mxu0 0
  %4908 = vmatpush1.bf16.msra.mxu0 0
  %4909 = vmatprep.subr.bf16.mxu0 0
  %4910 = vmatpush1.bf16.msra.mxu0 0
  %4911 = vmatprep.subr.bf16.mxu0 0
  %4912 = vmatpush1.bf16.msra.mxu0 0
  %4913 = vmatprep.subr.bf16.mxu0 0
  %4914 = vmatpush1.bf16.msra.mxu0 0
  %4915 = vmatprep.subr.bf16.mxu0 0
  %4916 = vmatpush1.bf16.msra.mxu0 0
  %4917 = vmatprep.subr.bf16.mxu0 0
  %4918 = vmatpush1.bf16.msra.mxu0 0
  %4919 = vmatprep.subr.bf16.mxu0 0
  %4920 = vmatpush1.bf16.msra.mxu0 0
  %4921 = vmatprep.subr.bf16.mxu0 0
  %4922 = vmatpush1.bf16.msra.mxu0 0
  %4923 = vmatprep.subr.bf16.mxu0 0
  %4924 = vmatpush1.bf16.msra.mxu0 0
  %4925 = vmatprep.subr.bf16.mxu0 0
  %4926 = vmatpush1.bf16.msra.mxu0 0
  %4927 = vmatprep.mubr.bf16.mxu0 0
  %4928 = vmatmul.mubr.bf16.gmra.mrb[0].mxu0 %v3975
  %v4929 = vpop.f32.mrb[0].mxu0
  %v4930 = vadd.f32 0.0, %v4929
  %v4931 = vpop.f32.mrb[0].mxu0
  %v4932 = vpop.f32.mrb[0].mxu0
  %v4933 = vadd.f32 0.0, %v4932
  %v4934 = vpop.f32.mrb[0].mxu0
  %4935 = vmatprep.mubr.bf16.mxu0 0
  %4936 = vmatmul.mubr.bf16.gmra.mrb[0].mxu0 %v3978
  %v4937 = vpop.f32.mrb[0].mxu0
  %v4938 = vadd.f32 0.0, %v4937
  %v4939 = vpop.f32.mrb[0].mxu0
  %v4940 = vpop.f32.mrb[0].mxu0
  %v4941 = vadd.f32 0.0, %v4940
  %v4942 = vpop.f32.mrb[0].mxu0
  %4943 = vmatprep.mubr.bf16.mxu0 0
  %4944 = vmatmul.mubr.bf16.gmra.mrb[0].mxu0 %v3981
  %v4945 = vpop.f32.mrb[0].mxu0
  %v4946 = vadd.f32 0.0, %v4945
  %v4947 = vpop.f32.mrb[0].mxu0
  %v4948 = vpop.f32.mrb[0].mxu0
  %v4949 = vadd.f32 0.0, %v4948
  %v4950 = vpop.f32.mrb[0].mxu0
  %4951 = vmatprep.mubr.bf16.mxu0 0
  %4952 = vmatmul.mubr.bf16.gmra.mrb[0].mxu0 %v3984
  %v4953 = vpop.f32.mrb[0].mxu0
  %v4954 = vadd.f32 0.0, %v4953
  %v4955 = vpop.f32.mrb[0].mxu0
  %v4956 = vpop.f32.mrb[0].mxu0
  %v4957 = vadd.f32 0.0, %v4956
  %v4958 = vpop.f32.mrb[0].mxu0
  %4959 = vmatprep.mubr.bf16.mxu0 0
  %4960 = vmatmul.mubr.bf16.gmra.mrb[0].mxu0 %v3987
  %v4961 = vpop.f32.mrb[0].mxu0
  %v4962 = vadd.f32 0.0, %v4961
  %v4963 = vpop.f32.mrb[0].mxu0
  %v4964 = vpop.f32.mrb[0].mxu0
  %v4965 = vadd.f32 0.0, %v4964
  %v4966 = vpop.f32.mrb[0].mxu0
  %4967 = vmatprep.mubr.bf16.mxu0 0
  %4968 = vmatmul.mubr.bf16.gmra.mrb[0].mxu0 %v3990
  %v4969 = vpop.f32.mrb[0].mxu0
  %v4970 = vadd.f32 0.0, %v4969
  %v4971 = vpop.f32.mrb[0].mxu0
  %v4972 = vpop.f32.mrb[0].mxu0
  %v4973 = vadd.f32 0.0, %v4972
  %v4974 = vpop.f32.mrb[0].mxu0
  %4975 = vmatprep.mubr.bf16.mxu0 0
  %4976 = vmatmul.mubr.bf16.gmra.mrb[0].mxu0 %v3993
  %v4977 = vpop.f32.mrb[0].mxu0
  %v4978 = vadd.f32 0.0, %v4977
  %v4979 = vpop.f32.mrb[0].mxu0
  %v4980 = vpop.f32.mrb[0].mxu0
  %v4981 = vadd.f32 0.0, %v4980
  %v4982 = vpop.f32.mrb[0].mxu0
  %4983 = vmatprep.mubr.bf16.mxu0 0
  %4984 = vmatmul.mubr.bf16.gmra.mrb[0].mxu0 %v3996
  %v4985 = vpop.f32.mrb[0].mxu0
  %v4986 = vadd.f32 0.0, %v4985
  %v4987 = vpop.f32.mrb[0].mxu0
  %v4988 = vpop.f32.mrb[0].mxu0
  %v4989 = vadd.f32 0.0, %v4988
  %v4990 = vpop.f32.mrb[0].mxu0
  %4991 = vmatprep.mubr.bf16.mxu0 0
  %4992 = vmatmul.mubr.bf16.gmra.mrb[0].mxu0 %v3999
  %v4993 = vpop.f32.mrb[0].mxu0
  %v4994 = vadd.f32 0.0, %v4993
  %v4995 = vpop.f32.mrb[0].mxu0
  %v4996 = vpop.f32.mrb[0].mxu0
  %v4997 = vadd.f32 0.0, %v4996
  %v4998 = vpop.f32.mrb[0].mxu0
  %4999 = vmatprep.mubr.bf16.mxu0 0
  %5000 = vmatmul.mubr.bf16.gmra.mrb[0].mxu0 %v4002
  %v5001 = vpop.f32.mrb[0].mxu0
  %v5002 = vadd.f32 0.0, %v5001
  %v5003 = vpop.f32.mrb[0].mxu0
  %v5004 = vpop.f32.mrb[0].mxu0
  %v5005 = vadd.f32 0.0, %v5004
  %v5006 = vpop.f32.mrb[0].mxu0
  %5007 = vdwg.mxu0
  %v5019 = vunpack.c.l.b16 %v4836
  %v5020 = vunpack.c.l.b16 %v4837
  %v5021 = vunpack.c.l.b16 %v4838
  %v5022 = vunpack.c.l.b16 %v4839
  %v5023 = vunpack.c.l.b16 %v4840
  %v5024 = vunpack.c.l.b16 %v4841
  %v5025 = vunpack.c.l.b16 %v4842
  %v5026 = vunpack.c.l.b16 %v4843
  %v5027 = vunpack.c.l.b16 %v4844
  %v5028 = vunpack.c.l.b16 %v4845
  %v5029 = vunpack.c.l.b16 %v4846
  %v5030 = vpack.c.b16 %v5020, %v5019
  %v5031 = vpack.c.b16 %v5022, %v5021
  %v5032 = vpack.c.b16 %v5024, %v5023
  %v5033 = vpack.c.b16 %v5026, %v5025
  %v5034 = vpack.c.b16 %v5028, %v5027
  %v5035 = vpack.c.b16 %v5029, %v5029
  %v5042 = vsel %vm4004, %v5035, 0
  %5044 = vmatprep.subr.bf16.mxu0 0
  %5045 = vmatpush1.bf16.msra.mxu0 %v5030
  %5046 = vmatprep.subr.bf16.mxu0 0
  %5047 = vmatpush1.bf16.msra.mxu0 %v5031
  %5048 = vmatprep.subr.bf16.mxu0 0
  %5049 = vmatpush1.bf16.msra.mxu0 %v5032
  %5050 = vmatprep.subr.bf16.mxu0 0
  %5051 = vmatpush1.bf16.msra.mxu0 %v5033
  %5052 = vmatprep.subr.bf16.mxu0 0
  %5053 = vmatpush1.bf16.msra.mxu0 %v5034
  %5054 = vmatprep.subr.bf16.mxu0 0
  %5055 = vmatpush1.bf16.msra.mxu0 %v5042
  %5056 = vmatprep.subr.bf16.mxu0 0
  %5057 = vmatpush1.bf16.msra.mxu0 0
  %5058 = vmatprep.subr.bf16.mxu0 0
  %5059 = vmatpush1.bf16.msra.mxu0 0
  %5060 = vmatprep.subr.bf16.mxu0 0
  %5061 = vmatpush1.bf16.msra.mxu0 0
  %5062 = vmatprep.subr.bf16.mxu0 0
  %5063 = vmatpush1.bf16.msra.mxu0 0
  %5064 = vmatprep.subr.bf16.mxu0 0
  %5065 = vmatpush1.bf16.msra.mxu0 0
  %5066 = vmatprep.subr.bf16.mxu0 0
  %5067 = vmatpush1.bf16.msra.mxu0 0
  %5068 = vmatprep.subr.bf16.mxu0 0
  %5069 = vmatpush1.bf16.msra.mxu0 0
  %5070 = vmatprep.subr.bf16.mxu0 0
  %5071 = vmatpush1.bf16.msra.mxu0 0
  %5072 = vmatprep.subr.bf16.mxu0 0
  %5073 = vmatpush1.bf16.msra.mxu0 0
  %5074 = vmatprep.subr.bf16.mxu0 0
  %5075 = vmatpush1.bf16.msra.mxu0 0
  %5076 = vmatprep.mubr.bf16.mxu0 0
  %5077 = vmatmul.mubr.bf16.gmra.mrb[0].mxu0 %v4155
  %v5078 = vpop.f32.mrb[0].mxu0
  %v5079 = vadd.f32 %v4930, %v5078
  %v5080 = vpop.f32.mrb[0].mxu0
  %v5081 = vpop.f32.mrb[0].mxu0
  %v5082 = vadd.f32 %v4933, %v5081
  %v5083 = vpop.f32.mrb[0].mxu0
  %5084 = vmatprep.mubr.bf16.mxu0 0
  %5085 = vmatmul.mubr.bf16.gmra.mrb[0].mxu0 %v3975
  %v5086 = vpop.f32.mrb[0].mxu0
  %v5087 = vadd.f32 %v4938, %v5086
  %v5088 = vpop.f32.mrb[0].mxu0
  %v5089 = vpop.f32.mrb[0].mxu0
  %v5090 = vadd.f32 %v4941, %v5089
  %v5091 = vpop.f32.mrb[0].mxu0
  %5092 = vmatprep.mubr.bf16.mxu0 0
  %5093 = vmatmul.mubr.bf16.gmra.mrb[0].mxu0 %v3978
  %v5094 = vpop.f32.mrb[0].mxu0
  %v5095 = vadd.f32 %v4946, %v5094
  %v5096 = vpop.f32.mrb[0].mxu0
  %v5097 = vpop.f32.mrb[0].mxu0
  %v5098 = vadd.f32 %v4949, %v5097
  %v5099 = vpop.f32.mrb[0].mxu0
  %5100 = vmatprep.mubr.bf16.mxu0 0
  %5101 = vmatmul.mubr.bf16.gmra.mrb[0].mxu0 %v3981
  %v5102 = vpop.f32.mrb[0].mxu0
  %v5103 = vadd.f32 %v4954, %v5102
  %v5104 = vpop.f32.mrb[0].mxu0
  %v5105 = vpop.f32.mrb[0].mxu0
  %v5106 = vadd.f32 %v4957, %v5105
  %v5107 = vpop.f32.mrb[0].mxu0
  %5108 = vmatprep.mubr.bf16.mxu0 0
  %5109 = vmatmul.mubr.bf16.gmra.mrb[0].mxu0 %v3984
  %v5110 = vpop.f32.mrb[0].mxu0
  %v5111 = vadd.f32 %v4962, %v5110
  %v5112 = vpop.f32.mrb[0].mxu0
  %v5113 = vpop.f32.mrb[0].mxu0
  %v5114 = vadd.f32 %v4965, %v5113
  %v5115 = vpop.f32.mrb[0].mxu0
  %5116 = vmatprep.mubr.bf16.mxu0 0
  %5117 = vmatmul.mubr.bf16.gmra.mrb[0].mxu0 %v3987
  %v5118 = vpop.f32.mrb[0].mxu0
  %v5119 = vadd.f32 %v4970, %v5118
  %v5120 = vpop.f32.mrb[0].mxu0
  %v5121 = vpop.f32.mrb[0].mxu0
  %v5122 = vadd.f32 %v4973, %v5121
  %v5123 = vpop.f32.mrb[0].mxu0
  %5124 = vmatprep.mubr.bf16.mxu0 0
  %5125 = vmatmul.mubr.bf16.gmra.mrb[0].mxu0 %v3990
  %v5126 = vpop.f32.mrb[0].mxu0
  %v5127 = vadd.f32 %v4978, %v5126
  %v5128 = vpop.f32.mrb[0].mxu0
  %v5129 = vpop.f32.mrb[0].mxu0
  %v5130 = vadd.f32 %v4981, %v5129
  %v5131 = vpop.f32.mrb[0].mxu0
  %5132 = vmatprep.mubr.bf16.mxu0 0
  %5133 = vmatmul.mubr.bf16.gmra.mrb[0].mxu0 %v3993
  %v5134 = vpop.f32.mrb[0].mxu0
  %v5135 = vadd.f32 %v4986, %v5134
  %v5136 = vpop.f32.mrb[0].mxu0
  %v5137 = vpop.f32.mrb[0].mxu0
  %v5138 = vadd.f32 %v4989, %v5137
  %v5139 = vpop.f32.mrb[0].mxu0
  %5140 = vmatprep.mubr.bf16.mxu0 0
  %5141 = vmatmul.mubr.bf16.gmra.mrb[0].mxu0 %v3996
  %v5142 = vpop.f32.mrb[0].mxu0
  %v5143 = vadd.f32 %v4994, %v5142
  %v5144 = vpop.f32.mrb[0].mxu0
  %v5145 = vpop.f32.mrb[0].mxu0
  %v5146 = vadd.f32 %v4997, %v5145
  %v5147 = vpop.f32.mrb[0].mxu0
  %5148 = vmatprep.mubr.bf16.mxu0 0
  %5149 = vmatmul.mubr.bf16.gmra.mrb[0].mxu0 %v3999
  %v5150 = vpop.f32.mrb[0].mxu0
  %v5151 = vadd.f32 %v5002, %v5150
  %v5152 = vpop.f32.mrb[0].mxu0
  %v5153 = vpop.f32.mrb[0].mxu0
  %v5154 = vadd.f32 %v5005, %v5153
  %v5155 = vpop.f32.mrb[0].mxu0
  %5156 = vdwg.mxu0
  %s5157 = scalar_lea.vmem %s2, 308
  %v5158 = vld [vmem:[%s5157] sm:$0xf]
  %v5159 = vld [vmem:[%s5157 + $0x4] sm:$0xf]
  %v5160 = vld [vmem:[%s5157 + $0x8] sm:$0xf]
  %v5161 = vld [vmem:[%s5157 + $0xc] sm:$0xf]
  %v5162 = vld [vmem:[%s5157 + $0x10] sm:$0xf]
  %v5163 = vld [vmem:[%s5157 + $0x14] sm:$0xf]
  %v5164 = vld [vmem:[%s5157 + $0x18] sm:$0xf]
  %v5165 = vld [vmem:[%s5157 + $0x1c] sm:$0xf]
  %v5166 = vld [vmem:[%s5157 + $0x20] sm:$0xf]
  %v5167 = vld [vmem:[%s5157 + $0x24] sm:$0xf]
  %v5168 = vld [vmem:[%s5157 + $0x28] sm:$0x3]
  %v5180 = vunpack.c.l.b16 %v5158
  %v5181 = vunpack.c.l.b16 %v5159
  %v5182 = vunpack.c.l.b16 %v5160
  %v5183 = vunpack.c.l.b16 %v5161
  %v5184 = vunpack.c.l.b16 %v5162
  %v5185 = vunpack.c.l.b16 %v5163
  %v5186 = vunpack.c.l.b16 %v5164
  %v5187 = vunpack.c.l.b16 %v5165
  %v5188 = vunpack.c.l.b16 %v5166
  %v5189 = vunpack.c.l.b16 %v5167
  %v5190 = vunpack.c.l.b16 %v5168
  %v5191 = vpack.c.b16 %v5181, %v5180
  %v5192 = vpack.c.b16 %v5183, %v5182
  %v5193 = vpack.c.b16 %v5185, %v5184
  %v5194 = vpack.c.b16 %v5187, %v5186
  %v5195 = vpack.c.b16 %v5189, %v5188
  %v5196 = vpack.c.b16 %v5190, %v5190
  %v5203 = vsel %vm4004, %v5196, 0
  %5205 = vmatprep.subr.bf16.mxu0 0
  %5206 = vmatpush1.bf16.msra.mxu0 %v5191
  %5207 = vmatprep.subr.bf16.mxu0 0
  %5208 = vmatpush1.bf16.msra.mxu0 %v5192
  %5209 = vmatprep.subr.bf16.mxu0 0
  %5210 = vmatpush1.bf16.msra.mxu0 %v5193
  %5211 = vmatprep.subr.bf16.mxu0 0
  %5212 = vmatpush1.bf16.msra.mxu0 %v5194
  %5213 = vmatprep.subr.bf16.mxu0 0
  %5214 = vmatpush1.bf16.msra.mxu0 %v5195
  %5215 = vmatprep.subr.bf16.mxu0 0
  %5216 = vmatpush1.bf16.msra.mxu0 %v5203
  %5217 = vmatprep.subr.bf16.mxu0 0
  %5218 = vmatpush1.bf16.msra.mxu0 0
  %5219 = vmatprep.subr.bf16.mxu0 0
  %5220 = vmatpush1.bf16.msra.mxu0 0
  %5221 = vmatprep.subr.bf16.mxu0 0
  %5222 = vmatpush1.bf16.msra.mxu0 0
  %5223 = vmatprep.subr.bf16.mxu0 0
  %5224 = vmatpush1.bf16.msra.mxu0 0
  %5225 = vmatprep.subr.bf16.mxu0 0
  %5226 = vmatpush1.bf16.msra.mxu0 0
  %5227 = vmatprep.subr.bf16.mxu0 0
  %5228 = vmatpush1.bf16.msra.mxu0 0
  %5229 = vmatprep.subr.bf16.mxu0 0
  %5230 = vmatpush1.bf16.msra.mxu0 0
  %5231 = vmatprep.subr.bf16.mxu0 0
  %5232 = vmatpush1.bf16.msra.mxu0 0
  %5233 = vmatprep.subr.bf16.mxu0 0
  %5234 = vmatpush1.bf16.msra.mxu0 0
  %5235 = vmatprep.subr.bf16.mxu0 0
  %5236 = vmatpush1.bf16.msra.mxu0 0
  %5237 = vmatprep.mubr.bf16.mxu0 0
  %5238 = vmatmul.mubr.bf16.gmra.mrb[0].mxu0 %v3978
  %v5239 = vpop.f32.mrb[0].mxu0
  %v5240 = vadd.f32 0.0, %v5239
  %v5241 = vpop.f32.mrb[0].mxu0
  %v5242 = vpop.f32.mrb[0].mxu0
  %v5243 = vadd.f32 0.0, %v5242
  %v5244 = vpop.f32.mrb[0].mxu0
  %5245 = vmatprep.mubr.bf16.mxu0 0
  %5246 = vmatmul.mubr.bf16.gmra.mrb[0].mxu0 %v3981
  %v5247 = vpop.f32.mrb[0].mxu0
  %v5248 = vadd.f32 0.0, %v5247
  %v5249 = vpop.f32.mrb[0].mxu0
  %v5250 = vpop.f32.mrb[0].mxu0
  %v5251 = vadd.f32 0.0, %v5250
  %v5252 = vpop.f32.mrb[0].mxu0
  %5253 = vmatprep.mubr.bf16.mxu0 0
  %5254 = vmatmul.mubr.bf16.gmra.mrb[0].mxu0 %v3984
  %v5255 = vpop.f32.mrb[0].mxu0
  %v5256 = vadd.f32 0.0, %v5255
  %v5257 = vpop.f32.mrb[0].mxu0
  %v5258 = vpop.f32.mrb[0].mxu0
  %v5259 = vadd.f32 0.0, %v5258
  %v5260 = vpop.f32.mrb[0].mxu0
  %5261 = vmatprep.mubr.bf16.mxu0 0
  %5262 = vmatmul.mubr.bf16.gmra.mrb[0].mxu0 %v3987
  %v5263 = vpop.f32.mrb[0].mxu0
  %v5264 = vadd.f32 0.0, %v5263
  %v5265 = vpop.f32.mrb[0].mxu0
  %v5266 = vpop.f32.mrb[0].mxu0
  %v5267 = vadd.f32 0.0, %v5266
  %v5268 = vpop.f32.mrb[0].mxu0
  %5269 = vmatprep.mubr.bf16.mxu0 0
  %5270 = vmatmul.mubr.bf16.gmra.mrb[0].mxu0 %v3990
  %v5271 = vpop.f32.mrb[0].mxu0
  %v5272 = vadd.f32 0.0, %v5271
  %v5273 = vpop.f32.mrb[0].mxu0
  %v5274 = vpop.f32.mrb[0].mxu0
  %v5275 = vadd.f32 0.0, %v5274
  %v5276 = vpop.f32.mrb[0].mxu0
  %5277 = vmatprep.mubr.bf16.mxu0 0
  %5278 = vmatmul.mubr.bf16.gmra.mrb[0].mxu0 %v3993
  %v5279 = vpop.f32.mrb[0].mxu0
  %v5280 = vadd.f32 0.0, %v5279
  %v5281 = vpop.f32.mrb[0].mxu0
  %v5282 = vpop.f32.mrb[0].mxu0
  %v5283 = vadd.f32 0.0, %v5282
  %v5284 = vpop.f32.mrb[0].mxu0
  %5285 = vmatprep.mubr.bf16.mxu0 0
  %5286 = vmatmul.mubr.bf16.gmra.mrb[0].mxu0 %v3996
  %v5287 = vpop.f32.mrb[0].mxu0
  %v5288 = vadd.f32 0.0, %v5287
  %v5289 = vpop.f32.mrb[0].mxu0
  %v5290 = vpop.f32.mrb[0].mxu0
  %v5291 = vadd.f32 0.0, %v5290
  %v5292 = vpop.f32.mrb[0].mxu0
  %5293 = vmatprep.mubr.bf16.mxu0 0
  %5294 = vmatmul.mubr.bf16.gmra.mrb[0].mxu0 %v3999
  %v5295 = vpop.f32.mrb[0].mxu0
  %v5296 = vadd.f32 0.0, %v5295
  %v5297 = vpop.f32.mrb[0].mxu0
  %v5298 = vpop.f32.mrb[0].mxu0
  %v5299 = vadd.f32 0.0, %v5298
  %v5300 = vpop.f32.mrb[0].mxu0
  %5301 = vmatprep.mubr.bf16.mxu0 0
  %5302 = vmatmul.mubr.bf16.gmra.mrb[0].mxu0 %v4002
  %v5303 = vpop.f32.mrb[0].mxu0
  %v5304 = vadd.f32 0.0, %v5303
  %v5305 = vpop.f32.mrb[0].mxu0
  %v5306 = vpop.f32.mrb[0].mxu0
  %v5307 = vadd.f32 0.0, %v5306
  %v5308 = vpop.f32.mrb[0].mxu0
  %5309 = vmatprep.mubr.bf16.mxu0 0
  %5310 = vmatmul.mubr.bf16.gmra.mrb[0].mxu0 %v4319
  %v5311 = vpop.f32.mrb[0].mxu0
  %v5312 = vadd.f32 0.0, %v5311
  %v5313 = vpop.f32.mrb[0].mxu0
  %v5314 = vpop.f32.mrb[0].mxu0
  %v5315 = vadd.f32 0.0, %v5314
  %v5316 = vpop.f32.mrb[0].mxu0
  %5317 = vdwg.mxu0
  %v5318 = vadd.f32 %v5079, %v5240
  %v5319 = vadd.f32 %v5082, %v5243
  %v5320 = vadd.f32 %v5087, %v5248
  %v5321 = vadd.f32 %v5090, %v5251
  %v5322 = vadd.f32 %v5095, %v5256
  %v5323 = vadd.f32 %v5098, %v5259
  %v5324 = vadd.f32 %v5103, %v5264
  %v5325 = vadd.f32 %v5106, %v5267
  %v5326 = vadd.f32 %v5111, %v5272
  %v5327 = vadd.f32 %v5114, %v5275
  %v5328 = vadd.f32 %v5119, %v5280
  %v5329 = vadd.f32 %v5122, %v5283
  %v5330 = vadd.f32 %v5127, %v5288
  %v5331 = vadd.f32 %v5130, %v5291
  %v5332 = vadd.f32 %v5135, %v5296
  %v5333 = vadd.f32 %v5138, %v5299
  %v5334 = vadd.f32 %v5143, %v5304
  %v5335 = vadd.f32 %v5146, %v5307
  %v5336 = vadd.f32 %v5151, %v5312
  %v5337 = vadd.f32 %v5154, %v5315
  %s5338 = scalar_lea.vmem %s2, 352
  %v5339 = vld [vmem:[%s5338] sm:$0xf]
  %v5340 = vld [vmem:[%s5338 + $0x4] sm:$0xf]
  %v5341 = vld [vmem:[%s5338 + $0x8] sm:$0xf]
  %v5342 = vld [vmem:[%s5338 + $0xc] sm:$0xf]
  %v5343 = vld [vmem:[%s5338 + $0x10] sm:$0xf]
  %v5344 = vld [vmem:[%s5338 + $0x14] sm:$0xf]
  %v5345 = vld [vmem:[%s5338 + $0x18] sm:$0xf]
  %v5346 = vld [vmem:[%s5338 + $0x1c] sm:$0xf]
  %v5347 = vld [vmem:[%s5338 + $0x20] sm:$0xf]
  %v5348 = vld [vmem:[%s5338 + $0x24] sm:$0xf]
  %v5349 = vld [vmem:[%s5338 + $0x28] sm:$0x3]
  %v5361 = vunpack.c.l.b16 %v5339
  %v5362 = vunpack.c.l.b16 %v5340
  %v5363 = vunpack.c.l.b16 %v5341
  %v5364 = vunpack.c.l.b16 %v5342
  %v5365 = vunpack.c.l.b16 %v5343
  %v5366 = vunpack.c.l.b16 %v5344
  %v5367 = vunpack.c.l.b16 %v5345
  %v5368 = vunpack.c.l.b16 %v5346
  %v5369 = vunpack.c.l.b16 %v5347
  %v5370 = vunpack.c.l.b16 %v5348
  %v5371 = vunpack.c.l.b16 %v5349
  %v5372 = vpack.c.b16 %v5362, %v5361
  %v5373 = vpack.c.b16 %v5364, %v5363
  %v5374 = vpack.c.b16 %v5366, %v5365
  %v5375 = vpack.c.b16 %v5368, %v5367
  %v5376 = vpack.c.b16 %v5370, %v5369
  %v5377 = vpack.c.b16 %v5371, %v5371
  %v5384 = vsel %vm4004, %v5377, 0
  %5386 = vmatprep.subr.bf16.mxu0 0
  %5387 = vmatpush1.bf16.msra.mxu0 %v5372
  %5388 = vmatprep.subr.bf16.mxu0 0
  %5389 = vmatpush1.bf16.msra.mxu0 %v5373
  %5390 = vmatprep.subr.bf16.mxu0 0
  %5391 = vmatpush1.bf16.msra.mxu0 %v5374
  %5392 = vmatprep.subr.bf16.mxu0 0
  %5393 = vmatpush1.bf16.msra.mxu0 %v5375
  %5394 = vmatprep.subr.bf16.mxu0 0
  %5395 = vmatpush1.bf16.msra.mxu0 %v5376
  %5396 = vmatprep.subr.bf16.mxu0 0
  %5397 = vmatpush1.bf16.msra.mxu0 %v5384
  %5398 = vmatprep.subr.bf16.mxu0 0
  %5399 = vmatpush1.bf16.msra.mxu0 0
  %5400 = vmatprep.subr.bf16.mxu0 0
  %5401 = vmatpush1.bf16.msra.mxu0 0
  %5402 = vmatprep.subr.bf16.mxu0 0
  %5403 = vmatpush1.bf16.msra.mxu0 0
  %5404 = vmatprep.subr.bf16.mxu0 0
  %5405 = vmatpush1.bf16.msra.mxu0 0
  %5406 = vmatprep.subr.bf16.mxu0 0
  %5407 = vmatpush1.bf16.msra.mxu0 0
  %5408 = vmatprep.subr.bf16.mxu0 0
  %5409 = vmatpush1.bf16.msra.mxu0 0
  %5410 = vmatprep.subr.bf16.mxu0 0
  %5411 = vmatpush1.bf16.msra.mxu0 0
  %5412 = vmatprep.subr.bf16.mxu0 0
  %5413 = vmatpush1.bf16.msra.mxu0 0
  %5414 = vmatprep.subr.bf16.mxu0 0
  %5415 = vmatpush1.bf16.msra.mxu0 0
  %5416 = vmatprep.subr.bf16.mxu0 0
  %5417 = vmatpush1.bf16.msra.mxu0 0
  %5418 = vmatprep.mubr.bf16.mxu0 0
  %5419 = vmatmul.mubr.bf16.gmra.mrb[0].mxu0 %v3981
  %v5420 = vpop.f32.mrb[0].mxu0
  %v5421 = vadd.f32 0.0, %v5420
  %v5422 = vpop.f32.mrb[0].mxu0
  %v5423 = vpop.f32.mrb[0].mxu0
  %v5424 = vadd.f32 0.0, %v5423
  %v5425 = vpop.f32.mrb[0].mxu0
  %5426 = vmatprep.mubr.bf16.mxu0 0
  %5427 = vmatmul.mubr.bf16.gmra.mrb[0].mxu0 %v3984
  %v5428 = vpop.f32.mrb[0].mxu0
  %v5429 = vadd.f32 0.0, %v5428
  %v5430 = vpop.f32.mrb[0].mxu0
  %v5431 = vpop.f32.mrb[0].mxu0
  %v5432 = vadd.f32 0.0, %v5431
  %v5433 = vpop.f32.mrb[0].mxu0
  %5434 = vmatprep.mubr.bf16.mxu0 0
  %5435 = vmatmul.mubr.bf16.gmra.mrb[0].mxu0 %v3987
  %v5436 = vpop.f32.mrb[0].mxu0
  %v5437 = vadd.f32 0.0, %v5436
  %v5438 = vpop.f32.mrb[0].mxu0
  %v5439 = vpop.f32.mrb[0].mxu0
  %v5440 = vadd.f32 0.0, %v5439
  %v5441 = vpop.f32.mrb[0].mxu0
  %5442 = vmatprep.mubr.bf16.mxu0 0
  %5443 = vmatmul.mubr.bf16.gmra.mrb[0].mxu0 %v3990
  %v5444 = vpop.f32.mrb[0].mxu0
  %v5445 = vadd.f32 0.0, %v5444
  %v5446 = vpop.f32.mrb[0].mxu0
  %v5447 = vpop.f32.mrb[0].mxu0
  %v5448 = vadd.f32 0.0, %v5447
  %v5449 = vpop.f32.mrb[0].mxu0
  %5450 = vmatprep.mubr.bf16.mxu0 0
  %5451 = vmatmul.mubr.bf16.gmra.mrb[0].mxu0 %v3993
  %v5452 = vpop.f32.mrb[0].mxu0
  %v5453 = vadd.f32 0.0, %v5452
  %v5454 = vpop.f32.mrb[0].mxu0
  %v5455 = vpop.f32.mrb[0].mxu0
  %v5456 = vadd.f32 0.0, %v5455
  %v5457 = vpop.f32.mrb[0].mxu0
  %5458 = vmatprep.mubr.bf16.mxu0 0
  %5459 = vmatmul.mubr.bf16.gmra.mrb[0].mxu0 %v3996
  %v5460 = vpop.f32.mrb[0].mxu0
  %v5461 = vadd.f32 0.0, %v5460
  %v5462 = vpop.f32.mrb[0].mxu0
  %v5463 = vpop.f32.mrb[0].mxu0
  %v5464 = vadd.f32 0.0, %v5463
  %v5465 = vpop.f32.mrb[0].mxu0
  %5466 = vmatprep.mubr.bf16.mxu0 0
  %5467 = vmatmul.mubr.bf16.gmra.mrb[0].mxu0 %v3999
  %v5468 = vpop.f32.mrb[0].mxu0
  %v5469 = vadd.f32 0.0, %v5468
  %v5470 = vpop.f32.mrb[0].mxu0
  %v5471 = vpop.f32.mrb[0].mxu0
  %v5472 = vadd.f32 0.0, %v5471
  %v5473 = vpop.f32.mrb[0].mxu0
  %5474 = vmatprep.mubr.bf16.mxu0 0
  %5475 = vmatmul.mubr.bf16.gmra.mrb[0].mxu0 %v4002
  %v5476 = vpop.f32.mrb[0].mxu0
  %v5477 = vadd.f32 0.0, %v5476
  %v5478 = vpop.f32.mrb[0].mxu0
  %v5479 = vpop.f32.mrb[0].mxu0
  %v5480 = vadd.f32 0.0, %v5479
  %v5481 = vpop.f32.mrb[0].mxu0
  %5482 = vmatprep.mubr.bf16.mxu0 0
  %5483 = vmatmul.mubr.bf16.gmra.mrb[0].mxu0 %v4319
  %v5484 = vpop.f32.mrb[0].mxu0
  %v5485 = vadd.f32 0.0, %v5484
  %v5486 = vpop.f32.mrb[0].mxu0
  %v5487 = vpop.f32.mrb[0].mxu0
  %v5488 = vadd.f32 0.0, %v5487
  %v5489 = vpop.f32.mrb[0].mxu0
  %5490 = vmatprep.mubr.bf16.mxu0 0
  %5491 = vmatmul.mubr.bf16.gmra.mrb[0].mxu0 %v4503
  %v5492 = vpop.f32.mrb[0].mxu0
  %v5493 = vadd.f32 0.0, %v5492
  %v5494 = vpop.f32.mrb[0].mxu0
  %v5495 = vpop.f32.mrb[0].mxu0
  %v5496 = vadd.f32 0.0, %v5495
  %v5497 = vpop.f32.mrb[0].mxu0
  %5498 = vdwg.mxu0
  %v5499 = vadd.f32 %v5318, %v5421
  %v5500 = vadd.f32 %v5319, %v5424
  %v5501 = vadd.f32 %v5320, %v5429
  %v5502 = vadd.f32 %v5321, %v5432
  %v5503 = vadd.f32 %v5322, %v5437
  %v5504 = vadd.f32 %v5323, %v5440
  %v5505 = vadd.f32 %v5324, %v5445
  %v5506 = vadd.f32 %v5325, %v5448
  %v5507 = vadd.f32 %v5326, %v5453
  %v5508 = vadd.f32 %v5327, %v5456
  %v5509 = vadd.f32 %v5328, %v5461
  %v5510 = vadd.f32 %v5329, %v5464
  %v5511 = vadd.f32 %v5330, %v5469
  %v5512 = vadd.f32 %v5331, %v5472
  %v5513 = vadd.f32 %v5332, %v5477
  %v5514 = vadd.f32 %v5333, %v5480
  %v5515 = vadd.f32 %v5334, %v5485
  %v5516 = vadd.f32 %v5335, %v5488
  %v5517 = vadd.f32 %v5336, %v5493
  %v5518 = vadd.f32 %v5337, %v5496
  %s5519 = scalar_lea.vmem %s2, 396
  %v5520 = vld [vmem:[%s5519] sm:$0xf]
  %v5521 = vld [vmem:[%s5519 + $0x4] sm:$0xf]
  %v5522 = vld [vmem:[%s5519 + $0x8] sm:$0xf]
  %v5523 = vld [vmem:[%s5519 + $0xc] sm:$0xf]
  %v5524 = vld [vmem:[%s5519 + $0x10] sm:$0xf]
  %v5525 = vld [vmem:[%s5519 + $0x14] sm:$0xf]
  %v5526 = vld [vmem:[%s5519 + $0x18] sm:$0xf]
  %v5527 = vld [vmem:[%s5519 + $0x1c] sm:$0xf]
  %v5528 = vld [vmem:[%s5519 + $0x20] sm:$0xf]
  %v5529 = vld [vmem:[%s5519 + $0x24] sm:$0xf]
  %v5530 = vld [vmem:[%s5519 + $0x28] sm:$0x3]
  %v5542 = vunpack.c.l.b16 %v5520
  %v5543 = vunpack.c.l.b16 %v5521
  %v5544 = vunpack.c.l.b16 %v5522
  %v5545 = vunpack.c.l.b16 %v5523
  %v5546 = vunpack.c.l.b16 %v5524
  %v5547 = vunpack.c.l.b16 %v5525
  %v5548 = vunpack.c.l.b16 %v5526
  %v5549 = vunpack.c.l.b16 %v5527
  %v5550 = vunpack.c.l.b16 %v5528
  %v5551 = vunpack.c.l.b16 %v5529
  %v5552 = vunpack.c.l.b16 %v5530
  %v5553 = vpack.c.b16 %v5543, %v5542
  %v5554 = vpack.c.b16 %v5545, %v5544
  %v5555 = vpack.c.b16 %v5547, %v5546
  %v5556 = vpack.c.b16 %v5549, %v5548
  %v5557 = vpack.c.b16 %v5551, %v5550
  %v5558 = vpack.c.b16 %v5552, %v5552
  %v5565 = vsel %vm4004, %v5558, 0
  %5567 = vmatprep.subr.bf16.mxu0 0
  %5568 = vmatpush1.bf16.msra.mxu0 %v5553
  %5569 = vmatprep.subr.bf16.mxu0 0
  %5570 = vmatpush1.bf16.msra.mxu0 %v5554
  %5571 = vmatprep.subr.bf16.mxu0 0
  %5572 = vmatpush1.bf16.msra.mxu0 %v5555
  %5573 = vmatprep.subr.bf16.mxu0 0
  %5574 = vmatpush1.bf16.msra.mxu0 %v5556
  %5575 = vmatprep.subr.bf16.mxu0 0
  %5576 = vmatpush1.bf16.msra.mxu0 %v5557
  %5577 = vmatprep.subr.bf16.mxu0 0
  %5578 = vmatpush1.bf16.msra.mxu0 %v5565
  %5579 = vmatprep.subr.bf16.mxu0 0
  %5580 = vmatpush1.bf16.msra.mxu0 0
  %5581 = vmatprep.subr.bf16.mxu0 0
  %5582 = vmatpush1.bf16.msra.mxu0 0
  %5583 = vmatprep.subr.bf16.mxu0 0
  %5584 = vmatpush1.bf16.msra.mxu0 0
  %5585 = vmatprep.subr.bf16.mxu0 0
  %5586 = vmatpush1.bf16.msra.mxu0 0
  %5587 = vmatprep.subr.bf16.mxu0 0
  %5588 = vmatpush1.bf16.msra.mxu0 0
  %5589 = vmatprep.subr.bf16.mxu0 0
  %5590 = vmatpush1.bf16.msra.mxu0 0
  %5591 = vmatprep.subr.bf16.mxu0 0
  %5592 = vmatpush1.bf16.msra.mxu0 0
  %5593 = vmatprep.subr.bf16.mxu0 0
  %5594 = vmatpush1.bf16.msra.mxu0 0
  %5595 = vmatprep.subr.bf16.mxu0 0
  %5596 = vmatpush1.bf16.msra.mxu0 0
  %5597 = vmatprep.subr.bf16.mxu0 0
  %5598 = vmatpush1.bf16.msra.mxu0 0
  %5599 = vmatprep.mubr.bf16.mxu0 0
  %5600 = vmatmul.mubr.bf16.gmra.mrb[0].mxu0 %v3984
  %v5601 = vpop.f32.mrb[0].mxu0
  %v5602 = vadd.f32 0.0, %v5601
  %v5603 = vpop.f32.mrb[0].mxu0
  %v5604 = vpop.f32.mrb[0].mxu0
  %v5605 = vadd.f32 0.0, %v5604
  %v5606 = vpop.f32.mrb[0].mxu0
  %5607 = vmatprep.mubr.bf16.mxu0 0
  %5608 = vmatmul.mubr.bf16.gmra.mrb[0].mxu0 %v3987
  %v5609 = vpop.f32.mrb[0].mxu0
  %v5610 = vadd.f32 0.0, %v5609
  %v5611 = vpop.f32.mrb[0].mxu0
  %v5612 = vpop.f32.mrb[0].mxu0
  %v5613 = vadd.f32 0.0, %v5612
  %v5614 = vpop.f32.mrb[0].mxu0
  %5615 = vmatprep.mubr.bf16.mxu0 0
  %5616 = vmatmul.mubr.bf16.gmra.mrb[0].mxu0 %v3990
  %v5617 = vpop.f32.mrb[0].mxu0
  %v5618 = vadd.f32 0.0, %v5617
  %v5619 = vpop.f32.mrb[0].mxu0
  %v5620 = vpop.f32.mrb[0].mxu0
  %v5621 = vadd.f32 0.0, %v5620
  %v5622 = vpop.f32.mrb[0].mxu0
  %5623 = vmatprep.mubr.bf16.mxu0 0
  %5624 = vmatmul.mubr.bf16.gmra.mrb[0].mxu0 %v3993
  %v5625 = vpop.f32.mrb[0].mxu0
  %v5626 = vadd.f32 0.0, %v5625
  %v5627 = vpop.f32.mrb[0].mxu0
  %v5628 = vpop.f32.mrb[0].mxu0
  %v5629 = vadd.f32 0.0, %v5628
  %v5630 = vpop.f32.mrb[0].mxu0
  %5631 = vmatprep.mubr.bf16.mxu0 0
  %5632 = vmatmul.mubr.bf16.gmra.mrb[0].mxu0 %v3996
  %v5633 = vpop.f32.mrb[0].mxu0
  %v5634 = vadd.f32 0.0, %v5633
  %v5635 = vpop.f32.mrb[0].mxu0
  %v5636 = vpop.f32.mrb[0].mxu0
  %v5637 = vadd.f32 0.0, %v5636
  %v5638 = vpop.f32.mrb[0].mxu0
  %5639 = vmatprep.mubr.bf16.mxu0 0
  %5640 = vmatmul.mubr.bf16.gmra.mrb[0].mxu0 %v3999
  %v5641 = vpop.f32.mrb[0].mxu0
  %v5642 = vadd.f32 0.0, %v5641
  %v5643 = vpop.f32.mrb[0].mxu0
  %v5644 = vpop.f32.mrb[0].mxu0
  %v5645 = vadd.f32 0.0, %v5644
  %v5646 = vpop.f32.mrb[0].mxu0
  %5647 = vmatprep.mubr.bf16.mxu0 0
  %5648 = vmatmul.mubr.bf16.gmra.mrb[0].mxu0 %v4002
  %v5649 = vpop.f32.mrb[0].mxu0
  %v5650 = vadd.f32 0.0, %v5649
  %v5651 = vpop.f32.mrb[0].mxu0
  %v5652 = vpop.f32.mrb[0].mxu0
  %v5653 = vadd.f32 0.0, %v5652
  %v5654 = vpop.f32.mrb[0].mxu0
  %5655 = vmatprep.mubr.bf16.mxu0 0
  %5656 = vmatmul.mubr.bf16.gmra.mrb[0].mxu0 %v4319
  %v5657 = vpop.f32.mrb[0].mxu0
  %v5658 = vadd.f32 0.0, %v5657
  %v5659 = vpop.f32.mrb[0].mxu0
  %v5660 = vpop.f32.mrb[0].mxu0
  %v5661 = vadd.f32 0.0, %v5660
  %v5662 = vpop.f32.mrb[0].mxu0
  %5663 = vmatprep.mubr.bf16.mxu0 0
  %5664 = vmatmul.mubr.bf16.gmra.mrb[0].mxu0 %v4503
  %v5665 = vpop.f32.mrb[0].mxu0
  %v5666 = vadd.f32 0.0, %v5665
  %v5667 = vpop.f32.mrb[0].mxu0
  %v5668 = vpop.f32.mrb[0].mxu0
  %v5669 = vadd.f32 0.0, %v5668
  %v5670 = vpop.f32.mrb[0].mxu0
  %5671 = vmatprep.mubr.bf16.mxu0 0
  %5672 = vmatmul.mubr.bf16.gmra.mrb[0].mxu0 %v4687
  %v5673 = vpop.f32.mrb[0].mxu0
  %v5674 = vadd.f32 0.0, %v5673
  %v5675 = vpop.f32.mrb[0].mxu0
  %v5676 = vpop.f32.mrb[0].mxu0
  %v5677 = vadd.f32 0.0, %v5676
  %v5678 = vpop.f32.mrb[0].mxu0
  %5679 = vdwg.mxu0
  %v5680 = vadd.f32 %v5499, %v5602
  %v5681 = vadd.f32 %v5500, %v5605
  %v5682 = vadd.f32 %v5501, %v5610
  %v5683 = vadd.f32 %v5502, %v5613
  %v5684 = vadd.f32 %v5503, %v5618
  %v5685 = vadd.f32 %v5504, %v5621
  %v5686 = vadd.f32 %v5505, %v5626
  %v5687 = vadd.f32 %v5506, %v5629
  %v5688 = vadd.f32 %v5507, %v5634
  %v5689 = vadd.f32 %v5508, %v5637
  %v5690 = vadd.f32 %v5509, %v5642
  %v5691 = vadd.f32 %v5510, %v5645
  %v5692 = vadd.f32 %v5511, %v5650
  %v5693 = vadd.f32 %v5512, %v5653
  %v5694 = vadd.f32 %v5513, %v5658
  %v5695 = vadd.f32 %v5514, %v5661
  %v5696 = vadd.f32 %v5515, %v5666
  %v5697 = vadd.f32 %v5516, %v5669
  %v5698 = vadd.f32 %v5517, %v5674
  %v5699 = vadd.f32 %v5518, %v5677
  %v5700 = vmax.f32 %v5680, %v5682
  %v5701 = vmax.f32 %v5681, %v5683
  %v5702 = vmax.f32 %v5684, %v5686
  %v5703 = vmax.f32 %v5685, %v5687
  %v5704 = vmax.f32 %v5688, %v5690
  %v5705 = vmax.f32 %v5689, %v5691
  %v5706 = vmax.f32 %v5692, %v5694
  %v5707 = vmax.f32 %v5693, %v5695
  %v5708 = vmax.f32 %v5696, %v5698
  %v5709 = vmax.f32 %v5697, %v5699
  %v5710 = vmax.f32 %v4825, %v5700
  %v5711 = vmax.f32 %v4826, %v5701
  %v5712 = vmax.f32 %v4827, %v5702
  %v5713 = vmax.f32 %v4828, %v5703
  %v5714 = vmax.f32 %v4829, %v5704
  %v5715 = vmax.f32 %v4830, %v5705
  %v5716 = vmax.f32 %v4831, %v5706
  %v5717 = vmax.f32 %v4832, %v5707
  %v5718 = vmax.f32 %v4833, %v5708
  %v5719 = vmax.f32 %v4834, %v5709
  %v5721 = vlaneseq
  %v5722 = vshrl.u32 %v5721, 7
  %v5723 = vsub.s32 0, %v5722
  %v5724 = vrot.slane %v3916, %v5723
  %v5726 = vadd.f32 %v5710, %v5724
  %v5727 = vadd.f32 %v5711, %v5724
  %v5728 = vadd.f32 %v5712, %v5724
  %v5729 = vadd.f32 %v5713, %v5724
  %v5730 = vadd.f32 %v5714, %v5724
  %v5731 = vadd.f32 %v5715, %v5724
  %v5732 = vadd.f32 %v5716, %v5724
  %v5733 = vadd.f32 %v5717, %v5724
  %v5734 = vadd.f32 %v5718, %v5724
  %v5735 = vadd.f32 %v5719, %v5724
  %v5736 = vmax.f32 %v5726, 0.0
  %v5737 = vmax.f32 %v5727, 0.0
  %v5738 = vmax.f32 %v5728, 0.0
  %v5739 = vmax.f32 %v5729, 0.0
  %v5740 = vmax.f32 %v5730, 0.0
  %v5741 = vmax.f32 %v5731, 0.0
  %v5742 = vmax.f32 %v5732, 0.0
  %v5743 = vmax.f32 %v5733, 0.0
  %v5744 = vmax.f32 %v5734, 0.0
  %v5745 = vmax.f32 %v5735, 0.0
  %v5746 = vpack.c.bf16 %v5737, %v5736
  %v5747 = vpack.c.bf16 %v5739, %v5738
  %v5748 = vpack.c.bf16 %v5741, %v5740
  %v5749 = vpack.c.bf16 %v5743, %v5742
  %v5750 = vpack.c.bf16 %v5745, %v5744
  %v5751 = vld [vmem:[%s3] sm:$0xf]
  %v5752 = vld [vmem:[%s3 + $0x4] sm:$0xf]
  %v5753 = vld [vmem:[%s3 + $0x8] sm:$0xf]
  %v5754 = vld [vmem:[%s3 + $0xc] sm:$0xf]
  %v5755 = vld [vmem:[%s3 + $0x10] sm:$0xf]
  %v5756 = vld [vmem:[%s3 + $0x14] sm:$0xf]
  %v5757 = vld [vmem:[%s3 + $0x18] sm:$0xf]
  %v5758 = vld [vmem:[%s3 + $0x1c] sm:$0xf]
  %v5759 = vld [vmem:[%s3 + $0x20] sm:$0xf]
  %v5760 = vld [vmem:[%s3 + $0x24] sm:$0xf]
  %s5761 = scalar_lea.vmem %s3, 40
  %v5762 = vld [vmem:[%s5761] sm:$0xf]
  %v5763 = vld [vmem:[%s5761 + $0x4] sm:$0xf]
  %v5764 = vld [vmem:[%s5761 + $0x8] sm:$0xf]
  %v5765 = vld [vmem:[%s5761 + $0xc] sm:$0xf]
  %v5766 = vld [vmem:[%s5761 + $0x10] sm:$0xf]
  %v5767 = vld [vmem:[%s5761 + $0x14] sm:$0xf]
  %v5768 = vld [vmem:[%s5761 + $0x18] sm:$0xf]
  %v5769 = vld [vmem:[%s5761 + $0x1c] sm:$0xf]
  %v5770 = vld [vmem:[%s5761 + $0x20] sm:$0xf]
  %v5771 = vld [vmem:[%s5761 + $0x24] sm:$0xf]
  %v5782 = vunpack.c.l.b16 %v5762
  %v5783 = vunpack.c.l.b16 %v5763
  %v5784 = vunpack.c.l.b16 %v5764
  %v5785 = vunpack.c.l.b16 %v5765
  %v5786 = vunpack.c.l.b16 %v5766
  %v5787 = vunpack.c.l.b16 %v5767
  %v5788 = vunpack.c.l.b16 %v5768
  %v5789 = vunpack.c.l.b16 %v5769
  %v5790 = vunpack.c.l.b16 %v5770
  %v5791 = vunpack.c.l.b16 %v5771
  %v5792 = vpack.c.b16 %v5783, %v5782
  %v5793 = vpack.c.b16 %v5785, %v5784
  %v5794 = vpack.c.b16 %v5787, %v5786
  %v5795 = vpack.c.b16 %v5789, %v5788
  %v5796 = vpack.c.b16 %v5791, %v5790
  %vm5802 = vcmask 654336
  %v5804 = vsel %vm5802, %v5747, 0
  %5806 = vmatprep.subr.bf16.mxu0 0
  %5807 = vmatpush1.bf16.msra.mxu0 %v5792
  %5808 = vmatprep.subr.bf16.mxu0 0
  %5809 = vmatpush1.bf16.msra.mxu0 %v5793
  %5810 = vmatprep.subr.bf16.mxu0 0
  %5811 = vmatpush1.bf16.msra.mxu0 %v5794
  %5812 = vmatprep.subr.bf16.mxu0 0
  %5813 = vmatpush1.bf16.msra.mxu0 %v5795
  %5814 = vmatprep.subr.bf16.mxu0 0
  %5815 = vmatpush1.bf16.msra.mxu0 %v5796
  %5816 = vmatprep.subr.bf16.mxu0 0
  %5817 = vmatpush1.bf16.msra.mxu0 0
  %5818 = vmatprep.subr.bf16.mxu0 0
  %5819 = vmatpush1.bf16.msra.mxu0 0
  %5820 = vmatprep.subr.bf16.mxu0 0
  %5821 = vmatpush1.bf16.msra.mxu0 0
  %5822 = vmatprep.subr.bf16.mxu0 0
  %5823 = vmatpush1.bf16.msra.mxu0 0
  %5824 = vmatprep.subr.bf16.mxu0 0
  %5825 = vmatpush1.bf16.msra.mxu0 0
  %5826 = vmatprep.subr.bf16.mxu0 0
  %5827 = vmatpush1.bf16.msra.mxu0 0
  %5828 = vmatprep.subr.bf16.mxu0 0
  %5829 = vmatpush1.bf16.msra.mxu0 0
  %5830 = vmatprep.subr.bf16.mxu0 0
  %5831 = vmatpush1.bf16.msra.mxu0 0
  %5832 = vmatprep.subr.bf16.mxu0 0
  %5833 = vmatpush1.bf16.msra.mxu0 0
  %5834 = vmatprep.subr.bf16.mxu0 0
  %5835 = vmatpush1.bf16.msra.mxu0 0
  %5836 = vmatprep.subr.bf16.mxu0 0
  %5837 = vmatpush1.bf16.msra.mxu0 0
  %5838 = vmatprep.mubr.bf16.mxu0 0
  %5839 = vmatmul.mubr.bf16.gmra.mrb[0].mxu0 %v5804
  %v5840 = vpop.f32.mrb[0].mxu0
  %v5841 = vadd.f32 0.0, %v5840
  %v5842 = vpop.f32.mrb[0].mxu0
  %v5843 = vpop.f32.mrb[0].mxu0
  %v5844 = vadd.f32 0.0, %v5843
  %v5845 = vpop.f32.mrb[0].mxu0
  %5846 = vdwg.mxu0
  %v5857 = vunpack.c.l.b16 %v5751
  %v5858 = vunpack.c.l.b16 %v5752
  %v5859 = vunpack.c.l.b16 %v5753
  %v5860 = vunpack.c.l.b16 %v5754
  %v5861 = vunpack.c.l.b16 %v5755
  %v5862 = vunpack.c.l.b16 %v5756
  %v5863 = vunpack.c.l.b16 %v5757
  %v5864 = vunpack.c.l.b16 %v5758
  %v5865 = vunpack.c.l.b16 %v5759
  %v5866 = vunpack.c.l.b16 %v5760
  %v5867 = vpack.c.b16 %v5858, %v5857
  %v5868 = vpack.c.b16 %v5860, %v5859
  %v5869 = vpack.c.b16 %v5862, %v5861
  %v5870 = vpack.c.b16 %v5864, %v5863
  %v5871 = vpack.c.b16 %v5866, %v5865
  %v5878 = vsel %vm5802, %v5746, 0
  %5880 = vmatprep.subr.bf16.mxu0 0
  %5881 = vmatpush1.bf16.msra.mxu0 %v5867
  %5882 = vmatprep.subr.bf16.mxu0 0
  %5883 = vmatpush1.bf16.msra.mxu0 %v5868
  %5884 = vmatprep.subr.bf16.mxu0 0
  %5885 = vmatpush1.bf16.msra.mxu0 %v5869
  %5886 = vmatprep.subr.bf16.mxu0 0
  %5887 = vmatpush1.bf16.msra.mxu0 %v5870
  %5888 = vmatprep.subr.bf16.mxu0 0
  %5889 = vmatpush1.bf16.msra.mxu0 %v5871
  %5890 = vmatprep.subr.bf16.mxu0 0
  %5891 = vmatpush1.bf16.msra.mxu0 0
  %5892 = vmatprep.subr.bf16.mxu0 0
  %5893 = vmatpush1.bf16.msra.mxu0 0
  %5894 = vmatprep.subr.bf16.mxu0 0
  %5895 = vmatpush1.bf16.msra.mxu0 0
  %5896 = vmatprep.subr.bf16.mxu0 0
  %5897 = vmatpush1.bf16.msra.mxu0 0
  %5898 = vmatprep.subr.bf16.mxu0 0
  %5899 = vmatpush1.bf16.msra.mxu0 0
  %5900 = vmatprep.subr.bf16.mxu0 0
  %5901 = vmatpush1.bf16.msra.mxu0 0
  %5902 = vmatprep.subr.bf16.mxu0 0
  %5903 = vmatpush1.bf16.msra.mxu0 0
  %5904 = vmatprep.subr.bf16.mxu0 0
  %5905 = vmatpush1.bf16.msra.mxu0 0
  %5906 = vmatprep.subr.bf16.mxu0 0
  %5907 = vmatpush1.bf16.msra.mxu0 0
  %5908 = vmatprep.subr.bf16.mxu0 0
  %5909 = vmatpush1.bf16.msra.mxu0 0
  %5910 = vmatprep.subr.bf16.mxu0 0
  %5911 = vmatpush1.bf16.msra.mxu0 0
  %5912 = vmatprep.mubr.bf16.mxu0 0
  %5913 = vmatmul.mubr.bf16.gmra.mrb[0].mxu0 %v5878
  %v5914 = vpop.f32.mrb[0].mxu0
  %v5915 = vadd.f32 %v5841, %v5914
  %v5916 = vpop.f32.mrb[0].mxu0
  %v5917 = vpop.f32.mrb[0].mxu0
  %v5918 = vadd.f32 %v5844, %v5917
  %v5919 = vpop.f32.mrb[0].mxu0
  %5920 = vdwg.mxu0
  %s5921 = scalar_lea.vmem %s3, 80
  %v5922 = vld [vmem:[%s5921] sm:$0xf]
  %v5923 = vld [vmem:[%s5921 + $0x4] sm:$0xf]
  %v5924 = vld [vmem:[%s5921 + $0x8] sm:$0xf]
  %v5925 = vld [vmem:[%s5921 + $0xc] sm:$0xf]
  %v5926 = vld [vmem:[%s5921 + $0x10] sm:$0xf]
  %v5927 = vld [vmem:[%s5921 + $0x14] sm:$0xf]
  %v5928 = vld [vmem:[%s5921 + $0x18] sm:$0xf]
  %v5929 = vld [vmem:[%s5921 + $0x1c] sm:$0xf]
  %v5930 = vld [vmem:[%s5921 + $0x20] sm:$0xf]
  %v5931 = vld [vmem:[%s5921 + $0x24] sm:$0xf]
  %v5942 = vunpack.c.l.b16 %v5922
  %v5943 = vunpack.c.l.b16 %v5923
  %v5944 = vunpack.c.l.b16 %v5924
  %v5945 = vunpack.c.l.b16 %v5925
  %v5946 = vunpack.c.l.b16 %v5926
  %v5947 = vunpack.c.l.b16 %v5927
  %v5948 = vunpack.c.l.b16 %v5928
  %v5949 = vunpack.c.l.b16 %v5929
  %v5950 = vunpack.c.l.b16 %v5930
  %v5951 = vunpack.c.l.b16 %v5931
  %v5952 = vpack.c.b16 %v5943, %v5942
  %v5953 = vpack.c.b16 %v5945, %v5944
  %v5954 = vpack.c.b16 %v5947, %v5946
  %v5955 = vpack.c.b16 %v5949, %v5948
  %v5956 = vpack.c.b16 %v5951, %v5950
  %v5963 = vsel %vm5802, %v5748, 0
  %5965 = vmatprep.subr.bf16.mxu0 0
  %5966 = vmatpush1.bf16.msra.mxu0 %v5952
  %5967 = vmatprep.subr.bf16.mxu0 0
  %5968 = vmatpush1.bf16.msra.mxu0 %v5953
  %5969 = vmatprep.subr.bf16.mxu0 0
  %5970 = vmatpush1.bf16.msra.mxu0 %v5954
  %5971 = vmatprep.subr.bf16.mxu0 0
  %5972 = vmatpush1.bf16.msra.mxu0 %v5955
  %5973 = vmatprep.subr.bf16.mxu0 0
  %5974 = vmatpush1.bf16.msra.mxu0 %v5956
  %5975 = vmatprep.subr.bf16.mxu0 0
  %5976 = vmatpush1.bf16.msra.mxu0 0
  %5977 = vmatprep.subr.bf16.mxu0 0
  %5978 = vmatpush1.bf16.msra.mxu0 0
  %5979 = vmatprep.subr.bf16.mxu0 0
  %5980 = vmatpush1.bf16.msra.mxu0 0
  %5981 = vmatprep.subr.bf16.mxu0 0
  %5982 = vmatpush1.bf16.msra.mxu0 0
  %5983 = vmatprep.subr.bf16.mxu0 0
  %5984 = vmatpush1.bf16.msra.mxu0 0
  %5985 = vmatprep.subr.bf16.mxu0 0
  %5986 = vmatpush1.bf16.msra.mxu0 0
  %5987 = vmatprep.subr.bf16.mxu0 0
  %5988 = vmatpush1.bf16.msra.mxu0 0
  %5989 = vmatprep.subr.bf16.mxu0 0
  %5990 = vmatpush1.bf16.msra.mxu0 0
  %5991 = vmatprep.subr.bf16.mxu0 0
  %5992 = vmatpush1.bf16.msra.mxu0 0
  %5993 = vmatprep.subr.bf16.mxu0 0
  %5994 = vmatpush1.bf16.msra.mxu0 0
  %5995 = vmatprep.subr.bf16.mxu0 0
  %5996 = vmatpush1.bf16.msra.mxu0 0
  %5997 = vmatprep.mubr.bf16.mxu0 0
  %5998 = vmatmul.mubr.bf16.gmra.mrb[0].mxu0 %v5963
  %v5999 = vpop.f32.mrb[0].mxu0
  %v6000 = vadd.f32 0.0, %v5999
  %v6001 = vpop.f32.mrb[0].mxu0
  %v6002 = vpop.f32.mrb[0].mxu0
  %v6003 = vadd.f32 0.0, %v6002
  %v6004 = vpop.f32.mrb[0].mxu0
  %6005 = vdwg.mxu0
  %v6006 = vadd.f32 %v5915, %v6000
  %v6007 = vadd.f32 %v5918, %v6003
  %s6008 = scalar_lea.vmem %s3, 120
  %v6009 = vld [vmem:[%s6008] sm:$0xf]
  %v6010 = vld [vmem:[%s6008 + $0x4] sm:$0xf]
  %v6011 = vld [vmem:[%s6008 + $0x8] sm:$0xf]
  %v6012 = vld [vmem:[%s6008 + $0xc] sm:$0xf]
  %v6013 = vld [vmem:[%s6008 + $0x10] sm:$0xf]
  %v6014 = vld [vmem:[%s6008 + $0x14] sm:$0xf]
  %v6015 = vld [vmem:[%s6008 + $0x18] sm:$0xf]
  %v6016 = vld [vmem:[%s6008 + $0x1c] sm:$0xf]
  %v6017 = vld [vmem:[%s6008 + $0x20] sm:$0xf]
  %v6018 = vld [vmem:[%s6008 + $0x24] sm:$0xf]
  %v6029 = vunpack.c.l.b16 %v6009
  %v6030 = vunpack.c.l.b16 %v6010
  %v6031 = vunpack.c.l.b16 %v6011
  %v6032 = vunpack.c.l.b16 %v6012
  %v6033 = vunpack.c.l.b16 %v6013
  %v6034 = vunpack.c.l.b16 %v6014
  %v6035 = vunpack.c.l.b16 %v6015
  %v6036 = vunpack.c.l.b16 %v6016
  %v6037 = vunpack.c.l.b16 %v6017
  %v6038 = vunpack.c.l.b16 %v6018
  %v6039 = vpack.c.b16 %v6030, %v6029
  %v6040 = vpack.c.b16 %v6032, %v6031
  %v6041 = vpack.c.b16 %v6034, %v6033
  %v6042 = vpack.c.b16 %v6036, %v6035
  %v6043 = vpack.c.b16 %v6038, %v6037
  %v6050 = vsel %vm5802, %v5749, 0
  %6052 = vmatprep.subr.bf16.mxu0 0
  %6053 = vmatpush1.bf16.msra.mxu0 %v6039
  %6054 = vmatprep.subr.bf16.mxu0 0
  %6055 = vmatpush1.bf16.msra.mxu0 %v6040
  %6056 = vmatprep.subr.bf16.mxu0 0
  %6057 = vmatpush1.bf16.msra.mxu0 %v6041
  %6058 = vmatprep.subr.bf16.mxu0 0
  %6059 = vmatpush1.bf16.msra.mxu0 %v6042
  %6060 = vmatprep.subr.bf16.mxu0 0
  %6061 = vmatpush1.bf16.msra.mxu0 %v6043
  %6062 = vmatprep.subr.bf16.mxu0 0
  %6063 = vmatpush1.bf16.msra.mxu0 0
  %6064 = vmatprep.subr.bf16.mxu0 0
  %6065 = vmatpush1.bf16.msra.mxu0 0
  %6066 = vmatprep.subr.bf16.mxu0 0
  %6067 = vmatpush1.bf16.msra.mxu0 0
  %6068 = vmatprep.subr.bf16.mxu0 0
  %6069 = vmatpush1.bf16.msra.mxu0 0
  %6070 = vmatprep.subr.bf16.mxu0 0
  %6071 = vmatpush1.bf16.msra.mxu0 0
  %6072 = vmatprep.subr.bf16.mxu0 0
  %6073 = vmatpush1.bf16.msra.mxu0 0
  %6074 = vmatprep.subr.bf16.mxu0 0
  %6075 = vmatpush1.bf16.msra.mxu0 0
  %6076 = vmatprep.subr.bf16.mxu0 0
  %6077 = vmatpush1.bf16.msra.mxu0 0
  %6078 = vmatprep.subr.bf16.mxu0 0
  %6079 = vmatpush1.bf16.msra.mxu0 0
  %6080 = vmatprep.subr.bf16.mxu0 0
  %6081 = vmatpush1.bf16.msra.mxu0 0
  %6082 = vmatprep.subr.bf16.mxu0 0
  %6083 = vmatpush1.bf16.msra.mxu0 0
  %6084 = vmatprep.mubr.bf16.mxu0 0
  %6085 = vmatmul.mubr.bf16.gmra.mrb[0].mxu0 %v6050
  %v6086 = vpop.f32.mrb[0].mxu0
  %v6087 = vadd.f32 0.0, %v6086
  %v6088 = vpop.f32.mrb[0].mxu0
  %v6089 = vpop.f32.mrb[0].mxu0
  %v6090 = vadd.f32 0.0, %v6089
  %v6091 = vpop.f32.mrb[0].mxu0
  %6092 = vdwg.mxu0
  %v6093 = vadd.f32 %v6006, %v6087
  %v6094 = vadd.f32 %v6007, %v6090
  %s6095 = scalar_lea.vmem %s3, 160
  %v6096 = vld [vmem:[%s6095] sm:$0xf]
  %v6097 = vld [vmem:[%s6095 + $0x4] sm:$0xf]
  %v6098 = vld [vmem:[%s6095 + $0x8] sm:$0xf]
  %v6099 = vld [vmem:[%s6095 + $0xc] sm:$0xf]
  %v6100 = vld [vmem:[%s6095 + $0x10] sm:$0xf]
  %v6101 = vld [vmem:[%s6095 + $0x14] sm:$0xf]
  %v6102 = vld [vmem:[%s6095 + $0x18] sm:$0xf]
  %v6103 = vld [vmem:[%s6095 + $0x1c] sm:$0xf]
  %v6104 = vld [vmem:[%s6095 + $0x20] sm:$0xf]
  %v6105 = vld [vmem:[%s6095 + $0x24] sm:$0xf]
  %v6116 = vunpack.c.l.b16 %v6096
  %v6117 = vunpack.c.l.b16 %v6097
  %v6118 = vunpack.c.l.b16 %v6098
  %v6119 = vunpack.c.l.b16 %v6099
  %v6120 = vunpack.c.l.b16 %v6100
  %v6121 = vunpack.c.l.b16 %v6101
  %v6122 = vunpack.c.l.b16 %v6102
  %v6123 = vunpack.c.l.b16 %v6103
  %v6124 = vunpack.c.l.b16 %v6104
  %v6125 = vunpack.c.l.b16 %v6105
  %v6126 = vpack.c.b16 %v6117, %v6116
  %v6127 = vpack.c.b16 %v6119, %v6118
  %v6128 = vpack.c.b16 %v6121, %v6120
  %v6129 = vpack.c.b16 %v6123, %v6122
  %v6130 = vpack.c.b16 %v6125, %v6124
  %v6137 = vsel %vm5802, %v5750, 0
  %6139 = vmatprep.subr.bf16.mxu0 0
  %6140 = vmatpush1.bf16.msra.mxu0 %v6126
  %6141 = vmatprep.subr.bf16.mxu0 0
  %6142 = vmatpush1.bf16.msra.mxu0 %v6127
  %6143 = vmatprep.subr.bf16.mxu0 0
  %6144 = vmatpush1.bf16.msra.mxu0 %v6128
  %6145 = vmatprep.subr.bf16.mxu0 0
  %6146 = vmatpush1.bf16.msra.mxu0 %v6129
  %6147 = vmatprep.subr.bf16.mxu0 0
  %6148 = vmatpush1.bf16.msra.mxu0 %v6130
  %6149 = vmatprep.subr.bf16.mxu0 0
  %6150 = vmatpush1.bf16.msra.mxu0 0
  %6151 = vmatprep.subr.bf16.mxu0 0
  %6152 = vmatpush1.bf16.msra.mxu0 0
  %6153 = vmatprep.subr.bf16.mxu0 0
  %6154 = vmatpush1.bf16.msra.mxu0 0
  %6155 = vmatprep.subr.bf16.mxu0 0
  %6156 = vmatpush1.bf16.msra.mxu0 0
  %6157 = vmatprep.subr.bf16.mxu0 0
  %6158 = vmatpush1.bf16.msra.mxu0 0
  %6159 = vmatprep.subr.bf16.mxu0 0
  %6160 = vmatpush1.bf16.msra.mxu0 0
  %6161 = vmatprep.subr.bf16.mxu0 0
  %6162 = vmatpush1.bf16.msra.mxu0 0
  %6163 = vmatprep.subr.bf16.mxu0 0
  %6164 = vmatpush1.bf16.msra.mxu0 0
  %6165 = vmatprep.subr.bf16.mxu0 0
  %6166 = vmatpush1.bf16.msra.mxu0 0
  %6167 = vmatprep.subr.bf16.mxu0 0
  %6168 = vmatpush1.bf16.msra.mxu0 0
  %6169 = vmatprep.subr.bf16.mxu0 0
  %6170 = vmatpush1.bf16.msra.mxu0 0
  %6171 = vmatprep.mubr.bf16.mxu0 0
  %6172 = vmatmul.mubr.bf16.gmra.mrb[0].mxu0 %v6137
  %v6173 = vpop.f32.mrb[0].mxu0
  %v6174 = vadd.f32 0.0, %v6173
  %v6175 = vpop.f32.mrb[0].mxu0
  %v6176 = vpop.f32.mrb[0].mxu0
  %v6177 = vadd.f32 0.0, %v6176
  %v6178 = vpop.f32.mrb[0].mxu0
  %6179 = vdwg.mxu0
  %v6180 = vadd.f32 %v6093, %v6174
  %v6181 = vadd.f32 %v6094, %v6177
  %v6182 = vld [vmem:[%s8] sm:$0x1]
  %v6184 = vlaneseq
  %v6185 = vshrl.u32 %v6184, 7
  %v6186 = vsub.s32 0, %v6185
  %v6187 = vrot.slane %v6182, %v6186
  %v6189 = vadd.f32 %v6180, %v6187
  %v6190 = vadd.f32 %v6181, %v6187
  %v6191 = vmax.f32 %v6189, 0.0
  %v6192 = vmax.f32 %v6190, 0.0
  %v6193 = vpack.c.bf16 %v6192, %v6191
  %v6194 = vld [vmem:[%s4] sm:$0xf]
  %v6195 = vld [vmem:[%s4 + $0x4] sm:$0xf]
  %v6196 = vld [vmem:[%s4 + $0x8] sm:$0xf]
  %v6197 = vld [vmem:[%s4 + $0xc] sm:$0xf]
  %v6198 = vld [vmem:[%s4 + $0x10] sm:$0xf]
  %v6199 = vld [vmem:[%s4 + $0x14] sm:$0xf]
  %v6200 = vld [vmem:[%s4 + $0x18] sm:$0xf]
  %v6201 = vld [vmem:[%s4 + $0x1c] sm:$0xf]
  %v6202 = vld [vmem:[%s4 + $0x20] sm:$0xf]
  %v6203 = vld [vmem:[%s4 + $0x24] sm:$0xf]
  %v6204 = vld [vmem:[%s4 + $0x28] sm:$0xf]
  %v6205 = vld [vmem:[%s4 + $0x2c] sm:$0xf]
  %v6206 = vld [vmem:[%s4 + $0x30] sm:$0xf]
  %v6207 = vld [vmem:[%s4 + $0x34] sm:$0xf]
  %v6208 = vld [vmem:[%s4 + $0x38] sm:$0xf]
  %v6209 = vld [vmem:[%s4 + $0x3c] sm:$0xf]
  %v6210 = vld [vmem:[%s9] sm:$0x1]
  %v6212 = vlaneseq
  %v6213 = vshrl.u32 %v6212, 7
  %v6214 = vsub.s32 0, %v6213
  %v6215 = vrot.slane %v6210, %v6214
  %v6233 = vunpack.c.l.b16 %v6194
  %v6234 = vunpack.c.l.b16 %v6195
  %v6235 = vunpack.c.l.b16 %v6196
  %v6236 = vunpack.c.l.b16 %v6197
  %v6237 = vunpack.c.l.b16 %v6198
  %v6238 = vunpack.c.l.b16 %v6199
  %v6239 = vunpack.c.l.b16 %v6200
  %v6240 = vunpack.c.l.b16 %v6201
  %v6241 = vunpack.c.l.b16 %v6202
  %v6242 = vunpack.c.l.b16 %v6203
  %v6243 = vunpack.c.l.b16 %v6204
  %v6244 = vunpack.c.l.b16 %v6205
  %v6245 = vunpack.c.l.b16 %v6206
  %v6246 = vunpack.c.l.b16 %v6207
  %v6247 = vunpack.c.l.b16 %v6208
  %v6248 = vunpack.c.l.b16 %v6209
  %v6249 = vpack.c.b16 %v6234, %v6233
  %v6250 = vpack.c.b16 %v6236, %v6235
  %v6251 = vpack.c.b16 %v6238, %v6237
  %v6252 = vpack.c.b16 %v6240, %v6239
  %v6253 = vpack.c.b16 %v6242, %v6241
  %v6254 = vpack.c.b16 %v6244, %v6243
  %v6255 = vpack.c.b16 %v6246, %v6245
  %v6256 = vpack.c.b16 %v6248, %v6247
  %6265 = vmatprep.subr.bf16.mxu0 0
  %6266 = vmatpush1.bf16.msra.mxu0 %v6249
  %6267 = vmatprep.subr.bf16.mxu0 0
  %6268 = vmatpush1.bf16.msra.mxu0 %v6250
  %6269 = vmatprep.subr.bf16.mxu0 0
  %6270 = vmatpush1.bf16.msra.mxu0 %v6251
  %6271 = vmatprep.subr.bf16.mxu0 0
  %6272 = vmatpush1.bf16.msra.mxu0 %v6252
  %6273 = vmatprep.subr.bf16.mxu0 0
  %6274 = vmatpush1.bf16.msra.mxu0 %v6253
  %6275 = vmatprep.subr.bf16.mxu0 0
  %6276 = vmatpush1.bf16.msra.mxu0 %v6254
  %6277 = vmatprep.subr.bf16.mxu0 0
  %6278 = vmatpush1.bf16.msra.mxu0 %v6255
  %6279 = vmatprep.subr.bf16.mxu0 0
  %6280 = vmatpush1.bf16.msra.mxu0 %v6256
  %6281 = vmatprep.subr.bf16.mxu0 0
  %6282 = vmatpush1.bf16.msra.mxu0 0
  %6283 = vmatprep.subr.bf16.mxu0 0
  %6284 = vmatpush1.bf16.msra.mxu0 0
  %6285 = vmatprep.subr.bf16.mxu0 0
  %6286 = vmatpush1.bf16.msra.mxu0 0
  %6287 = vmatprep.subr.bf16.mxu0 0
  %6288 = vmatpush1.bf16.msra.mxu0 0
  %6289 = vmatprep.subr.bf16.mxu0 0
  %6290 = vmatpush1.bf16.msra.mxu0 0
  %6291 = vmatprep.subr.bf16.mxu0 0
  %6292 = vmatpush1.bf16.msra.mxu0 0
  %6293 = vmatprep.subr.bf16.mxu0 0
  %6294 = vmatpush1.bf16.msra.mxu0 0
  %6295 = vmatprep.subr.bf16.mxu0 0
  %6296 = vmatpush1.bf16.msra.mxu0 0
  %6297 = vmatprep.mubr.bf16.mxu0 0
  %6298 = vmatmul.mubr.bf16.gmra.mrb[0].mxu0 %v6193
  %v6299 = vpop.f32.mrb[0].mxu0
  %v6300 = vadd.f32 %v6215, %v6299
  %v6301 = vpop.f32.mrb[0].mxu0
  %v6302 = vpop.f32.mrb[0].mxu0
  %v6303 = vadd.f32 %v6215, %v6302
  %v6304 = vpop.f32.mrb[0].mxu0
  %6305 = vdwg.mxu0
  %v6306 = vmax.f32 %v6300, 0.0
  %v6307 = vmax.f32 %v6303, 0.0
  %v6308 = vpack.c.bf16 %v6307, %v6306
  %v6309 = vld [vmem:[%s5] sm:$0xf]
  %v6310 = vld [vmem:[%s5 + $0x4] sm:$0xf]
  %v6311 = vld [vmem:[%s5 + $0x8] sm:$0xf]
  %v6312 = vld [vmem:[%s5 + $0xc] sm:$0xf]
  %v6313 = vld [vmem:[%s5 + $0x10] sm:$0xf]
  %v6314 = vld [vmem:[%s5 + $0x14] sm:$0xf]
  %v6315 = vld [vmem:[%s5 + $0x18] sm:$0xf]
  %v6316 = vld [vmem:[%s5 + $0x1c] sm:$0xf]
  %v6317 = vld [vmem:[%s5 + $0x20] sm:$0xf]
  %v6318 = vld [vmem:[%s5 + $0x24] sm:$0xf]
  %v6319 = vld [vmem:[%s5 + $0x28] sm:$0xf]
  %v6320 = vld [vmem:[%s5 + $0x2c] sm:$0xf]
  %v6321 = vld [vmem:[%s5 + $0x30] sm:$0xf]
  %v6322 = vld [vmem:[%s5 + $0x34] sm:$0xf]
  %v6323 = vld [vmem:[%s5 + $0x38] sm:$0xf]
  %v6324 = vld [vmem:[%s5 + $0x3c] sm:$0xf]
  %v6325 = vld [vmem:[%s10] sm:$0x1]
  %v6327 = vlaneseq
  %v6328 = vshrl.u32 %v6327, 7
  %v6329 = vsub.s32 0, %v6328
  %v6330 = vrot.slane %v6325, %v6329
  %v6348 = vunpack.c.l.b16 %v6309
  %v6349 = vunpack.c.l.b16 %v6310
  %v6350 = vunpack.c.l.b16 %v6311
  %v6351 = vunpack.c.l.b16 %v6312
  %v6352 = vunpack.c.l.b16 %v6313
  %v6353 = vunpack.c.l.b16 %v6314
  %v6354 = vunpack.c.l.b16 %v6315
  %v6355 = vunpack.c.l.b16 %v6316
  %v6356 = vunpack.c.l.b16 %v6317
  %v6357 = vunpack.c.l.b16 %v6318
  %v6358 = vunpack.c.l.b16 %v6319
  %v6359 = vunpack.c.l.b16 %v6320
  %v6360 = vunpack.c.l.b16 %v6321
  %v6361 = vunpack.c.l.b16 %v6322
  %v6362 = vunpack.c.l.b16 %v6323
  %v6363 = vunpack.c.l.b16 %v6324
  %v6364 = vpack.c.b16 %v6349, %v6348
  %v6365 = vpack.c.b16 %v6351, %v6350
  %v6366 = vpack.c.b16 %v6353, %v6352
  %v6367 = vpack.c.b16 %v6355, %v6354
  %v6368 = vpack.c.b16 %v6357, %v6356
  %v6369 = vpack.c.b16 %v6359, %v6358
  %v6370 = vpack.c.b16 %v6361, %v6360
  %v6371 = vpack.c.b16 %v6363, %v6362
  %6380 = vmatprep.subr.bf16.mxu0 0
  %6381 = vmatpush1.bf16.msra.mxu0 %v6364
  %6382 = vmatprep.subr.bf16.mxu0 0
  %6383 = vmatpush1.bf16.msra.mxu0 %v6365
  %6384 = vmatprep.subr.bf16.mxu0 0
  %6385 = vmatpush1.bf16.msra.mxu0 %v6366
  %6386 = vmatprep.subr.bf16.mxu0 0
  %6387 = vmatpush1.bf16.msra.mxu0 %v6367
  %6388 = vmatprep.subr.bf16.mxu0 0
  %6389 = vmatpush1.bf16.msra.mxu0 %v6368
  %6390 = vmatprep.subr.bf16.mxu0 0
  %6391 = vmatpush1.bf16.msra.mxu0 %v6369
  %6392 = vmatprep.subr.bf16.mxu0 0
  %6393 = vmatpush1.bf16.msra.mxu0 %v6370
  %6394 = vmatprep.subr.bf16.mxu0 0
  %6395 = vmatpush1.bf16.msra.mxu0 %v6371
  %6396 = vmatprep.subr.bf16.mxu0 0
  %6397 = vmatpush1.bf16.msra.mxu0 0
  %6398 = vmatprep.subr.bf16.mxu0 0
  %6399 = vmatpush1.bf16.msra.mxu0 0
  %6400 = vmatprep.subr.bf16.mxu0 0
  %6401 = vmatpush1.bf16.msra.mxu0 0
  %6402 = vmatprep.subr.bf16.mxu0 0
  %6403 = vmatpush1.bf16.msra.mxu0 0
  %6404 = vmatprep.subr.bf16.mxu0 0
  %6405 = vmatpush1.bf16.msra.mxu0 0
  %6406 = vmatprep.subr.bf16.mxu0 0
  %6407 = vmatpush1.bf16.msra.mxu0 0
  %6408 = vmatprep.subr.bf16.mxu0 0
  %6409 = vmatpush1.bf16.msra.mxu0 0
  %6410 = vmatprep.subr.bf16.mxu0 0
  %6411 = vmatpush1.bf16.msra.mxu0 0
  %6412 = vmatprep.mubr.bf16.mxu0 0
  %6413 = vmatmul.mubr.bf16.gmra.mrb[0].mxu0 %v6308
  %v6414 = vpop.f32.mrb[0].mxu0
  %v6415 = vadd.f32 %v6330, %v6414
  %v6416 = vpop.f32.mrb[0].mxu0
  %v6417 = vpop.f32.mrb[0].mxu0
  %v6418 = vadd.f32 %v6330, %v6417
  %v6419 = vpop.f32.mrb[0].mxu0
  %6420 = vdwg.mxu0
  %6421 = vst [vmem:[%s11] sm:$0xff] %v6415
  %6422 = vst [vmem:[%s11 + $0x8] sm:$0xff] %v6418
  // Predicated region
  $region46: #{lenet_forward.1} parent=0 // pred_check
    _
  $region47: #{lenet_forward.1} parent=0 // pred_check_branch
    %6424 = sbr.rel (0) target = $region49
  $region48: #{lenet_forward.1} parent=0 // pred_region
    _
  $region49: #{lenet_forward.1} parent=0 // pred_fallthru
    _
  // Predicated region
  $region50: #{lenet_forward.1} parent=0 // pred_check
    _
  $region51: #{lenet_forward.1} parent=0 // pred_check_branch
    %6426 = sbr.rel (0) target = $region53
  $region52: #{lenet_forward.1} parent=0 // pred_region
    _
  $region53: #{lenet_forward.1} parent=0 // pred_fallthru
    _

</llo_original>
